<compile_context>
chip_gen: v6e
topology: v6e:2x2x1
jax: 0.10.0
libtpu: 0.0.40
codegen_flags: <defaults>
</compile_context>

<pallas_src>
import functools

import numpy as np

import jax
import jax.numpy as jnp
from jax.experimental import pallas as pl
from jax.experimental.pallas import tpu as pltpu


_LANE = 128          # channel padding (lane width)
_SUB = 16            # row padding so bf16 operands are (16,128)-tile aligned
_TM_CONV1 = 128      # conv1 M tile: 4 full tiles at 64x64 input, 2 per TC on v7x
_BN_EPS = 1e-5


def _round_up(x, m):
    return (x + m - 1) // m * m


# ============================================================================
# Kernel 1: conv1 (+ folded BN + ReLU) as a grid-tiled fused matmul
# ============================================================================
def _conv1_kernel(a_ref, w_ref, b_ref, o_ref):
    acc = jnp.dot(a_ref[...], w_ref[...], preferred_element_type=jnp.float32)
    o_ref[...] = jnp.maximum(acc + b_ref[...], 0.0).astype(o_ref.dtype)


def _conv1_call(cols, w, b, *, tm=_TM_CONV1):
    m, k = cols.shape
    _, cp = w.shape
    assert m % tm == 0                       # rows pre-padded -> every tile full
    return pl.pallas_call(
        _conv1_kernel,
        out_shape=jax.ShapeDtypeStruct((m, cp), jnp.bfloat16),
        grid=(m // tm,),
        in_specs=[
            pl.BlockSpec((tm, k), lambda i: (i, 0)),    # im2col rows, tiled on M
            pl.BlockSpec((k, cp), lambda i: (0, 0)),    # folded weight, resident
            pl.BlockSpec((1, cp), lambda i: (0, 0)),    # folded bias, resident
        ],
        out_specs=pl.BlockSpec((tm, cp), lambda i: (i, 0)),
        compiler_params=pltpu.CompilerParams(
            dimension_semantics=("parallel",),          # megacore split on v7x
            vmem_limit_bytes=2 * 1024 * 1024,           # right-sized (<0.2 MiB used)
        ),
    )(cols, w, b)


# ============================================================================
# Kernel 2: fused tail  conv2 -> conv3 -> conv4 -> avg-pool -> FC1/2/3
# ============================================================================
def _tail_kernel(a1_ref,
                 s2_ref, w2_ref, b2_ref,
                 s3_ref, w3_ref, b3_ref,
                 s4_ref, w4_ref, b4_ref,
                 wl1_ref, bl1_ref, wl2_ref, bl2_ref, wl3_ref, bl3_ref,
                 o_ref, *, batch, sp4):
    def conv_bn_relu(a, s_ref, w_ref, b_ref):
        # im2col-as-matmul: for each of the 9 taps, a constant one-hot
        # selection matrix gathers that tap's input rows (MXU dot), then the
        # folded per-tap weight is applied; accumulation stays f32.
        ntap, m_out, _ = s_ref.shape
        cout = w_ref.shape[2]
        acc = jnp.zeros((m_out, cout), jnp.float32)
        for t in range(ntap):
            rows = jnp.dot(s_ref[t], a, preferred_element_type=jnp.float32)
            rows = rows.astype(jnp.bfloat16)            # exact: pure row gather
            acc = acc + jnp.dot(rows, w_ref[t],
                                preferred_element_type=jnp.float32)
        return jnp.maximum(acc + b_ref[...], 0.0).astype(jnp.bfloat16)

    a2 = conv_bn_relu(a1_ref[...], s2_ref, w2_ref, b2_ref)   # (M2p, 128)
    a3 = conv_bn_relu(a2, s3_ref, w3_ref, b3_ref)            # (M3p, 128)
    a4 = conv_bn_relu(a3, s4_ref, w4_ref, b4_ref)            # (M4p, 128)

    # Global average pool (torch.mean over W then H).  a4 rows are (n, oh, ow);
    # with a 64x64 input the conv4 spatial extent is 1x1 so this is a row pick.
    if sp4 == 1:
        feat = a4[:batch, :].astype(jnp.float32)
    else:
        parts = [jnp.mean(a4[n * sp4:(n + 1) * sp4, :].astype(jnp.float32),
                          axis=0, keepdims=True) for n in range(batch)]
        feat = jnp.concatenate(parts, axis=0)

    h = jnp.dot(feat.astype(jnp.bfloat16), wl1_ref[...],
                preferred_element_type=jnp.float32)
    h = jnp.maximum(h + bl1_ref[...], 0.0)
    h = jnp.dot(h.astype(jnp.bfloat16), wl2_ref[...],
                preferred_element_type=jnp.float32)
    h = jnp.maximum(h + bl2_ref[...], 0.0)
    # TODO(synk): nn.Dropout(0.25) is treated as eval-mode identity (no RNG mask).
    h = jnp.dot(h.astype(jnp.bfloat16), wl3_ref[...],
                preferred_element_type=jnp.float32)
    o_ref[...] = jax.nn.sigmoid(h + bl3_ref[...]).astype(o_ref.dtype)


def _tail_call(a1, prep, *, batch, sp4):
    d3p = prep["wl3"].shape[1]
    vmem = pl.BlockSpec(memory_space=pltpu.MemorySpace.VMEM)
    return pl.pallas_call(
        functools.partial(_tail_kernel, batch=batch, sp4=sp4),
        out_shape=jax.ShapeDtypeStruct((batch, d3p), jnp.float32),
        in_specs=[vmem] * 16,
        out_specs=vmem,
        compiler_params=pltpu.CompilerParams(
            vmem_limit_bytes=8 * 1024 * 1024,           # ~2.5 MiB actually resident
        ),
    )(a1,
      prep["s2"], prep["w2"], prep["b2"],
      prep["s3"], prep["w3"], prep["b3"],
      prep["s4"], prep["w4"], prep["b4"],
      prep["wl1"], prep["bl1"], prep["wl2"], prep["bl2"],
      prep["wl3"], prep["bl3"])


# ============================================================================
# One-time parameter folding / padding / casting + selection-matrix constants
# ============================================================================
def _make_sel(batch, hin, win, hout, wout, stride, m_in_pad, m_out_pad):
    """One-hot row-selection matrices for a 3x3/stride-`stride` conv window."""
    sel = np.zeros((9, m_out_pad, m_in_pad), np.float32)
    for di in range(3):
        for dj in range(3):
            t = di * 3 + dj
            for b in range(batch):
                for oh in range(hout):
                    for ow in range(wout):
                        r = (b * hout + oh) * wout + ow
                        src = (b * hin + stride * oh + di) * win + (stride * ow + dj)
                        sel[t, r, src] = 1.0
    return jnp.asarray(sel, dtype=jnp.bfloat16)


def prepare_params(params, *, batch, in_hw, eps=_BN_EPS):
    """Fold BN into conv weights, pad everything to 128 lanes, cast to bf16.

    Done once, outside the per-call forward pass.
    """
    H, W = in_hw

    # ---- conv1 (8x8 / stride 4) in space-to-depth form: K order (hc,wc,ha,wb,ci)
    w1, b1, g1, be1, rm1, rv1 = params["conv1"]
    cout1, cin1, _, _ = w1.shape
    c1p = _round_up(cout1, _LANE)
    s1 = g1 / jnp.sqrt(rv1 + eps)
    wk = jnp.transpose(w1, (2, 3, 1, 0))                   # (8, 8, cin, cout)
    wk = wk.reshape(2, 4, 2, 4, cin1, cout1)               # (hc, ha, wc, wb, ci, co)
    wk = jnp.transpose(wk, (0, 2, 1, 3, 4, 5))             # (hc, wc, ha, wb, ci, co)
    wk = wk.reshape(64 * cin1, cout1) * s1[None, :]        # BN scale folded
    wk = jnp.pad(wk, ((0, 0), (0, c1p - cout1)))
    bias1 = (b1 - rm1) * s1 + be1
    bias1 = jnp.pad(bias1, (0, c1p - cout1)).reshape(1, c1p)

    # ---- conv2/3/4: per-tap (9, cin_pad, cout_pad) folded weights
    def fold3x3(key, cinp, coutp):
        w, b, g, be, rm, rv = params[key]
        cout, cin, kh, kw = w.shape
        s = g / jnp.sqrt(rv + eps)
        wt = jnp.transpose(w, (2, 3, 1, 0)).reshape(kh * kw, cin, cout)
        wt = wt * s[None, None, :]                          # BN scale folded
        wt = jnp.pad(wt, ((0, 0), (0, cinp - cin), (0, coutp - cout)))
        bb = (b - rm) * s + be
        bb = jnp.pad(bb, (0, coutp - cout)).reshape(1, coutp)
        return wt.astype(jnp.bfloat16), bb.astype(jnp.float32)

    c2p = _round_up(params["conv2"][0].shape[0], _LANE)
    c3p = _round_up(params["conv3"][0].shape[0], _LANE)
    c4p = _round_up(params["conv4"][0].shape[0], _LANE)
    w2, b2 = fold3x3("conv2", c1p, c2p)
    w3, b3 = fold3x3("conv3", c2p, c3p)
    w4, b4 = fold3x3("conv4", c3p, c4p)

    # ---- FC weights: pad K and N to 128-lane multiples (zeros -> exact)
    wl1, bl1 = params["lin1"]
    wl2, bl2 = params["lin2"]
    wl3, bl3 = params["lin3"]
    d1p = _round_up(wl1.shape[1], _LANE)
    d2p = _round_up(wl2.shape[1], _LANE)
    d3p = _round_up(wl3.shape[1], _LANE)
    wl1p = jnp.pad(wl1, ((0, c4p - wl1.shape[0]), (0, d1p - wl1.shape[1])))
    bl1p = jnp.pad(bl1, (0, d1p - bl1.shape[0])).reshape(1, d1p)
    wl2p = jnp.pad(wl2, ((0, d1p - wl2.shape[0]), (0, d2p - wl2.shape[1])))
    bl2p = jnp.pad(bl2, (0, d2p - bl2.shape[0])).reshape(1, d2p)
    wl3p = jnp.pad(wl3, ((0, d2p - wl3.shape[0]), (0, d3p - wl3.shape[1])))
    bl3p = jnp.pad(bl3, (0, d3p - bl3.shape[0])).reshape(1, d3p)

    # ---- spatial bookkeeping + one-hot gather matrices (constants)
    ho1, wo1 = (H - 8) // 4 + 1, (W - 8) // 4 + 1
    ho2, wo2 = (ho1 - 3) // 2 + 1, (wo1 - 3) // 2 + 1
    ho3, wo3 = (ho2 - 3) // 2 + 1, (wo2 - 3) // 2 + 1
    ho4, wo4 = (ho3 - 3) // 2 + 1, (wo3 - 3) // 2 + 1
    m1p = _round_up(batch * ho1 * wo1, _TM_CONV1)
    m2p = _round_up(batch * ho2 * wo2, _SUB)
    m3p = _round_up(batch * ho3 * wo3, _SUB)
    m4p = _round_up(batch * ho4 * wo4, _SUB)
    s2 = _make_sel(batch, ho1, wo1, ho2, wo2, 2, m1p, m2p)
    s3 = _make_sel(batch, ho2, wo2, ho3, wo3, 2, m2p, m3p)
    s4 = _make_sel(batch, ho3, wo3, ho4, wo4, 2, m3p, m4p)

    return {
        "w1": wk.astype(jnp.bfloat16), "b1": bias1.astype(jnp.float32),
        "w2": w2, "b2": b2, "w3": w3, "b3": b3, "w4": w4, "b4": b4,
        "s2": s2, "s3": s3, "s4": s4,
        "wl1": wl1p.astype(jnp.bfloat16), "bl1": bl1p.astype(jnp.float32),
        "wl2": wl2p.astype(jnp.bfloat16), "bl2": bl2p.astype(jnp.float32),
        "wl3": wl3p.astype(jnp.bfloat16), "bl3": bl3p.astype(jnp.float32),
    }


# ============================================================================
# Full forward pass (mirrors CNN4_FC3.forward, eval mode)
# ============================================================================
def cnn4_fc3_forward(prep, x_nchw, *, output_dim):
    n, cin, H, W = x_nchw.shape
    assert H % 4 == 0 and W % 4 == 0 and H >= 8 and W >= 8
    ho1, wo1 = (H - 8) // 4 + 1, (W - 8) // 4 + 1
    ho2, wo2 = (ho1 - 3) // 2 + 1, (wo1 - 3) // 2 + 1
    ho3, wo3 = (ho2 - 3) // 2 + 1, (wo2 - 3) // 2 + 1
    ho4, wo4 = (ho3 - 3) // 2 + 1, (wo3 - 3) // 2 + 1

    # conv1 im2col via 4x4 space-to-depth: 4 unit-stride slices instead of 64.
    x = jnp.transpose(x_nchw, (0, 2, 3, 1)).astype(jnp.bfloat16)   # NCHW->NHWC once
    x4 = x.reshape(n, H // 4, 4, W // 4, 4, cin)
    x4 = jnp.transpose(x4, (0, 1, 3, 2, 4, 5)).reshape(n, H // 4, W // 4, 16 * cin)
    cols1 = jnp.concatenate(
        [x4[:, i:i + ho1, j:j + wo1, :] for i in range(2) for j in range(2)],
        axis=-1)
    cols1 = cols1.reshape(n * ho1 * wo1, 64 * cin)
    m1p = prep["s2"].shape[2]                                      # padded M1
    cols1 = jnp.pad(cols1, ((0, m1p - n * ho1 * wo1), (0, 0)))     # full tiles

    a1 = _conv1_call(cols1, prep["w1"], prep["b1"])                # (m1p, 128) bf16
    out = _tail_call(a1, prep, batch=n, sp4=ho4 * wo4)             # (n, 128) f32
    return out[:, :output_dim]


# ============================================================================
# Deterministic synthetic parameters (torch layouts for the conv weights)
# ============================================================================
def init_params(key, output_dim, c):
    keys = iter(jax.random.split(key, 32))

    def conv_p(cout, cin, kh, kw):
        w = jax.random.normal(next(keys), (cout, cin, kh, kw), jnp.float32)
        w = w / jnp.sqrt(float(cin * kh * kw))
        b = 0.01 * jax.random.normal(next(keys), (cout,), jnp.float32)
        return w, b

    def bn_p(ch):
        gamma = 1.0 + 0.1 * jax.random.normal(next(keys), (ch,), jnp.float32)
        beta = 0.1 * jax.random.normal(next(keys), (ch,), jnp.float32)
        rmean = 0.05 * jax.random.normal(next(keys), (ch,), jnp.float32)
        rvar = jnp.ones((ch,), jnp.float32)
        return gamma, beta, rmean, rvar

    def lin_p(din, dout):
        w = jax.random.normal(next(keys), (din, dout), jnp.float32) / jnp.sqrt(float(din))
        b = 0.01 * jax.random.normal(next(keys), (dout,), jnp.float32)
        return w, b

    return {
        "conv1": conv_p(c, 1, 8, 8) + bn_p(c),
        "conv2": conv_p(2 * c, c, 3, 3) + bn_p(2 * c),
        "conv3": conv_p(4 * c, 2 * c, 3, 3) + bn_p(4 * c),
        "conv4": conv_p(4 * c, 4 * c, 3, 3) + bn_p(4 * c),
        "lin1": lin_p(4 * c, 128 * output_dim),
        "lin2": lin_p(128 * output_dim, 16 * output_dim),
        "lin3": lin_p(16 * output_dim, output_dim),
    }


if __name__ == "__main__":
    output_dim = 4
    c = 16
    key = jax.random.PRNGKey(0)
    k_params, k_x = jax.random.split(key)

    params = init_params(k_params, output_dim, c)
    # Smallest spatial size that survives the stride-4/2/2/2 conv stack is 64x64.
    x = jax.random.normal(k_x, (2, 1, 64, 64), jnp.float32)        # NCHW, 1 channel

    # Fold BN, pad and cast the weights ONCE (not per forward call).
    prep = prepare_params(params, batch=2, in_hw=(64, 64))

    fwd = jax.jit(functools.partial(cnn4_fc3_forward, output_dim=output_dim))
    y = fwd(prep, x)
    jax.block_until_ready(y)

    assert y.shape == (2, output_dim)
    assert bool(jnp.all((y >= 0.0) & (y <= 1.0)))
    print("KERNEL_OK")
</pallas_src>

<mosaic_0001>
module attributes {stable_mosaic.version = 11 : i64} {
  func.func @_conv1_kernel(%arg0: i32, %arg1: memref<128x64xbf16, #tpu.memory_space<vmem>>, %arg2: memref<64x128xbf16, #tpu.memory_space<vmem>>, %arg3: memref<1x128xf32, #tpu.memory_space<vmem>>, %arg4: memref<128x128xbf16, #tpu.memory_space<vmem>>) attributes {dimension_semantics = [#tpu.dimension_semantics<parallel>], iteration_bounds = array<i64: 4>, scalar_prefetch = 0 : i64, scratch_operands = 0 : i64, tpu.core_type = #tpu.core_type<tc>, window_params = [{transform_indices = @transform_0, window_bounds = array<i64: 128, 64>}, {pipeline_mode = #tpu.pipeline_mode<synchronous>, transform_indices = @transform_1, window_bounds = array<i64: 64, 128>}, {pipeline_mode = #tpu.pipeline_mode<synchronous>, transform_indices = @transform_2, window_bounds = array<i64: 1, 128>}, {transform_indices = @transform_3, window_bounds = array<i64: 128, 128>}]} {
    %c0 = arith.constant 0 : index
    %c0_0 = arith.constant 0 : index
    %0 = vector.load %arg1[%c0, %c0_0] : memref<128x64xbf16, #tpu.memory_space<vmem>>, vector<128x64xbf16>
    %c0_1 = arith.constant 0 : index
    %c0_2 = arith.constant 0 : index
    %1 = vector.load %arg2[%c0_1, %c0_2] : memref<64x128xbf16, #tpu.memory_space<vmem>>, vector<64x128xbf16>
    %cst = arith.constant dense<0.000000e+00> : vector<128x128xf32>
    %2 = tpu.matmul %0, %1, %cst {dimension_numbers = #tpu.dot_dimension_numbers<[1], [0], [0], [1], [0, 0, 1, 1], [], []>} : vector<128x64xbf16>, vector<64x128xbf16>, vector<128x128xf32> -> vector<128x128xf32>
    %c0_3 = arith.constant 0 : index
    %c0_4 = arith.constant 0 : index
    %3 = vector.load %arg3[%c0_3, %c0_4] : memref<1x128xf32, #tpu.memory_space<vmem>>, vector<1x128xf32>
    %4 = vector.broadcast %3 : vector<1x128xf32> to vector<128x128xf32>
    %5 = arith.addf %2, %4 : vector<128x128xf32>
    %cst_5 = arith.constant 0.000000e+00 : f32
    %6 = vector.broadcast %cst_5 : f32 to vector<128x128xf32>
    %7 = arith.maximumf %5, %6 : vector<128x128xf32>
    %8 = arith.truncf %7 : vector<128x128xf32> to vector<128x128xbf16>
    %c0_6 = arith.constant 0 : index
    %c0_7 = arith.constant 0 : index
    %9 = vector.load %arg4[%c0_6, %c0_7] : memref<128x128xbf16, #tpu.memory_space<vmem>>, vector<128x128xbf16>
    tpu.vector_store %arg4[%c0_6, %c0_7], %8 {strides = array<i32>} : memref<128x128xbf16, #tpu.memory_space<vmem>>, vector<128x128xbf16>,
    return
  }
  func.func @transform_0(%arg0: i32) -> (i32, i32) {
    %c0_i32 = arith.constant 0 : i32
    %c0_i32_0 = arith.constant 0 : i32
    return %arg0, %c0_i32 : i32, i32
  }
  func.func @transform_1(%arg0: i32) -> (i32, i32) {
    %c0_i32 = arith.constant 0 : i32
    %c0_i32_0 = arith.constant 0 : i32
    %c0_i32_1 = arith.constant 0 : i32
    return %c0_i32, %c0_i32_0 : i32, i32
  }
  func.func @transform_2(%arg0: i32) -> (i32, i32) {
    %c0_i32 = arith.constant 0 : i32
    %c0_i32_0 = arith.constant 0 : i32
    %c0_i32_1 = arith.constant 0 : i32
    return %c0_i32, %c0_i32_0 : i32, i32
  }
  func.func @transform_3(%arg0: i32) -> (i32, i32) {
    %c0_i32 = arith.constant 0 : i32
    %c0_i32_0 = arith.constant 0 : i32
    return %arg0, %c0_i32 : i32, i32
  }
}

module attributes {stable_mosaic.version = 11 : i64} {
  func.func @_tail_kernel(%arg0: memref<512x128xbf16, #tpu.memory_space<vmem>>, %arg1: memref<9x112x512xbf16, #tpu.memory_space<vmem>>, %arg2: memref<9x128x128xbf16, #tpu.memory_space<vmem>>, %arg3: memref<1x128xf32, #tpu.memory_space<vmem>>, %arg4: memref<9x32x112xbf16, #tpu.memory_space<vmem>>, %arg5: memref<9x128x128xbf16, #tpu.memory_space<vmem>>, %arg6: memref<1x128xf32, #tpu.memory_space<vmem>>, %arg7: memref<9x16x32xbf16, #tpu.memory_space<vmem>>, %arg8: memref<9x128x128xbf16, #tpu.memory_space<vmem>>, %arg9: memref<1x128xf32, #tpu.memory_space<vmem>>, %arg10: memref<128x512xbf16, #tpu.memory_space<vmem>>, %arg11: memref<1x512xf32, #tpu.memory_space<vmem>>, %arg12: memref<512x128xbf16, #tpu.memory_space<vmem>>, %arg13: memref<1x128xf32, #tpu.memory_space<vmem>>, %arg14: memref<128x128xbf16, #tpu.memory_space<vmem>>, %arg15: memref<1x128xf32, #tpu.memory_space<vmem>>, %arg16: memref<2x128xf32, #tpu.memory_space<vmem>>) attributes {dimension_semantics = [], scalar_prefetch = 0 : i64, scratch_operands = 0 : i64, tpu.core_type = #tpu.core_type<tc>} {
    %c0 = arith.constant 0 : index
    %c0_0 = arith.constant 0 : index
    %0 = vector.load %arg0[%c0, %c0_0] : memref<512x128xbf16, #tpu.memory_space<vmem>>, vector<512x128xbf16>
    %cst = arith.constant 0.000000e+00 : f32
    %1 = vector.broadcast %cst : f32 to vector<112x128xf32>
    %c0_1 = arith.constant 0 : index
    %c0_2 = arith.constant 0 : index
    %c0_3 = arith.constant 0 : index
    %2 = vector.load %arg1[%c0_1, %c0_2, %c0_3] : memref<9x112x512xbf16, #tpu.memory_space<vmem>>, vector<1x112x512xbf16>
    %3 = vector.shape_cast %2 : vector<1x112x512xbf16> to vector<112x512xbf16>
    %cst_4 = arith.constant dense<0.000000e+00> : vector<112x128xf32>
    %4 = tpu.matmul %3, %0, %cst_4 {dimension_numbers = #tpu.dot_dimension_numbers<[1], [0], [0], [1], [0, 0, 1, 1], [], []>} : vector<112x512xbf16>, vector<512x128xbf16>, vector<112x128xf32> -> vector<112x128xf32>
    %5 = arith.truncf %4 : vector<112x128xf32> to vector<112x128xbf16>
    %c0_5 = arith.constant 0 : index
    %c0_6 = arith.constant 0 : index
    %c0_7 = arith.constant 0 : index
    %6 = vector.load %arg2[%c0_5, %c0_6, %c0_7] : memref<9x128x128xbf16, #tpu.memory_space<vmem>>, vector<1x128x128xbf16>
    %7 = vector.shape_cast %6 : vector<1x128x128xbf16> to vector<128x128xbf16>
    %cst_8 = arith.constant dense<0.000000e+00> : vector<112x128xf32>
    %8 = tpu.matmul %5, %7, %cst_8 {dimension_numbers = #tpu.dot_dimension_numbers<[1], [0], [0], [1], [0, 0, 1, 1], [], []>} : vector<112x128xbf16>, vector<128x128xbf16>, vector<112x128xf32> -> vector<112x128xf32>
    %9 = arith.addf %1, %8 : vector<112x128xf32>
    %c1 = arith.constant 1 : index
    %c0_9 = arith.constant 0 : index
    %c0_10 = arith.constant 0 : index
    %10 = vector.load %arg1[%c1, %c0_9, %c0_10] : memref<9x112x512xbf16, #tpu.memory_space<vmem>>, vector<1x112x512xbf16>
    %11 = vector.shape_cast %10 : vector<1x112x512xbf16> to vector<112x512xbf16>
    %cst_11 = arith.constant dense<0.000000e+00> : vector<112x128xf32>
    %12 = tpu.matmul %11, %0, %cst_11 {dimension_numbers = #tpu.dot_dimension_numbers<[1], [0], [0], [1], [0, 0, 1, 1], [], []>} : vector<112x512xbf16>, vector<512x128xbf16>, vector<112x128xf32> -> vector<112x128xf32>
    %13 = arith.truncf %12 : vector<112x128xf32> to vector<112x128xbf16>
    %c1_12 = arith.constant 1 : index
    %c0_13 = arith.constant 0 : index
    %c0_14 = arith.constant 0 : index
    %14 = vector.load %arg2[%c1_12, %c0_13, %c0_14] : memref<9x128x128xbf16, #tpu.memory_space<vmem>>, vector<1x128x128xbf16>
    %15 = vector.shape_cast %14 : vector<1x128x128xbf16> to vector<128x128xbf16>
    %cst_15 = arith.constant dense<0.000000e+00> : vector<112x128xf32>
    %16 = tpu.matmul %13, %15, %cst_15 {dimension_numbers = #tpu.dot_dimension_numbers<[1], [0], [0], [1], [0, 0, 1, 1], [], []>} : vector<112x128xbf16>, vector<128x128xbf16>, vector<112x128xf32> -> vector<112x128xf32>
    %17 = arith.addf %9, %16 : vector<112x128xf32>
    %c2 = arith.constant 2 : index
    %c0_16 = arith.constant 0 : index
    %c0_17 = arith.constant 0 : index
    %18 = vector.load %arg1[%c2, %c0_16, %c0_17] : memref<9x112x512xbf16, #tpu.memory_space<vmem>>, vector<1x112x512xbf16>
    %19 = vector.shape_cast %18 : vector<1x112x512xbf16> to vector<112x512xbf16>
    %cst_18 = arith.constant dense<0.000000e+00> : vector<112x128xf32>
    %20 = tpu.matmul %19, %0, %cst_18 {dimension_numbers = #tpu.dot_dimension_numbers<[1], [0], [0], [1], [0, 0, 1, 1], [], []>} : vector<112x512xbf16>, vector<512x128xbf16>, vector<112x128xf32> -> vector<112x128xf32>
    %21 = arith.truncf %20 : vector<112x128xf32> to vector<112x128xbf16>
    %c2_19 = arith.constant 2 : index
    %c0_20 = arith.constant 0 : index
    %c0_21 = arith.constant 0 : index
    %22 = vector.load %arg2[%c2_19, %c0_20, %c0_21] : memref<9x128x128xbf16, #tpu.memory_space<vmem>>, vector<1x128x128xbf16>
    %23 = vector.shape_cast %22 : vector<1x128x128xbf16> to vector<128x128xbf16>
    %cst_22 = arith.constant dense<0.000000e+00> : vector<112x128xf32>
    %24 = tpu.matmul %21, %23, %cst_22 {dimension_numbers = #tpu.dot_dimension_numbers<[1], [0], [0], [1], [0, 0, 1, 1], [], []>} : vector<112x128xbf16>, vector<128x128xbf16>, vector<112x128xf32> -> vector<112x128xf32>
    %25 = arith.addf %17, %24 : vector<112x128xf32>
    %c3 = arith.constant 3 : index
    %c0_23 = arith.constant 0 : index
    %c0_24 = arith.constant 0 : index
    %26 = vector.load %arg1[%c3, %c0_23, %c0_24] : memref<9x112x512xbf16, #tpu.memory_space<vmem>>, vector<1x112x512xbf16>
    %27 = vector.shape_cast %26 : vector<1x112x512xbf16> to vector<112x512xbf16>
    %cst_25 = arith.constant dense<0.000000e+00> : vector<112x128xf32>
    %28 = tpu.matmul %27, %0, %cst_25 {dimension_numbers = #tpu.dot_dimension_numbers<[1], [0], [0], [1], [0, 0, 1, 1], [], []>} : vector<112x512xbf16>, vector<512x128xbf16>, vector<112x128xf32> -> vector<112x128xf32>
    %29 = arith.truncf %28 : vector<112x128xf32> to vector<112x128xbf16>
    %c3_26 = arith.constant 3 : index
    %c0_27 = arith.constant 0 : index
    %c0_28 = arith.constant 0 : index
    %30 = vector.load %arg2[%c3_26, %c0_27, %c0_28] : memref<9x128x128xbf16, #tpu.memory_space<vmem>>, vector<1x128x128xbf16>
    %31 = vector.shape_cast %30 : vector<1x128x128xbf16> to vector<128x128xbf16>
    %cst_29 = arith.constant dense<0.000000e+00> : vector<112x128xf32>
    %32 = tpu.matmul %29, %31, %cst_29 {dimension_numbers = #tpu.dot_dimension_numbers<[1], [0], [0], [1], [0, 0, 1, 1], [], []>} : vector<112x128xbf16>, vector<128x128xbf16>, vector<112x128xf32> -> vector<112x128xf32>
    %33 = arith.addf %25, %32 : vector<112x128xf32>
    %c4 = arith.constant 4 : index
    %c0_30 = arith.constant 0 : index
    %c0_31 = arith.constant 0 : index
    %34 = vector.load %arg1[%c4, %c0_30, %c0_31] : memref<9x112x512xbf16, #tpu.memory_space<vmem>>, vector<1x112x512xbf16>
    %35 = vector.shape_cast %34 : vector<1x112x512xbf16> to vector<112x512xbf16>
    %cst_32 = arith.constant dense<0.000000e+00> : vector<112x128xf32>
    %36 = tpu.matmul %35, %0, %cst_32 {dimension_numbers = #tpu.dot_dimension_numbers<[1], [0], [0], [1], [0, 0, 1, 1], [], []>} : vector<112x512xbf16>, vector<512x128xbf16>, vector<112x128xf32> -> vector<112x128xf32>
    %37 = arith.truncf %36 : vector<112x128xf32> to vector<112x128xbf16>
    %c4_33 = arith.constant 4 : index
    %c0_34 = arith.constant 0 : index
    %c0_35 = arith.constant 0 : index
    %38 = vector.load %arg2[%c4_33, %c0_34, %c0_35] : memref<9x128x128xbf16, #tpu.memory_space<vmem>>, vector<1x128x128xbf16>
    %39 = vector.shape_cast %38 : vector<1x128x128xbf16> to vector<128x128xbf16>
    %cst_36 = arith.constant dense<0.000000e+00> : vector<112x128xf32>
    %40 = tpu.matmul %37, %39, %cst_36 {dimension_numbers = #tpu.dot_dimension_numbers<[1], [0], [0], [1], [0, 0, 1, 1], [], []>} : vector<112x128xbf16>, vector<128x128xbf16>, vector<112x128xf32> -> vector<112x128xf32>
    %41 = arith.addf %33, %40 : vector<112x128xf32>
    %c5 = arith.constant 5 : index
    %c0_37 = arith.constant 0 : index
    %c0_38 = arith.constant 0 : index
    %42 = vector.load %arg1[%c5, %c0_37, %c0_38] : memref<9x112x512xbf16, #tpu.memory_space<vmem>>, vector<1x112x512xbf16>
    %43 = vector.shape_cast %42 : vector<1x112x512xbf16> to vector<112x512xbf16>
    %cst_39 = arith.constant dense<0.000000e+00> : vector<112x128xf32>
    %44 = tpu.matmul %43, %0, %cst_39 {dimension_numbers = #tpu.dot_dimension_numbers<[1], [0], [0], [1], [0, 0, 1, 1], [], []>} : vector<112x512xbf16>, vector<512x128xbf16>, vector<112x128xf32> -> vector<112x128xf32>
    %45 = arith.truncf %44 : vector<112x128xf32> to vector<112x128xbf16>
    %c5_40 = arith.constant 5 : index
    %c0_41 = arith.constant 0 : index
    %c0_42 = arith.constant 0 : index
    %46 = vector.load %arg2[%c5_40, %c0_41, %c0_42] : memref<9x128x128xbf16, #tpu.memory_space<vmem>>, vector<1x128x128xbf16>
    %47 = vector.shape_cast %46 : vector<1x128x128xbf16> to vector<128x128xbf16>
    %cst_43 = arith.constant dense<0.000000e+00> : vector<112x128xf32>
    %48 = tpu.matmul %45, %47, %cst_43 {dimension_numbers = #tpu.dot_dimension_numbers<[1], [0], [0], [1], [0, 0, 1, 1], [], []>} : vector<112x128xbf16>, vector<128x128xbf16>, vector<112x128xf32> -> vector<112x128xf32>
    %49 = arith.addf %41, %48 : vector<112x128xf32>
    %c6 = arith.constant 6 : index
    %c0_44 = arith.constant 0 : index
    %c0_45 = arith.constant 0 : index
    %50 = vector.load %arg1[%c6, %c0_44, %c0_45] : memref<9x112x512xbf16, #tpu.memory_space<vmem>>, vector<1x112x512xbf16>
    %51 = vector.shape_cast %50 : vector<1x112x512xbf16> to vector<112x512xbf16>
    %cst_46 = arith.constant dense<0.000000e+00> : vector<112x128xf32>
    %52 = tpu.matmul %51, %0, %cst_46 {dimension_numbers = #tpu.dot_dimension_numbers<[1], [0], [0], [1], [0, 0, 1, 1], [], []>} : vector<112x512xbf16>, vector<512x128xbf16>, vector<112x128xf32> -> vector<112x128xf32>
    %53 = arith.truncf %52 : vector<112x128xf32> to vector<112x128xbf16>
    %c6_47 = arith.constant 6 : index
    %c0_48 = arith.constant 0 : index
    %c0_49 = arith.constant 0 : index
    %54 = vector.load %arg2[%c6_47, %c0_48, %c0_49] : memref<9x128x128xbf16, #tpu.memory_space<vmem>>, vector<1x128x128xbf16>
    %55 = vector.shape_cast %54 : vector<1x128x128xbf16> to vector<128x128xbf16>
    %cst_50 = arith.constant dense<0.000000e+00> : vector<112x128xf32>
    %56 = tpu.matmul %53, %55, %cst_50 {dimension_numbers = #tpu.dot_dimension_numbers<[1], [0], [0], [1], [0, 0, 1, 1], [], []>} : vector<112x128xbf16>, vector<128x128xbf16>, vector<112x128xf32> -> vector<112x128xf32>
    %57 = arith.addf %49, %56 : vector<112x128xf32>
    %c7 = arith.constant 7 : index
    %c0_51 = arith.constant 0 : index
    %c0_52 = arith.constant 0 : index
    %58 = vector.load %arg1[%c7, %c0_51, %c0_52] : memref<9x112x512xbf16, #tpu.memory_space<vmem>>, vector<1x112x512xbf16>
    %59 = vector.shape_cast %58 : vector<1x112x512xbf16> to vector<112x512xbf16>
    %cst_53 = arith.constant dense<0.000000e+00> : vector<112x128xf32>
    %60 = tpu.matmul %59, %0, %cst_53 {dimension_numbers = #tpu.dot_dimension_numbers<[1], [0], [0], [1], [0, 0, 1, 1], [], []>} : vector<112x512xbf16>, vector<512x128xbf16>, vector<112x128xf32> -> vector<112x128xf32>
    %61 = arith.truncf %60 : vector<112x128xf32> to vector<112x128xbf16>
    %c7_54 = arith.constant 7 : index
    %c0_55 = arith.constant 0 : index
    %c0_56 = arith.constant 0 : index
    %62 = vector.load %arg2[%c7_54, %c0_55, %c0_56] : memref<9x128x128xbf16, #tpu.memory_space<vmem>>, vector<1x128x128xbf16>
    %63 = vector.shape_cast %62 : vector<1x128x128xbf16> to vector<128x128xbf16>
    %cst_57 = arith.constant dense<0.000000e+00> : vector<112x128xf32>
    %64 = tpu.matmul %61, %63, %cst_57 {dimension_numbers = #tpu.dot_dimension_numbers<[1], [0], [0], [1], [0, 0, 1, 1], [], []>} : vector<112x128xbf16>, vector<128x128xbf16>, vector<112x128xf32> -> vector<112x128xf32>
    %65 = arith.addf %57, %64 : vector<112x128xf32>
    %c8 = arith.constant 8 : index
    %c0_58 = arith.constant 0 : index
    %c0_59 = arith.constant 0 : index
    %66 = vector.load %arg1[%c8, %c0_58, %c0_59] : memref<9x112x512xbf16, #tpu.memory_space<vmem>>, vector<1x112x512xbf16>
    %67 = vector.shape_cast %66 : vector<1x112x512xbf16> to vector<112x512xbf16>
    %cst_60 = arith.constant dense<0.000000e+00> : vector<112x128xf32>
    %68 = tpu.matmul %67, %0, %cst_60 {dimension_numbers = #tpu.dot_dimension_numbers<[1], [0], [0], [1], [0, 0, 1, 1], [], []>} : vector<112x512xbf16>, vector<512x128xbf16>, vector<112x128xf32> -> vector<112x128xf32>
    %69 = arith.truncf %68 : vector<112x128xf32> to vector<112x128xbf16>
    %c8_61 = arith.constant 8 : index
    %c0_62 = arith.constant 0 : index
    %c0_63 = arith.constant 0 : index
    %70 = vector.load %arg2[%c8_61, %c0_62, %c0_63] : memref<9x128x128xbf16, #tpu.memory_space<vmem>>, vector<1x128x128xbf16>
    %71 = vector.shape_cast %70 : vector<1x128x128xbf16> to vector<128x128xbf16>
    %cst_64 = arith.constant dense<0.000000e+00> : vector<112x128xf32>
    %72 = tpu.matmul %69, %71, %cst_64 {dimension_numbers = #tpu.dot_dimension_numbers<[1], [0], [0], [1], [0, 0, 1, 1], [], []>} : vector<112x128xbf16>, vector<128x128xbf16>, vector<112x128xf32> -> vector<112x128xf32>
    %73 = arith.addf %65, %72 : vector<112x128xf32>
    %c0_65 = arith.constant 0 : index
    %c0_66 = arith.constant 0 : index
    %74 = vector.load %arg3[%c0_65, %c0_66] : memref<1x128xf32, #tpu.memory_space<vmem>>, vector<1x128xf32>
    %75 = vector.broadcast %74 : vector<1x128xf32> to vector<112x128xf32>
    %76 = arith.addf %73, %75 : vector<112x128xf32>
    %cst_67 = arith.constant 0.000000e+00 : f32
    %77 = vector.broadcast %cst_67 : f32 to vector<112x128xf32>
    %78 = arith.maximumf %76, %77 : vector<112x128xf32>
    %79 = arith.truncf %78 : vector<112x128xf32> to vector<112x128xbf16>
    %cst_68 = arith.constant 0.000000e+00 : f32
    %80 = vector.broadcast %cst_68 : f32 to vector<32x128xf32>
    %c0_69 = arith.constant 0 : index
    %c0_70 = arith.constant 0 : index
    %c0_71 = arith.constant 0 : index
    %81 = vector.load %arg4[%c0_69, %c0_70, %c0_71] : memref<9x32x112xbf16, #tpu.memory_space<vmem>>, vector<1x32x112xbf16>
    %82 = vector.shape_cast %81 : vector<1x32x112xbf16> to vector<32x112xbf16>
    %cst_72 = arith.constant dense<0.000000e+00> : vector<32x128xf32>
    %83 = tpu.matmul %82, %79, %cst_72 {dimension_numbers = #tpu.dot_dimension_numbers<[1], [0], [0], [1], [0, 0, 1, 1], [], []>} : vector<32x112xbf16>, vector<112x128xbf16>, vector<32x128xf32> -> vector<32x128xf32>
    %84 = arith.truncf %83 : vector<32x128xf32> to vector<32x128xbf16>
    %c0_73 = arith.constant 0 : index
    %c0_74 = arith.constant 0 : index
    %c0_75 = arith.constant 0 : index
    %85 = vector.load %arg5[%c0_73, %c0_74, %c0_75] : memref<9x128x128xbf16, #tpu.memory_space<vmem>>, vector<1x128x128xbf16>
    %86 = vector.shape_cast %85 : vector<1x128x128xbf16> to vector<128x128xbf16>
    %cst_76 = arith.constant dense<0.000000e+00> : vector<32x128xf32>
    %87 = tpu.matmul %84, %86, %cst_76 {dimension_numbers = #tpu.dot_dimension_numbers<[1], [0], [0], [1], [0, 0, 1, 1], [], []>} : vector<32x128xbf16>, vector<128x128xbf16>, vector<32x128xf32> -> vector<32x128xf32>
    %88 = arith.addf %80, %87 : vector<32x128xf32>
    %c1_77 = arith.constant 1 : index
    %c0_78 = arith.constant 0 : index
    %c0_79 = arith.constant 0 : index
    %89 = vector.load %arg4[%c1_77, %c0_78, %c0_79] : memref<9x32x112xbf16, #tpu.memory_space<vmem>>, vector<1x32x112xbf16>
    %90 = vector.shape_cast %89 : vector<1x32x112xbf16> to vector<32x112xbf16>
    %cst_80 = arith.constant dense<0.000000e+00> : vector<32x128xf32>
    %91 = tpu.matmul %90, %79, %cst_80 {dimension_numbers = #tpu.dot_dimension_numbers<[1], [0], [0], [1], [0, 0, 1, 1], [], []>} : vector<32x112xbf16>, vector<112x128xbf16>, vector<32x128xf32> -> vector<32x128xf32>
    %92 = arith.truncf %91 : vector<32x128xf32> to vector<32x128xbf16>
    %c1_81 = arith.constant 1 : index
    %c0_82 = arith.constant 0 : index
    %c0_83 = arith.constant 0 : index
    %93 = vector.load %arg5[%c1_81, %c0_82, %c0_83] : memref<9x128x128xbf16, #tpu.memory_space<vmem>>, vector<1x128x128xbf16>
    %94 = vector.shape_cast %93 : vector<1x128x128xbf16> to vector<128x128xbf16>
    %cst_84 = arith.constant dense<0.000000e+00> : vector<32x128xf32>
    %95 = tpu.matmul %92, %94, %cst_84 {dimension_numbers = #tpu.dot_dimension_numbers<[1], [0], [0], [1], [0, 0, 1, 1], [], []>} : vector<32x128xbf16>, vector<128x128xbf16>, vector<32x128xf32> -> vector<32x128xf32>
    %96 = arith.addf %88, %95 : vector<32x128xf32>
    %c2_85 = arith.constant 2 : index
    %c0_86 = arith.constant 0 : index
    %c0_87 = arith.constant 0 : index
    %97 = vector.load %arg4[%c2_85, %c0_86, %c0_87] : memref<9x32x112xbf16, #tpu.memory_space<vmem>>, vector<1x32x112xbf16>
    %98 = vector.shape_cast %97 : vector<1x32x112xbf16> to vector<32x112xbf16>
    %cst_88 = arith.constant dense<0.000000e+00> : vector<32x128xf32>
    %99 = tpu.matmul %98, %79, %cst_88 {dimension_numbers = #tpu.dot_dimension_numbers<[1], [0], [0], [1], [0, 0, 1, 1], [], []>} : vector<32x112xbf16>, vector<112x128xbf16>, vector<32x128xf32> -> vector<32x128xf32>
    %100 = arith.truncf %99 : vector<32x128xf32> to vector<32x128xbf16>
    %c2_89 = arith.constant 2 : index
    %c0_90 = arith.constant 0 : index
    %c0_91 = arith.constant 0 : index
    %101 = vector.load %arg5[%c2_89, %c0_90, %c0_91] : memref<9x128x128xbf16, #tpu.memory_space<vmem>>, vector<1x128x128xbf16>
    %102 = vector.shape_cast %101 : vector<1x128x128xbf16> to vector<128x128xbf16>
    %cst_92 = arith.constant dense<0.000000e+00> : vector<32x128xf32>
    %103 = tpu.matmul %100, %102, %cst_92 {dimension_numbers = #tpu.dot_dimension_numbers<[1], [0], [0], [1], [0, 0, 1, 1], [], []>} : vector<32x128xbf16>, vector<128x128xbf16>, vector<32x128xf32> -> vector<32x128xf32>
    %104 = arith.addf %96, %103 : vector<32x128xf32>
    %c3_93 = arith.constant 3 : index
    %c0_94 = arith.constant 0 : index
    %c0_95 = arith.constant 0 : index
    %105 = vector.load %arg4[%c3_93, %c0_94, %c0_95] : memref<9x32x112xbf16, #tpu.memory_space<vmem>>, vector<1x32x112xbf16>
    %106 = vector.shape_cast %105 : vector<1x32x112xbf16> to vector<32x112xbf16>
    %cst_96 = arith.constant dense<0.000000e+00> : vector<32x128xf32>
    %107 = tpu.matmul %106, %79, %cst_96 {dimension_numbers = #tpu.dot_dimension_numbers<[1], [0], [0], [1], [0, 0, 1, 1], [], []>} : vector<32x112xbf16>, vector<112x128xbf16>, vector<32x128xf32> -> vector<32x128xf32>
    %108 = arith.truncf %107 : vector<32x128xf32> to vector<32x128xbf16>
    %c3_97 = arith.constant 3 : index
    %c0_98 = arith.constant 0 : index
    %c0_99 = arith.constant 0 : index
    %109 = vector.load %arg5[%c3_97, %c0_98, %c0_99] : memref<9x128x128xbf16, #tpu.memory_space<vmem>>, vector<1x128x128xbf16>
    %110 = vector.shape_cast %109 : vector<1x128x128xbf16> to vector<128x128xbf16>
    %cst_100 = arith.constant dense<0.000000e+00> : vector<32x128xf32>
    %111 = tpu.matmul %108, %110, %cst_100 {dimension_numbers = #tpu.dot_dimension_numbers<[1], [0], [0], [1], [0, 0, 1, 1], [], []>} : vector<32x128xbf16>, vector<128x128xbf16>, vector<32x128xf32> -> vector<32x128xf32>
    %112 = arith.addf %104, %111 : vector<32x128xf32>
    %c4_101 = arith.constant 4 : index
    %c0_102 = arith.constant 0 : index
    %c0_103 = arith.constant 0 : index
    %113 = vector.load %arg4[%c4_101, %c0_102, %c0_103] : memref<9x32x112xbf16, #tpu.memory_space<vmem>>, vector<1x32x112xbf16>
    %114 = vector.shape_cast %113 : vector<1x32x112xbf16> to vector<32x112xbf16>
    %cst_104 = arith.constant dense<0.000000e+00> : vector<32x128xf32>
    %115 = tpu.matmul %114, %79, %cst_104 {dimension_numbers = #tpu.dot_dimension_numbers<[1], [0], [0], [1], [0, 0, 1, 1], [], []>} : vector<32x112xbf16>, vector<112x128xbf16>, vector<32x128xf32> -> vector<32x128xf32>
    %116 = arith.truncf %115 : vector<32x128xf32> to vector<32x128xbf16>
    %c4_105 = arith.constant 4 : index
    %c0_106 = arith.constant 0 : index
    %c0_107 = arith.constant 0 : index
    %117 = vector.load %arg5[%c4_105, %c0_106, %c0_107] : memref<9x128x128xbf16, #tpu.memory_space<vmem>>, vector<1x128x128xbf16>
    %118 = vector.shape_cast %117 : vector<1x128x128xbf16> to vector<128x128xbf16>
    %cst_108 = arith.constant dense<0.000000e+00> : vector<32x128xf32>
    %119 = tpu.matmul %116, %118, %cst_108 {dimension_numbers = #tpu.dot_dimension_numbers<[1], [0], [0], [1], [0, 0, 1, 1], [], []>} : vector<32x128xbf16>, vector<128x128xbf16>, vector<32x128xf32> -> vector<32x128xf32>
    %120 = arith.addf %112, %119 : vector<32x128xf32>
    %c5_109 = arith.constant 5 : index
    %c0_110 = arith.constant 0 : index
    %c0_111 = arith.constant 0 : index
    %121 = vector.load %arg4[%c5_109, %c0_110, %c0_111] : memref<9x32x112xbf16, #tpu.memory_space<vmem>>, vector<1x32x112xbf16>
    %122 = vector.shape_cast %121 : vector<1x32x112xbf16> to vector<32x112xbf16>
    %cst_112 = arith.constant dense<0.000000e+00> : vector<32x128xf32>
    %123 = tpu.matmul %122, %79, %cst_112 {dimension_numbers = #tpu.dot_dimension_numbers<[1], [0], [0], [1], [0, 0, 1, 1], [], []>} : vector<32x112xbf16>, vector<112x128xbf16>, vector<32x128xf32> -> vector<32x128xf32>
    %124 = arith.truncf %123 : vector<32x128xf32> to vector<32x128xbf16>
    %c5_113 = arith.constant 5 : index
    %c0_114 = arith.constant 0 : index
    %c0_115 = arith.constant 0 : index
    %125 = vector.load %arg5[%c5_113, %c0_114, %c0_115] : memref<9x128x128xbf16, #tpu.memory_space<vmem>>, vector<1x128x128xbf16>
    %126 = vector.shape_cast %125 : vector<1x128x128xbf16> to vector<128x128xbf16>
    %cst_116 = arith.constant dense<0.000000e+00> : vector<32x128xf32>
    %127 = tpu.matmul %124, %126, %cst_116 {dimension_numbers = #tpu.dot_dimension_numbers<[1], [0], [0], [1], [0, 0, 1, 1], [], []>} : vector<32x128xbf16>, vector<128x128xbf16>, vector<32x128xf32> -> vector<32x128xf32>
    %128 = arith.addf %120, %127 : vector<32x128xf32>
    %c6_117 = arith.constant 6 : index
    %c0_118 = arith.constant 0 : index
    %c0_119 = arith.constant 0 : index
    %129 = vector.load %arg4[%c6_117, %c0_118, %c0_119] : memref<9x32x112xbf16, #tpu.memory_space<vmem>>, vector<1x32x112xbf16>
    %130 = vector.shape_cast %129 : vector<1x32x112xbf16> to vector<32x112xbf16>
    %cst_120 = arith.constant dense<0.000000e+00> : vector<32x128xf32>
    %131 = tpu.matmul %130, %79, %cst_120 {dimension_numbers = #tpu.dot_dimension_numbers<[1], [0], [0], [1], [0, 0, 1, 1], [], []>} : vector<32x112xbf16>, vector<112x128xbf16>, vector<32x128xf32> -> vector<32x128xf32>
    %132 = arith.truncf %131 : vector<32x128xf32> to vector<32x128xbf16>
    %c6_121 = arith.constant 6 : index
    %c0_122 = arith.constant 0 : index
    %c0_123 = arith.constant 0 : index
    %133 = vector.load %arg5[%c6_121, %c0_122, %c0_123] : memref<9x128x128xbf16, #tpu.memory_space<vmem>>, vector<1x128x128xbf16>
    %134 = vector.shape_cast %133 : vector<1x128x128xbf16> to vector<128x128xbf16>
    %cst_124 = arith.constant dense<0.000000e+00> : vector<32x128xf32>
    %135 = tpu.matmul %132, %134, %cst_124 {dimension_numbers = #tpu.dot_dimension_numbers<[1], [0], [0], [1], [0, 0, 1, 1], [], []>} : vector<32x128xbf16>, vector<128x128xbf16>, vector<32x128xf32> -> vector<32x128xf32>
    %136 = arith.addf %128, %135 : vector<32x128xf32>
    %c7_125 = arith.constant 7 : index
    %c0_126 = arith.constant 0 : index
    %c0_127 = arith.constant 0 : index
    %137 = vector.load %arg4[%c7_125, %c0_126, %c0_127] : memref<9x32x112xbf16, #tpu.memory_space<vmem>>, vector<1x32x112xbf16>
    %138 = vector.shape_cast %137 : vector<1x32x112xbf16> to vector<32x112xbf16>
    %cst_128 = arith.constant dense<0.000000e+00> : vector<32x128xf32>
    %139 = tpu.matmul %138, %79, %cst_128 {dimension_numbers = #tpu.dot_dimension_numbers<[1], [0], [0], [1], [0, 0, 1, 1], [], []>} : vector<32x112xbf16>, vector<112x128xbf16>, vector<32x128xf32> -> vector<32x128xf32>
    %140 = arith.truncf %139 : vector<32x128xf32> to vector<32x128xbf16>
    %c7_129 = arith.constant 7 : index
    %c0_130 = arith.constant 0 : index
    %c0_131 = arith.constant 0 : index
    %141 = vector.load %arg5[%c7_129, %c0_130, %c0_131] : memref<9x128x128xbf16, #tpu.memory_space<vmem>>, vector<1x128x128xbf16>
    %142 = vector.shape_cast %141 : vector<1x128x128xbf16> to vector<128x128xbf16>
    %cst_132 = arith.constant dense<0.000000e+00> : vector<32x128xf32>
    %143 = tpu.matmul %140, %142, %cst_132 {dimension_numbers = #tpu.dot_dimension_numbers<[1], [0], [0], [1], [0, 0, 1, 1], [], []>} : vector<32x128xbf16>, vector<128x128xbf16>, vector<32x128xf32> -> vector<32x128xf32>
    %144 = arith.addf %136, %143 : vector<32x128xf32>
    %c8_133 = arith.constant 8 : index
    %c0_134 = arith.constant 0 : index
    %c0_135 = arith.constant 0 : index
    %145 = vector.load %arg4[%c8_133, %c0_134, %c0_135] : memref<9x32x112xbf16, #tpu.memory_space<vmem>>, vector<1x32x112xbf16>
    %146 = vector.shape_cast %145 : vector<1x32x112xbf16> to vector<32x112xbf16>
    %cst_136 = arith.constant dense<0.000000e+00> : vector<32x128xf32>
    %147 = tpu.matmul %146, %79, %cst_136 {dimension_numbers = #tpu.dot_dimension_numbers<[1], [0], [0], [1], [0, 0, 1, 1], [], []>} : vector<32x112xbf16>, vector<112x128xbf16>, vector<32x128xf32> -> vector<32x128xf32>
    %148 = arith.truncf %147 : vector<32x128xf32> to vector<32x128xbf16>
    %c8_137 = arith.constant 8 : index
    %c0_138 = arith.constant 0 : index
    %c0_139 = arith.constant 0 : index
    %149 = vector.load %arg5[%c8_137, %c0_138, %c0_139] : memref<9x128x128xbf16, #tpu.memory_space<vmem>>, vector<1x128x128xbf16>
    %150 = vector.shape_cast %149 : vector<1x128x128xbf16> to vector<128x128xbf16>
    %cst_140 = arith.constant dense<0.000000e+00> : vector<32x128xf32>
    %151 = tpu.matmul %148, %150, %cst_140 {dimension_numbers = #tpu.dot_dimension_numbers<[1], [0], [0], [1], [0, 0, 1, 1], [], []>} : vector<32x128xbf16>, vector<128x128xbf16>, vector<32x128xf32> -> vector<32x128xf32>
    %152 = arith.addf %144, %151 : vector<32x128xf32>
    %c0_141 = arith.constant 0 : index
    %c0_142 = arith.constant 0 : index
    %153 = vector.load %arg6[%c0_141, %c0_142] : memref<1x128xf32, #tpu.memory_space<vmem>>, vector<1x128xf32>
    %154 = vector.broadcast %153 : vector<1x128xf32> to vector<32x128xf32>
    %155 = arith.addf %152, %154 : vector<32x128xf32>
    %cst_143 = arith.constant 0.000000e+00 : f32
    %156 = vector.broadcast %cst_143 : f32 to vector<32x128xf32>
    %157 = arith.maximumf %155, %156 : vector<32x128xf32>
    %158 = arith.truncf %157 : vector<32x128xf32> to vector<32x128xbf16>
    %cst_144 = arith.constant 0.000000e+00 : f32
    %159 = vector.broadcast %cst_144 : f32 to vector<16x128xf32>
    %c0_145 = arith.constant 0 : index
    %c0_146 = arith.constant 0 : index
    %c0_147 = arith.constant 0 : index
    %160 = vector.load %arg7[%c0_145, %c0_146, %c0_147] : memref<9x16x32xbf16, #tpu.memory_space<vmem>>, vector<1x16x32xbf16>
    %161 = vector.shape_cast %160 : vector<1x16x32xbf16> to vector<16x32xbf16>
    %cst_148 = arith.constant dense<0.000000e+00> : vector<16x128xf32>
    %162 = tpu.matmul %161, %158, %cst_148 {dimension_numbers = #tpu.dot_dimension_numbers<[1], [0], [0], [1], [0, 0, 1, 1], [], []>} : vector<16x32xbf16>, vector<32x128xbf16>, vector<16x128xf32> -> vector<16x128xf32>
    %163 = arith.truncf %162 : vector<16x128xf32> to vector<16x128xbf16>
    %c0_149 = arith.constant 0 : index
    %c0_150 = arith.constant 0 : index
    %c0_151 = arith.constant 0 : index
    %164 = vector.load %arg8[%c0_149, %c0_150, %c0_151] : memref<9x128x128xbf16, #tpu.memory_space<vmem>>, vector<1x128x128xbf16>
    %165 = vector.shape_cast %164 : vector<1x128x128xbf16> to vector<128x128xbf16>
    %cst_152 = arith.constant dense<0.000000e+00> : vector<16x128xf32>
    %166 = tpu.matmul %163, %165, %cst_152 {dimension_numbers = #tpu.dot_dimension_numbers<[1], [0], [0], [1], [0, 0, 1, 1], [], []>} : vector<16x128xbf16>, vector<128x128xbf16>, vector<16x128xf32> -> vector<16x128xf32>
    %167 = arith.addf %159, %166 : vector<16x128xf32>
    %c1_153 = arith.constant 1 : index
    %c0_154 = arith.constant 0 : index
    %c0_155 = arith.constant 0 : index
    %168 = vector.load %arg7[%c1_153, %c0_154, %c0_155] : memref<9x16x32xbf16, #tpu.memory_space<vmem>>, vector<1x16x32xbf16>
    %169 = vector.shape_cast %168 : vector<1x16x32xbf16> to vector<16x32xbf16>
    %cst_156 = arith.constant dense<0.000000e+00> : vector<16x128xf32>
    %170 = tpu.matmul %169, %158, %cst_156 {dimension_numbers = #tpu.dot_dimension_numbers<[1], [0], [0], [1], [0, 0, 1, 1], [], []>} : vector<16x32xbf16>, vector<32x128xbf16>, vector<16x128xf32> -> vector<16x128xf32>
    %171 = arith.truncf %170 : vector<16x128xf32> to vector<16x128xbf16>
    %c1_157 = arith.constant 1 : index
    %c0_158 = arith.constant 0 : index
    %c0_159 = arith.constant 0 : index
    %172 = vector.load %arg8[%c1_157, %c0_158, %c0_159] : memref<9x128x128xbf16, #tpu.memory_space<vmem>>, vector<1x128x128xbf16>
    %173 = vector.shape_cast %172 : vector<1x128x128xbf16> to vector<128x128xbf16>
    %cst_160 = arith.constant dense<0.000000e+00> : vector<16x128xf32>
    %174 = tpu.matmul %171, %173, %cst_160 {dimension_numbers = #tpu.dot_dimension_numbers<[1], [0], [0], [1], [0, 0, 1, 1], [], []>} : vector<16x128xbf16>, vector<128x128xbf16>, vector<16x128xf32> -> vector<16x128xf32>
    %175 = arith.addf %167, %174 : vector<16x128xf32>
    %c2_161 = arith.constant 2 : index
    %c0_162 = arith.constant 0 : index
    %c0_163 = arith.constant 0 : index
    %176 = vector.load %arg7[%c2_161, %c0_162, %c0_163] : memref<9x16x32xbf16, #tpu.memory_space<vmem>>, vector<1x16x32xbf16>
    %177 = vector.shape_cast %176 : vector<1x16x32xbf16> to vector<16x32xbf16>
    %cst_164 = arith.constant dense<0.000000e+00> : vector<16x128xf32>
    %178 = tpu.matmul %177, %158, %cst_164 {dimension_numbers = #tpu.dot_dimension_numbers<[1], [0], [0], [1], [0, 0, 1, 1], [], []>} : vector<16x32xbf16>, vector<32x128xbf16>, vector<16x128xf32> -> vector<16x128xf32>
    %179 = arith.truncf %178 : vector<16x128xf32> to vector<16x128xbf16>
    %c2_165 = arith.constant 2 : index
    %c0_166 = arith.constant 0 : index
    %c0_167 = arith.constant 0 : index
    %180 = vector.load %arg8[%c2_165, %c0_166, %c0_167] : memref<9x128x128xbf16, #tpu.memory_space<vmem>>, vector<1x128x128xbf16>
    %181 = vector.shape_cast %180 : vector<1x128x128xbf16> to vector<128x128xbf16>
    %cst_168 = arith.constant dense<0.000000e+00> : vector<16x128xf32>
    %182 = tpu.matmul %179, %181, %cst_168 {dimension_numbers = #tpu.dot_dimension_numbers<[1], [0], [0], [1], [0, 0, 1, 1], [], []>} : vector<16x128xbf16>, vector<128x128xbf16>, vector<16x128xf32> -> vector<16x128xf32>
    %183 = arith.addf %175, %182 : vector<16x128xf32>
    %c3_169 = arith.constant 3 : index
    %c0_170 = arith.constant 0 : index
    %c0_171 = arith.constant 0 : index
    %184 = vector.load %arg7[%c3_169, %c0_170, %c0_171] : memref<9x16x32xbf16, #tpu.memory_space<vmem>>, vector<1x16x32xbf16>
    %185 = vector.shape_cast %184 : vector<1x16x32xbf16> to vector<16x32xbf16>
    %cst_172 = arith.constant dense<0.000000e+00> : vector<16x128xf32>
    %186 = tpu.matmul %185, %158, %cst_172 {dimension_numbers = #tpu.dot_dimension_numbers<[1], [0], [0], [1], [0, 0, 1, 1], [], []>} : vector<16x32xbf16>, vector<32x128xbf16>, vector<16x128xf32> -> vector<16x128xf32>
    %187 = arith.truncf %186 : vector<16x128xf32> to vector<16x128xbf16>
    %c3_173 = arith.constant 3 : index
    %c0_174 = arith.constant 0 : index
    %c0_175 = arith.constant 0 : index
    %188 = vector.load %arg8[%c3_173, %c0_174, %c0_175] : memref<9x128x128xbf16, #tpu.memory_space<vmem>>, vector<1x128x128xbf16>
    %189 = vector.shape_cast %188 : vector<1x128x128xbf16> to vector<128x128xbf16>
    %cst_176 = arith.constant dense<0.000000e+00> : vector<16x128xf32>
    %190 = tpu.matmul %187, %189, %cst_176 {dimension_numbers = #tpu.dot_dimension_numbers<[1], [0], [0], [1], [0, 0, 1, 1], [], []>} : vector<16x128xbf16>, vector<128x128xbf16>, vector<16x128xf32> -> vector<16x128xf32>
    %191 = arith.addf %183, %190 : vector<16x128xf32>
    %c4_177 = arith.constant 4 : index
    %c0_178 = arith.constant 0 : index
    %c0_179 = arith.constant 0 : index
    %192 = vector.load %arg7[%c4_177, %c0_178, %c0_179] : memref<9x16x32xbf16, #tpu.memory_space<vmem>>, vector<1x16x32xbf16>
    %193 = vector.shape_cast %192 : vector<1x16x32xbf16> to vector<16x32xbf16>
    %cst_180 = arith.constant dense<0.000000e+00> : vector<16x128xf32>
    %194 = tpu.matmul %193, %158, %cst_180 {dimension_numbers = #tpu.dot_dimension_numbers<[1], [0], [0], [1], [0, 0, 1, 1], [], []>} : vector<16x32xbf16>, vector<32x128xbf16>, vector<16x128xf32> -> vector<16x128xf32>
    %195 = arith.truncf %194 : vector<16x128xf32> to vector<16x128xbf16>
    %c4_181 = arith.constant 4 : index
    %c0_182 = arith.constant 0 : index
    %c0_183 = arith.constant 0 : index
    %196 = vector.load %arg8[%c4_181, %c0_182, %c0_183] : memref<9x128x128xbf16, #tpu.memory_space<vmem>>, vector<1x128x128xbf16>
    %197 = vector.shape_cast %196 : vector<1x128x128xbf16> to vector<128x128xbf16>
    %cst_184 = arith.constant dense<0.000000e+00> : vector<16x128xf32>
    %198 = tpu.matmul %195, %197, %cst_184 {dimension_numbers = #tpu.dot_dimension_numbers<[1], [0], [0], [1], [0, 0, 1, 1], [], []>} : vector<16x128xbf16>, vector<128x128xbf16>, vector<16x128xf32> -> vector<16x128xf32>
    %199 = arith.addf %191, %198 : vector<16x128xf32>
    %c5_185 = arith.constant 5 : index
    %c0_186 = arith.constant 0 : index
    %c0_187 = arith.constant 0 : index
    %200 = vector.load %arg7[%c5_185, %c0_186, %c0_187] : memref<9x16x32xbf16, #tpu.memory_space<vmem>>, vector<1x16x32xbf16>
    %201 = vector.shape_cast %200 : vector<1x16x32xbf16> to vector<16x32xbf16>
    %cst_188 = arith.constant dense<0.000000e+00> : vector<16x128xf32>
    %202 = tpu.matmul %201, %158, %cst_188 {dimension_numbers = #tpu.dot_dimension_numbers<[1], [0], [0], [1], [0, 0, 1, 1], [], []>} : vector<16x32xbf16>, vector<32x128xbf16>, vector<16x128xf32> -> vector<16x128xf32>
    %203 = arith.truncf %202 : vector<16x128xf32> to vector<16x128xbf16>
    %c5_189 = arith.constant 5 : index
    %c0_190 = arith.constant 0 : index
    %c0_191 = arith.constant 0 : index
    %204 = vector.load %arg8[%c5_189, %c0_190, %c0_191] : memref<9x128x128xbf16, #tpu.memory_space<vmem>>, vector<1x128x128xbf16>
    %205 = vector.shape_cast %204 : vector<1x128x128xbf16> to vector<128x128xbf16>
    %cst_192 = arith.constant dense<0.000000e+00> : vector<16x128xf32>
    %206 = tpu.matmul %203, %205, %cst_192 {dimension_numbers = #tpu.dot_dimension_numbers<[1], [0], [0], [1], [0, 0, 1, 1], [], []>} : vector<16x128xbf16>, vector<128x128xbf16>, vector<16x128xf32> -> vector<16x128xf32>
    %207 = arith.addf %199, %206 : vector<16x128xf32>
    %c6_193 = arith.constant 6 : index
    %c0_194 = arith.constant 0 : index
    %c0_195 = arith.constant 0 : index
    %208 = vector.load %arg7[%c6_193, %c0_194, %c0_195] : memref<9x16x32xbf16, #tpu.memory_space<vmem>>, vector<1x16x32xbf16>
    %209 = vector.shape_cast %208 : vector<1x16x32xbf16> to vector<16x32xbf16>
    %cst_196 = arith.constant dense<0.000000e+00> : vector<16x128xf32>
    %210 = tpu.matmul %209, %158, %cst_196 {dimension_numbers = #tpu.dot_dimension_numbers<[1], [0], [0], [1], [0, 0, 1, 1], [], []>} : vector<16x32xbf16>, vector<32x128xbf16>, vector<16x128xf32> -> vector<16x128xf32>
    %211 = arith.truncf %210 : vector<16x128xf32> to vector<16x128xbf16>
    %c6_197 = arith.constant 6 : index
    %c0_198 = arith.constant 0 : index
    %c0_199 = arith.constant 0 : index
    %212 = vector.load %arg8[%c6_197, %c0_198, %c0_199] : memref<9x128x128xbf16, #tpu.memory_space<vmem>>, vector<1x128x128xbf16>
    %213 = vector.shape_cast %212 : vector<1x128x128xbf16> to vector<128x128xbf16>
    %cst_200 = arith.constant dense<0.000000e+00> : vector<16x128xf32>
    %214 = tpu.matmul %211, %213, %cst_200 {dimension_numbers = #tpu.dot_dimension_numbers<[1], [0], [0], [1], [0, 0, 1, 1], [], []>} : vector<16x128xbf16>, vector<128x128xbf16>, vector<16x128xf32> -> vector<16x128xf32>
    %215 = arith.addf %207, %214 : vector<16x128xf32>
    %c7_201 = arith.constant 7 : index
    %c0_202 = arith.constant 0 : index
    %c0_203 = arith.constant 0 : index
    %216 = vector.load %arg7[%c7_201, %c0_202, %c0_203] : memref<9x16x32xbf16, #tpu.memory_space<vmem>>, vector<1x16x32xbf16>
    %217 = vector.shape_cast %216 : vector<1x16x32xbf16> to vector<16x32xbf16>
    %cst_204 = arith.constant dense<0.000000e+00> : vector<16x128xf32>
    %218 = tpu.matmul %217, %158, %cst_204 {dimension_numbers = #tpu.dot_dimension_numbers<[1], [0], [0], [1], [0, 0, 1, 1], [], []>} : vector<16x32xbf16>, vector<32x128xbf16>, vector<16x128xf32> -> vector<16x128xf32>
    %219 = arith.truncf %218 : vector<16x128xf32> to vector<16x128xbf16>
    %c7_205 = arith.constant 7 : index
    %c0_206 = arith.constant 0 : index
    %c0_207 = arith.constant 0 : index
    %220 = vector.load %arg8[%c7_205, %c0_206, %c0_207] : memref<9x128x128xbf16, #tpu.memory_space<vmem>>, vector<1x128x128xbf16>
    %221 = vector.shape_cast %220 : vector<1x128x128xbf16> to vector<128x128xbf16>
    %cst_208 = arith.constant dense<0.000000e+00> : vector<16x128xf32>
    %222 = tpu.matmul %219, %221, %cst_208 {dimension_numbers = #tpu.dot_dimension_numbers<[1], [0], [0], [1], [0, 0, 1, 1], [], []>} : vector<16x128xbf16>, vector<128x128xbf16>, vector<16x128xf32> -> vector<16x128xf32>
    %223 = arith.addf %215, %222 : vector<16x128xf32>
    %c8_209 = arith.constant 8 : index
    %c0_210 = arith.constant 0 : index
    %c0_211 = arith.constant 0 : index
    %224 = vector.load %arg7[%c8_209, %c0_210, %c0_211] : memref<9x16x32xbf16, #tpu.memory_space<vmem>>, vector<1x16x32xbf16>
    %225 = vector.shape_cast %224 : vector<1x16x32xbf16> to vector<16x32xbf16>
    %cst_212 = arith.constant dense<0.000000e+00> : vector<16x128xf32>
    %226 = tpu.matmul %225, %158, %cst_212 {dimension_numbers = #tpu.dot_dimension_numbers<[1], [0], [0], [1], [0, 0, 1, 1], [], []>} : vector<16x32xbf16>, vector<32x128xbf16>, vector<16x128xf32> -> vector<16x128xf32>
    %227 = arith.truncf %226 : vector<16x128xf32> to vector<16x128xbf16>
    %c8_213 = arith.constant 8 : index
    %c0_214 = arith.constant 0 : index
    %c0_215 = arith.constant 0 : index
    %228 = vector.load %arg8[%c8_213, %c0_214, %c0_215] : memref<9x128x128xbf16, #tpu.memory_space<vmem>>, vector<1x128x128xbf16>
    %229 = vector.shape_cast %228 : vector<1x128x128xbf16> to vector<128x128xbf16>
    %cst_216 = arith.constant dense<0.000000e+00> : vector<16x128xf32>
    %230 = tpu.matmul %227, %229, %cst_216 {dimension_numbers = #tpu.dot_dimension_numbers<[1], [0], [0], [1], [0, 0, 1, 1], [], []>} : vector<16x128xbf16>, vector<128x128xbf16>, vector<16x128xf32> -> vector<16x128xf32>
    %231 = arith.addf %223, %230 : vector<16x128xf32>
    %c0_217 = arith.constant 0 : index
    %c0_218 = arith.constant 0 : index
    %232 = vector.load %arg9[%c0_217, %c0_218] : memref<1x128xf32, #tpu.memory_space<vmem>>, vector<1x128xf32>
    %233 = vector.broadcast %232 : vector<1x128xf32> to vector<16x128xf32>
    %234 = arith.addf %231, %233 : vector<16x128xf32>
    %cst_219 = arith.constant 0.000000e+00 : f32
    %235 = vector.broadcast %cst_219 : f32 to vector<16x128xf32>
    %236 = arith.maximumf %234, %235 : vector<16x128xf32>
    %237 = arith.truncf %236 : vector<16x128xf32> to vector<16x128xbf16>
    %238 = vector.extract_strided_slice %237 {offsets = [0, 0], sizes = [2, 128], strides = [1, 1]} : vector<16x128xbf16> to vector<2x128xbf16>
    %239 = arith.extf %238 : vector<2x128xbf16> to vector<2x128xf32>
    %240 = arith.truncf %239 : vector<2x128xf32> to vector<2x128xbf16>
    %c0_220 = arith.constant 0 : index
    %c0_221 = arith.constant 0 : index
    %241 = vector.load %arg10[%c0_220, %c0_221] : memref<128x512xbf16, #tpu.memory_space<vmem>>, vector<128x512xbf16>
    %cst_222 = arith.constant dense<0.000000e+00> : vector<2x512xf32>
    %242 = tpu.matmul %240, %241, %cst_222 {dimension_numbers = #tpu.dot_dimension_numbers<[1], [0], [0], [1], [0, 0, 1, 1], [], []>} : vector<2x128xbf16>, vector<128x512xbf16>, vector<2x512xf32> -> vector<2x512xf32>
    %c0_223 = arith.constant 0 : index
    %c0_224 = arith.constant 0 : index
    %243 = vector.load %arg11[%c0_223, %c0_224] : memref<1x512xf32, #tpu.memory_space<vmem>>, vector<1x512xf32>
    %244 = vector.broadcast %243 : vector<1x512xf32> to vector<2x512xf32>
    %245 = arith.addf %242, %244 : vector<2x512xf32>
    %cst_225 = arith.constant 0.000000e+00 : f32
    %246 = vector.broadcast %cst_225 : f32 to vector<2x512xf32>
    %247 = arith.maximumf %245, %246 : vector<2x512xf32>
    %248 = arith.truncf %247 : vector<2x512xf32> to vector<2x512xbf16>
    %c0_226 = arith.constant 0 : index
    %c0_227 = arith.constant 0 : index
    %249 = vector.load %arg12[%c0_226, %c0_227] : memref<512x128xbf16, #tpu.memory_space<vmem>>, vector<512x128xbf16>
    %cst_228 = arith.constant dense<0.000000e+00> : vector<2x128xf32>
    %250 = tpu.matmul %248, %249, %cst_228 {dimension_numbers = #tpu.dot_dimension_numbers<[1], [0], [0], [1], [0, 0, 1, 1], [], []>} : vector<2x512xbf16>, vector<512x128xbf16>, vector<2x128xf32> -> vector<2x128xf32>
    %c0_229 = arith.constant 0 : index
    %c0_230 = arith.constant 0 : index
    %251 = vector.load %arg13[%c0_229, %c0_230] : memref<1x128xf32, #tpu.memory_space<vmem>>, vector<1x128xf32>
    %252 = vector.broadcast %251 : vector<1x128xf32> to vector<2x128xf32>
    %253 = arith.addf %250, %252 : vector<2x128xf32>
    %cst_231 = arith.constant 0.000000e+00 : f32
    %254 = vector.broadcast %cst_231 : f32 to vector<2x128xf32>
    %255 = arith.maximumf %253, %254 : vector<2x128xf32>
    %256 = arith.truncf %255 : vector<2x128xf32> to vector<2x128xbf16>
    %c0_232 = arith.constant 0 : index
    %c0_233 = arith.constant 0 : index
    %257 = vector.load %arg14[%c0_232, %c0_233] : memref<128x128xbf16, #tpu.memory_space<vmem>>, vector<128x128xbf16>
    %cst_234 = arith.constant dense<0.000000e+00> : vector<2x128xf32>
    %258 = tpu.matmul %256, %257, %cst_234 {dimension_numbers = #tpu.dot_dimension_numbers<[1], [0], [0], [1], [0, 0, 1, 1], [], []>} : vector<2x128xbf16>, vector<128x128xbf16>, vector<2x128xf32> -> vector<2x128xf32>
    %c0_235 = arith.constant 0 : index
    %c0_236 = arith.constant 0 : index
    %259 = vector.load %arg15[%c0_235, %c0_236] : memref<1x128xf32, #tpu.memory_space<vmem>>, vector<1x128xf32>
    %260 = vector.broadcast %259 : vector<1x128xf32> to vector<2x128xf32>
    %261 = arith.addf %258, %260 : vector<2x128xf32>
    %262 = arith.negf %261 : vector<2x128xf32>
    %263 = math.exp %262 : vector<2x128xf32>
    %cst_237 = arith.constant 1.000000e+00 : f32
    %264 = vector.broadcast %cst_237 : f32 to vector<2x128xf32>
    %265 = arith.addf %264, %263 : vector<2x128xf32>
    %266 = arith.divf %264, %265 : vector<2x128xf32>
    %c0_238 = arith.constant 0 : index
    %c0_239 = arith.constant 0 : index
    %267 = vector.load %arg16[%c0_238, %c0_239] : memref<2x128xf32, #tpu.memory_space<vmem>>, vector<2x128xf32>
    tpu.vector_store %arg16[%c0_238, %c0_239], %266 {strides = array<i32>} : memref<2x128xf32, #tpu.memory_space<vmem>>, vector<2x128xf32>,
    return
  }
}

</mosaic_0001>

<llo_original>
// kernel: cnn4_fc3_forward.2
$region0: #{cnn4_fc3_forward.2}
  #allocation0 [shape = 'u32[]', space=smem, size = 0x4, offset = 0x4, fixed_abs, tag = 'smem constant byte address 0x4 - core index']
  #allocation1 [shape = 'u32[144,128]{1,0:T(1,128)}', space=vmem, size = 0x12000, scoped, tag = 'internal scratch']
  %s0 = inlined_call_operand.vmem [shape: bf16[512,64], index: 0, kind: input, shape index: {}]
  %s1 = inlined_call_operand.vmem [shape: bf16[64,128], index: 1, kind: input, shape index: {}]
  %s2 = inlined_call_operand.vmem [shape: f32[1,128], index: 2, kind: input, shape index: {}]
  %s3 = inlined_call_operand.vmem [shape: bf16[512,128], index: 3, kind: output, shape index: {}]
  %s4 = sld [smem:[#allocation0]]
  $region45: #{cnn4_fc3_forward.2} parent=0
    _
  %s6 = ssub.s32 1, %s4
  %s7 = scalar_select 0, %s6, %s4
  loop: start=0, step=1, limit=6
  $region2: #{cnn4_fc3_forward.2} parent=0 // loop_pre_header
    _
  $region3: #{cnn4_fc3_forward.2} parent=0 // loop_header
    %s9 = sphi 0, %s13
    %p10 = scmp.ge.s32.totalorder %s9, 6
    %s19 = sphi 0, %s21
    %s22 = sphi 0, %s19
    %s23 = sphi 0, %s22
    %s39 = sphi 0, %s23
    %s43 = sphi 0, %s43
    %s45 = sphi 0, %s43
    %s46 = sphi 0, %s45
    %s60 = sphi 0, %s46
    %s64 = sphi 0, %s64
    %s66 = sphi 0, %s64
    %s67 = sphi 0, %s66
    %s81 = sphi 0, %s67
    %s87 = sphi 0, %s89
    %s90 = sphi 0, %s87
    %s91 = sphi 0, %s90
    %s107 = sphi 0, %s91
  $region4: #{cnn4_fc3_forward.2} parent=0 // loop_header_branch
    %12 = sbr.rel (%p10) target = $region8
  $region5: #{cnn4_fc3_forward.2} parent=0 // loop_body
    %s14 = ssub.s32 %s9, 1
    %s15 = ssub.s32 %s9, 2
    %s16 = sadd.s32 %s9, 1
    %s17 = ssub.s32 %s9, %s16
    %p18 = scmp.eq.s32.totalorder %s17, 0
    %s20 = sadd.s32 %s19, 1
    %s21 = scalar_select %p18, %s19, %s20
    %p24 = pneg %p18
    %p25 = scmp.eq.s32.totalorder %s9, 3
    %p26 = por %p24, %p25
    %p27 = scmp.ne.s32.totalorder %s19, %s22
    %p28 = scmp.eq.s32.totalorder %s9, 0
    %p29 = por %p27, %p28
    %p30 = scmp.ne.s32.totalorder %s19, %s22
    %p31 = scmp.eq.s32.totalorder %s14, 3
    %p32 = por %p30, %p31
    %p33 = scmp.ne.s32.totalorder %s22, %s23
    %p34 = scmp.eq.s32.totalorder %s14, 0
    %p35 = por %p33, %p34
    %p36 = scmp.ne.s32.totalorder %s22, %s23
    %p37 = scmp.eq.s32.totalorder %s15, 3
    %p38 = por %p36, %p37
    %p40 = scmp.ne.s32.totalorder %s23, %s39
    %p41 = scmp.eq.s32.totalorder %s15, 0
    %p42 = por %p40, %p41
    %s44 = sadd.s32 %s43, 1
    %p47 = scmp.eq.s32.totalorder %s9, 3
    %p48 = scmp.ne.s32.totalorder %s43, %s45
    %p49 = scmp.eq.s32.totalorder %s9, 0
    %p50 = por %p48, %p49
    %p51 = scmp.ne.s32.totalorder %s43, %s45
    %p52 = scmp.eq.s32.totalorder %s14, 3
    %p53 = por %p51, %p52
    %p54 = scmp.ne.s32.totalorder %s45, %s46
    %p55 = scmp.eq.s32.totalorder %s14, 0
    %p56 = por %p54, %p55
    %p57 = scmp.ne.s32.totalorder %s45, %s46
    %p58 = scmp.eq.s32.totalorder %s15, 3
    %p59 = por %p57, %p58
    %p61 = scmp.ne.s32.totalorder %s46, %s60
    %p62 = scmp.eq.s32.totalorder %s15, 0
    %p63 = por %p61, %p62
    %s65 = sadd.s32 %s64, 1
    %p68 = scmp.eq.s32.totalorder %s9, 3
    %p69 = scmp.ne.s32.totalorder %s64, %s66
    %p70 = scmp.eq.s32.totalorder %s9, 0
    %p71 = por %p69, %p70
    %p72 = scmp.ne.s32.totalorder %s64, %s66
    %p73 = scmp.eq.s32.totalorder %s14, 3
    %p74 = por %p72, %p73
    %p75 = scmp.ne.s32.totalorder %s66, %s67
    %p76 = scmp.eq.s32.totalorder %s14, 0
    %p77 = por %p75, %p76
    %p78 = scmp.ne.s32.totalorder %s66, %s67
    %p79 = scmp.eq.s32.totalorder %s15, 3
    %p80 = por %p78, %p79
    %p82 = scmp.ne.s32.totalorder %s67, %s81
    %p83 = scmp.eq.s32.totalorder %s15, 0
    %p84 = por %p82, %p83
    %s85 = ssub.s32 %s9, %s16
    %p86 = scmp.eq.s32.totalorder %s85, 0
    %s88 = sadd.s32 %s87, 1
    %s89 = scalar_select %p86, %s87, %s88
    %p92 = pneg %p86
    %p93 = scmp.eq.s32.totalorder %s9, 3
    %p94 = por %p92, %p93
    %p95 = scmp.ne.s32.totalorder %s87, %s90
    %p96 = scmp.eq.s32.totalorder %s9, 0
    %p97 = por %p95, %p96
    %p98 = scmp.ne.s32.totalorder %s87, %s90
    %p99 = scmp.eq.s32.totalorder %s14, 3
    %p100 = por %p98, %p99
    %p101 = scmp.ne.s32.totalorder %s90, %s91
    %p102 = scmp.eq.s32.totalorder %s14, 0
    %p103 = por %p101, %p102
    %p104 = scmp.ne.s32.totalorder %s90, %s91
    %p105 = scmp.eq.s32.totalorder %s15, 3
    %p106 = por %p104, %p105
    %p108 = scmp.ne.s32.totalorder %s91, %s107
    %p109 = scmp.eq.s32.totalorder %s15, 0
    %p110 = por %p108, %p109
    %p111 = scmp.le.s32.totalorder 1, %s9
    %p112 = scmp.lt.s32.totalorder %s9, 5
    %p113 = pnand %p111, %p112
    %p114 = pneg %p113
    // Predicated region
    $region9: #{cnn4_fc3_forward.2} parent=5 // pred_check
      _
    $region10: #{cnn4_fc3_forward.2} parent=5 // pred_check_branch
      %116 = sbr.rel (%p113) target = $region12
    $region11: #{cnn4_fc3_forward.2} parent=5 // pred_region
      %s117 = ssub.s32 %s9, 1
      // Predicated region
      $region13: #{cnn4_fc3_forward.2} parent=11 // pred_check
        %p118 = pneg %p56
      $region14: #{cnn4_fc3_forward.2} parent=11 // pred_check_branch
        %120 = sbr.rel (%p118) target = $region16
      $region15: #{cnn4_fc3_forward.2} parent=11 // pred_region
        _
      $region16: #{cnn4_fc3_forward.2} parent=11 // pred_fallthru
        _
      // Predicated region
      $region17: #{cnn4_fc3_forward.2} parent=11 // pred_check
        %p121 = pneg %p77
      $region18: #{cnn4_fc3_forward.2} parent=11 // pred_check_branch
        %123 = sbr.rel (%p121) target = $region20
      $region19: #{cnn4_fc3_forward.2} parent=11 // pred_region
        _
      $region20: #{cnn4_fc3_forward.2} parent=11 // pred_fallthru
        _
    $region12: #{cnn4_fc3_forward.2} parent=5 // pred_fallthru
      _
    %p124 = scmp.lt.s32.totalorder %s9, 4
    // Predicated region
    $region21: #{cnn4_fc3_forward.2} parent=5 // pred_check
      %p125 = pneg %p124
    $region22: #{cnn4_fc3_forward.2} parent=5 // pred_check_branch
      %127 = sbr.rel (%p125) target = $region24
    $region23: #{cnn4_fc3_forward.2} parent=5 // pred_region
      // Predicated region
      $region25: #{cnn4_fc3_forward.2} parent=23 // pred_check
        %p128 = pneg %p29
      $region26: #{cnn4_fc3_forward.2} parent=23 // pred_check_branch
        %130 = sbr.rel (%p128) target = $region28
      $region27: #{cnn4_fc3_forward.2} parent=23 // pred_region
        %s131 = smul.u32 16, %s9
        %p132 = scmp.lt.s32.totalorder %s131, 63
        %s133 = scalar_select %p132, %s131, 63
        %s134 = smul.addr %s133, 4
        %s135 = scalar_lea.vmem %s0, %s134
        %s136 = smul.u32 16, %s9
      $region28: #{cnn4_fc3_forward.2} parent=23 // pred_fallthru
        _
    $region24: #{cnn4_fc3_forward.2} parent=5 // pred_fallthru
      _
    %p137 = scmp.le.s32.totalorder 1, %s9
    %p138 = scmp.lt.s32.totalorder %s9, 5
    %p139 = pnand %p137, %p138
    %p140 = pneg %p139
    // Predicated region
    $region29: #{cnn4_fc3_forward.2} parent=5 // pred_check
      _
    $region30: #{cnn4_fc3_forward.2} parent=5 // pred_check_branch
      %142 = sbr.rel (%p139) target = $region32
    $region31: #{cnn4_fc3_forward.2} parent=5 // pred_region
      %s143 = ssub.s32 %s9, 1
      %s144 = smul.u32 16, %s14
      %p145 = scmp.lt.s32.totalorder %s144, 63
      %s146 = scalar_select %p145, %s144, 63
      %s147 = smul.addr %s146, 4
      %s148 = scalar_lea.vmem %s0, %s147
      %p149 = pneg %p35
      %p150 = pneg %p32
      %p151 = pneg %p56
      %p152 = pneg %p53
      %p153 = pneg %p77
      %p154 = pneg %p74
      %p155 = pneg %p103
      %p156 = pneg %p100
      %s157 = smul.u32 16, %s14
      %p158 = scmp.lt.s32.totalorder %s157, 63
      %s159 = scalar_select %p158, %s157, 63
      %s160 = smul.addr %s159, 4
      %s161 = scalar_lea.vmem %s3, %s160
      %s162 = smul.u32 16, %s14
      %p163 = scmp.lt.s32.totalorder %s162, 63
      %s164 = scalar_select %p163, %s162, 63
      %s165 = smul.addr %s164, 4
      %s166 = scalar_lea.vmem %s0, %s165
      %s167 = smul.u32 16, %s14
      %s168 = smul.u32 16, %s14
      %p169 = scmp.lt.s32.totalorder %s168, 63
      %s170 = scalar_select %p169, %s168, 63
      %s171 = smul.addr %s170, 4
      %s172 = scalar_lea.vmem %s3, %s171
      %s173 = smul.u32 16, %s14
      %v175 = vld [vmem:[%s166] sm:$0xf]
      %v176 = vld [vmem:[%s166 + $0x4] sm:$0xf]
      %v177 = vld [vmem:[%s166 + $0x8] sm:$0xf]
      %v178 = vld [vmem:[%s166 + $0xc] sm:$0xf]
      %v179 = vld [vmem:[%s166 + $0x10] sm:$0xf]
      %v180 = vld [vmem:[%s166 + $0x14] sm:$0xf]
      %v181 = vld [vmem:[%s166 + $0x18] sm:$0xf]
      %v182 = vld [vmem:[%s166 + $0x1c] sm:$0xf]
      %v183 = vld [vmem:[%s166 + $0x20] sm:$0xf]
      %v184 = vld [vmem:[%s166 + $0x24] sm:$0xf]
      %v185 = vld [vmem:[%s166 + $0x28] sm:$0xf]
      %v186 = vld [vmem:[%s166 + $0x2c] sm:$0xf]
      %v187 = vld [vmem:[%s166 + $0x30] sm:$0xf]
      %v188 = vld [vmem:[%s166 + $0x34] sm:$0xf]
      %v189 = vld [vmem:[%s166 + $0x38] sm:$0xf]
      %v190 = vld [vmem:[%s166 + $0x3c] sm:$0xf]
      %v191 = vld [vmem:[%s1] sm:$0xf]
      %v192 = vld [vmem:[%s1 + $0x4] sm:$0xf]
      %v193 = vld [vmem:[%s1 + $0x8] sm:$0xf]
      %v194 = vld [vmem:[%s1 + $0xc] sm:$0xf]
      %v195 = vld [vmem:[%s1 + $0x10] sm:$0xf]
      %v196 = vld [vmem:[%s1 + $0x14] sm:$0xf]
      %v197 = vld [vmem:[%s1 + $0x18] sm:$0xf]
      %v198 = vld [vmem:[%s1 + $0x1c] sm:$0xf]
      %v199 = vld [vmem:[%s2] sm:$0x1]
      %v201 = vlaneseq
      %v202 = vshrl.u32 %v201, 7
      %v203 = vsub.s32 0, %v202
      %v204 = vrot.slane %v199, %v203
      %v222 = vunpack.c.l.b16 %v175
      %v223 = vunpack.c.l.b16 %v176
      %v224 = vunpack.c.l.b16 %v177
      %v225 = vunpack.c.l.b16 %v178
      %v226 = vunpack.c.l.b16 %v179
      %v227 = vunpack.c.l.b16 %v180
      %v228 = vunpack.c.l.b16 %v181
      %v229 = vunpack.c.l.b16 %v182
      %v230 = vunpack.c.l.b16 %v183
      %v231 = vunpack.c.l.b16 %v184
      %v232 = vunpack.c.l.b16 %v185
      %v233 = vunpack.c.l.b16 %v186
      %v234 = vunpack.c.l.b16 %v187
      %v235 = vunpack.c.l.b16 %v188
      %v236 = vunpack.c.l.b16 %v189
      %v237 = vunpack.c.l.b16 %v190
      %v238 = vpack.c.b16 %v223, %v222
      %v239 = vpack.c.b16 %v225, %v224
      %v240 = vpack.c.b16 %v227, %v226
      %v241 = vpack.c.b16 %v229, %v228
      %v242 = vpack.c.b16 %v231, %v230
      %v243 = vpack.c.b16 %v233, %v232
      %v244 = vpack.c.b16 %v235, %v234
      %v245 = vpack.c.b16 %v237, %v236
      %v254 = vunpack.c.l.b16 %v191
      %v255 = vunpack.c.l.b16 %v192
      %v256 = vunpack.c.l.b16 %v193
      %v257 = vunpack.c.l.b16 %v194
      %v258 = vunpack.c.l.b16 %v195
      %v259 = vunpack.c.l.b16 %v196
      %v260 = vunpack.c.l.b16 %v197
      %v261 = vunpack.c.l.b16 %v198
      %v262 = vpack.c.b16 %v255, %v254
      %v263 = vpack.c.b16 %v257, %v256
      %v264 = vpack.c.b16 %v259, %v258
      %v265 = vpack.c.b16 %v261, %v260
      %vm270 = vcmask 523264
      %v272 = vsel %vm270, %v238, 0
      %v275 = vsel %vm270, %v239, 0
      %v278 = vsel %vm270, %v240, 0
      %v281 = vsel %vm270, %v241, 0
      %v284 = vsel %vm270, %v242, 0
      %v287 = vsel %vm270, %v243, 0
      %v290 = vsel %vm270, %v244, 0
      %v293 = vsel %vm270, %v245, 0
      %295 = vmatprep.subr.bf16.mxu0 0
      %296 = vmatpush1.bf16.msra.mxu0 0
      %297 = vmatprep.subr.bf16.mxu0 0
      %298 = vmatpush1.bf16.msra.mxu0 0
      %299 = vmatprep.subr.bf16.mxu0 0
      %300 = vmatpush1.bf16.msra.mxu0 0
      %301 = vmatprep.subr.bf16.mxu0 0
      %302 = vmatpush1.bf16.msra.mxu0 0
      %303 = vmatprep.subr.bf16.mxu0 0
      %304 = vmatpush1.bf16.msra.mxu0 %v265
      %305 = vmatprep.subr.bf16.mxu0 0
      %306 = vmatpush1.bf16.msra.mxu0 %v264
      %307 = vmatprep.subr.bf16.mxu0 0
      %308 = vmatpush1.bf16.msra.mxu0 %v263
      %309 = vmatprep.subr.bf16.mxu0 0
      %310 = vmatpush1.bf16.msra.mxu0 %v262
      %311 = vmatprep.subr.bf16.mxu0 0
      %312 = vmatpush2.bf16.msra.mxu0 0
      %313 = vmatprep.subr.bf16.mxu0 0
      %314 = vmatpush2.bf16.msra.mxu0 0
      %315 = vmatprep.subr.bf16.mxu0 0
      %316 = vmatpush2.bf16.msra.mxu0 0
      %317 = vmatprep.subr.bf16.mxu0 0
      %318 = vmatpush2.bf16.msra.mxu0 0
      %319 = vmatprep.subr.bf16.mxu0 0
      %320 = vmatpush2.bf16.msra.mxu0 0
      %321 = vmatprep.subr.bf16.mxu0 0
      %322 = vmatpush2.bf16.msra.mxu0 0
      %323 = vmatprep.subr.bf16.mxu0 0
      %324 = vmatpush2.bf16.msra.mxu0 0
      %325 = vmatprep.subr.bf16.mxu0 0
      %326 = vmatpush2.bf16.msra.mxu0 0
      %327 = vmatprep.mubr.bf16.mxu0 0
      %328 = vmatmul.mubr.bf16.gmra.mxu0 %v272
      %v329 = vpop.f32.mrf.mxu0
      %v330 = vadd.f32 %v204, %v329
      %v331 = vpop.f32.mrf.mxu0
      %v332 = vpop.f32.mrf.mxu0
      %v333 = vadd.f32 %v204, %v332
      %v334 = vpop.f32.mrf.mxu0
      %335 = vmatprep.mubr.bf16.mxu0 0
      %336 = vmatmul.mubr.bf16.gmra.mxu0 %v275
      %v337 = vpop.f32.mrf.mxu0
      %v338 = vadd.f32 %v204, %v337
      %v339 = vpop.f32.mrf.mxu0
      %v340 = vpop.f32.mrf.mxu0
      %v341 = vadd.f32 %v204, %v340
      %v342 = vpop.f32.mrf.mxu0
      %343 = vmatprep.mubr.bf16.mxu0 0
      %344 = vmatmul.mubr.bf16.gmra.mxu0 %v278
      %v345 = vpop.f32.mrf.mxu0
      %v346 = vadd.f32 %v204, %v345
      %v347 = vpop.f32.mrf.mxu0
      %v348 = vpop.f32.mrf.mxu0
      %v349 = vadd.f32 %v204, %v348
      %v350 = vpop.f32.mrf.mxu0
      %351 = vmatprep.mubr.bf16.mxu0 0
      %352 = vmatmul.mubr.bf16.gmra.mxu0 %v281
      %v353 = vpop.f32.mrf.mxu0
      %v354 = vadd.f32 %v204, %v353
      %v355 = vpop.f32.mrf.mxu0
      %v356 = vpop.f32.mrf.mxu0
      %v357 = vadd.f32 %v204, %v356
      %v358 = vpop.f32.mrf.mxu0
      %359 = vmatprep.mubr.bf16.mxu0 0
      %360 = vmatmul.mubr.bf16.gmra.mxu0 %v284
      %v361 = vpop.f32.mrf.mxu0
      %v362 = vadd.f32 %v204, %v361
      %v363 = vpop.f32.mrf.mxu0
      %v364 = vpop.f32.mrf.mxu0
      %v365 = vadd.f32 %v204, %v364
      %v366 = vpop.f32.mrf.mxu0
      %367 = vmatprep.mubr.bf16.mxu0 0
      %368 = vmatmul.mubr.bf16.gmra.mxu0 %v287
      %v369 = vpop.f32.mrf.mxu0
      %v370 = vadd.f32 %v204, %v369
      %v371 = vpop.f32.mrf.mxu0
      %v372 = vpop.f32.mrf.mxu0
      %v373 = vadd.f32 %v204, %v372
      %v374 = vpop.f32.mrf.mxu0
      %375 = vmatprep.mubr.bf16.mxu0 0
      %376 = vmatmul.mubr.bf16.gmra.mxu0 %v290
      %v377 = vpop.f32.mrf.mxu0
      %v378 = vadd.f32 %v204, %v377
      %v379 = vpop.f32.mrf.mxu0
      %v380 = vpop.f32.mrf.mxu0
      %v381 = vadd.f32 %v204, %v380
      %v382 = vpop.f32.mrf.mxu0
      %383 = vmatprep.mubr.bf16.mxu0 0
      %384 = vmatmul.mubr.bf16.gmra.mxu0 %v293
      %v385 = vpop.f32.mrf.mxu0
      %v386 = vadd.f32 %v204, %v385
      %v387 = vpop.f32.mrf.mxu0
      %v388 = vpop.f32.mrf.mxu0
      %v389 = vadd.f32 %v204, %v388
      %v390 = vpop.f32.mrf.mxu0
      %391 = vdwg.mxu0
      %v392 = vmax.f32 %v330, 0.0
      %v393 = vmax.f32 %v333, 0.0
      %v394 = vmax.f32 %v338, 0.0
      %v395 = vmax.f32 %v341, 0.0
      %v396 = vmax.f32 %v346, 0.0
      %v397 = vmax.f32 %v349, 0.0
      %v398 = vmax.f32 %v354, 0.0
      %v399 = vmax.f32 %v357, 0.0
      %v400 = vmax.f32 %v362, 0.0
      %v401 = vmax.f32 %v365, 0.0
      %v402 = vmax.f32 %v370, 0.0
      %v403 = vmax.f32 %v373, 0.0
      %v404 = vmax.f32 %v378, 0.0
      %v405 = vmax.f32 %v381, 0.0
      %v406 = vmax.f32 %v386, 0.0
      %v407 = vmax.f32 %v389, 0.0
      %v408 = vpack.c.bf16 %v393, %v392
      %v409 = vpack.c.bf16 %v395, %v394
      %v410 = vpack.c.bf16 %v397, %v396
      %v411 = vpack.c.bf16 %v399, %v398
      %v412 = vpack.c.bf16 %v401, %v400
      %v413 = vpack.c.bf16 %v403, %v402
      %v414 = vpack.c.bf16 %v405, %v404
      %v415 = vpack.c.bf16 %v407, %v406
      %v424 = vunpack.c.l.b16 %v408
      %v425 = vunpack.c.h.b16 %v408
      %v426 = vunpack.c.l.b16 %v409
      %v427 = vunpack.c.h.b16 %v409
      %v428 = vunpack.c.l.b16 %v410
      %v429 = vunpack.c.h.b16 %v410
      %v430 = vunpack.c.l.b16 %v411
      %v431 = vunpack.c.h.b16 %v411
      %v432 = vunpack.c.l.b16 %v412
      %v433 = vunpack.c.h.b16 %v412
      %v434 = vunpack.c.l.b16 %v413
      %v435 = vunpack.c.h.b16 %v413
      %v436 = vunpack.c.l.b16 %v414
      %v437 = vunpack.c.h.b16 %v414
      %v438 = vunpack.c.l.b16 %v415
      %v439 = vunpack.c.h.b16 %v415
      %v440 = vpack.c.b16 %v424, %v424
      %v441 = vpack.c.b16 %v425, %v425
      %v442 = vpack.c.b16 %v426, %v426
      %v443 = vpack.c.b16 %v427, %v427
      %v444 = vpack.c.b16 %v428, %v428
      %v445 = vpack.c.b16 %v429, %v429
      %v446 = vpack.c.b16 %v430, %v430
      %v447 = vpack.c.b16 %v431, %v431
      %v448 = vpack.c.b16 %v432, %v432
      %v449 = vpack.c.b16 %v433, %v433
      %v450 = vpack.c.b16 %v434, %v434
      %v451 = vpack.c.b16 %v435, %v435
      %v452 = vpack.c.b16 %v436, %v436
      %v453 = vpack.c.b16 %v437, %v437
      %v454 = vpack.c.b16 %v438, %v438
      %v455 = vpack.c.b16 %v439, %v439
      %472 = vst [vmem:[%s172] sm:$0xf] %v440
      %473 = vst [vmem:[%s172 + $0x4] sm:$0xf] %v441
      %474 = vst [vmem:[%s172 + $0x8] sm:$0xf] %v442
      %475 = vst [vmem:[%s172 + $0xc] sm:$0xf] %v443
      %476 = vst [vmem:[%s172 + $0x10] sm:$0xf] %v444
      %477 = vst [vmem:[%s172 + $0x14] sm:$0xf] %v445
      %478 = vst [vmem:[%s172 + $0x18] sm:$0xf] %v446
      %479 = vst [vmem:[%s172 + $0x1c] sm:$0xf] %v447
      %480 = vst [vmem:[%s172 + $0x20] sm:$0xf] %v448
      %481 = vst [vmem:[%s172 + $0x24] sm:$0xf] %v449
      %482 = vst [vmem:[%s172 + $0x28] sm:$0xf] %v450
      %483 = vst [vmem:[%s172 + $0x2c] sm:$0xf] %v451
      %484 = vst [vmem:[%s172 + $0x30] sm:$0xf] %v452
      %485 = vst [vmem:[%s172 + $0x34] sm:$0xf] %v453
      %486 = vst [vmem:[%s172 + $0x38] sm:$0xf] %v454
      %487 = vst [vmem:[%s172 + $0x3c] sm:$0xf] %v455
      %s488 = smul.u32 16, %s14
      %p489 = scmp.lt.s32.totalorder %s488, 63
      %s490 = scalar_select %p489, %s488, 63
      %s491 = smul.addr %s490, 4
      %s492 = scalar_lea.vmem %s3, %s491
      // Predicated region
      $region33: #{cnn4_fc3_forward.2} parent=31 // pred_check
        %p493 = pneg %p100
      $region34: #{cnn4_fc3_forward.2} parent=31 // pred_check_branch
        %495 = sbr.rel (%p493) target = $region36
      $region35: #{cnn4_fc3_forward.2} parent=31 // pred_region
        %s496 = smul.u32 16, %s14
      $region36: #{cnn4_fc3_forward.2} parent=31 // pred_fallthru
        _
    $region32: #{cnn4_fc3_forward.2} parent=5 // pred_fallthru
      _
    %p497 = scmp.le.s32.totalorder 2, %s9
    // Predicated region
    $region37: #{cnn4_fc3_forward.2} parent=5 // pred_check
      %p498 = pneg %p497
    $region38: #{cnn4_fc3_forward.2} parent=5 // pred_check_branch
      %500 = sbr.rel (%p498) target = $region40
    $region39: #{cnn4_fc3_forward.2} parent=5 // pred_region
      %s501 = ssub.s32 %s9, 2
      // Predicated region
      $region41: #{cnn4_fc3_forward.2} parent=39 // pred_check
        %p502 = pneg %p106
      $region42: #{cnn4_fc3_forward.2} parent=39 // pred_check_branch
        %504 = sbr.rel (%p502) target = $region44
      $region43: #{cnn4_fc3_forward.2} parent=39 // pred_region
        %s505 = smul.u32 16, %s15
        %p506 = scmp.lt.s32.totalorder %s505, 63
        %s507 = scalar_select %p506, %s505, 63
        %s508 = smul.addr %s507, 4
        %s509 = scalar_lea.vmem %s3, %s508
      $region44: #{cnn4_fc3_forward.2} parent=39 // pred_fallthru
        _
    $region40: #{cnn4_fc3_forward.2} parent=5 // pred_fallthru
      _
  $region6: #{cnn4_fc3_forward.2} parent=0 // loop_footer
    %s13 = sadd.s32 1, %s9
  $region7: #{cnn4_fc3_forward.2} parent=0 // loop_footer_branch
    %8 = sbr.rel target = $region3
  $region8: #{cnn4_fc3_forward.2} parent=0 // loop_exit
    _

// kernel: cnn4_fc3_forward.3
$region0: #{cnn4_fc3_forward.3}
  #allocation0 [shape = 'u32[]', space=smem, size = 0x4, offset = 0x4, fixed_abs, tag = 'smem constant byte address 0x4 - core index']
  #allocation1 [shape = 'u32[144,128]{1,0:T(1,128)}', space=vmem, size = 0x12000, scoped, tag = 'internal scratch']
  %s0 = inlined_call_operand.vmem [shape: bf16[512,128], index: 0, kind: input, shape index: {}]
  %s1 = inlined_call_operand.vmem [shape: bf16[9,112,512], index: 1, kind: input, shape index: {}]
  %s2 = inlined_call_operand.vmem [shape: bf16[9,128,128], index: 2, kind: input, shape index: {}]
  %s3 = inlined_call_operand.vmem [shape: f32[1,128], index: 3, kind: input, shape index: {}]
  %s4 = inlined_call_operand.vmem [shape: bf16[9,32,112], index: 4, kind: input, shape index: {}]
  %s5 = inlined_call_operand.vmem [shape: bf16[9,128,128], index: 5, kind: input, shape index: {}]
  %s6 = inlined_call_operand.vmem [shape: f32[1,128], index: 6, kind: input, shape index: {}]
  %s7 = inlined_call_operand.vmem [shape: bf16[9,16,32], index: 7, kind: input, shape index: {}]
  %s8 = inlined_call_operand.vmem [shape: bf16[9,128,128], index: 8, kind: input, shape index: {}]
  %s9 = inlined_call_operand.vmem [shape: f32[1,128], index: 9, kind: input, shape index: {}]
  %s10 = inlined_call_operand.vmem [shape: bf16[128,512], index: 10, kind: input, shape index: {}]
  %s11 = inlined_call_operand.vmem [shape: f32[1,512], index: 11, kind: input, shape index: {}]
  %s12 = inlined_call_operand.vmem [shape: bf16[512,128], index: 12, kind: input, shape index: {}]
  %s13 = inlined_call_operand.vmem [shape: f32[1,128], index: 13, kind: input, shape index: {}]
  %s14 = inlined_call_operand.vmem [shape: bf16[128,128], index: 14, kind: input, shape index: {}]
  %s15 = inlined_call_operand.vmem [shape: f32[1,128], index: 15, kind: input, shape index: {}]
  %s16 = inlined_call_operand.hbm [shape: f32[2,128], index: 16, kind: output, shape index: {}]
  %s17 = sld [smem:[#allocation0]]
  $region74: #{cnn4_fc3_forward.3} parent=0
    _
  %s19 = ssub.s32 1, %s17
  %s20 = scalar_select 0, %s19, %s17
  $region1: #{cnn4_fc3_forward.3} parent=0
    #allocation2 [shape = 'u8[1024]{0}', space=vmem, size = 0x400, scoped, tag = 'output window, operand 0, single buffered']
    #allocation3 [shape = 's32[1]{0}', space=sflag, size = 0x4, scoped, tag = 'scoped memory for cnn4_fc3_forward.3']
    %21 = vsyncpa [#allocation3], 0
    // Predicated region
    $region2: #{cnn4_fc3_forward.3} parent=1 // pred_check
      _
    $region3: #{cnn4_fc3_forward.3} parent=1 // pred_check_branch
      %23 = sbr.rel (0) target = $region5
    $region4: #{cnn4_fc3_forward.3} parent=1 // pred_region
      _
    $region5: #{cnn4_fc3_forward.3} parent=1 // pred_fallthru
      _
    // Predicated region
    $region6: #{cnn4_fc3_forward.3} parent=1 // pred_check
      _
    $region7: #{cnn4_fc3_forward.3} parent=1 // pred_check_branch
      %25 = sbr.rel (0) target = $region9
    $region8: #{cnn4_fc3_forward.3} parent=1 // pred_region
      _
    $region9: #{cnn4_fc3_forward.3} parent=1 // pred_fallthru
      _
    // Predicated region
    $region10: #{cnn4_fc3_forward.3} parent=1 // pred_check
      _
    $region11: #{cnn4_fc3_forward.3} parent=1 // pred_check_branch
      %27 = sbr.rel (0) target = $region13
    $region12: #{cnn4_fc3_forward.3} parent=1 // pred_region
      _
    $region13: #{cnn4_fc3_forward.3} parent=1 // pred_fallthru
      _
    // Predicated region
    $region14: #{cnn4_fc3_forward.3} parent=1 // pred_check
      _
    $region15: #{cnn4_fc3_forward.3} parent=1 // pred_check_branch
      %29 = sbr.rel (0) target = $region17
    $region16: #{cnn4_fc3_forward.3} parent=1 // pred_region
      _
    $region17: #{cnn4_fc3_forward.3} parent=1 // pred_fallthru
      _
    // Predicated region
    $region18: #{cnn4_fc3_forward.3} parent=1 // pred_check
      _
    $region19: #{cnn4_fc3_forward.3} parent=1 // pred_check_branch
      %31 = sbr.rel (0) target = $region21
    $region20: #{cnn4_fc3_forward.3} parent=1 // pred_region
      _
    $region21: #{cnn4_fc3_forward.3} parent=1 // pred_fallthru
      _
    // Predicated region
    $region22: #{cnn4_fc3_forward.3} parent=1 // pred_check
      _
    $region23: #{cnn4_fc3_forward.3} parent=1 // pred_check_branch
      %33 = sbr.rel (0) target = $region25
    $region24: #{cnn4_fc3_forward.3} parent=1 // pred_region
      _
    $region25: #{cnn4_fc3_forward.3} parent=1 // pred_fallthru
      _
    // Predicated region
    $region26: #{cnn4_fc3_forward.3} parent=1 // pred_check
      _
    $region27: #{cnn4_fc3_forward.3} parent=1 // pred_check_branch
      %35 = sbr.rel (0) target = $region29
    $region28: #{cnn4_fc3_forward.3} parent=1 // pred_region
      _
    $region29: #{cnn4_fc3_forward.3} parent=1 // pred_fallthru
      _
    // Predicated region
    $region30: #{cnn4_fc3_forward.3} parent=1 // pred_check
      _
    $region31: #{cnn4_fc3_forward.3} parent=1 // pred_check_branch
      %37 = sbr.rel (0) target = $region33
    $region32: #{cnn4_fc3_forward.3} parent=1 // pred_region
      _
    $region33: #{cnn4_fc3_forward.3} parent=1 // pred_fallthru
      _
    // Predicated region
    $region34: #{cnn4_fc3_forward.3} parent=1 // pred_check
      _
    $region35: #{cnn4_fc3_forward.3} parent=1 // pred_check_branch
      %39 = sbr.rel (0) target = $region37
    $region36: #{cnn4_fc3_forward.3} parent=1 // pred_region
      _
    $region37: #{cnn4_fc3_forward.3} parent=1 // pred_fallthru
      _
    // Predicated region
    $region38: #{cnn4_fc3_forward.3} parent=1 // pred_check
      _
    $region39: #{cnn4_fc3_forward.3} parent=1 // pred_check_branch
      %41 = sbr.rel (0) target = $region41
    $region40: #{cnn4_fc3_forward.3} parent=1 // pred_region
      _
    $region41: #{cnn4_fc3_forward.3} parent=1 // pred_fallthru
      _
    // Predicated region
    $region42: #{cnn4_fc3_forward.3} parent=1 // pred_check
      _
    $region43: #{cnn4_fc3_forward.3} parent=1 // pred_check_branch
      %43 = sbr.rel (0) target = $region45
    $region44: #{cnn4_fc3_forward.3} parent=1 // pred_region
      _
    $region45: #{cnn4_fc3_forward.3} parent=1 // pred_fallthru
      _
    // Predicated region
    $region46: #{cnn4_fc3_forward.3} parent=1 // pred_check
      _
    $region47: #{cnn4_fc3_forward.3} parent=1 // pred_check_branch
      %45 = sbr.rel (0) target = $region49
    $region48: #{cnn4_fc3_forward.3} parent=1 // pred_region
      _
    $region49: #{cnn4_fc3_forward.3} parent=1 // pred_fallthru
      _
    // Predicated region
    $region50: #{cnn4_fc3_forward.3} parent=1 // pred_check
      _
    $region51: #{cnn4_fc3_forward.3} parent=1 // pred_check_branch
      %47 = sbr.rel (0) target = $region53
    $region52: #{cnn4_fc3_forward.3} parent=1 // pred_region
      _
    $region53: #{cnn4_fc3_forward.3} parent=1 // pred_fallthru
      _
    // Predicated region
    $region54: #{cnn4_fc3_forward.3} parent=1 // pred_check
      _
    $region55: #{cnn4_fc3_forward.3} parent=1 // pred_check_branch
      %49 = sbr.rel (0) target = $region57
    $region56: #{cnn4_fc3_forward.3} parent=1 // pred_region
      _
    $region57: #{cnn4_fc3_forward.3} parent=1 // pred_fallthru
      _
    // Predicated region
    $region58: #{cnn4_fc3_forward.3} parent=1 // pred_check
      _
    $region59: #{cnn4_fc3_forward.3} parent=1 // pred_check_branch
      %51 = sbr.rel (0) target = $region61
    $region60: #{cnn4_fc3_forward.3} parent=1 // pred_region
      _
    $region61: #{cnn4_fc3_forward.3} parent=1 // pred_fallthru
      _
    // Predicated region
    $region62: #{cnn4_fc3_forward.3} parent=1 // pred_check
      _
    $region63: #{cnn4_fc3_forward.3} parent=1 // pred_check_branch
      %53 = sbr.rel (0) target = $region65
    $region64: #{cnn4_fc3_forward.3} parent=1 // pred_region
      _
    $region65: #{cnn4_fc3_forward.3} parent=1 // pred_fallthru
      _
    %v55 = vld [vmem:[%s0] sm:$0xf]
    %v56 = vld [vmem:[%s0 + $0x4] sm:$0xf]
    %v57 = vld [vmem:[%s0 + $0x8] sm:$0xf]
    %v58 = vld [vmem:[%s0 + $0xc] sm:$0xf]
    %v59 = vld [vmem:[%s0 + $0x10] sm:$0xf]
    %v60 = vld [vmem:[%s0 + $0x14] sm:$0xf]
    %v61 = vld [vmem:[%s0 + $0x18] sm:$0xf]
    %v62 = vld [vmem:[%s0 + $0x1c] sm:$0xf]
    %v63 = vld [vmem:[%s0 + $0x20] sm:$0xf]
    %v64 = vld [vmem:[%s0 + $0x24] sm:$0xf]
    %v65 = vld [vmem:[%s0 + $0x28] sm:$0xf]
    %v66 = vld [vmem:[%s0 + $0x2c] sm:$0xf]
    %v67 = vld [vmem:[%s0 + $0x30] sm:$0xf]
    %v68 = vld [vmem:[%s0 + $0x34] sm:$0xf]
    %v69 = vld [vmem:[%s0 + $0x38] sm:$0xf]
    %v70 = vld [vmem:[%s0 + $0x3c] sm:$0xf]
    %v71 = vld [vmem:[%s0 + $0x40] sm:$0xf]
    %v72 = vld [vmem:[%s0 + $0x44] sm:$0xf]
    %v73 = vld [vmem:[%s0 + $0x48] sm:$0xf]
    %v74 = vld [vmem:[%s0 + $0x4c] sm:$0xf]
    %v75 = vld [vmem:[%s0 + $0x50] sm:$0xf]
    %v76 = vld [vmem:[%s0 + $0x54] sm:$0xf]
    %v77 = vld [vmem:[%s0 + $0x58] sm:$0xf]
    %v78 = vld [vmem:[%s0 + $0x5c] sm:$0xf]
    %v79 = vld [vmem:[%s0 + $0x60] sm:$0xf]
    %v80 = vld [vmem:[%s0 + $0x64] sm:$0xf]
    %v81 = vld [vmem:[%s0 + $0x68] sm:$0xf]
    %v82 = vld [vmem:[%s0 + $0x6c] sm:$0xf]
    %v83 = vld [vmem:[%s0 + $0x70] sm:$0xf]
    %v84 = vld [vmem:[%s0 + $0x74] sm:$0xf]
    %v85 = vld [vmem:[%s0 + $0x78] sm:$0xf]
    %v86 = vld [vmem:[%s0 + $0x7c] sm:$0xf]
    %v87 = vld [vmem:[%s0 + $0x80] sm:$0xf]
    %v88 = vld [vmem:[%s0 + $0x84] sm:$0xf]
    %v89 = vld [vmem:[%s0 + $0x88] sm:$0xf]
    %v90 = vld [vmem:[%s0 + $0x8c] sm:$0xf]
    %v91 = vld [vmem:[%s0 + $0x90] sm:$0xf]
    %v92 = vld [vmem:[%s0 + $0x94] sm:$0xf]
    %v93 = vld [vmem:[%s0 + $0x98] sm:$0xf]
    %v94 = vld [vmem:[%s0 + $0x9c] sm:$0xf]
    %v95 = vld [vmem:[%s0 + $0xa0] sm:$0xf]
    %v96 = vld [vmem:[%s0 + $0xa4] sm:$0xf]
    %v97 = vld [vmem:[%s0 + $0xa8] sm:$0xf]
    %v98 = vld [vmem:[%s0 + $0xac] sm:$0xf]
    %v99 = vld [vmem:[%s0 + $0xb0] sm:$0xf]
    %v100 = vld [vmem:[%s0 + $0xb4] sm:$0xf]
    %v101 = vld [vmem:[%s0 + $0xb8] sm:$0xf]
    %v102 = vld [vmem:[%s0 + $0xbc] sm:$0xf]
    %v103 = vld [vmem:[%s0 + $0xc0] sm:$0xf]
    %v104 = vld [vmem:[%s0 + $0xc4] sm:$0xf]
    %v105 = vld [vmem:[%s0 + $0xc8] sm:$0xf]
    %v106 = vld [vmem:[%s0 + $0xcc] sm:$0xf]
    %v107 = vld [vmem:[%s0 + $0xd0] sm:$0xf]
    %v108 = vld [vmem:[%s0 + $0xd4] sm:$0xf]
    %v109 = vld [vmem:[%s0 + $0xd8] sm:$0xf]
    %v110 = vld [vmem:[%s0 + $0xdc] sm:$0xf]
    %v111 = vld [vmem:[%s0 + $0xe0] sm:$0xf]
    %v112 = vld [vmem:[%s0 + $0xe4] sm:$0xf]
    %v113 = vld [vmem:[%s0 + $0xe8] sm:$0xf]
    %v114 = vld [vmem:[%s0 + $0xec] sm:$0xf]
    %v115 = vld [vmem:[%s0 + $0xf0] sm:$0xf]
    %v116 = vld [vmem:[%s0 + $0xf4] sm:$0xf]
    %v117 = vld [vmem:[%s0 + $0xf8] sm:$0xf]
    %v118 = vld [vmem:[%s0 + $0xfc] sm:$0xf]
    %v119 = vld [vmem:[%s1] sm:$0xff]
    %v120 = vld [vmem:[%s1 + $0x8] sm:$0xff]
    %v121 = vld [vmem:[%s1 + $0x10] sm:$0xff]
    %v122 = vld [vmem:[%s1 + $0x18] sm:$0xff]
    %v123 = vld [vmem:[%s1 + $0x20] sm:$0xff]
    %v124 = vld [vmem:[%s1 + $0x28] sm:$0xff]
    %v125 = vld [vmem:[%s1 + $0x30] sm:$0xff]
    %v126 = vld [vmem:[%s1 + $0x38] sm:$0xff]
    %v127 = vld [vmem:[%s1 + $0x40] sm:$0xff]
    %v128 = vld [vmem:[%s1 + $0x48] sm:$0xff]
    %v129 = vld [vmem:[%s1 + $0x50] sm:$0xff]
    %v130 = vld [vmem:[%s1 + $0x58] sm:$0xff]
    %v131 = vld [vmem:[%s1 + $0x60] sm:$0xff]
    %v132 = vld [vmem:[%s1 + $0x68] sm:$0xff]
    %v133 = vld [vmem:[%s1 + $0x70] sm:$0xff]
    %v134 = vld [vmem:[%s1 + $0x78] sm:$0xff]
    %v135 = vld [vmem:[%s1 + $0x80] sm:$0xff]
    %v136 = vld [vmem:[%s1 + $0x88] sm:$0xff]
    %v137 = vld [vmem:[%s1 + $0x90] sm:$0xff]
    %v138 = vld [vmem:[%s1 + $0x98] sm:$0xff]
    %v139 = vld [vmem:[%s1 + $0xa0] sm:$0xff]
    %v140 = vld [vmem:[%s1 + $0xa8] sm:$0xff]
    %v141 = vld [vmem:[%s1 + $0xb0] sm:$0xff]
    %v142 = vld [vmem:[%s1 + $0xb8] sm:$0xff]
    %v143 = vld [vmem:[%s1 + $0xc0] sm:$0xff]
    %v144 = vld [vmem:[%s1 + $0xc8] sm:$0xff]
    %v145 = vld [vmem:[%s1 + $0xd0] sm:$0xff]
    %v146 = vld [vmem:[%s1 + $0xd8] sm:$0xff]
    %v175 = vunpack.c.l.b16 %v119
    %v176 = vunpack.c.h.b16 %v119
    %v177 = vunpack.c.l.b16 %v120
    %v178 = vunpack.c.h.b16 %v120
    %v179 = vunpack.c.l.b16 %v121
    %v180 = vunpack.c.h.b16 %v121
    %v181 = vunpack.c.l.b16 %v122
    %v182 = vunpack.c.h.b16 %v122
    %v183 = vunpack.c.l.b16 %v123
    %v184 = vunpack.c.h.b16 %v123
    %v185 = vunpack.c.l.b16 %v124
    %v186 = vunpack.c.h.b16 %v124
    %v187 = vunpack.c.l.b16 %v125
    %v188 = vunpack.c.h.b16 %v125
    %v189 = vunpack.c.l.b16 %v126
    %v190 = vunpack.c.h.b16 %v126
    %v191 = vunpack.c.l.b16 %v127
    %v192 = vunpack.c.h.b16 %v127
    %v193 = vunpack.c.l.b16 %v128
    %v194 = vunpack.c.h.b16 %v128
    %v195 = vunpack.c.l.b16 %v129
    %v196 = vunpack.c.h.b16 %v129
    %v197 = vunpack.c.l.b16 %v130
    %v198 = vunpack.c.h.b16 %v130
    %v199 = vunpack.c.l.b16 %v131
    %v200 = vunpack.c.h.b16 %v131
    %v201 = vunpack.c.l.b16 %v132
    %v202 = vunpack.c.h.b16 %v132
    %v203 = vunpack.c.l.b16 %v133
    %v204 = vunpack.c.h.b16 %v133
    %v205 = vunpack.c.l.b16 %v134
    %v206 = vunpack.c.h.b16 %v134
    %v207 = vunpack.c.l.b16 %v135
    %v208 = vunpack.c.h.b16 %v135
    %v209 = vunpack.c.l.b16 %v136
    %v210 = vunpack.c.h.b16 %v136
    %v211 = vunpack.c.l.b16 %v137
    %v212 = vunpack.c.h.b16 %v137
    %v213 = vunpack.c.l.b16 %v138
    %v214 = vunpack.c.h.b16 %v138
    %v215 = vunpack.c.l.b16 %v139
    %v216 = vunpack.c.h.b16 %v139
    %v217 = vunpack.c.l.b16 %v140
    %v218 = vunpack.c.h.b16 %v140
    %v219 = vunpack.c.l.b16 %v141
    %v220 = vunpack.c.h.b16 %v141
    %v221 = vunpack.c.l.b16 %v142
    %v222 = vunpack.c.h.b16 %v142
    %v223 = vunpack.c.l.b16 %v143
    %v224 = vunpack.c.h.b16 %v143
    %v225 = vunpack.c.l.b16 %v144
    %v226 = vunpack.c.h.b16 %v144
    %v227 = vunpack.c.l.b16 %v145
    %v228 = vunpack.c.h.b16 %v145
    %v229 = vunpack.c.l.b16 %v146
    %v230 = vunpack.c.h.b16 %v146
    %v231 = vpack.c.b16 %v179, %v175
    %v232 = vpack.c.b16 %v180, %v176
    %v233 = vpack.c.b16 %v181, %v177
    %v234 = vpack.c.b16 %v182, %v178
    %v235 = vpack.c.b16 %v187, %v183
    %v236 = vpack.c.b16 %v188, %v184
    %v237 = vpack.c.b16 %v189, %v185
    %v238 = vpack.c.b16 %v190, %v186
    %v239 = vpack.c.b16 %v195, %v191
    %v240 = vpack.c.b16 %v196, %v192
    %v241 = vpack.c.b16 %v197, %v193
    %v242 = vpack.c.b16 %v198, %v194
    %v243 = vpack.c.b16 %v203, %v199
    %v244 = vpack.c.b16 %v204, %v200
    %v245 = vpack.c.b16 %v205, %v201
    %v246 = vpack.c.b16 %v206, %v202
    %v247 = vpack.c.b16 %v211, %v207
    %v248 = vpack.c.b16 %v212, %v208
    %v249 = vpack.c.b16 %v213, %v209
    %v250 = vpack.c.b16 %v214, %v210
    %v251 = vpack.c.b16 %v219, %v215
    %v252 = vpack.c.b16 %v220, %v216
    %v253 = vpack.c.b16 %v221, %v217
    %v254 = vpack.c.b16 %v222, %v218
    %v255 = vpack.c.b16 %v227, %v223
    %v256 = vpack.c.b16 %v228, %v224
    %v257 = vpack.c.b16 %v229, %v225
    %v258 = vpack.c.b16 %v230, %v226
    %v351 = vunpack.c.l.b16 %v55
    %v352 = vunpack.c.l.b16 %v56
    %v353 = vunpack.c.l.b16 %v57
    %v354 = vunpack.c.l.b16 %v58
    %v355 = vunpack.c.l.b16 %v59
    %v356 = vunpack.c.l.b16 %v60
    %v357 = vunpack.c.l.b16 %v61
    %v358 = vunpack.c.l.b16 %v62
    %v359 = vunpack.c.l.b16 %v63
    %v360 = vunpack.c.l.b16 %v64
    %v361 = vunpack.c.l.b16 %v65
    %v362 = vunpack.c.l.b16 %v66
    %v363 = vunpack.c.l.b16 %v67
    %v364 = vunpack.c.l.b16 %v68
    %v365 = vunpack.c.l.b16 %v69
    %v366 = vunpack.c.l.b16 %v70
    %v367 = vunpack.c.l.b16 %v71
    %v368 = vunpack.c.l.b16 %v72
    %v369 = vunpack.c.l.b16 %v73
    %v370 = vunpack.c.l.b16 %v74
    %v371 = vunpack.c.l.b16 %v75
    %v372 = vunpack.c.l.b16 %v76
    %v373 = vunpack.c.l.b16 %v77
    %v374 = vunpack.c.l.b16 %v78
    %v375 = vunpack.c.l.b16 %v79
    %v376 = vunpack.c.l.b16 %v80
    %v377 = vunpack.c.l.b16 %v81
    %v378 = vunpack.c.l.b16 %v82
    %v379 = vunpack.c.l.b16 %v83
    %v380 = vunpack.c.l.b16 %v84
    %v381 = vunpack.c.l.b16 %v85
    %v382 = vunpack.c.l.b16 %v86
    %v383 = vunpack.c.l.b16 %v87
    %v384 = vunpack.c.l.b16 %v88
    %v385 = vunpack.c.l.b16 %v89
    %v386 = vunpack.c.l.b16 %v90
    %v387 = vunpack.c.l.b16 %v91
    %v388 = vunpack.c.l.b16 %v92
    %v389 = vunpack.c.l.b16 %v93
    %v390 = vunpack.c.l.b16 %v94
    %v391 = vunpack.c.l.b16 %v95
    %v392 = vunpack.c.l.b16 %v96
    %v393 = vunpack.c.l.b16 %v97
    %v394 = vunpack.c.l.b16 %v98
    %v395 = vunpack.c.l.b16 %v99
    %v396 = vunpack.c.l.b16 %v100
    %v397 = vunpack.c.l.b16 %v101
    %v398 = vunpack.c.l.b16 %v102
    %v399 = vunpack.c.l.b16 %v103
    %v400 = vunpack.c.l.b16 %v104
    %v401 = vunpack.c.l.b16 %v105
    %v402 = vunpack.c.l.b16 %v106
    %v403 = vunpack.c.l.b16 %v107
    %v404 = vunpack.c.l.b16 %v108
    %v405 = vunpack.c.l.b16 %v109
    %v406 = vunpack.c.l.b16 %v110
    %v407 = vunpack.c.l.b16 %v111
    %v408 = vunpack.c.l.b16 %v112
    %v409 = vunpack.c.l.b16 %v113
    %v410 = vunpack.c.l.b16 %v114
    %v411 = vunpack.c.l.b16 %v115
    %v412 = vunpack.c.l.b16 %v116
    %v413 = vunpack.c.l.b16 %v117
    %v414 = vunpack.c.l.b16 %v118
    %v415 = vpack.c.b16 %v352, %v351
    %v416 = vpack.c.b16 %v354, %v353
    %v417 = vpack.c.b16 %v356, %v355
    %v418 = vpack.c.b16 %v358, %v357
    %v419 = vpack.c.b16 %v360, %v359
    %v420 = vpack.c.b16 %v362, %v361
    %v421 = vpack.c.b16 %v364, %v363
    %v422 = vpack.c.b16 %v366, %v365
    %v423 = vpack.c.b16 %v368, %v367
    %v424 = vpack.c.b16 %v370, %v369
    %v425 = vpack.c.b16 %v372, %v371
    %v426 = vpack.c.b16 %v374, %v373
    %v427 = vpack.c.b16 %v376, %v375
    %v428 = vpack.c.b16 %v378, %v377
    %v429 = vpack.c.b16 %v380, %v379
    %v430 = vpack.c.b16 %v382, %v381
    %v431 = vpack.c.b16 %v384, %v383
    %v432 = vpack.c.b16 %v386, %v385
    %v433 = vpack.c.b16 %v388, %v387
    %v434 = vpack.c.b16 %v390, %v389
    %v435 = vpack.c.b16 %v392, %v391
    %v436 = vpack.c.b16 %v394, %v393
    %v437 = vpack.c.b16 %v396, %v395
    %v438 = vpack.c.b16 %v398, %v397
    %v439 = vpack.c.b16 %v400, %v399
    %v440 = vpack.c.b16 %v402, %v401
    %v441 = vpack.c.b16 %v404, %v403
    %v442 = vpack.c.b16 %v406, %v405
    %v443 = vpack.c.b16 %v408, %v407
    %v444 = vpack.c.b16 %v410, %v409
    %v445 = vpack.c.b16 %v412, %v411
    %v446 = vpack.c.b16 %v414, %v413
    %479 = vmatprep.subr.bf16.mxu0 0
    %480 = vmatpush1.bf16.msra.mxu0 %v422
    %481 = vmatprep.subr.bf16.mxu0 0
    %482 = vmatpush1.bf16.msra.mxu0 %v421
    %483 = vmatprep.subr.bf16.mxu0 0
    %484 = vmatpush1.bf16.msra.mxu0 %v420
    %485 = vmatprep.subr.bf16.mxu0 0
    %486 = vmatpush1.bf16.msra.mxu0 %v419
    %487 = vmatprep.subr.bf16.mxu0 0
    %488 = vmatpush1.bf16.msra.mxu0 %v418
    %489 = vmatprep.subr.bf16.mxu0 0
    %490 = vmatpush1.bf16.msra.mxu0 %v417
    %491 = vmatprep.subr.bf16.mxu0 0
    %492 = vmatpush1.bf16.msra.mxu0 %v416
    %493 = vmatprep.subr.bf16.mxu0 0
    %494 = vmatpush1.bf16.msra.mxu0 %v415
    %495 = vmatprep.subr.bf16.mxu0 0
    %496 = vmatpush2.bf16.msra.mxu0 %v430
    %497 = vmatprep.subr.bf16.mxu0 0
    %498 = vmatpush2.bf16.msra.mxu0 %v429
    %499 = vmatprep.subr.bf16.mxu0 0
    %500 = vmatpush2.bf16.msra.mxu0 %v428
    %501 = vmatprep.subr.bf16.mxu0 0
    %502 = vmatpush2.bf16.msra.mxu0 %v427
    %503 = vmatprep.subr.bf16.mxu0 0
    %504 = vmatpush2.bf16.msra.mxu0 %v426
    %505 = vmatprep.subr.bf16.mxu0 0
    %506 = vmatpush2.bf16.msra.mxu0 %v425
    %507 = vmatprep.subr.bf16.mxu0 0
    %508 = vmatpush2.bf16.msra.mxu0 %v424
    %509 = vmatprep.subr.bf16.mxu0 0
    %510 = vmatpush2.bf16.msra.mxu0 %v423
    %511 = vmatprep.mubr.bf16.mxu0 %v232
    %512 = vmatmul.mubr.bf16.gmra.mxu0 %v231
    %v513 = vpop.f32.mrf.mxu0
    %v514 = vadd.f32 0.0, %v513
    %v515 = vpop.f32.mrf.mxu0
    %v516 = vpop.f32.mrf.mxu0
    %v517 = vadd.f32 0.0, %v516
    %v518 = vpop.f32.mrf.mxu0
    %519 = vmatprep.mubr.bf16.mxu0 %v236
    %520 = vmatmul.mubr.bf16.gmra.mxu0 %v235
    %v521 = vpop.f32.mrf.mxu0
    %v522 = vadd.f32 0.0, %v521
    %v523 = vpop.f32.mrf.mxu0
    %v524 = vpop.f32.mrf.mxu0
    %v525 = vadd.f32 0.0, %v524
    %v526 = vpop.f32.mrf.mxu0
    %527 = vmatprep.mubr.bf16.mxu0 %v240
    %528 = vmatmul.mubr.bf16.gmra.mxu0 %v239
    %v529 = vpop.f32.mrf.mxu0
    %v530 = vadd.f32 0.0, %v529
    %v531 = vpop.f32.mrf.mxu0
    %v532 = vpop.f32.mrf.mxu0
    %v533 = vadd.f32 0.0, %v532
    %v534 = vpop.f32.mrf.mxu0
    %535 = vmatprep.mubr.bf16.mxu0 %v244
    %536 = vmatmul.mubr.bf16.gmra.mxu0 %v243
    %v537 = vpop.f32.mrf.mxu0
    %v538 = vadd.f32 0.0, %v537
    %v539 = vpop.f32.mrf.mxu0
    %v540 = vpop.f32.mrf.mxu0
    %v541 = vadd.f32 0.0, %v540
    %v542 = vpop.f32.mrf.mxu0
    %543 = vmatprep.mubr.bf16.mxu0 %v248
    %544 = vmatmul.mubr.bf16.gmra.mxu0 %v247
    %v545 = vpop.f32.mrf.mxu0
    %v546 = vadd.f32 0.0, %v545
    %v547 = vpop.f32.mrf.mxu0
    %v548 = vpop.f32.mrf.mxu0
    %v549 = vadd.f32 0.0, %v548
    %v550 = vpop.f32.mrf.mxu0
    %551 = vmatprep.mubr.bf16.mxu0 %v252
    %552 = vmatmul.mubr.bf16.gmra.mxu0 %v251
    %v553 = vpop.f32.mrf.mxu0
    %v554 = vadd.f32 0.0, %v553
    %v555 = vpop.f32.mrf.mxu0
    %v556 = vpop.f32.mrf.mxu0
    %v557 = vadd.f32 0.0, %v556
    %v558 = vpop.f32.mrf.mxu0
    %559 = vmatprep.mubr.bf16.mxu0 %v256
    %560 = vmatmul.mubr.bf16.gmra.mxu0 %v255
    %v561 = vpop.f32.mrf.mxu0
    %v562 = vadd.f32 0.0, %v561
    %v563 = vpop.f32.mrf.mxu0
    %v564 = vpop.f32.mrf.mxu0
    %v565 = vadd.f32 0.0, %v564
    %v566 = vpop.f32.mrf.mxu0
    %567 = vdwg.mxu0
    %568 = vmatprep.subr.bf16.mxu0 0
    %569 = vmatpush1.bf16.msra.mxu0 %v438
    %570 = vmatprep.subr.bf16.mxu0 0
    %571 = vmatpush1.bf16.msra.mxu0 %v437
    %572 = vmatprep.subr.bf16.mxu0 0
    %573 = vmatpush1.bf16.msra.mxu0 %v436
    %574 = vmatprep.subr.bf16.mxu0 0
    %575 = vmatpush1.bf16.msra.mxu0 %v435
    %576 = vmatprep.subr.bf16.mxu0 0
    %577 = vmatpush1.bf16.msra.mxu0 %v434
    %578 = vmatprep.subr.bf16.mxu0 0
    %579 = vmatpush1.bf16.msra.mxu0 %v433
    %580 = vmatprep.subr.bf16.mxu0 0
    %581 = vmatpush1.bf16.msra.mxu0 %v432
    %582 = vmatprep.subr.bf16.mxu0 0
    %583 = vmatpush1.bf16.msra.mxu0 %v431
    %584 = vmatprep.subr.bf16.mxu0 0
    %585 = vmatpush2.bf16.msra.mxu0 %v446
    %586 = vmatprep.subr.bf16.mxu0 0
    %587 = vmatpush2.bf16.msra.mxu0 %v445
    %588 = vmatprep.subr.bf16.mxu0 0
    %589 = vmatpush2.bf16.msra.mxu0 %v444
    %590 = vmatprep.subr.bf16.mxu0 0
    %591 = vmatpush2.bf16.msra.mxu0 %v443
    %592 = vmatprep.subr.bf16.mxu0 0
    %593 = vmatpush2.bf16.msra.mxu0 %v442
    %594 = vmatprep.subr.bf16.mxu0 0
    %595 = vmatpush2.bf16.msra.mxu0 %v441
    %596 = vmatprep.subr.bf16.mxu0 0
    %597 = vmatpush2.bf16.msra.mxu0 %v440
    %598 = vmatprep.subr.bf16.mxu0 0
    %599 = vmatpush2.bf16.msra.mxu0 %v439
    %600 = vmatprep.mubr.bf16.mxu0 %v234
    %601 = vmatmul.mubr.bf16.gmra.mxu0 %v233
    %v602 = vpop.f32.mrf.mxu0
    %v603 = vadd.f32 %v514, %v602
    %v604 = vpop.f32.mrf.mxu0
    %v605 = vpop.f32.mrf.mxu0
    %v606 = vadd.f32 %v517, %v605
    %v607 = vpop.f32.mrf.mxu0
    %608 = vmatprep.mubr.bf16.mxu0 %v238
    %609 = vmatmul.mubr.bf16.gmra.mxu0 %v237
    %v610 = vpop.f32.mrf.mxu0
    %v611 = vadd.f32 %v522, %v610
    %v612 = vpop.f32.mrf.mxu0
    %v613 = vpop.f32.mrf.mxu0
    %v614 = vadd.f32 %v525, %v613
    %v615 = vpop.f32.mrf.mxu0
    %616 = vmatprep.mubr.bf16.mxu0 %v242
    %617 = vmatmul.mubr.bf16.gmra.mxu0 %v241
    %v618 = vpop.f32.mrf.mxu0
    %v619 = vadd.f32 %v530, %v618
    %v620 = vpop.f32.mrf.mxu0
    %v621 = vpop.f32.mrf.mxu0
    %v622 = vadd.f32 %v533, %v621
    %v623 = vpop.f32.mrf.mxu0
    %624 = vmatprep.mubr.bf16.mxu0 %v246
    %625 = vmatmul.mubr.bf16.gmra.mxu0 %v245
    %v626 = vpop.f32.mrf.mxu0
    %v627 = vadd.f32 %v538, %v626
    %v628 = vpop.f32.mrf.mxu0
    %v629 = vpop.f32.mrf.mxu0
    %v630 = vadd.f32 %v541, %v629
    %v631 = vpop.f32.mrf.mxu0
    %632 = vmatprep.mubr.bf16.mxu0 %v250
    %633 = vmatmul.mubr.bf16.gmra.mxu0 %v249
    %v634 = vpop.f32.mrf.mxu0
    %v635 = vadd.f32 %v546, %v634
    %v636 = vpop.f32.mrf.mxu0
    %v637 = vpop.f32.mrf.mxu0
    %v638 = vadd.f32 %v549, %v637
    %v639 = vpop.f32.mrf.mxu0
    %640 = vmatprep.mubr.bf16.mxu0 %v254
    %641 = vmatmul.mubr.bf16.gmra.mxu0 %v253
    %v642 = vpop.f32.mrf.mxu0
    %v643 = vadd.f32 %v554, %v642
    %v644 = vpop.f32.mrf.mxu0
    %v645 = vpop.f32.mrf.mxu0
    %v646 = vadd.f32 %v557, %v645
    %v647 = vpop.f32.mrf.mxu0
    %648 = vmatprep.mubr.bf16.mxu0 %v258
    %649 = vmatmul.mubr.bf16.gmra.mxu0 %v257
    %v650 = vpop.f32.mrf.mxu0
    %v651 = vadd.f32 %v562, %v650
    %v652 = vpop.f32.mrf.mxu0
    %v653 = vpop.f32.mrf.mxu0
    %v654 = vadd.f32 %v565, %v653
    %v655 = vpop.f32.mrf.mxu0
    %656 = vdwg.mxu0
    %v657 = vpack.c.bf16 %v606, %v603
    %v658 = vpack.c.bf16 %v614, %v611
    %v659 = vpack.c.bf16 %v622, %v619
    %v660 = vpack.c.bf16 %v630, %v627
    %v661 = vpack.c.bf16 %v638, %v635
    %v662 = vpack.c.bf16 %v646, %v643
    %v663 = vpack.c.bf16 %v654, %v651
    %v664 = vld [vmem:[%s2] sm:$0xf]
    %v665 = vld [vmem:[%s2 + $0x4] sm:$0xf]
    %v666 = vld [vmem:[%s2 + $0x8] sm:$0xf]
    %v667 = vld [vmem:[%s2 + $0xc] sm:$0xf]
    %v668 = vld [vmem:[%s2 + $0x10] sm:$0xf]
    %v669 = vld [vmem:[%s2 + $0x14] sm:$0xf]
    %v670 = vld [vmem:[%s2 + $0x18] sm:$0xf]
    %v671 = vld [vmem:[%s2 + $0x1c] sm:$0xf]
    %v672 = vld [vmem:[%s2 + $0x20] sm:$0xf]
    %v673 = vld [vmem:[%s2 + $0x24] sm:$0xf]
    %v674 = vld [vmem:[%s2 + $0x28] sm:$0xf]
    %v675 = vld [vmem:[%s2 + $0x2c] sm:$0xf]
    %v676 = vld [vmem:[%s2 + $0x30] sm:$0xf]
    %v677 = vld [vmem:[%s2 + $0x34] sm:$0xf]
    %v678 = vld [vmem:[%s2 + $0x38] sm:$0xf]
    %v679 = vld [vmem:[%s2 + $0x3c] sm:$0xf]
    %s680 = scalar_lea.vmem %s1, 224
    %v681 = vld [vmem:[%s680] sm:$0xff]
    %v682 = vld [vmem:[%s680 + $0x8] sm:$0xff]
    %v683 = vld [vmem:[%s680 + $0x10] sm:$0xff]
    %v684 = vld [vmem:[%s680 + $0x18] sm:$0xff]
    %v685 = vld [vmem:[%s680 + $0x20] sm:$0xff]
    %v686 = vld [vmem:[%s680 + $0x28] sm:$0xff]
    %v687 = vld [vmem:[%s680 + $0x30] sm:$0xff]
    %v688 = vld [vmem:[%s680 + $0x38] sm:$0xff]
    %v689 = vld [vmem:[%s680 + $0x40] sm:$0xff]
    %v690 = vld [vmem:[%s680 + $0x48] sm:$0xff]
    %v691 = vld [vmem:[%s680 + $0x50] sm:$0xff]
    %v692 = vld [vmem:[%s680 + $0x58] sm:$0xff]
    %v693 = vld [vmem:[%s680 + $0x60] sm:$0xff]
    %v694 = vld [vmem:[%s680 + $0x68] sm:$0xff]
    %v695 = vld [vmem:[%s680 + $0x70] sm:$0xff]
    %v696 = vld [vmem:[%s680 + $0x78] sm:$0xff]
    %v697 = vld [vmem:[%s680 + $0x80] sm:$0xff]
    %v698 = vld [vmem:[%s680 + $0x88] sm:$0xff]
    %v699 = vld [vmem:[%s680 + $0x90] sm:$0xff]
    %v700 = vld [vmem:[%s680 + $0x98] sm:$0xff]
    %v701 = vld [vmem:[%s680 + $0xa0] sm:$0xff]
    %v702 = vld [vmem:[%s680 + $0xa8] sm:$0xff]
    %v703 = vld [vmem:[%s680 + $0xb0] sm:$0xff]
    %v704 = vld [vmem:[%s680 + $0xb8] sm:$0xff]
    %v705 = vld [vmem:[%s680 + $0xc0] sm:$0xff]
    %v706 = vld [vmem:[%s680 + $0xc8] sm:$0xff]
    %v707 = vld [vmem:[%s680 + $0xd0] sm:$0xff]
    %v708 = vld [vmem:[%s680 + $0xd8] sm:$0xff]
    %v737 = vunpack.c.l.b16 %v681
    %v738 = vunpack.c.h.b16 %v681
    %v739 = vunpack.c.l.b16 %v682
    %v740 = vunpack.c.h.b16 %v682
    %v741 = vunpack.c.l.b16 %v683
    %v742 = vunpack.c.h.b16 %v683
    %v743 = vunpack.c.l.b16 %v684
    %v744 = vunpack.c.h.b16 %v684
    %v745 = vunpack.c.l.b16 %v685
    %v746 = vunpack.c.h.b16 %v685
    %v747 = vunpack.c.l.b16 %v686
    %v748 = vunpack.c.h.b16 %v686
    %v749 = vunpack.c.l.b16 %v687
    %v750 = vunpack.c.h.b16 %v687
    %v751 = vunpack.c.l.b16 %v688
    %v752 = vunpack.c.h.b16 %v688
    %v753 = vunpack.c.l.b16 %v689
    %v754 = vunpack.c.h.b16 %v689
    %v755 = vunpack.c.l.b16 %v690
    %v756 = vunpack.c.h.b16 %v690
    %v757 = vunpack.c.l.b16 %v691
    %v758 = vunpack.c.h.b16 %v691
    %v759 = vunpack.c.l.b16 %v692
    %v760 = vunpack.c.h.b16 %v692
    %v761 = vunpack.c.l.b16 %v693
    %v762 = vunpack.c.h.b16 %v693
    %v763 = vunpack.c.l.b16 %v694
    %v764 = vunpack.c.h.b16 %v694
    %v765 = vunpack.c.l.b16 %v695
    %v766 = vunpack.c.h.b16 %v695
    %v767 = vunpack.c.l.b16 %v696
    %v768 = vunpack.c.h.b16 %v696
    %v769 = vunpack.c.l.b16 %v697
    %v770 = vunpack.c.h.b16 %v697
    %v771 = vunpack.c.l.b16 %v698
    %v772 = vunpack.c.h.b16 %v698
    %v773 = vunpack.c.l.b16 %v699
    %v774 = vunpack.c.h.b16 %v699
    %v775 = vunpack.c.l.b16 %v700
    %v776 = vunpack.c.h.b16 %v700
    %v777 = vunpack.c.l.b16 %v701
    %v778 = vunpack.c.h.b16 %v701
    %v779 = vunpack.c.l.b16 %v702
    %v780 = vunpack.c.h.b16 %v702
    %v781 = vunpack.c.l.b16 %v703
    %v782 = vunpack.c.h.b16 %v703
    %v783 = vunpack.c.l.b16 %v704
    %v784 = vunpack.c.h.b16 %v704
    %v785 = vunpack.c.l.b16 %v705
    %v786 = vunpack.c.h.b16 %v705
    %v787 = vunpack.c.l.b16 %v706
    %v788 = vunpack.c.h.b16 %v706
    %v789 = vunpack.c.l.b16 %v707
    %v790 = vunpack.c.h.b16 %v707
    %v791 = vunpack.c.l.b16 %v708
    %v792 = vunpack.c.h.b16 %v708
    %v793 = vpack.c.b16 %v741, %v737
    %v794 = vpack.c.b16 %v742, %v738
    %v795 = vpack.c.b16 %v743, %v739
    %v796 = vpack.c.b16 %v744, %v740
    %v797 = vpack.c.b16 %v749, %v745
    %v798 = vpack.c.b16 %v750, %v746
    %v799 = vpack.c.b16 %v751, %v747
    %v800 = vpack.c.b16 %v752, %v748
    %v801 = vpack.c.b16 %v757, %v753
    %v802 = vpack.c.b16 %v758, %v754
    %v803 = vpack.c.b16 %v759, %v755
    %v804 = vpack.c.b16 %v760, %v756
    %v805 = vpack.c.b16 %v765, %v761
    %v806 = vpack.c.b16 %v766, %v762
    %v807 = vpack.c.b16 %v767, %v763
    %v808 = vpack.c.b16 %v768, %v764
    %v809 = vpack.c.b16 %v773, %v769
    %v810 = vpack.c.b16 %v774, %v770
    %v811 = vpack.c.b16 %v775, %v771
    %v812 = vpack.c.b16 %v776, %v772
    %v813 = vpack.c.b16 %v781, %v777
    %v814 = vpack.c.b16 %v782, %v778
    %v815 = vpack.c.b16 %v783, %v779
    %v816 = vpack.c.b16 %v784, %v780
    %v817 = vpack.c.b16 %v789, %v785
    %v818 = vpack.c.b16 %v790, %v786
    %v819 = vpack.c.b16 %v791, %v787
    %v820 = vpack.c.b16 %v792, %v788
    %849 = vmatprep.subr.bf16.mxu0 0
    %850 = vmatpush1.bf16.msra.mxu0 %v422
    %851 = vmatprep.subr.bf16.mxu0 0
    %852 = vmatpush1.bf16.msra.mxu0 %v421
    %853 = vmatprep.subr.bf16.mxu0 0
    %854 = vmatpush1.bf16.msra.mxu0 %v420
    %855 = vmatprep.subr.bf16.mxu0 0
    %856 = vmatpush1.bf16.msra.mxu0 %v419
    %857 = vmatprep.subr.bf16.mxu0 0
    %858 = vmatpush1.bf16.msra.mxu0 %v418
    %859 = vmatprep.subr.bf16.mxu0 0
    %860 = vmatpush1.bf16.msra.mxu0 %v417
    %861 = vmatprep.subr.bf16.mxu0 0
    %862 = vmatpush1.bf16.msra.mxu0 %v416
    %863 = vmatprep.subr.bf16.mxu0 0
    %864 = vmatpush1.bf16.msra.mxu0 %v415
    %865 = vmatprep.subr.bf16.mxu0 0
    %866 = vmatpush2.bf16.msra.mxu0 %v430
    %867 = vmatprep.subr.bf16.mxu0 0
    %868 = vmatpush2.bf16.msra.mxu0 %v429
    %869 = vmatprep.subr.bf16.mxu0 0
    %870 = vmatpush2.bf16.msra.mxu0 %v428
    %871 = vmatprep.subr.bf16.mxu0 0
    %872 = vmatpush2.bf16.msra.mxu0 %v427
    %873 = vmatprep.subr.bf16.mxu0 0
    %874 = vmatpush2.bf16.msra.mxu0 %v426
    %875 = vmatprep.subr.bf16.mxu0 0
    %876 = vmatpush2.bf16.msra.mxu0 %v425
    %877 = vmatprep.subr.bf16.mxu0 0
    %878 = vmatpush2.bf16.msra.mxu0 %v424
    %879 = vmatprep.subr.bf16.mxu0 0
    %880 = vmatpush2.bf16.msra.mxu0 %v423
    %881 = vmatprep.mubr.bf16.mxu0 %v794
    %882 = vmatmul.mubr.bf16.gmra.mxu0 %v793
    %v883 = vpop.f32.mrf.mxu0
    %v884 = vadd.f32 0.0, %v883
    %v885 = vpop.f32.mrf.mxu0
    %v886 = vpop.f32.mrf.mxu0
    %v887 = vadd.f32 0.0, %v886
    %v888 = vpop.f32.mrf.mxu0
    %889 = vmatprep.mubr.bf16.mxu0 %v798
    %890 = vmatmul.mubr.bf16.gmra.mxu0 %v797
    %v891 = vpop.f32.mrf.mxu0
    %v892 = vadd.f32 0.0, %v891
    %v893 = vpop.f32.mrf.mxu0
    %v894 = vpop.f32.mrf.mxu0
    %v895 = vadd.f32 0.0, %v894
    %v896 = vpop.f32.mrf.mxu0
    %897 = vmatprep.mubr.bf16.mxu0 %v802
    %898 = vmatmul.mubr.bf16.gmra.mxu0 %v801
    %v899 = vpop.f32.mrf.mxu0
    %v900 = vadd.f32 0.0, %v899
    %v901 = vpop.f32.mrf.mxu0
    %v902 = vpop.f32.mrf.mxu0
    %v903 = vadd.f32 0.0, %v902
    %v904 = vpop.f32.mrf.mxu0
    %905 = vmatprep.mubr.bf16.mxu0 %v806
    %906 = vmatmul.mubr.bf16.gmra.mxu0 %v805
    %v907 = vpop.f32.mrf.mxu0
    %v908 = vadd.f32 0.0, %v907
    %v909 = vpop.f32.mrf.mxu0
    %v910 = vpop.f32.mrf.mxu0
    %v911 = vadd.f32 0.0, %v910
    %v912 = vpop.f32.mrf.mxu0
    %913 = vmatprep.mubr.bf16.mxu0 %v810
    %914 = vmatmul.mubr.bf16.gmra.mxu0 %v809
    %v915 = vpop.f32.mrf.mxu0
    %v916 = vadd.f32 0.0, %v915
    %v917 = vpop.f32.mrf.mxu0
    %v918 = vpop.f32.mrf.mxu0
    %v919 = vadd.f32 0.0, %v918
    %v920 = vpop.f32.mrf.mxu0
    %921 = vmatprep.mubr.bf16.mxu0 %v814
    %922 = vmatmul.mubr.bf16.gmra.mxu0 %v813
    %v923 = vpop.f32.mrf.mxu0
    %v924 = vadd.f32 0.0, %v923
    %v925 = vpop.f32.mrf.mxu0
    %v926 = vpop.f32.mrf.mxu0
    %v927 = vadd.f32 0.0, %v926
    %v928 = vpop.f32.mrf.mxu0
    %929 = vmatprep.mubr.bf16.mxu0 %v818
    %930 = vmatmul.mubr.bf16.gmra.mxu0 %v817
    %v931 = vpop.f32.mrf.mxu0
    %v932 = vadd.f32 0.0, %v931
    %v933 = vpop.f32.mrf.mxu0
    %v934 = vpop.f32.mrf.mxu0
    %v935 = vadd.f32 0.0, %v934
    %v936 = vpop.f32.mrf.mxu0
    %937 = vdwg.mxu0
    %938 = vmatprep.subr.bf16.mxu0 0
    %939 = vmatpush1.bf16.msra.mxu0 %v438
    %940 = vmatprep.subr.bf16.mxu0 0
    %941 = vmatpush1.bf16.msra.mxu0 %v437
    %942 = vmatprep.subr.bf16.mxu0 0
    %943 = vmatpush1.bf16.msra.mxu0 %v436
    %944 = vmatprep.subr.bf16.mxu0 0
    %945 = vmatpush1.bf16.msra.mxu0 %v435
    %946 = vmatprep.subr.bf16.mxu0 0
    %947 = vmatpush1.bf16.msra.mxu0 %v434
    %948 = vmatprep.subr.bf16.mxu0 0
    %949 = vmatpush1.bf16.msra.mxu0 %v433
    %950 = vmatprep.subr.bf16.mxu0 0
    %951 = vmatpush1.bf16.msra.mxu0 %v432
    %952 = vmatprep.subr.bf16.mxu0 0
    %953 = vmatpush1.bf16.msra.mxu0 %v431
    %954 = vmatprep.subr.bf16.mxu0 0
    %955 = vmatpush2.bf16.msra.mxu0 %v446
    %956 = vmatprep.subr.bf16.mxu0 0
    %957 = vmatpush2.bf16.msra.mxu0 %v445
    %958 = vmatprep.subr.bf16.mxu0 0
    %959 = vmatpush2.bf16.msra.mxu0 %v444
    %960 = vmatprep.subr.bf16.mxu0 0
    %961 = vmatpush2.bf16.msra.mxu0 %v443
    %962 = vmatprep.subr.bf16.mxu0 0
    %963 = vmatpush2.bf16.msra.mxu0 %v442
    %964 = vmatprep.subr.bf16.mxu0 0
    %965 = vmatpush2.bf16.msra.mxu0 %v441
    %966 = vmatprep.subr.bf16.mxu0 0
    %967 = vmatpush2.bf16.msra.mxu0 %v440
    %968 = vmatprep.subr.bf16.mxu0 0
    %969 = vmatpush2.bf16.msra.mxu0 %v439
    %970 = vmatprep.mubr.bf16.mxu0 %v796
    %971 = vmatmul.mubr.bf16.gmra.mxu0 %v795
    %v972 = vpop.f32.mrf.mxu0
    %v973 = vadd.f32 %v884, %v972
    %v974 = vpop.f32.mrf.mxu0
    %v975 = vpop.f32.mrf.mxu0
    %v976 = vadd.f32 %v887, %v975
    %v977 = vpop.f32.mrf.mxu0
    %978 = vmatprep.mubr.bf16.mxu0 %v800
    %979 = vmatmul.mubr.bf16.gmra.mxu0 %v799
    %v980 = vpop.f32.mrf.mxu0
    %v981 = vadd.f32 %v892, %v980
    %v982 = vpop.f32.mrf.mxu0
    %v983 = vpop.f32.mrf.mxu0
    %v984 = vadd.f32 %v895, %v983
    %v985 = vpop.f32.mrf.mxu0
    %986 = vmatprep.mubr.bf16.mxu0 %v804
    %987 = vmatmul.mubr.bf16.gmra.mxu0 %v803
    %v988 = vpop.f32.mrf.mxu0
    %v989 = vadd.f32 %v900, %v988
    %v990 = vpop.f32.mrf.mxu0
    %v991 = vpop.f32.mrf.mxu0
    %v992 = vadd.f32 %v903, %v991
    %v993 = vpop.f32.mrf.mxu0
    %994 = vmatprep.mubr.bf16.mxu0 %v808
    %995 = vmatmul.mubr.bf16.gmra.mxu0 %v807
    %v996 = vpop.f32.mrf.mxu0
    %v997 = vadd.f32 %v908, %v996
    %v998 = vpop.f32.mrf.mxu0
    %v999 = vpop.f32.mrf.mxu0
    %v1000 = vadd.f32 %v911, %v999
    %v1001 = vpop.f32.mrf.mxu0
    %1002 = vmatprep.mubr.bf16.mxu0 %v812
    %1003 = vmatmul.mubr.bf16.gmra.mxu0 %v811
    %v1004 = vpop.f32.mrf.mxu0
    %v1005 = vadd.f32 %v916, %v1004
    %v1006 = vpop.f32.mrf.mxu0
    %v1007 = vpop.f32.mrf.mxu0
    %v1008 = vadd.f32 %v919, %v1007
    %v1009 = vpop.f32.mrf.mxu0
    %1010 = vmatprep.mubr.bf16.mxu0 %v816
    %1011 = vmatmul.mubr.bf16.gmra.mxu0 %v815
    %v1012 = vpop.f32.mrf.mxu0
    %v1013 = vadd.f32 %v924, %v1012
    %v1014 = vpop.f32.mrf.mxu0
    %v1015 = vpop.f32.mrf.mxu0
    %v1016 = vadd.f32 %v927, %v1015
    %v1017 = vpop.f32.mrf.mxu0
    %1018 = vmatprep.mubr.bf16.mxu0 %v820
    %1019 = vmatmul.mubr.bf16.gmra.mxu0 %v819
    %v1020 = vpop.f32.mrf.mxu0
    %v1021 = vadd.f32 %v932, %v1020
    %v1022 = vpop.f32.mrf.mxu0
    %v1023 = vpop.f32.mrf.mxu0
    %v1024 = vadd.f32 %v935, %v1023
    %v1025 = vpop.f32.mrf.mxu0
    %1026 = vdwg.mxu0
    %v1027 = vpack.c.bf16 %v976, %v973
    %v1028 = vpack.c.bf16 %v984, %v981
    %v1029 = vpack.c.bf16 %v992, %v989
    %v1030 = vpack.c.bf16 %v1000, %v997
    %v1031 = vpack.c.bf16 %v1008, %v1005
    %v1032 = vpack.c.bf16 %v1016, %v1013
    %v1033 = vpack.c.bf16 %v1024, %v1021
    %s1034 = scalar_lea.vmem %s2, 64
    %v1035 = vld [vmem:[%s1034] sm:$0xf]
    %v1036 = vld [vmem:[%s1034 + $0x4] sm:$0xf]
    %v1037 = vld [vmem:[%s1034 + $0x8] sm:$0xf]
    %v1038 = vld [vmem:[%s1034 + $0xc] sm:$0xf]
    %v1039 = vld [vmem:[%s1034 + $0x10] sm:$0xf]
    %v1040 = vld [vmem:[%s1034 + $0x14] sm:$0xf]
    %v1041 = vld [vmem:[%s1034 + $0x18] sm:$0xf]
    %v1042 = vld [vmem:[%s1034 + $0x1c] sm:$0xf]
    %v1043 = vld [vmem:[%s1034 + $0x20] sm:$0xf]
    %v1044 = vld [vmem:[%s1034 + $0x24] sm:$0xf]
    %v1045 = vld [vmem:[%s1034 + $0x28] sm:$0xf]
    %v1046 = vld [vmem:[%s1034 + $0x2c] sm:$0xf]
    %v1047 = vld [vmem:[%s1034 + $0x30] sm:$0xf]
    %v1048 = vld [vmem:[%s1034 + $0x34] sm:$0xf]
    %v1049 = vld [vmem:[%s1034 + $0x38] sm:$0xf]
    %v1050 = vld [vmem:[%s1034 + $0x3c] sm:$0xf]
    %v1067 = vunpack.c.l.b16 %v1035
    %v1068 = vunpack.c.l.b16 %v1036
    %v1069 = vunpack.c.l.b16 %v1037
    %v1070 = vunpack.c.l.b16 %v1038
    %v1071 = vunpack.c.l.b16 %v1039
    %v1072 = vunpack.c.l.b16 %v1040
    %v1073 = vunpack.c.l.b16 %v1041
    %v1074 = vunpack.c.l.b16 %v1042
    %v1075 = vunpack.c.l.b16 %v1043
    %v1076 = vunpack.c.l.b16 %v1044
    %v1077 = vunpack.c.l.b16 %v1045
    %v1078 = vunpack.c.l.b16 %v1046
    %v1079 = vunpack.c.l.b16 %v1047
    %v1080 = vunpack.c.l.b16 %v1048
    %v1081 = vunpack.c.l.b16 %v1049
    %v1082 = vunpack.c.l.b16 %v1050
    %v1083 = vpack.c.b16 %v1068, %v1067
    %v1084 = vpack.c.b16 %v1070, %v1069
    %v1085 = vpack.c.b16 %v1072, %v1071
    %v1086 = vpack.c.b16 %v1074, %v1073
    %v1087 = vpack.c.b16 %v1076, %v1075
    %v1088 = vpack.c.b16 %v1078, %v1077
    %v1089 = vpack.c.b16 %v1080, %v1079
    %v1090 = vpack.c.b16 %v1082, %v1081
    %1099 = vmatprep.subr.bf16.mxu0 0
    %1100 = vmatpush1.bf16.msra.mxu0 %v1090
    %1101 = vmatprep.subr.bf16.mxu0 0
    %1102 = vmatpush1.bf16.msra.mxu0 %v1089
    %1103 = vmatprep.subr.bf16.mxu0 0
    %1104 = vmatpush1.bf16.msra.mxu0 %v1088
    %1105 = vmatprep.subr.bf16.mxu0 0
    %1106 = vmatpush1.bf16.msra.mxu0 %v1087
    %1107 = vmatprep.subr.bf16.mxu0 0
    %1108 = vmatpush1.bf16.msra.mxu0 %v1086
    %1109 = vmatprep.subr.bf16.mxu0 0
    %1110 = vmatpush1.bf16.msra.mxu0 %v1085
    %1111 = vmatprep.subr.bf16.mxu0 0
    %1112 = vmatpush1.bf16.msra.mxu0 %v1084
    %1113 = vmatprep.subr.bf16.mxu0 0
    %1114 = vmatpush1.bf16.msra.mxu0 %v1083
    %1115 = vmatprep.subr.bf16.mxu0 0
    %1116 = vmatpush2.bf16.msra.mxu0 0
    %1117 = vmatprep.subr.bf16.mxu0 0
    %1118 = vmatpush2.bf16.msra.mxu0 0
    %1119 = vmatprep.subr.bf16.mxu0 0
    %1120 = vmatpush2.bf16.msra.mxu0 0
    %1121 = vmatprep.subr.bf16.mxu0 0
    %1122 = vmatpush2.bf16.msra.mxu0 0
    %1123 = vmatprep.subr.bf16.mxu0 0
    %1124 = vmatpush2.bf16.msra.mxu0 0
    %1125 = vmatprep.subr.bf16.mxu0 0
    %1126 = vmatpush2.bf16.msra.mxu0 0
    %1127 = vmatprep.subr.bf16.mxu0 0
    %1128 = vmatpush2.bf16.msra.mxu0 0
    %1129 = vmatprep.subr.bf16.mxu0 0
    %1130 = vmatpush2.bf16.msra.mxu0 0
    %1131 = vmatprep.mubr.bf16.mxu0 0
    %1132 = vmatmul.mubr.bf16.gmra.mxu0 %v1027
    %v1133 = vpop.f32.mrf.mxu0
    %v1134 = vadd.f32 0.0, %v1133
    %v1135 = vpop.f32.mrf.mxu0
    %v1136 = vpop.f32.mrf.mxu0
    %v1137 = vadd.f32 0.0, %v1136
    %v1138 = vpop.f32.mrf.mxu0
    %1139 = vmatprep.mubr.bf16.mxu0 0
    %1140 = vmatmul.mubr.bf16.gmra.mxu0 %v1028
    %v1141 = vpop.f32.mrf.mxu0
    %v1142 = vadd.f32 0.0, %v1141
    %v1143 = vpop.f32.mrf.mxu0
    %v1144 = vpop.f32.mrf.mxu0
    %v1145 = vadd.f32 0.0, %v1144
    %v1146 = vpop.f32.mrf.mxu0
    %1147 = vmatprep.mubr.bf16.mxu0 0
    %1148 = vmatmul.mubr.bf16.gmra.mxu0 %v1029
    %v1149 = vpop.f32.mrf.mxu0
    %v1150 = vadd.f32 0.0, %v1149
    %v1151 = vpop.f32.mrf.mxu0
    %v1152 = vpop.f32.mrf.mxu0
    %v1153 = vadd.f32 0.0, %v1152
    %v1154 = vpop.f32.mrf.mxu0
    %1155 = vmatprep.mubr.bf16.mxu0 0
    %1156 = vmatmul.mubr.bf16.gmra.mxu0 %v1030
    %v1157 = vpop.f32.mrf.mxu0
    %v1158 = vadd.f32 0.0, %v1157
    %v1159 = vpop.f32.mrf.mxu0
    %v1160 = vpop.f32.mrf.mxu0
    %v1161 = vadd.f32 0.0, %v1160
    %v1162 = vpop.f32.mrf.mxu0
    %1163 = vmatprep.mubr.bf16.mxu0 0
    %1164 = vmatmul.mubr.bf16.gmra.mxu0 %v1031
    %v1165 = vpop.f32.mrf.mxu0
    %v1166 = vadd.f32 0.0, %v1165
    %v1167 = vpop.f32.mrf.mxu0
    %v1168 = vpop.f32.mrf.mxu0
    %v1169 = vadd.f32 0.0, %v1168
    %v1170 = vpop.f32.mrf.mxu0
    %1171 = vmatprep.mubr.bf16.mxu0 0
    %1172 = vmatmul.mubr.bf16.gmra.mxu0 %v1032
    %v1173 = vpop.f32.mrf.mxu0
    %v1174 = vadd.f32 0.0, %v1173
    %v1175 = vpop.f32.mrf.mxu0
    %v1176 = vpop.f32.mrf.mxu0
    %v1177 = vadd.f32 0.0, %v1176
    %v1178 = vpop.f32.mrf.mxu0
    %1179 = vmatprep.mubr.bf16.mxu0 0
    %1180 = vmatmul.mubr.bf16.gmra.mxu0 %v1033
    %v1181 = vpop.f32.mrf.mxu0
    %v1182 = vadd.f32 0.0, %v1181
    %v1183 = vpop.f32.mrf.mxu0
    %v1184 = vpop.f32.mrf.mxu0
    %v1185 = vadd.f32 0.0, %v1184
    %v1186 = vpop.f32.mrf.mxu0
    %1187 = vdwg.mxu0
    %v1204 = vunpack.c.l.b16 %v664
    %v1205 = vunpack.c.l.b16 %v665
    %v1206 = vunpack.c.l.b16 %v666
    %v1207 = vunpack.c.l.b16 %v667
    %v1208 = vunpack.c.l.b16 %v668
    %v1209 = vunpack.c.l.b16 %v669
    %v1210 = vunpack.c.l.b16 %v670
    %v1211 = vunpack.c.l.b16 %v671
    %v1212 = vunpack.c.l.b16 %v672
    %v1213 = vunpack.c.l.b16 %v673
    %v1214 = vunpack.c.l.b16 %v674
    %v1215 = vunpack.c.l.b16 %v675
    %v1216 = vunpack.c.l.b16 %v676
    %v1217 = vunpack.c.l.b16 %v677
    %v1218 = vunpack.c.l.b16 %v678
    %v1219 = vunpack.c.l.b16 %v679
    %v1220 = vpack.c.b16 %v1205, %v1204
    %v1221 = vpack.c.b16 %v1207, %v1206
    %v1222 = vpack.c.b16 %v1209, %v1208
    %v1223 = vpack.c.b16 %v1211, %v1210
    %v1224 = vpack.c.b16 %v1213, %v1212
    %v1225 = vpack.c.b16 %v1215, %v1214
    %v1226 = vpack.c.b16 %v1217, %v1216
    %v1227 = vpack.c.b16 %v1219, %v1218
    %1236 = vmatprep.subr.bf16.mxu0 0
    %1237 = vmatpush1.bf16.msra.mxu0 %v1227
    %1238 = vmatprep.subr.bf16.mxu0 0
    %1239 = vmatpush1.bf16.msra.mxu0 %v1226
    %1240 = vmatprep.subr.bf16.mxu0 0
    %1241 = vmatpush1.bf16.msra.mxu0 %v1225
    %1242 = vmatprep.subr.bf16.mxu0 0
    %1243 = vmatpush1.bf16.msra.mxu0 %v1224
    %1244 = vmatprep.subr.bf16.mxu0 0
    %1245 = vmatpush1.bf16.msra.mxu0 %v1223
    %1246 = vmatprep.subr.bf16.mxu0 0
    %1247 = vmatpush1.bf16.msra.mxu0 %v1222
    %1248 = vmatprep.subr.bf16.mxu0 0
    %1249 = vmatpush1.bf16.msra.mxu0 %v1221
    %1250 = vmatprep.subr.bf16.mxu0 0
    %1251 = vmatpush1.bf16.msra.mxu0 %v1220
    %1252 = vmatprep.subr.bf16.mxu0 0
    %1253 = vmatpush2.bf16.msra.mxu0 0
    %1254 = vmatprep.subr.bf16.mxu0 0
    %1255 = vmatpush2.bf16.msra.mxu0 0
    %1256 = vmatprep.subr.bf16.mxu0 0
    %1257 = vmatpush2.bf16.msra.mxu0 0
    %1258 = vmatprep.subr.bf16.mxu0 0
    %1259 = vmatpush2.bf16.msra.mxu0 0
    %1260 = vmatprep.subr.bf16.mxu0 0
    %1261 = vmatpush2.bf16.msra.mxu0 0
    %1262 = vmatprep.subr.bf16.mxu0 0
    %1263 = vmatpush2.bf16.msra.mxu0 0
    %1264 = vmatprep.subr.bf16.mxu0 0
    %1265 = vmatpush2.bf16.msra.mxu0 0
    %1266 = vmatprep.subr.bf16.mxu0 0
    %1267 = vmatpush2.bf16.msra.mxu0 0
    %1268 = vmatprep.mubr.bf16.mxu0 0
    %1269 = vmatmul.mubr.bf16.gmra.mxu0 %v657
    %v1270 = vpop.f32.mrf.mxu0
    %v1271 = vadd.f32 %v1134, %v1270
    %v1272 = vpop.f32.mrf.mxu0
    %v1273 = vpop.f32.mrf.mxu0
    %v1274 = vadd.f32 %v1137, %v1273
    %v1275 = vpop.f32.mrf.mxu0
    %1276 = vmatprep.mubr.bf16.mxu0 0
    %1277 = vmatmul.mubr.bf16.gmra.mxu0 %v658
    %v1278 = vpop.f32.mrf.mxu0
    %v1279 = vadd.f32 %v1142, %v1278
    %v1280 = vpop.f32.mrf.mxu0
    %v1281 = vpop.f32.mrf.mxu0
    %v1282 = vadd.f32 %v1145, %v1281
    %v1283 = vpop.f32.mrf.mxu0
    %1284 = vmatprep.mubr.bf16.mxu0 0
    %1285 = vmatmul.mubr.bf16.gmra.mxu0 %v659
    %v1286 = vpop.f32.mrf.mxu0
    %v1287 = vadd.f32 %v1150, %v1286
    %v1288 = vpop.f32.mrf.mxu0
    %v1289 = vpop.f32.mrf.mxu0
    %v1290 = vadd.f32 %v1153, %v1289
    %v1291 = vpop.f32.mrf.mxu0
    %1292 = vmatprep.mubr.bf16.mxu0 0
    %1293 = vmatmul.mubr.bf16.gmra.mxu0 %v660
    %v1294 = vpop.f32.mrf.mxu0
    %v1295 = vadd.f32 %v1158, %v1294
    %v1296 = vpop.f32.mrf.mxu0
    %v1297 = vpop.f32.mrf.mxu0
    %v1298 = vadd.f32 %v1161, %v1297
    %v1299 = vpop.f32.mrf.mxu0
    %1300 = vmatprep.mubr.bf16.mxu0 0
    %1301 = vmatmul.mubr.bf16.gmra.mxu0 %v661
    %v1302 = vpop.f32.mrf.mxu0
    %v1303 = vadd.f32 %v1166, %v1302
    %v1304 = vpop.f32.mrf.mxu0
    %v1305 = vpop.f32.mrf.mxu0
    %v1306 = vadd.f32 %v1169, %v1305
    %v1307 = vpop.f32.mrf.mxu0
    %1308 = vmatprep.mubr.bf16.mxu0 0
    %1309 = vmatmul.mubr.bf16.gmra.mxu0 %v662
    %v1310 = vpop.f32.mrf.mxu0
    %v1311 = vadd.f32 %v1174, %v1310
    %v1312 = vpop.f32.mrf.mxu0
    %v1313 = vpop.f32.mrf.mxu0
    %v1314 = vadd.f32 %v1177, %v1313
    %v1315 = vpop.f32.mrf.mxu0
    %1316 = vmatprep.mubr.bf16.mxu0 0
    %1317 = vmatmul.mubr.bf16.gmra.mxu0 %v663
    %v1318 = vpop.f32.mrf.mxu0
    %v1319 = vadd.f32 %v1182, %v1318
    %v1320 = vpop.f32.mrf.mxu0
    %v1321 = vpop.f32.mrf.mxu0
    %v1322 = vadd.f32 %v1185, %v1321
    %v1323 = vpop.f32.mrf.mxu0
    %1324 = vdwg.mxu0
    %s1325 = scalar_lea.vmem %s1, 448
    %v1326 = vld [vmem:[%s1325] sm:$0xff]
    %v1327 = vld [vmem:[%s1325 + $0x8] sm:$0xff]
    %v1328 = vld [vmem:[%s1325 + $0x10] sm:$0xff]
    %v1329 = vld [vmem:[%s1325 + $0x18] sm:$0xff]
    %v1330 = vld [vmem:[%s1325 + $0x20] sm:$0xff]
    %v1331 = vld [vmem:[%s1325 + $0x28] sm:$0xff]
    %v1332 = vld [vmem:[%s1325 + $0x30] sm:$0xff]
    %v1333 = vld [vmem:[%s1325 + $0x38] sm:$0xff]
    %v1334 = vld [vmem:[%s1325 + $0x40] sm:$0xff]
    %v1335 = vld [vmem:[%s1325 + $0x48] sm:$0xff]
    %v1336 = vld [vmem:[%s1325 + $0x50] sm:$0xff]
    %v1337 = vld [vmem:[%s1325 + $0x58] sm:$0xff]
    %v1338 = vld [vmem:[%s1325 + $0x60] sm:$0xff]
    %v1339 = vld [vmem:[%s1325 + $0x68] sm:$0xff]
    %v1340 = vld [vmem:[%s1325 + $0x70] sm:$0xff]
    %v1341 = vld [vmem:[%s1325 + $0x78] sm:$0xff]
    %v1342 = vld [vmem:[%s1325 + $0x80] sm:$0xff]
    %v1343 = vld [vmem:[%s1325 + $0x88] sm:$0xff]
    %v1344 = vld [vmem:[%s1325 + $0x90] sm:$0xff]
    %v1345 = vld [vmem:[%s1325 + $0x98] sm:$0xff]
    %v1346 = vld [vmem:[%s1325 + $0xa0] sm:$0xff]
    %v1347 = vld [vmem:[%s1325 + $0xa8] sm:$0xff]
    %v1348 = vld [vmem:[%s1325 + $0xb0] sm:$0xff]
    %v1349 = vld [vmem:[%s1325 + $0xb8] sm:$0xff]
    %v1350 = vld [vmem:[%s1325 + $0xc0] sm:$0xff]
    %v1351 = vld [vmem:[%s1325 + $0xc8] sm:$0xff]
    %v1352 = vld [vmem:[%s1325 + $0xd0] sm:$0xff]
    %v1353 = vld [vmem:[%s1325 + $0xd8] sm:$0xff]
    %v1382 = vunpack.c.l.b16 %v1326
    %v1383 = vunpack.c.h.b16 %v1326
    %v1384 = vunpack.c.l.b16 %v1327
    %v1385 = vunpack.c.h.b16 %v1327
    %v1386 = vunpack.c.l.b16 %v1328
    %v1387 = vunpack.c.h.b16 %v1328
    %v1388 = vunpack.c.l.b16 %v1329
    %v1389 = vunpack.c.h.b16 %v1329
    %v1390 = vunpack.c.l.b16 %v1330
    %v1391 = vunpack.c.h.b16 %v1330
    %v1392 = vunpack.c.l.b16 %v1331
    %v1393 = vunpack.c.h.b16 %v1331
    %v1394 = vunpack.c.l.b16 %v1332
    %v1395 = vunpack.c.h.b16 %v1332
    %v1396 = vunpack.c.l.b16 %v1333
    %v1397 = vunpack.c.h.b16 %v1333
    %v1398 = vunpack.c.l.b16 %v1334
    %v1399 = vunpack.c.h.b16 %v1334
    %v1400 = vunpack.c.l.b16 %v1335
    %v1401 = vunpack.c.h.b16 %v1335
    %v1402 = vunpack.c.l.b16 %v1336
    %v1403 = vunpack.c.h.b16 %v1336
    %v1404 = vunpack.c.l.b16 %v1337
    %v1405 = vunpack.c.h.b16 %v1337
    %v1406 = vunpack.c.l.b16 %v1338
    %v1407 = vunpack.c.h.b16 %v1338
    %v1408 = vunpack.c.l.b16 %v1339
    %v1409 = vunpack.c.h.b16 %v1339
    %v1410 = vunpack.c.l.b16 %v1340
    %v1411 = vunpack.c.h.b16 %v1340
    %v1412 = vunpack.c.l.b16 %v1341
    %v1413 = vunpack.c.h.b16 %v1341
    %v1414 = vunpack.c.l.b16 %v1342
    %v1415 = vunpack.c.h.b16 %v1342
    %v1416 = vunpack.c.l.b16 %v1343
    %v1417 = vunpack.c.h.b16 %v1343
    %v1418 = vunpack.c.l.b16 %v1344
    %v1419 = vunpack.c.h.b16 %v1344
    %v1420 = vunpack.c.l.b16 %v1345
    %v1421 = vunpack.c.h.b16 %v1345
    %v1422 = vunpack.c.l.b16 %v1346
    %v1423 = vunpack.c.h.b16 %v1346
    %v1424 = vunpack.c.l.b16 %v1347
    %v1425 = vunpack.c.h.b16 %v1347
    %v1426 = vunpack.c.l.b16 %v1348
    %v1427 = vunpack.c.h.b16 %v1348
    %v1428 = vunpack.c.l.b16 %v1349
    %v1429 = vunpack.c.h.b16 %v1349
    %v1430 = vunpack.c.l.b16 %v1350
    %v1431 = vunpack.c.h.b16 %v1350
    %v1432 = vunpack.c.l.b16 %v1351
    %v1433 = vunpack.c.h.b16 %v1351
    %v1434 = vunpack.c.l.b16 %v1352
    %v1435 = vunpack.c.h.b16 %v1352
    %v1436 = vunpack.c.l.b16 %v1353
    %v1437 = vunpack.c.h.b16 %v1353
    %v1438 = vpack.c.b16 %v1386, %v1382
    %v1439 = vpack.c.b16 %v1387, %v1383
    %v1440 = vpack.c.b16 %v1388, %v1384
    %v1441 = vpack.c.b16 %v1389, %v1385
    %v1442 = vpack.c.b16 %v1394, %v1390
    %v1443 = vpack.c.b16 %v1395, %v1391
    %v1444 = vpack.c.b16 %v1396, %v1392
    %v1445 = vpack.c.b16 %v1397, %v1393
    %v1446 = vpack.c.b16 %v1402, %v1398
    %v1447 = vpack.c.b16 %v1403, %v1399
    %v1448 = vpack.c.b16 %v1404, %v1400
    %v1449 = vpack.c.b16 %v1405, %v1401
    %v1450 = vpack.c.b16 %v1410, %v1406
    %v1451 = vpack.c.b16 %v1411, %v1407
    %v1452 = vpack.c.b16 %v1412, %v1408
    %v1453 = vpack.c.b16 %v1413, %v1409
    %v1454 = vpack.c.b16 %v1418, %v1414
    %v1455 = vpack.c.b16 %v1419, %v1415
    %v1456 = vpack.c.b16 %v1420, %v1416
    %v1457 = vpack.c.b16 %v1421, %v1417
    %v1458 = vpack.c.b16 %v1426, %v1422
    %v1459 = vpack.c.b16 %v1427, %v1423
    %v1460 = vpack.c.b16 %v1428, %v1424
    %v1461 = vpack.c.b16 %v1429, %v1425
    %v1462 = vpack.c.b16 %v1434, %v1430
    %v1463 = vpack.c.b16 %v1435, %v1431
    %v1464 = vpack.c.b16 %v1436, %v1432
    %v1465 = vpack.c.b16 %v1437, %v1433
    %1494 = vmatprep.subr.bf16.mxu0 0
    %1495 = vmatpush1.bf16.msra.mxu0 %v422
    %1496 = vmatprep.subr.bf16.mxu0 0
    %1497 = vmatpush1.bf16.msra.mxu0 %v421
    %1498 = vmatprep.subr.bf16.mxu0 0
    %1499 = vmatpush1.bf16.msra.mxu0 %v420
    %1500 = vmatprep.subr.bf16.mxu0 0
    %1501 = vmatpush1.bf16.msra.mxu0 %v419
    %1502 = vmatprep.subr.bf16.mxu0 0
    %1503 = vmatpush1.bf16.msra.mxu0 %v418
    %1504 = vmatprep.subr.bf16.mxu0 0
    %1505 = vmatpush1.bf16.msra.mxu0 %v417
    %1506 = vmatprep.subr.bf16.mxu0 0
    %1507 = vmatpush1.bf16.msra.mxu0 %v416
    %1508 = vmatprep.subr.bf16.mxu0 0
    %1509 = vmatpush1.bf16.msra.mxu0 %v415
    %1510 = vmatprep.subr.bf16.mxu0 0
    %1511 = vmatpush2.bf16.msra.mxu0 %v430
    %1512 = vmatprep.subr.bf16.mxu0 0
    %1513 = vmatpush2.bf16.msra.mxu0 %v429
    %1514 = vmatprep.subr.bf16.mxu0 0
    %1515 = vmatpush2.bf16.msra.mxu0 %v428
    %1516 = vmatprep.subr.bf16.mxu0 0
    %1517 = vmatpush2.bf16.msra.mxu0 %v427
    %1518 = vmatprep.subr.bf16.mxu0 0
    %1519 = vmatpush2.bf16.msra.mxu0 %v426
    %1520 = vmatprep.subr.bf16.mxu0 0
    %1521 = vmatpush2.bf16.msra.mxu0 %v425
    %1522 = vmatprep.subr.bf16.mxu0 0
    %1523 = vmatpush2.bf16.msra.mxu0 %v424
    %1524 = vmatprep.subr.bf16.mxu0 0
    %1525 = vmatpush2.bf16.msra.mxu0 %v423
    %1526 = vmatprep.mubr.bf16.mxu0 %v1439
    %1527 = vmatmul.mubr.bf16.gmra.mxu0 %v1438
    %v1528 = vpop.f32.mrf.mxu0
    %v1529 = vadd.f32 0.0, %v1528
    %v1530 = vpop.f32.mrf.mxu0
    %v1531 = vpop.f32.mrf.mxu0
    %v1532 = vadd.f32 0.0, %v1531
    %v1533 = vpop.f32.mrf.mxu0
    %1534 = vmatprep.mubr.bf16.mxu0 %v1443
    %1535 = vmatmul.mubr.bf16.gmra.mxu0 %v1442
    %v1536 = vpop.f32.mrf.mxu0
    %v1537 = vadd.f32 0.0, %v1536
    %v1538 = vpop.f32.mrf.mxu0
    %v1539 = vpop.f32.mrf.mxu0
    %v1540 = vadd.f32 0.0, %v1539
    %v1541 = vpop.f32.mrf.mxu0
    %1542 = vmatprep.mubr.bf16.mxu0 %v1447
    %1543 = vmatmul.mubr.bf16.gmra.mxu0 %v1446
    %v1544 = vpop.f32.mrf.mxu0
    %v1545 = vadd.f32 0.0, %v1544
    %v1546 = vpop.f32.mrf.mxu0
    %v1547 = vpop.f32.mrf.mxu0
    %v1548 = vadd.f32 0.0, %v1547
    %v1549 = vpop.f32.mrf.mxu0
    %1550 = vmatprep.mubr.bf16.mxu0 %v1451
    %1551 = vmatmul.mubr.bf16.gmra.mxu0 %v1450
    %v1552 = vpop.f32.mrf.mxu0
    %v1553 = vadd.f32 0.0, %v1552
    %v1554 = vpop.f32.mrf.mxu0
    %v1555 = vpop.f32.mrf.mxu0
    %v1556 = vadd.f32 0.0, %v1555
    %v1557 = vpop.f32.mrf.mxu0
    %1558 = vmatprep.mubr.bf16.mxu0 %v1455
    %1559 = vmatmul.mubr.bf16.gmra.mxu0 %v1454
    %v1560 = vpop.f32.mrf.mxu0
    %v1561 = vadd.f32 0.0, %v1560
    %v1562 = vpop.f32.mrf.mxu0
    %v1563 = vpop.f32.mrf.mxu0
    %v1564 = vadd.f32 0.0, %v1563
    %v1565 = vpop.f32.mrf.mxu0
    %1566 = vmatprep.mubr.bf16.mxu0 %v1459
    %1567 = vmatmul.mubr.bf16.gmra.mxu0 %v1458
    %v1568 = vpop.f32.mrf.mxu0
    %v1569 = vadd.f32 0.0, %v1568
    %v1570 = vpop.f32.mrf.mxu0
    %v1571 = vpop.f32.mrf.mxu0
    %v1572 = vadd.f32 0.0, %v1571
    %v1573 = vpop.f32.mrf.mxu0
    %1574 = vmatprep.mubr.bf16.mxu0 %v1463
    %1575 = vmatmul.mubr.bf16.gmra.mxu0 %v1462
    %v1576 = vpop.f32.mrf.mxu0
    %v1577 = vadd.f32 0.0, %v1576
    %v1578 = vpop.f32.mrf.mxu0
    %v1579 = vpop.f32.mrf.mxu0
    %v1580 = vadd.f32 0.0, %v1579
    %v1581 = vpop.f32.mrf.mxu0
    %1582 = vdwg.mxu0
    %1583 = vmatprep.subr.bf16.mxu0 0
    %1584 = vmatpush1.bf16.msra.mxu0 %v438
    %1585 = vmatprep.subr.bf16.mxu0 0
    %1586 = vmatpush1.bf16.msra.mxu0 %v437
    %1587 = vmatprep.subr.bf16.mxu0 0
    %1588 = vmatpush1.bf16.msra.mxu0 %v436
    %1589 = vmatprep.subr.bf16.mxu0 0
    %1590 = vmatpush1.bf16.msra.mxu0 %v435
    %1591 = vmatprep.subr.bf16.mxu0 0
    %1592 = vmatpush1.bf16.msra.mxu0 %v434
    %1593 = vmatprep.subr.bf16.mxu0 0
    %1594 = vmatpush1.bf16.msra.mxu0 %v433
    %1595 = vmatprep.subr.bf16.mxu0 0
    %1596 = vmatpush1.bf16.msra.mxu0 %v432
    %1597 = vmatprep.subr.bf16.mxu0 0
    %1598 = vmatpush1.bf16.msra.mxu0 %v431
    %1599 = vmatprep.subr.bf16.mxu0 0
    %1600 = vmatpush2.bf16.msra.mxu0 %v446
    %1601 = vmatprep.subr.bf16.mxu0 0
    %1602 = vmatpush2.bf16.msra.mxu0 %v445
    %1603 = vmatprep.subr.bf16.mxu0 0
    %1604 = vmatpush2.bf16.msra.mxu0 %v444
    %1605 = vmatprep.subr.bf16.mxu0 0
    %1606 = vmatpush2.bf16.msra.mxu0 %v443
    %1607 = vmatprep.subr.bf16.mxu0 0
    %1608 = vmatpush2.bf16.msra.mxu0 %v442
    %1609 = vmatprep.subr.bf16.mxu0 0
    %1610 = vmatpush2.bf16.msra.mxu0 %v441
    %1611 = vmatprep.subr.bf16.mxu0 0
    %1612 = vmatpush2.bf16.msra.mxu0 %v440
    %1613 = vmatprep.subr.bf16.mxu0 0
    %1614 = vmatpush2.bf16.msra.mxu0 %v439
    %1615 = vmatprep.mubr.bf16.mxu0 %v1441
    %1616 = vmatmul.mubr.bf16.gmra.mxu0 %v1440
    %v1617 = vpop.f32.mrf.mxu0
    %v1618 = vadd.f32 %v1529, %v1617
    %v1619 = vpop.f32.mrf.mxu0
    %v1620 = vpop.f32.mrf.mxu0
    %v1621 = vadd.f32 %v1532, %v1620
    %v1622 = vpop.f32.mrf.mxu0
    %1623 = vmatprep.mubr.bf16.mxu0 %v1445
    %1624 = vmatmul.mubr.bf16.gmra.mxu0 %v1444
    %v1625 = vpop.f32.mrf.mxu0
    %v1626 = vadd.f32 %v1537, %v1625
    %v1627 = vpop.f32.mrf.mxu0
    %v1628 = vpop.f32.mrf.mxu0
    %v1629 = vadd.f32 %v1540, %v1628
    %v1630 = vpop.f32.mrf.mxu0
    %1631 = vmatprep.mubr.bf16.mxu0 %v1449
    %1632 = vmatmul.mubr.bf16.gmra.mxu0 %v1448
    %v1633 = vpop.f32.mrf.mxu0
    %v1634 = vadd.f32 %v1545, %v1633
    %v1635 = vpop.f32.mrf.mxu0
    %v1636 = vpop.f32.mrf.mxu0
    %v1637 = vadd.f32 %v1548, %v1636
    %v1638 = vpop.f32.mrf.mxu0
    %1639 = vmatprep.mubr.bf16.mxu0 %v1453
    %1640 = vmatmul.mubr.bf16.gmra.mxu0 %v1452
    %v1641 = vpop.f32.mrf.mxu0
    %v1642 = vadd.f32 %v1553, %v1641
    %v1643 = vpop.f32.mrf.mxu0
    %v1644 = vpop.f32.mrf.mxu0
    %v1645 = vadd.f32 %v1556, %v1644
    %v1646 = vpop.f32.mrf.mxu0
    %1647 = vmatprep.mubr.bf16.mxu0 %v1457
    %1648 = vmatmul.mubr.bf16.gmra.mxu0 %v1456
    %v1649 = vpop.f32.mrf.mxu0
    %v1650 = vadd.f32 %v1561, %v1649
    %v1651 = vpop.f32.mrf.mxu0
    %v1652 = vpop.f32.mrf.mxu0
    %v1653 = vadd.f32 %v1564, %v1652
    %v1654 = vpop.f32.mrf.mxu0
    %1655 = vmatprep.mubr.bf16.mxu0 %v1461
    %1656 = vmatmul.mubr.bf16.gmra.mxu0 %v1460
    %v1657 = vpop.f32.mrf.mxu0
    %v1658 = vadd.f32 %v1569, %v1657
    %v1659 = vpop.f32.mrf.mxu0
    %v1660 = vpop.f32.mrf.mxu0
    %v1661 = vadd.f32 %v1572, %v1660
    %v1662 = vpop.f32.mrf.mxu0
    %1663 = vmatprep.mubr.bf16.mxu0 %v1465
    %1664 = vmatmul.mubr.bf16.gmra.mxu0 %v1464
    %v1665 = vpop.f32.mrf.mxu0
    %v1666 = vadd.f32 %v1577, %v1665
    %v1667 = vpop.f32.mrf.mxu0
    %v1668 = vpop.f32.mrf.mxu0
    %v1669 = vadd.f32 %v1580, %v1668
    %v1670 = vpop.f32.mrf.mxu0
    %1671 = vdwg.mxu0
    %v1672 = vpack.c.bf16 %v1621, %v1618
    %v1673 = vpack.c.bf16 %v1629, %v1626
    %v1674 = vpack.c.bf16 %v1637, %v1634
    %v1675 = vpack.c.bf16 %v1645, %v1642
    %v1676 = vpack.c.bf16 %v1653, %v1650
    %v1677 = vpack.c.bf16 %v1661, %v1658
    %v1678 = vpack.c.bf16 %v1669, %v1666
    %s1679 = scalar_lea.vmem %s2, 128
    %v1680 = vld [vmem:[%s1679] sm:$0xf]
    %v1681 = vld [vmem:[%s1679 + $0x4] sm:$0xf]
    %v1682 = vld [vmem:[%s1679 + $0x8] sm:$0xf]
    %v1683 = vld [vmem:[%s1679 + $0xc] sm:$0xf]
    %v1684 = vld [vmem:[%s1679 + $0x10] sm:$0xf]
    %v1685 = vld [vmem:[%s1679 + $0x14] sm:$0xf]
    %v1686 = vld [vmem:[%s1679 + $0x18] sm:$0xf]
    %v1687 = vld [vmem:[%s1679 + $0x1c] sm:$0xf]
    %v1688 = vld [vmem:[%s1679 + $0x20] sm:$0xf]
    %v1689 = vld [vmem:[%s1679 + $0x24] sm:$0xf]
    %v1690 = vld [vmem:[%s1679 + $0x28] sm:$0xf]
    %v1691 = vld [vmem:[%s1679 + $0x2c] sm:$0xf]
    %v1692 = vld [vmem:[%s1679 + $0x30] sm:$0xf]
    %v1693 = vld [vmem:[%s1679 + $0x34] sm:$0xf]
    %v1694 = vld [vmem:[%s1679 + $0x38] sm:$0xf]
    %v1695 = vld [vmem:[%s1679 + $0x3c] sm:$0xf]
    %v1712 = vunpack.c.l.b16 %v1680
    %v1713 = vunpack.c.l.b16 %v1681
    %v1714 = vunpack.c.l.b16 %v1682
    %v1715 = vunpack.c.l.b16 %v1683
    %v1716 = vunpack.c.l.b16 %v1684
    %v1717 = vunpack.c.l.b16 %v1685
    %v1718 = vunpack.c.l.b16 %v1686
    %v1719 = vunpack.c.l.b16 %v1687
    %v1720 = vunpack.c.l.b16 %v1688
    %v1721 = vunpack.c.l.b16 %v1689
    %v1722 = vunpack.c.l.b16 %v1690
    %v1723 = vunpack.c.l.b16 %v1691
    %v1724 = vunpack.c.l.b16 %v1692
    %v1725 = vunpack.c.l.b16 %v1693
    %v1726 = vunpack.c.l.b16 %v1694
    %v1727 = vunpack.c.l.b16 %v1695
    %v1728 = vpack.c.b16 %v1713, %v1712
    %v1729 = vpack.c.b16 %v1715, %v1714
    %v1730 = vpack.c.b16 %v1717, %v1716
    %v1731 = vpack.c.b16 %v1719, %v1718
    %v1732 = vpack.c.b16 %v1721, %v1720
    %v1733 = vpack.c.b16 %v1723, %v1722
    %v1734 = vpack.c.b16 %v1725, %v1724
    %v1735 = vpack.c.b16 %v1727, %v1726
    %1744 = vmatprep.subr.bf16.mxu0 0
    %1745 = vmatpush1.bf16.msra.mxu0 %v1735
    %1746 = vmatprep.subr.bf16.mxu0 0
    %1747 = vmatpush1.bf16.msra.mxu0 %v1734
    %1748 = vmatprep.subr.bf16.mxu0 0
    %1749 = vmatpush1.bf16.msra.mxu0 %v1733
    %1750 = vmatprep.subr.bf16.mxu0 0
    %1751 = vmatpush1.bf16.msra.mxu0 %v1732
    %1752 = vmatprep.subr.bf16.mxu0 0
    %1753 = vmatpush1.bf16.msra.mxu0 %v1731
    %1754 = vmatprep.subr.bf16.mxu0 0
    %1755 = vmatpush1.bf16.msra.mxu0 %v1730
    %1756 = vmatprep.subr.bf16.mxu0 0
    %1757 = vmatpush1.bf16.msra.mxu0 %v1729
    %1758 = vmatprep.subr.bf16.mxu0 0
    %1759 = vmatpush1.bf16.msra.mxu0 %v1728
    %1760 = vmatprep.subr.bf16.mxu0 0
    %1761 = vmatpush2.bf16.msra.mxu0 0
    %1762 = vmatprep.subr.bf16.mxu0 0
    %1763 = vmatpush2.bf16.msra.mxu0 0
    %1764 = vmatprep.subr.bf16.mxu0 0
    %1765 = vmatpush2.bf16.msra.mxu0 0
    %1766 = vmatprep.subr.bf16.mxu0 0
    %1767 = vmatpush2.bf16.msra.mxu0 0
    %1768 = vmatprep.subr.bf16.mxu0 0
    %1769 = vmatpush2.bf16.msra.mxu0 0
    %1770 = vmatprep.subr.bf16.mxu0 0
    %1771 = vmatpush2.bf16.msra.mxu0 0
    %1772 = vmatprep.subr.bf16.mxu0 0
    %1773 = vmatpush2.bf16.msra.mxu0 0
    %1774 = vmatprep.subr.bf16.mxu0 0
    %1775 = vmatpush2.bf16.msra.mxu0 0
    %1776 = vmatprep.mubr.bf16.mxu0 0
    %1777 = vmatmul.mubr.bf16.gmra.mxu0 %v1672
    %v1778 = vpop.f32.mrf.mxu0
    %v1779 = vadd.f32 0.0, %v1778
    %v1780 = vpop.f32.mrf.mxu0
    %v1781 = vpop.f32.mrf.mxu0
    %v1782 = vadd.f32 0.0, %v1781
    %v1783 = vpop.f32.mrf.mxu0
    %1784 = vmatprep.mubr.bf16.mxu0 0
    %1785 = vmatmul.mubr.bf16.gmra.mxu0 %v1673
    %v1786 = vpop.f32.mrf.mxu0
    %v1787 = vadd.f32 0.0, %v1786
    %v1788 = vpop.f32.mrf.mxu0
    %v1789 = vpop.f32.mrf.mxu0
    %v1790 = vadd.f32 0.0, %v1789
    %v1791 = vpop.f32.mrf.mxu0
    %1792 = vmatprep.mubr.bf16.mxu0 0
    %1793 = vmatmul.mubr.bf16.gmra.mxu0 %v1674
    %v1794 = vpop.f32.mrf.mxu0
    %v1795 = vadd.f32 0.0, %v1794
    %v1796 = vpop.f32.mrf.mxu0
    %v1797 = vpop.f32.mrf.mxu0
    %v1798 = vadd.f32 0.0, %v1797
    %v1799 = vpop.f32.mrf.mxu0
    %1800 = vmatprep.mubr.bf16.mxu0 0
    %1801 = vmatmul.mubr.bf16.gmra.mxu0 %v1675
    %v1802 = vpop.f32.mrf.mxu0
    %v1803 = vadd.f32 0.0, %v1802
    %v1804 = vpop.f32.mrf.mxu0
    %v1805 = vpop.f32.mrf.mxu0
    %v1806 = vadd.f32 0.0, %v1805
    %v1807 = vpop.f32.mrf.mxu0
    %1808 = vmatprep.mubr.bf16.mxu0 0
    %1809 = vmatmul.mubr.bf16.gmra.mxu0 %v1676
    %v1810 = vpop.f32.mrf.mxu0
    %v1811 = vadd.f32 0.0, %v1810
    %v1812 = vpop.f32.mrf.mxu0
    %v1813 = vpop.f32.mrf.mxu0
    %v1814 = vadd.f32 0.0, %v1813
    %v1815 = vpop.f32.mrf.mxu0
    %1816 = vmatprep.mubr.bf16.mxu0 0
    %1817 = vmatmul.mubr.bf16.gmra.mxu0 %v1677
    %v1818 = vpop.f32.mrf.mxu0
    %v1819 = vadd.f32 0.0, %v1818
    %v1820 = vpop.f32.mrf.mxu0
    %v1821 = vpop.f32.mrf.mxu0
    %v1822 = vadd.f32 0.0, %v1821
    %v1823 = vpop.f32.mrf.mxu0
    %1824 = vmatprep.mubr.bf16.mxu0 0
    %1825 = vmatmul.mubr.bf16.gmra.mxu0 %v1678
    %v1826 = vpop.f32.mrf.mxu0
    %v1827 = vadd.f32 0.0, %v1826
    %v1828 = vpop.f32.mrf.mxu0
    %v1829 = vpop.f32.mrf.mxu0
    %v1830 = vadd.f32 0.0, %v1829
    %v1831 = vpop.f32.mrf.mxu0
    %1832 = vdwg.mxu0
    %v1833 = vadd.f32 %v1271, %v1779
    %v1834 = vadd.f32 %v1274, %v1782
    %v1835 = vadd.f32 %v1279, %v1787
    %v1836 = vadd.f32 %v1282, %v1790
    %v1837 = vadd.f32 %v1287, %v1795
    %v1838 = vadd.f32 %v1290, %v1798
    %v1839 = vadd.f32 %v1295, %v1803
    %v1840 = vadd.f32 %v1298, %v1806
    %v1841 = vadd.f32 %v1303, %v1811
    %v1842 = vadd.f32 %v1306, %v1814
    %v1843 = vadd.f32 %v1311, %v1819
    %v1844 = vadd.f32 %v1314, %v1822
    %v1845 = vadd.f32 %v1319, %v1827
    %v1846 = vadd.f32 %v1322, %v1830
    %s1847 = scalar_lea.vmem %s1, 672
    %v1848 = vld [vmem:[%s1847] sm:$0xff]
    %v1849 = vld [vmem:[%s1847 + $0x8] sm:$0xff]
    %v1850 = vld [vmem:[%s1847 + $0x10] sm:$0xff]
    %v1851 = vld [vmem:[%s1847 + $0x18] sm:$0xff]
    %v1852 = vld [vmem:[%s1847 + $0x20] sm:$0xff]
    %v1853 = vld [vmem:[%s1847 + $0x28] sm:$0xff]
    %v1854 = vld [vmem:[%s1847 + $0x30] sm:$0xff]
    %v1855 = vld [vmem:[%s1847 + $0x38] sm:$0xff]
    %v1856 = vld [vmem:[%s1847 + $0x40] sm:$0xff]
    %v1857 = vld [vmem:[%s1847 + $0x48] sm:$0xff]
    %v1858 = vld [vmem:[%s1847 + $0x50] sm:$0xff]
    %v1859 = vld [vmem:[%s1847 + $0x58] sm:$0xff]
    %v1860 = vld [vmem:[%s1847 + $0x60] sm:$0xff]
    %v1861 = vld [vmem:[%s1847 + $0x68] sm:$0xff]
    %v1862 = vld [vmem:[%s1847 + $0x70] sm:$0xff]
    %v1863 = vld [vmem:[%s1847 + $0x78] sm:$0xff]
    %v1864 = vld [vmem:[%s1847 + $0x80] sm:$0xff]
    %v1865 = vld [vmem:[%s1847 + $0x88] sm:$0xff]
    %v1866 = vld [vmem:[%s1847 + $0x90] sm:$0xff]
    %v1867 = vld [vmem:[%s1847 + $0x98] sm:$0xff]
    %v1868 = vld [vmem:[%s1847 + $0xa0] sm:$0xff]
    %v1869 = vld [vmem:[%s1847 + $0xa8] sm:$0xff]
    %v1870 = vld [vmem:[%s1847 + $0xb0] sm:$0xff]
    %v1871 = vld [vmem:[%s1847 + $0xb8] sm:$0xff]
    %v1872 = vld [vmem:[%s1847 + $0xc0] sm:$0xff]
    %v1873 = vld [vmem:[%s1847 + $0xc8] sm:$0xff]
    %v1874 = vld [vmem:[%s1847 + $0xd0] sm:$0xff]
    %v1875 = vld [vmem:[%s1847 + $0xd8] sm:$0xff]
    %v1904 = vunpack.c.l.b16 %v1848
    %v1905 = vunpack.c.h.b16 %v1848
    %v1906 = vunpack.c.l.b16 %v1849
    %v1907 = vunpack.c.h.b16 %v1849
    %v1908 = vunpack.c.l.b16 %v1850
    %v1909 = vunpack.c.h.b16 %v1850
    %v1910 = vunpack.c.l.b16 %v1851
    %v1911 = vunpack.c.h.b16 %v1851
    %v1912 = vunpack.c.l.b16 %v1852
    %v1913 = vunpack.c.h.b16 %v1852
    %v1914 = vunpack.c.l.b16 %v1853
    %v1915 = vunpack.c.h.b16 %v1853
    %v1916 = vunpack.c.l.b16 %v1854
    %v1917 = vunpack.c.h.b16 %v1854
    %v1918 = vunpack.c.l.b16 %v1855
    %v1919 = vunpack.c.h.b16 %v1855
    %v1920 = vunpack.c.l.b16 %v1856
    %v1921 = vunpack.c.h.b16 %v1856
    %v1922 = vunpack.c.l.b16 %v1857
    %v1923 = vunpack.c.h.b16 %v1857
    %v1924 = vunpack.c.l.b16 %v1858
    %v1925 = vunpack.c.h.b16 %v1858
    %v1926 = vunpack.c.l.b16 %v1859
    %v1927 = vunpack.c.h.b16 %v1859
    %v1928 = vunpack.c.l.b16 %v1860
    %v1929 = vunpack.c.h.b16 %v1860
    %v1930 = vunpack.c.l.b16 %v1861
    %v1931 = vunpack.c.h.b16 %v1861
    %v1932 = vunpack.c.l.b16 %v1862
    %v1933 = vunpack.c.h.b16 %v1862
    %v1934 = vunpack.c.l.b16 %v1863
    %v1935 = vunpack.c.h.b16 %v1863
    %v1936 = vunpack.c.l.b16 %v1864
    %v1937 = vunpack.c.h.b16 %v1864
    %v1938 = vunpack.c.l.b16 %v1865
    %v1939 = vunpack.c.h.b16 %v1865
    %v1940 = vunpack.c.l.b16 %v1866
    %v1941 = vunpack.c.h.b16 %v1866
    %v1942 = vunpack.c.l.b16 %v1867
    %v1943 = vunpack.c.h.b16 %v1867
    %v1944 = vunpack.c.l.b16 %v1868
    %v1945 = vunpack.c.h.b16 %v1868
    %v1946 = vunpack.c.l.b16 %v1869
    %v1947 = vunpack.c.h.b16 %v1869
    %v1948 = vunpack.c.l.b16 %v1870
    %v1949 = vunpack.c.h.b16 %v1870
    %v1950 = vunpack.c.l.b16 %v1871
    %v1951 = vunpack.c.h.b16 %v1871
    %v1952 = vunpack.c.l.b16 %v1872
    %v1953 = vunpack.c.h.b16 %v1872
    %v1954 = vunpack.c.l.b16 %v1873
    %v1955 = vunpack.c.h.b16 %v1873
    %v1956 = vunpack.c.l.b16 %v1874
    %v1957 = vunpack.c.h.b16 %v1874
    %v1958 = vunpack.c.l.b16 %v1875
    %v1959 = vunpack.c.h.b16 %v1875
    %v1960 = vpack.c.b16 %v1908, %v1904
    %v1961 = vpack.c.b16 %v1909, %v1905
    %v1962 = vpack.c.b16 %v1910, %v1906
    %v1963 = vpack.c.b16 %v1911, %v1907
    %v1964 = vpack.c.b16 %v1916, %v1912
    %v1965 = vpack.c.b16 %v1917, %v1913
    %v1966 = vpack.c.b16 %v1918, %v1914
    %v1967 = vpack.c.b16 %v1919, %v1915
    %v1968 = vpack.c.b16 %v1924, %v1920
    %v1969 = vpack.c.b16 %v1925, %v1921
    %v1970 = vpack.c.b16 %v1926, %v1922
    %v1971 = vpack.c.b16 %v1927, %v1923
    %v1972 = vpack.c.b16 %v1932, %v1928
    %v1973 = vpack.c.b16 %v1933, %v1929
    %v1974 = vpack.c.b16 %v1934, %v1930
    %v1975 = vpack.c.b16 %v1935, %v1931
    %v1976 = vpack.c.b16 %v1940, %v1936
    %v1977 = vpack.c.b16 %v1941, %v1937
    %v1978 = vpack.c.b16 %v1942, %v1938
    %v1979 = vpack.c.b16 %v1943, %v1939
    %v1980 = vpack.c.b16 %v1948, %v1944
    %v1981 = vpack.c.b16 %v1949, %v1945
    %v1982 = vpack.c.b16 %v1950, %v1946
    %v1983 = vpack.c.b16 %v1951, %v1947
    %v1984 = vpack.c.b16 %v1956, %v1952
    %v1985 = vpack.c.b16 %v1957, %v1953
    %v1986 = vpack.c.b16 %v1958, %v1954
    %v1987 = vpack.c.b16 %v1959, %v1955
    %2016 = vmatprep.subr.bf16.mxu0 0
    %2017 = vmatpush1.bf16.msra.mxu0 %v422
    %2018 = vmatprep.subr.bf16.mxu0 0
    %2019 = vmatpush1.bf16.msra.mxu0 %v421
    %2020 = vmatprep.subr.bf16.mxu0 0
    %2021 = vmatpush1.bf16.msra.mxu0 %v420
    %2022 = vmatprep.subr.bf16.mxu0 0
    %2023 = vmatpush1.bf16.msra.mxu0 %v419
    %2024 = vmatprep.subr.bf16.mxu0 0
    %2025 = vmatpush1.bf16.msra.mxu0 %v418
    %2026 = vmatprep.subr.bf16.mxu0 0
    %2027 = vmatpush1.bf16.msra.mxu0 %v417
    %2028 = vmatprep.subr.bf16.mxu0 0
    %2029 = vmatpush1.bf16.msra.mxu0 %v416
    %2030 = vmatprep.subr.bf16.mxu0 0
    %2031 = vmatpush1.bf16.msra.mxu0 %v415
    %2032 = vmatprep.subr.bf16.mxu0 0
    %2033 = vmatpush2.bf16.msra.mxu0 %v430
    %2034 = vmatprep.subr.bf16.mxu0 0
    %2035 = vmatpush2.bf16.msra.mxu0 %v429
    %2036 = vmatprep.subr.bf16.mxu0 0
    %2037 = vmatpush2.bf16.msra.mxu0 %v428
    %2038 = vmatprep.subr.bf16.mxu0 0
    %2039 = vmatpush2.bf16.msra.mxu0 %v427
    %2040 = vmatprep.subr.bf16.mxu0 0
    %2041 = vmatpush2.bf16.msra.mxu0 %v426
    %2042 = vmatprep.subr.bf16.mxu0 0
    %2043 = vmatpush2.bf16.msra.mxu0 %v425
    %2044 = vmatprep.subr.bf16.mxu0 0
    %2045 = vmatpush2.bf16.msra.mxu0 %v424
    %2046 = vmatprep.subr.bf16.mxu0 0
    %2047 = vmatpush2.bf16.msra.mxu0 %v423
    %2048 = vmatprep.mubr.bf16.mxu0 %v1961
    %2049 = vmatmul.mubr.bf16.gmra.mxu0 %v1960
    %v2050 = vpop.f32.mrf.mxu0
    %v2051 = vadd.f32 0.0, %v2050
    %v2052 = vpop.f32.mrf.mxu0
    %v2053 = vpop.f32.mrf.mxu0
    %v2054 = vadd.f32 0.0, %v2053
    %v2055 = vpop.f32.mrf.mxu0
    %2056 = vmatprep.mubr.bf16.mxu0 %v1965
    %2057 = vmatmul.mubr.bf16.gmra.mxu0 %v1964
    %v2058 = vpop.f32.mrf.mxu0
    %v2059 = vadd.f32 0.0, %v2058
    %v2060 = vpop.f32.mrf.mxu0
    %v2061 = vpop.f32.mrf.mxu0
    %v2062 = vadd.f32 0.0, %v2061
    %v2063 = vpop.f32.mrf.mxu0
    %2064 = vmatprep.mubr.bf16.mxu0 %v1969
    %2065 = vmatmul.mubr.bf16.gmra.mxu0 %v1968
    %v2066 = vpop.f32.mrf.mxu0
    %v2067 = vadd.f32 0.0, %v2066
    %v2068 = vpop.f32.mrf.mxu0
    %v2069 = vpop.f32.mrf.mxu0
    %v2070 = vadd.f32 0.0, %v2069
    %v2071 = vpop.f32.mrf.mxu0
    %2072 = vmatprep.mubr.bf16.mxu0 %v1973
    %2073 = vmatmul.mubr.bf16.gmra.mxu0 %v1972
    %v2074 = vpop.f32.mrf.mxu0
    %v2075 = vadd.f32 0.0, %v2074
    %v2076 = vpop.f32.mrf.mxu0
    %v2077 = vpop.f32.mrf.mxu0
    %v2078 = vadd.f32 0.0, %v2077
    %v2079 = vpop.f32.mrf.mxu0
    %2080 = vmatprep.mubr.bf16.mxu0 %v1977
    %2081 = vmatmul.mubr.bf16.gmra.mxu0 %v1976
    %v2082 = vpop.f32.mrf.mxu0
    %v2083 = vadd.f32 0.0, %v2082
    %v2084 = vpop.f32.mrf.mxu0
    %v2085 = vpop.f32.mrf.mxu0
    %v2086 = vadd.f32 0.0, %v2085
    %v2087 = vpop.f32.mrf.mxu0
    %2088 = vmatprep.mubr.bf16.mxu0 %v1981
    %2089 = vmatmul.mubr.bf16.gmra.mxu0 %v1980
    %v2090 = vpop.f32.mrf.mxu0
    %v2091 = vadd.f32 0.0, %v2090
    %v2092 = vpop.f32.mrf.mxu0
    %v2093 = vpop.f32.mrf.mxu0
    %v2094 = vadd.f32 0.0, %v2093
    %v2095 = vpop.f32.mrf.mxu0
    %2096 = vmatprep.mubr.bf16.mxu0 %v1985
    %2097 = vmatmul.mubr.bf16.gmra.mxu0 %v1984
    %v2098 = vpop.f32.mrf.mxu0
    %v2099 = vadd.f32 0.0, %v2098
    %v2100 = vpop.f32.mrf.mxu0
    %v2101 = vpop.f32.mrf.mxu0
    %v2102 = vadd.f32 0.0, %v2101
    %v2103 = vpop.f32.mrf.mxu0
    %2104 = vdwg.mxu0
    %2105 = vmatprep.subr.bf16.mxu0 0
    %2106 = vmatpush1.bf16.msra.mxu0 %v438
    %2107 = vmatprep.subr.bf16.mxu0 0
    %2108 = vmatpush1.bf16.msra.mxu0 %v437
    %2109 = vmatprep.subr.bf16.mxu0 0
    %2110 = vmatpush1.bf16.msra.mxu0 %v436
    %2111 = vmatprep.subr.bf16.mxu0 0
    %2112 = vmatpush1.bf16.msra.mxu0 %v435
    %2113 = vmatprep.subr.bf16.mxu0 0
    %2114 = vmatpush1.bf16.msra.mxu0 %v434
    %2115 = vmatprep.subr.bf16.mxu0 0
    %2116 = vmatpush1.bf16.msra.mxu0 %v433
    %2117 = vmatprep.subr.bf16.mxu0 0
    %2118 = vmatpush1.bf16.msra.mxu0 %v432
    %2119 = vmatprep.subr.bf16.mxu0 0
    %2120 = vmatpush1.bf16.msra.mxu0 %v431
    %2121 = vmatprep.subr.bf16.mxu0 0
    %2122 = vmatpush2.bf16.msra.mxu0 %v446
    %2123 = vmatprep.subr.bf16.mxu0 0
    %2124 = vmatpush2.bf16.msra.mxu0 %v445
    %2125 = vmatprep.subr.bf16.mxu0 0
    %2126 = vmatpush2.bf16.msra.mxu0 %v444
    %2127 = vmatprep.subr.bf16.mxu0 0
    %2128 = vmatpush2.bf16.msra.mxu0 %v443
    %2129 = vmatprep.subr.bf16.mxu0 0
    %2130 = vmatpush2.bf16.msra.mxu0 %v442
    %2131 = vmatprep.subr.bf16.mxu0 0
    %2132 = vmatpush2.bf16.msra.mxu0 %v441
    %2133 = vmatprep.subr.bf16.mxu0 0
    %2134 = vmatpush2.bf16.msra.mxu0 %v440
    %2135 = vmatprep.subr.bf16.mxu0 0
    %2136 = vmatpush2.bf16.msra.mxu0 %v439
    %2137 = vmatprep.mubr.bf16.mxu0 %v1963
    %2138 = vmatmul.mubr.bf16.gmra.mxu0 %v1962
    %v2139 = vpop.f32.mrf.mxu0
    %v2140 = vadd.f32 %v2051, %v2139
    %v2141 = vpop.f32.mrf.mxu0
    %v2142 = vpop.f32.mrf.mxu0
    %v2143 = vadd.f32 %v2054, %v2142
    %v2144 = vpop.f32.mrf.mxu0
    %2145 = vmatprep.mubr.bf16.mxu0 %v1967
    %2146 = vmatmul.mubr.bf16.gmra.mxu0 %v1966
    %v2147 = vpop.f32.mrf.mxu0
    %v2148 = vadd.f32 %v2059, %v2147
    %v2149 = vpop.f32.mrf.mxu0
    %v2150 = vpop.f32.mrf.mxu0
    %v2151 = vadd.f32 %v2062, %v2150
    %v2152 = vpop.f32.mrf.mxu0
    %2153 = vmatprep.mubr.bf16.mxu0 %v1971
    %2154 = vmatmul.mubr.bf16.gmra.mxu0 %v1970
    %v2155 = vpop.f32.mrf.mxu0
    %v2156 = vadd.f32 %v2067, %v2155
    %v2157 = vpop.f32.mrf.mxu0
    %v2158 = vpop.f32.mrf.mxu0
    %v2159 = vadd.f32 %v2070, %v2158
    %v2160 = vpop.f32.mrf.mxu0
    %2161 = vmatprep.mubr.bf16.mxu0 %v1975
    %2162 = vmatmul.mubr.bf16.gmra.mxu0 %v1974
    %v2163 = vpop.f32.mrf.mxu0
    %v2164 = vadd.f32 %v2075, %v2163
    %v2165 = vpop.f32.mrf.mxu0
    %v2166 = vpop.f32.mrf.mxu0
    %v2167 = vadd.f32 %v2078, %v2166
    %v2168 = vpop.f32.mrf.mxu0
    %2169 = vmatprep.mubr.bf16.mxu0 %v1979
    %2170 = vmatmul.mubr.bf16.gmra.mxu0 %v1978
    %v2171 = vpop.f32.mrf.mxu0
    %v2172 = vadd.f32 %v2083, %v2171
    %v2173 = vpop.f32.mrf.mxu0
    %v2174 = vpop.f32.mrf.mxu0
    %v2175 = vadd.f32 %v2086, %v2174
    %v2176 = vpop.f32.mrf.mxu0
    %2177 = vmatprep.mubr.bf16.mxu0 %v1983
    %2178 = vmatmul.mubr.bf16.gmra.mxu0 %v1982
    %v2179 = vpop.f32.mrf.mxu0
    %v2180 = vadd.f32 %v2091, %v2179
    %v2181 = vpop.f32.mrf.mxu0
    %v2182 = vpop.f32.mrf.mxu0
    %v2183 = vadd.f32 %v2094, %v2182
    %v2184 = vpop.f32.mrf.mxu0
    %2185 = vmatprep.mubr.bf16.mxu0 %v1987
    %2186 = vmatmul.mubr.bf16.gmra.mxu0 %v1986
    %v2187 = vpop.f32.mrf.mxu0
    %v2188 = vadd.f32 %v2099, %v2187
    %v2189 = vpop.f32.mrf.mxu0
    %v2190 = vpop.f32.mrf.mxu0
    %v2191 = vadd.f32 %v2102, %v2190
    %v2192 = vpop.f32.mrf.mxu0
    %2193 = vdwg.mxu0
    %v2194 = vpack.c.bf16 %v2143, %v2140
    %v2195 = vpack.c.bf16 %v2151, %v2148
    %v2196 = vpack.c.bf16 %v2159, %v2156
    %v2197 = vpack.c.bf16 %v2167, %v2164
    %v2198 = vpack.c.bf16 %v2175, %v2172
    %v2199 = vpack.c.bf16 %v2183, %v2180
    %v2200 = vpack.c.bf16 %v2191, %v2188
    %s2201 = scalar_lea.vmem %s2, 192
    %v2202 = vld [vmem:[%s2201] sm:$0xf]
    %v2203 = vld [vmem:[%s2201 + $0x4] sm:$0xf]
    %v2204 = vld [vmem:[%s2201 + $0x8] sm:$0xf]
    %v2205 = vld [vmem:[%s2201 + $0xc] sm:$0xf]
    %v2206 = vld [vmem:[%s2201 + $0x10] sm:$0xf]
    %v2207 = vld [vmem:[%s2201 + $0x14] sm:$0xf]
    %v2208 = vld [vmem:[%s2201 + $0x18] sm:$0xf]
    %v2209 = vld [vmem:[%s2201 + $0x1c] sm:$0xf]
    %v2210 = vld [vmem:[%s2201 + $0x20] sm:$0xf]
    %v2211 = vld [vmem:[%s2201 + $0x24] sm:$0xf]
    %v2212 = vld [vmem:[%s2201 + $0x28] sm:$0xf]
    %v2213 = vld [vmem:[%s2201 + $0x2c] sm:$0xf]
    %v2214 = vld [vmem:[%s2201 + $0x30] sm:$0xf]
    %v2215 = vld [vmem:[%s2201 + $0x34] sm:$0xf]
    %v2216 = vld [vmem:[%s2201 + $0x38] sm:$0xf]
    %v2217 = vld [vmem:[%s2201 + $0x3c] sm:$0xf]
    %v2234 = vunpack.c.l.b16 %v2202
    %v2235 = vunpack.c.l.b16 %v2203
    %v2236 = vunpack.c.l.b16 %v2204
    %v2237 = vunpack.c.l.b16 %v2205
    %v2238 = vunpack.c.l.b16 %v2206
    %v2239 = vunpack.c.l.b16 %v2207
    %v2240 = vunpack.c.l.b16 %v2208
    %v2241 = vunpack.c.l.b16 %v2209
    %v2242 = vunpack.c.l.b16 %v2210
    %v2243 = vunpack.c.l.b16 %v2211
    %v2244 = vunpack.c.l.b16 %v2212
    %v2245 = vunpack.c.l.b16 %v2213
    %v2246 = vunpack.c.l.b16 %v2214
    %v2247 = vunpack.c.l.b16 %v2215
    %v2248 = vunpack.c.l.b16 %v2216
    %v2249 = vunpack.c.l.b16 %v2217
    %v2250 = vpack.c.b16 %v2235, %v2234
    %v2251 = vpack.c.b16 %v2237, %v2236
    %v2252 = vpack.c.b16 %v2239, %v2238
    %v2253 = vpack.c.b16 %v2241, %v2240
    %v2254 = vpack.c.b16 %v2243, %v2242
    %v2255 = vpack.c.b16 %v2245, %v2244
    %v2256 = vpack.c.b16 %v2247, %v2246
    %v2257 = vpack.c.b16 %v2249, %v2248
    %2266 = vmatprep.subr.bf16.mxu0 0
    %2267 = vmatpush1.bf16.msra.mxu0 %v2257
    %2268 = vmatprep.subr.bf16.mxu0 0
    %2269 = vmatpush1.bf16.msra.mxu0 %v2256
    %2270 = vmatprep.subr.bf16.mxu0 0
    %2271 = vmatpush1.bf16.msra.mxu0 %v2255
    %2272 = vmatprep.subr.bf16.mxu0 0
    %2273 = vmatpush1.bf16.msra.mxu0 %v2254
    %2274 = vmatprep.subr.bf16.mxu0 0
    %2275 = vmatpush1.bf16.msra.mxu0 %v2253
    %2276 = vmatprep.subr.bf16.mxu0 0
    %2277 = vmatpush1.bf16.msra.mxu0 %v2252
    %2278 = vmatprep.subr.bf16.mxu0 0
    %2279 = vmatpush1.bf16.msra.mxu0 %v2251
    %2280 = vmatprep.subr.bf16.mxu0 0
    %2281 = vmatpush1.bf16.msra.mxu0 %v2250
    %2282 = vmatprep.subr.bf16.mxu0 0
    %2283 = vmatpush2.bf16.msra.mxu0 0
    %2284 = vmatprep.subr.bf16.mxu0 0
    %2285 = vmatpush2.bf16.msra.mxu0 0
    %2286 = vmatprep.subr.bf16.mxu0 0
    %2287 = vmatpush2.bf16.msra.mxu0 0
    %2288 = vmatprep.subr.bf16.mxu0 0
    %2289 = vmatpush2.bf16.msra.mxu0 0
    %2290 = vmatprep.subr.bf16.mxu0 0
    %2291 = vmatpush2.bf16.msra.mxu0 0
    %2292 = vmatprep.subr.bf16.mxu0 0
    %2293 = vmatpush2.bf16.msra.mxu0 0
    %2294 = vmatprep.subr.bf16.mxu0 0
    %2295 = vmatpush2.bf16.msra.mxu0 0
    %2296 = vmatprep.subr.bf16.mxu0 0
    %2297 = vmatpush2.bf16.msra.mxu0 0
    %2298 = vmatprep.mubr.bf16.mxu0 0
    %2299 = vmatmul.mubr.bf16.gmra.mxu0 %v2194
    %v2300 = vpop.f32.mrf.mxu0
    %v2301 = vadd.f32 0.0, %v2300
    %v2302 = vpop.f32.mrf.mxu0
    %v2303 = vpop.f32.mrf.mxu0
    %v2304 = vadd.f32 0.0, %v2303
    %v2305 = vpop.f32.mrf.mxu0
    %2306 = vmatprep.mubr.bf16.mxu0 0
    %2307 = vmatmul.mubr.bf16.gmra.mxu0 %v2195
    %v2308 = vpop.f32.mrf.mxu0
    %v2309 = vadd.f32 0.0, %v2308
    %v2310 = vpop.f32.mrf.mxu0
    %v2311 = vpop.f32.mrf.mxu0
    %v2312 = vadd.f32 0.0, %v2311
    %v2313 = vpop.f32.mrf.mxu0
    %2314 = vmatprep.mubr.bf16.mxu0 0
    %2315 = vmatmul.mubr.bf16.gmra.mxu0 %v2196
    %v2316 = vpop.f32.mrf.mxu0
    %v2317 = vadd.f32 0.0, %v2316
    %v2318 = vpop.f32.mrf.mxu0
    %v2319 = vpop.f32.mrf.mxu0
    %v2320 = vadd.f32 0.0, %v2319
    %v2321 = vpop.f32.mrf.mxu0
    %2322 = vmatprep.mubr.bf16.mxu0 0
    %2323 = vmatmul.mubr.bf16.gmra.mxu0 %v2197
    %v2324 = vpop.f32.mrf.mxu0
    %v2325 = vadd.f32 0.0, %v2324
    %v2326 = vpop.f32.mrf.mxu0
    %v2327 = vpop.f32.mrf.mxu0
    %v2328 = vadd.f32 0.0, %v2327
    %v2329 = vpop.f32.mrf.mxu0
    %2330 = vmatprep.mubr.bf16.mxu0 0
    %2331 = vmatmul.mubr.bf16.gmra.mxu0 %v2198
    %v2332 = vpop.f32.mrf.mxu0
    %v2333 = vadd.f32 0.0, %v2332
    %v2334 = vpop.f32.mrf.mxu0
    %v2335 = vpop.f32.mrf.mxu0
    %v2336 = vadd.f32 0.0, %v2335
    %v2337 = vpop.f32.mrf.mxu0
    %2338 = vmatprep.mubr.bf16.mxu0 0
    %2339 = vmatmul.mubr.bf16.gmra.mxu0 %v2199
    %v2340 = vpop.f32.mrf.mxu0
    %v2341 = vadd.f32 0.0, %v2340
    %v2342 = vpop.f32.mrf.mxu0
    %v2343 = vpop.f32.mrf.mxu0
    %v2344 = vadd.f32 0.0, %v2343
    %v2345 = vpop.f32.mrf.mxu0
    %2346 = vmatprep.mubr.bf16.mxu0 0
    %2347 = vmatmul.mubr.bf16.gmra.mxu0 %v2200
    %v2348 = vpop.f32.mrf.mxu0
    %v2349 = vadd.f32 0.0, %v2348
    %v2350 = vpop.f32.mrf.mxu0
    %v2351 = vpop.f32.mrf.mxu0
    %v2352 = vadd.f32 0.0, %v2351
    %v2353 = vpop.f32.mrf.mxu0
    %2354 = vdwg.mxu0
    %v2355 = vadd.f32 %v1833, %v2301
    %v2356 = vadd.f32 %v1834, %v2304
    %v2357 = vadd.f32 %v1835, %v2309
    %v2358 = vadd.f32 %v1836, %v2312
    %v2359 = vadd.f32 %v1837, %v2317
    %v2360 = vadd.f32 %v1838, %v2320
    %v2361 = vadd.f32 %v1839, %v2325
    %v2362 = vadd.f32 %v1840, %v2328
    %v2363 = vadd.f32 %v1841, %v2333
    %v2364 = vadd.f32 %v1842, %v2336
    %v2365 = vadd.f32 %v1843, %v2341
    %v2366 = vadd.f32 %v1844, %v2344
    %v2367 = vadd.f32 %v1845, %v2349
    %v2368 = vadd.f32 %v1846, %v2352
    %s2369 = scalar_lea.vmem %s1, 896
    %v2370 = vld [vmem:[%s2369] sm:$0xff]
    %v2371 = vld [vmem:[%s2369 + $0x8] sm:$0xff]
    %v2372 = vld [vmem:[%s2369 + $0x10] sm:$0xff]
    %v2373 = vld [vmem:[%s2369 + $0x18] sm:$0xff]
    %v2374 = vld [vmem:[%s2369 + $0x20] sm:$0xff]
    %v2375 = vld [vmem:[%s2369 + $0x28] sm:$0xff]
    %v2376 = vld [vmem:[%s2369 + $0x30] sm:$0xff]
    %v2377 = vld [vmem:[%s2369 + $0x38] sm:$0xff]
    %v2378 = vld [vmem:[%s2369 + $0x40] sm:$0xff]
    %v2379 = vld [vmem:[%s2369 + $0x48] sm:$0xff]
    %v2380 = vld [vmem:[%s2369 + $0x50] sm:$0xff]
    %v2381 = vld [vmem:[%s2369 + $0x58] sm:$0xff]
    %v2382 = vld [vmem:[%s2369 + $0x60] sm:$0xff]
    %v2383 = vld [vmem:[%s2369 + $0x68] sm:$0xff]
    %v2384 = vld [vmem:[%s2369 + $0x70] sm:$0xff]
    %v2385 = vld [vmem:[%s2369 + $0x78] sm:$0xff]
    %v2386 = vld [vmem:[%s2369 + $0x80] sm:$0xff]
    %v2387 = vld [vmem:[%s2369 + $0x88] sm:$0xff]
    %v2388 = vld [vmem:[%s2369 + $0x90] sm:$0xff]
    %v2389 = vld [vmem:[%s2369 + $0x98] sm:$0xff]
    %v2390 = vld [vmem:[%s2369 + $0xa0] sm:$0xff]
    %v2391 = vld [vmem:[%s2369 + $0xa8] sm:$0xff]
    %v2392 = vld [vmem:[%s2369 + $0xb0] sm:$0xff]
    %v2393 = vld [vmem:[%s2369 + $0xb8] sm:$0xff]
    %v2394 = vld [vmem:[%s2369 + $0xc0] sm:$0xff]
    %v2395 = vld [vmem:[%s2369 + $0xc8] sm:$0xff]
    %v2396 = vld [vmem:[%s2369 + $0xd0] sm:$0xff]
    %v2397 = vld [vmem:[%s2369 + $0xd8] sm:$0xff]
    %v2426 = vunpack.c.l.b16 %v2370
    %v2427 = vunpack.c.h.b16 %v2370
    %v2428 = vunpack.c.l.b16 %v2371
    %v2429 = vunpack.c.h.b16 %v2371
    %v2430 = vunpack.c.l.b16 %v2372
    %v2431 = vunpack.c.h.b16 %v2372
    %v2432 = vunpack.c.l.b16 %v2373
    %v2433 = vunpack.c.h.b16 %v2373
    %v2434 = vunpack.c.l.b16 %v2374
    %v2435 = vunpack.c.h.b16 %v2374
    %v2436 = vunpack.c.l.b16 %v2375
    %v2437 = vunpack.c.h.b16 %v2375
    %v2438 = vunpack.c.l.b16 %v2376
    %v2439 = vunpack.c.h.b16 %v2376
    %v2440 = vunpack.c.l.b16 %v2377
    %v2441 = vunpack.c.h.b16 %v2377
    %v2442 = vunpack.c.l.b16 %v2378
    %v2443 = vunpack.c.h.b16 %v2378
    %v2444 = vunpack.c.l.b16 %v2379
    %v2445 = vunpack.c.h.b16 %v2379
    %v2446 = vunpack.c.l.b16 %v2380
    %v2447 = vunpack.c.h.b16 %v2380
    %v2448 = vunpack.c.l.b16 %v2381
    %v2449 = vunpack.c.h.b16 %v2381
    %v2450 = vunpack.c.l.b16 %v2382
    %v2451 = vunpack.c.h.b16 %v2382
    %v2452 = vunpack.c.l.b16 %v2383
    %v2453 = vunpack.c.h.b16 %v2383
    %v2454 = vunpack.c.l.b16 %v2384
    %v2455 = vunpack.c.h.b16 %v2384
    %v2456 = vunpack.c.l.b16 %v2385
    %v2457 = vunpack.c.h.b16 %v2385
    %v2458 = vunpack.c.l.b16 %v2386
    %v2459 = vunpack.c.h.b16 %v2386
    %v2460 = vunpack.c.l.b16 %v2387
    %v2461 = vunpack.c.h.b16 %v2387
    %v2462 = vunpack.c.l.b16 %v2388
    %v2463 = vunpack.c.h.b16 %v2388
    %v2464 = vunpack.c.l.b16 %v2389
    %v2465 = vunpack.c.h.b16 %v2389
    %v2466 = vunpack.c.l.b16 %v2390
    %v2467 = vunpack.c.h.b16 %v2390
    %v2468 = vunpack.c.l.b16 %v2391
    %v2469 = vunpack.c.h.b16 %v2391
    %v2470 = vunpack.c.l.b16 %v2392
    %v2471 = vunpack.c.h.b16 %v2392
    %v2472 = vunpack.c.l.b16 %v2393
    %v2473 = vunpack.c.h.b16 %v2393
    %v2474 = vunpack.c.l.b16 %v2394
    %v2475 = vunpack.c.h.b16 %v2394
    %v2476 = vunpack.c.l.b16 %v2395
    %v2477 = vunpack.c.h.b16 %v2395
    %v2478 = vunpack.c.l.b16 %v2396
    %v2479 = vunpack.c.h.b16 %v2396
    %v2480 = vunpack.c.l.b16 %v2397
    %v2481 = vunpack.c.h.b16 %v2397
    %v2482 = vpack.c.b16 %v2430, %v2426
    %v2483 = vpack.c.b16 %v2431, %v2427
    %v2484 = vpack.c.b16 %v2432, %v2428
    %v2485 = vpack.c.b16 %v2433, %v2429
    %v2486 = vpack.c.b16 %v2438, %v2434
    %v2487 = vpack.c.b16 %v2439, %v2435
    %v2488 = vpack.c.b16 %v2440, %v2436
    %v2489 = vpack.c.b16 %v2441, %v2437
    %v2490 = vpack.c.b16 %v2446, %v2442
    %v2491 = vpack.c.b16 %v2447, %v2443
    %v2492 = vpack.c.b16 %v2448, %v2444
    %v2493 = vpack.c.b16 %v2449, %v2445
    %v2494 = vpack.c.b16 %v2454, %v2450
    %v2495 = vpack.c.b16 %v2455, %v2451
    %v2496 = vpack.c.b16 %v2456, %v2452
    %v2497 = vpack.c.b16 %v2457, %v2453
    %v2498 = vpack.c.b16 %v2462, %v2458
    %v2499 = vpack.c.b16 %v2463, %v2459
    %v2500 = vpack.c.b16 %v2464, %v2460
    %v2501 = vpack.c.b16 %v2465, %v2461
    %v2502 = vpack.c.b16 %v2470, %v2466
    %v2503 = vpack.c.b16 %v2471, %v2467
    %v2504 = vpack.c.b16 %v2472, %v2468
    %v2505 = vpack.c.b16 %v2473, %v2469
    %v2506 = vpack.c.b16 %v2478, %v2474
    %v2507 = vpack.c.b16 %v2479, %v2475
    %v2508 = vpack.c.b16 %v2480, %v2476
    %v2509 = vpack.c.b16 %v2481, %v2477
    %2538 = vmatprep.subr.bf16.mxu0 0
    %2539 = vmatpush1.bf16.msra.mxu0 %v422
    %2540 = vmatprep.subr.bf16.mxu0 0
    %2541 = vmatpush1.bf16.msra.mxu0 %v421
    %2542 = vmatprep.subr.bf16.mxu0 0
    %2543 = vmatpush1.bf16.msra.mxu0 %v420
    %2544 = vmatprep.subr.bf16.mxu0 0
    %2545 = vmatpush1.bf16.msra.mxu0 %v419
    %2546 = vmatprep.subr.bf16.mxu0 0
    %2547 = vmatpush1.bf16.msra.mxu0 %v418
    %2548 = vmatprep.subr.bf16.mxu0 0
    %2549 = vmatpush1.bf16.msra.mxu0 %v417
    %2550 = vmatprep.subr.bf16.mxu0 0
    %2551 = vmatpush1.bf16.msra.mxu0 %v416
    %2552 = vmatprep.subr.bf16.mxu0 0
    %2553 = vmatpush1.bf16.msra.mxu0 %v415
    %2554 = vmatprep.subr.bf16.mxu0 0
    %2555 = vmatpush2.bf16.msra.mxu0 %v430
    %2556 = vmatprep.subr.bf16.mxu0 0
    %2557 = vmatpush2.bf16.msra.mxu0 %v429
    %2558 = vmatprep.subr.bf16.mxu0 0
    %2559 = vmatpush2.bf16.msra.mxu0 %v428
    %2560 = vmatprep.subr.bf16.mxu0 0
    %2561 = vmatpush2.bf16.msra.mxu0 %v427
    %2562 = vmatprep.subr.bf16.mxu0 0
    %2563 = vmatpush2.bf16.msra.mxu0 %v426
    %2564 = vmatprep.subr.bf16.mxu0 0
    %2565 = vmatpush2.bf16.msra.mxu0 %v425
    %2566 = vmatprep.subr.bf16.mxu0 0
    %2567 = vmatpush2.bf16.msra.mxu0 %v424
    %2568 = vmatprep.subr.bf16.mxu0 0
    %2569 = vmatpush2.bf16.msra.mxu0 %v423
    %2570 = vmatprep.mubr.bf16.mxu0 %v2483
    %2571 = vmatmul.mubr.bf16.gmra.mxu0 %v2482
    %v2572 = vpop.f32.mrf.mxu0
    %v2573 = vadd.f32 0.0, %v2572
    %v2574 = vpop.f32.mrf.mxu0
    %v2575 = vpop.f32.mrf.mxu0
    %v2576 = vadd.f32 0.0, %v2575
    %v2577 = vpop.f32.mrf.mxu0
    %2578 = vmatprep.mubr.bf16.mxu0 %v2487
    %2579 = vmatmul.mubr.bf16.gmra.mxu0 %v2486
    %v2580 = vpop.f32.mrf.mxu0
    %v2581 = vadd.f32 0.0, %v2580
    %v2582 = vpop.f32.mrf.mxu0
    %v2583 = vpop.f32.mrf.mxu0
    %v2584 = vadd.f32 0.0, %v2583
    %v2585 = vpop.f32.mrf.mxu0
    %2586 = vmatprep.mubr.bf16.mxu0 %v2491
    %2587 = vmatmul.mubr.bf16.gmra.mxu0 %v2490
    %v2588 = vpop.f32.mrf.mxu0
    %v2589 = vadd.f32 0.0, %v2588
    %v2590 = vpop.f32.mrf.mxu0
    %v2591 = vpop.f32.mrf.mxu0
    %v2592 = vadd.f32 0.0, %v2591
    %v2593 = vpop.f32.mrf.mxu0
    %2594 = vmatprep.mubr.bf16.mxu0 %v2495
    %2595 = vmatmul.mubr.bf16.gmra.mxu0 %v2494
    %v2596 = vpop.f32.mrf.mxu0
    %v2597 = vadd.f32 0.0, %v2596
    %v2598 = vpop.f32.mrf.mxu0
    %v2599 = vpop.f32.mrf.mxu0
    %v2600 = vadd.f32 0.0, %v2599
    %v2601 = vpop.f32.mrf.mxu0
    %2602 = vmatprep.mubr.bf16.mxu0 %v2499
    %2603 = vmatmul.mubr.bf16.gmra.mxu0 %v2498
    %v2604 = vpop.f32.mrf.mxu0
    %v2605 = vadd.f32 0.0, %v2604
    %v2606 = vpop.f32.mrf.mxu0
    %v2607 = vpop.f32.mrf.mxu0
    %v2608 = vadd.f32 0.0, %v2607
    %v2609 = vpop.f32.mrf.mxu0
    %2610 = vmatprep.mubr.bf16.mxu0 %v2503
    %2611 = vmatmul.mubr.bf16.gmra.mxu0 %v2502
    %v2612 = vpop.f32.mrf.mxu0
    %v2613 = vadd.f32 0.0, %v2612
    %v2614 = vpop.f32.mrf.mxu0
    %v2615 = vpop.f32.mrf.mxu0
    %v2616 = vadd.f32 0.0, %v2615
    %v2617 = vpop.f32.mrf.mxu0
    %2618 = vmatprep.mubr.bf16.mxu0 %v2507
    %2619 = vmatmul.mubr.bf16.gmra.mxu0 %v2506
    %v2620 = vpop.f32.mrf.mxu0
    %v2621 = vadd.f32 0.0, %v2620
    %v2622 = vpop.f32.mrf.mxu0
    %v2623 = vpop.f32.mrf.mxu0
    %v2624 = vadd.f32 0.0, %v2623
    %v2625 = vpop.f32.mrf.mxu0
    %2626 = vdwg.mxu0
    %2627 = vmatprep.subr.bf16.mxu0 0
    %2628 = vmatpush1.bf16.msra.mxu0 %v438
    %2629 = vmatprep.subr.bf16.mxu0 0
    %2630 = vmatpush1.bf16.msra.mxu0 %v437
    %2631 = vmatprep.subr.bf16.mxu0 0
    %2632 = vmatpush1.bf16.msra.mxu0 %v436
    %2633 = vmatprep.subr.bf16.mxu0 0
    %2634 = vmatpush1.bf16.msra.mxu0 %v435
    %2635 = vmatprep.subr.bf16.mxu0 0
    %2636 = vmatpush1.bf16.msra.mxu0 %v434
    %2637 = vmatprep.subr.bf16.mxu0 0
    %2638 = vmatpush1.bf16.msra.mxu0 %v433
    %2639 = vmatprep.subr.bf16.mxu0 0
    %2640 = vmatpush1.bf16.msra.mxu0 %v432
    %2641 = vmatprep.subr.bf16.mxu0 0
    %2642 = vmatpush1.bf16.msra.mxu0 %v431
    %2643 = vmatprep.subr.bf16.mxu0 0
    %2644 = vmatpush2.bf16.msra.mxu0 %v446
    %2645 = vmatprep.subr.bf16.mxu0 0
    %2646 = vmatpush2.bf16.msra.mxu0 %v445
    %2647 = vmatprep.subr.bf16.mxu0 0
    %2648 = vmatpush2.bf16.msra.mxu0 %v444
    %2649 = vmatprep.subr.bf16.mxu0 0
    %2650 = vmatpush2.bf16.msra.mxu0 %v443
    %2651 = vmatprep.subr.bf16.mxu0 0
    %2652 = vmatpush2.bf16.msra.mxu0 %v442
    %2653 = vmatprep.subr.bf16.mxu0 0
    %2654 = vmatpush2.bf16.msra.mxu0 %v441
    %2655 = vmatprep.subr.bf16.mxu0 0
    %2656 = vmatpush2.bf16.msra.mxu0 %v440
    %2657 = vmatprep.subr.bf16.mxu0 0
    %2658 = vmatpush2.bf16.msra.mxu0 %v439
    %2659 = vmatprep.mubr.bf16.mxu0 %v2485
    %2660 = vmatmul.mubr.bf16.gmra.mxu0 %v2484
    %v2661 = vpop.f32.mrf.mxu0
    %v2662 = vadd.f32 %v2573, %v2661
    %v2663 = vpop.f32.mrf.mxu0
    %v2664 = vpop.f32.mrf.mxu0
    %v2665 = vadd.f32 %v2576, %v2664
    %v2666 = vpop.f32.mrf.mxu0
    %2667 = vmatprep.mubr.bf16.mxu0 %v2489
    %2668 = vmatmul.mubr.bf16.gmra.mxu0 %v2488
    %v2669 = vpop.f32.mrf.mxu0
    %v2670 = vadd.f32 %v2581, %v2669
    %v2671 = vpop.f32.mrf.mxu0
    %v2672 = vpop.f32.mrf.mxu0
    %v2673 = vadd.f32 %v2584, %v2672
    %v2674 = vpop.f32.mrf.mxu0
    %2675 = vmatprep.mubr.bf16.mxu0 %v2493
    %2676 = vmatmul.mubr.bf16.gmra.mxu0 %v2492
    %v2677 = vpop.f32.mrf.mxu0
    %v2678 = vadd.f32 %v2589, %v2677
    %v2679 = vpop.f32.mrf.mxu0
    %v2680 = vpop.f32.mrf.mxu0
    %v2681 = vadd.f32 %v2592, %v2680
    %v2682 = vpop.f32.mrf.mxu0
    %2683 = vmatprep.mubr.bf16.mxu0 %v2497
    %2684 = vmatmul.mubr.bf16.gmra.mxu0 %v2496
    %v2685 = vpop.f32.mrf.mxu0
    %v2686 = vadd.f32 %v2597, %v2685
    %v2687 = vpop.f32.mrf.mxu0
    %v2688 = vpop.f32.mrf.mxu0
    %v2689 = vadd.f32 %v2600, %v2688
    %v2690 = vpop.f32.mrf.mxu0
    %2691 = vmatprep.mubr.bf16.mxu0 %v2501
    %2692 = vmatmul.mubr.bf16.gmra.mxu0 %v2500
    %v2693 = vpop.f32.mrf.mxu0
    %v2694 = vadd.f32 %v2605, %v2693
    %v2695 = vpop.f32.mrf.mxu0
    %v2696 = vpop.f32.mrf.mxu0
    %v2697 = vadd.f32 %v2608, %v2696
    %v2698 = vpop.f32.mrf.mxu0
    %2699 = vmatprep.mubr.bf16.mxu0 %v2505
    %2700 = vmatmul.mubr.bf16.gmra.mxu0 %v2504
    %v2701 = vpop.f32.mrf.mxu0
    %v2702 = vadd.f32 %v2613, %v2701
    %v2703 = vpop.f32.mrf.mxu0
    %v2704 = vpop.f32.mrf.mxu0
    %v2705 = vadd.f32 %v2616, %v2704
    %v2706 = vpop.f32.mrf.mxu0
    %2707 = vmatprep.mubr.bf16.mxu0 %v2509
    %2708 = vmatmul.mubr.bf16.gmra.mxu0 %v2508
    %v2709 = vpop.f32.mrf.mxu0
    %v2710 = vadd.f32 %v2621, %v2709
    %v2711 = vpop.f32.mrf.mxu0
    %v2712 = vpop.f32.mrf.mxu0
    %v2713 = vadd.f32 %v2624, %v2712
    %v2714 = vpop.f32.mrf.mxu0
    %2715 = vdwg.mxu0
    %v2716 = vpack.c.bf16 %v2665, %v2662
    %v2717 = vpack.c.bf16 %v2673, %v2670
    %v2718 = vpack.c.bf16 %v2681, %v2678
    %v2719 = vpack.c.bf16 %v2689, %v2686
    %v2720 = vpack.c.bf16 %v2697, %v2694
    %v2721 = vpack.c.bf16 %v2705, %v2702
    %v2722 = vpack.c.bf16 %v2713, %v2710
    %s2723 = scalar_lea.vmem %s2, 256
    %v2724 = vld [vmem:[%s2723] sm:$0xf]
    %v2725 = vld [vmem:[%s2723 + $0x4] sm:$0xf]
    %v2726 = vld [vmem:[%s2723 + $0x8] sm:$0xf]
    %v2727 = vld [vmem:[%s2723 + $0xc] sm:$0xf]
    %v2728 = vld [vmem:[%s2723 + $0x10] sm:$0xf]
    %v2729 = vld [vmem:[%s2723 + $0x14] sm:$0xf]
    %v2730 = vld [vmem:[%s2723 + $0x18] sm:$0xf]
    %v2731 = vld [vmem:[%s2723 + $0x1c] sm:$0xf]
    %v2732 = vld [vmem:[%s2723 + $0x20] sm:$0xf]
    %v2733 = vld [vmem:[%s2723 + $0x24] sm:$0xf]
    %v2734 = vld [vmem:[%s2723 + $0x28] sm:$0xf]
    %v2735 = vld [vmem:[%s2723 + $0x2c] sm:$0xf]
    %v2736 = vld [vmem:[%s2723 + $0x30] sm:$0xf]
    %v2737 = vld [vmem:[%s2723 + $0x34] sm:$0xf]
    %v2738 = vld [vmem:[%s2723 + $0x38] sm:$0xf]
    %v2739 = vld [vmem:[%s2723 + $0x3c] sm:$0xf]
    %v2756 = vunpack.c.l.b16 %v2724
    %v2757 = vunpack.c.l.b16 %v2725
    %v2758 = vunpack.c.l.b16 %v2726
    %v2759 = vunpack.c.l.b16 %v2727
    %v2760 = vunpack.c.l.b16 %v2728
    %v2761 = vunpack.c.l.b16 %v2729
    %v2762 = vunpack.c.l.b16 %v2730
    %v2763 = vunpack.c.l.b16 %v2731
    %v2764 = vunpack.c.l.b16 %v2732
    %v2765 = vunpack.c.l.b16 %v2733
    %v2766 = vunpack.c.l.b16 %v2734
    %v2767 = vunpack.c.l.b16 %v2735
    %v2768 = vunpack.c.l.b16 %v2736
    %v2769 = vunpack.c.l.b16 %v2737
    %v2770 = vunpack.c.l.b16 %v2738
    %v2771 = vunpack.c.l.b16 %v2739
    %v2772 = vpack.c.b16 %v2757, %v2756
    %v2773 = vpack.c.b16 %v2759, %v2758
    %v2774 = vpack.c.b16 %v2761, %v2760
    %v2775 = vpack.c.b16 %v2763, %v2762
    %v2776 = vpack.c.b16 %v2765, %v2764
    %v2777 = vpack.c.b16 %v2767, %v2766
    %v2778 = vpack.c.b16 %v2769, %v2768
    %v2779 = vpack.c.b16 %v2771, %v2770
    %2788 = vmatprep.subr.bf16.mxu0 0
    %2789 = vmatpush1.bf16.msra.mxu0 %v2779
    %2790 = vmatprep.subr.bf16.mxu0 0
    %2791 = vmatpush1.bf16.msra.mxu0 %v2778
    %2792 = vmatprep.subr.bf16.mxu0 0
    %2793 = vmatpush1.bf16.msra.mxu0 %v2777
    %2794 = vmatprep.subr.bf16.mxu0 0
    %2795 = vmatpush1.bf16.msra.mxu0 %v2776
    %2796 = vmatprep.subr.bf16.mxu0 0
    %2797 = vmatpush1.bf16.msra.mxu0 %v2775
    %2798 = vmatprep.subr.bf16.mxu0 0
    %2799 = vmatpush1.bf16.msra.mxu0 %v2774
    %2800 = vmatprep.subr.bf16.mxu0 0
    %2801 = vmatpush1.bf16.msra.mxu0 %v2773
    %2802 = vmatprep.subr.bf16.mxu0 0
    %2803 = vmatpush1.bf16.msra.mxu0 %v2772
    %2804 = vmatprep.subr.bf16.mxu0 0
    %2805 = vmatpush2.bf16.msra.mxu0 0
    %2806 = vmatprep.subr.bf16.mxu0 0
    %2807 = vmatpush2.bf16.msra.mxu0 0
    %2808 = vmatprep.subr.bf16.mxu0 0
    %2809 = vmatpush2.bf16.msra.mxu0 0
    %2810 = vmatprep.subr.bf16.mxu0 0
    %2811 = vmatpush2.bf16.msra.mxu0 0
    %2812 = vmatprep.subr.bf16.mxu0 0
    %2813 = vmatpush2.bf16.msra.mxu0 0
    %2814 = vmatprep.subr.bf16.mxu0 0
    %2815 = vmatpush2.bf16.msra.mxu0 0
    %2816 = vmatprep.subr.bf16.mxu0 0
    %2817 = vmatpush2.bf16.msra.mxu0 0
    %2818 = vmatprep.subr.bf16.mxu0 0
    %2819 = vmatpush2.bf16.msra.mxu0 0
    %2820 = vmatprep.mubr.bf16.mxu0 0
    %2821 = vmatmul.mubr.bf16.gmra.mxu0 %v2716
    %v2822 = vpop.f32.mrf.mxu0
    %v2823 = vadd.f32 0.0, %v2822
    %v2824 = vpop.f32.mrf.mxu0
    %v2825 = vpop.f32.mrf.mxu0
    %v2826 = vadd.f32 0.0, %v2825
    %v2827 = vpop.f32.mrf.mxu0
    %2828 = vmatprep.mubr.bf16.mxu0 0
    %2829 = vmatmul.mubr.bf16.gmra.mxu0 %v2717
    %v2830 = vpop.f32.mrf.mxu0
    %v2831 = vadd.f32 0.0, %v2830
    %v2832 = vpop.f32.mrf.mxu0
    %v2833 = vpop.f32.mrf.mxu0
    %v2834 = vadd.f32 0.0, %v2833
    %v2835 = vpop.f32.mrf.mxu0
    %2836 = vmatprep.mubr.bf16.mxu0 0
    %2837 = vmatmul.mubr.bf16.gmra.mxu0 %v2718
    %v2838 = vpop.f32.mrf.mxu0
    %v2839 = vadd.f32 0.0, %v2838
    %v2840 = vpop.f32.mrf.mxu0
    %v2841 = vpop.f32.mrf.mxu0
    %v2842 = vadd.f32 0.0, %v2841
    %v2843 = vpop.f32.mrf.mxu0
    %2844 = vmatprep.mubr.bf16.mxu0 0
    %2845 = vmatmul.mubr.bf16.gmra.mxu0 %v2719
    %v2846 = vpop.f32.mrf.mxu0
    %v2847 = vadd.f32 0.0, %v2846
    %v2848 = vpop.f32.mrf.mxu0
    %v2849 = vpop.f32.mrf.mxu0
    %v2850 = vadd.f32 0.0, %v2849
    %v2851 = vpop.f32.mrf.mxu0
    %2852 = vmatprep.mubr.bf16.mxu0 0
    %2853 = vmatmul.mubr.bf16.gmra.mxu0 %v2720
    %v2854 = vpop.f32.mrf.mxu0
    %v2855 = vadd.f32 0.0, %v2854
    %v2856 = vpop.f32.mrf.mxu0
    %v2857 = vpop.f32.mrf.mxu0
    %v2858 = vadd.f32 0.0, %v2857
    %v2859 = vpop.f32.mrf.mxu0
    %2860 = vmatprep.mubr.bf16.mxu0 0
    %2861 = vmatmul.mubr.bf16.gmra.mxu0 %v2721
    %v2862 = vpop.f32.mrf.mxu0
    %v2863 = vadd.f32 0.0, %v2862
    %v2864 = vpop.f32.mrf.mxu0
    %v2865 = vpop.f32.mrf.mxu0
    %v2866 = vadd.f32 0.0, %v2865
    %v2867 = vpop.f32.mrf.mxu0
    %2868 = vmatprep.mubr.bf16.mxu0 0
    %2869 = vmatmul.mubr.bf16.gmra.mxu0 %v2722
    %v2870 = vpop.f32.mrf.mxu0
    %v2871 = vadd.f32 0.0, %v2870
    %v2872 = vpop.f32.mrf.mxu0
    %v2873 = vpop.f32.mrf.mxu0
    %v2874 = vadd.f32 0.0, %v2873
    %v2875 = vpop.f32.mrf.mxu0
    %2876 = vdwg.mxu0
    %v2877 = vadd.f32 %v2355, %v2823
    %v2878 = vadd.f32 %v2356, %v2826
    %v2879 = vadd.f32 %v2357, %v2831
    %v2880 = vadd.f32 %v2358, %v2834
    %v2881 = vadd.f32 %v2359, %v2839
    %v2882 = vadd.f32 %v2360, %v2842
    %v2883 = vadd.f32 %v2361, %v2847
    %v2884 = vadd.f32 %v2362, %v2850
    %v2885 = vadd.f32 %v2363, %v2855
    %v2886 = vadd.f32 %v2364, %v2858
    %v2887 = vadd.f32 %v2365, %v2863
    %v2888 = vadd.f32 %v2366, %v2866
    %v2889 = vadd.f32 %v2367, %v2871
    %v2890 = vadd.f32 %v2368, %v2874
    %s2891 = scalar_lea.vmem %s1, 1120
    %v2892 = vld [vmem:[%s2891] sm:$0xff]
    %v2893 = vld [vmem:[%s2891 + $0x8] sm:$0xff]
    %v2894 = vld [vmem:[%s2891 + $0x10] sm:$0xff]
    %v2895 = vld [vmem:[%s2891 + $0x18] sm:$0xff]
    %v2896 = vld [vmem:[%s2891 + $0x20] sm:$0xff]
    %v2897 = vld [vmem:[%s2891 + $0x28] sm:$0xff]
    %v2898 = vld [vmem:[%s2891 + $0x30] sm:$0xff]
    %v2899 = vld [vmem:[%s2891 + $0x38] sm:$0xff]
    %v2900 = vld [vmem:[%s2891 + $0x40] sm:$0xff]
    %v2901 = vld [vmem:[%s2891 + $0x48] sm:$0xff]
    %v2902 = vld [vmem:[%s2891 + $0x50] sm:$0xff]
    %v2903 = vld [vmem:[%s2891 + $0x58] sm:$0xff]
    %v2904 = vld [vmem:[%s2891 + $0x60] sm:$0xff]
    %v2905 = vld [vmem:[%s2891 + $0x68] sm:$0xff]
    %v2906 = vld [vmem:[%s2891 + $0x70] sm:$0xff]
    %v2907 = vld [vmem:[%s2891 + $0x78] sm:$0xff]
    %v2908 = vld [vmem:[%s2891 + $0x80] sm:$0xff]
    %v2909 = vld [vmem:[%s2891 + $0x88] sm:$0xff]
    %v2910 = vld [vmem:[%s2891 + $0x90] sm:$0xff]
    %v2911 = vld [vmem:[%s2891 + $0x98] sm:$0xff]
    %v2912 = vld [vmem:[%s2891 + $0xa0] sm:$0xff]
    %v2913 = vld [vmem:[%s2891 + $0xa8] sm:$0xff]
    %v2914 = vld [vmem:[%s2891 + $0xb0] sm:$0xff]
    %v2915 = vld [vmem:[%s2891 + $0xb8] sm:$0xff]
    %v2916 = vld [vmem:[%s2891 + $0xc0] sm:$0xff]
    %v2917 = vld [vmem:[%s2891 + $0xc8] sm:$0xff]
    %v2918 = vld [vmem:[%s2891 + $0xd0] sm:$0xff]
    %v2919 = vld [vmem:[%s2891 + $0xd8] sm:$0xff]
    %v2948 = vunpack.c.l.b16 %v2892
    %v2949 = vunpack.c.h.b16 %v2892
    %v2950 = vunpack.c.l.b16 %v2893
    %v2951 = vunpack.c.h.b16 %v2893
    %v2952 = vunpack.c.l.b16 %v2894
    %v2953 = vunpack.c.h.b16 %v2894
    %v2954 = vunpack.c.l.b16 %v2895
    %v2955 = vunpack.c.h.b16 %v2895
    %v2956 = vunpack.c.l.b16 %v2896
    %v2957 = vunpack.c.h.b16 %v2896
    %v2958 = vunpack.c.l.b16 %v2897
    %v2959 = vunpack.c.h.b16 %v2897
    %v2960 = vunpack.c.l.b16 %v2898
    %v2961 = vunpack.c.h.b16 %v2898
    %v2962 = vunpack.c.l.b16 %v2899
    %v2963 = vunpack.c.h.b16 %v2899
    %v2964 = vunpack.c.l.b16 %v2900
    %v2965 = vunpack.c.h.b16 %v2900
    %v2966 = vunpack.c.l.b16 %v2901
    %v2967 = vunpack.c.h.b16 %v2901
    %v2968 = vunpack.c.l.b16 %v2902
    %v2969 = vunpack.c.h.b16 %v2902
    %v2970 = vunpack.c.l.b16 %v2903
    %v2971 = vunpack.c.h.b16 %v2903
    %v2972 = vunpack.c.l.b16 %v2904
    %v2973 = vunpack.c.h.b16 %v2904
    %v2974 = vunpack.c.l.b16 %v2905
    %v2975 = vunpack.c.h.b16 %v2905
    %v2976 = vunpack.c.l.b16 %v2906
    %v2977 = vunpack.c.h.b16 %v2906
    %v2978 = vunpack.c.l.b16 %v2907
    %v2979 = vunpack.c.h.b16 %v2907
    %v2980 = vunpack.c.l.b16 %v2908
    %v2981 = vunpack.c.h.b16 %v2908
    %v2982 = vunpack.c.l.b16 %v2909
    %v2983 = vunpack.c.h.b16 %v2909
    %v2984 = vunpack.c.l.b16 %v2910
    %v2985 = vunpack.c.h.b16 %v2910
    %v2986 = vunpack.c.l.b16 %v2911
    %v2987 = vunpack.c.h.b16 %v2911
    %v2988 = vunpack.c.l.b16 %v2912
    %v2989 = vunpack.c.h.b16 %v2912
    %v2990 = vunpack.c.l.b16 %v2913
    %v2991 = vunpack.c.h.b16 %v2913
    %v2992 = vunpack.c.l.b16 %v2914
    %v2993 = vunpack.c.h.b16 %v2914
    %v2994 = vunpack.c.l.b16 %v2915
    %v2995 = vunpack.c.h.b16 %v2915
    %v2996 = vunpack.c.l.b16 %v2916
    %v2997 = vunpack.c.h.b16 %v2916
    %v2998 = vunpack.c.l.b16 %v2917
    %v2999 = vunpack.c.h.b16 %v2917
    %v3000 = vunpack.c.l.b16 %v2918
    %v3001 = vunpack.c.h.b16 %v2918
    %v3002 = vunpack.c.l.b16 %v2919
    %v3003 = vunpack.c.h.b16 %v2919
    %v3004 = vpack.c.b16 %v2952, %v2948
    %v3005 = vpack.c.b16 %v2953, %v2949
    %v3006 = vpack.c.b16 %v2954, %v2950
    %v3007 = vpack.c.b16 %v2955, %v2951
    %v3008 = vpack.c.b16 %v2960, %v2956
    %v3009 = vpack.c.b16 %v2961, %v2957
    %v3010 = vpack.c.b16 %v2962, %v2958
    %v3011 = vpack.c.b16 %v2963, %v2959
    %v3012 = vpack.c.b16 %v2968, %v2964
    %v3013 = vpack.c.b16 %v2969, %v2965
    %v3014 = vpack.c.b16 %v2970, %v2966
    %v3015 = vpack.c.b16 %v2971, %v2967
    %v3016 = vpack.c.b16 %v2976, %v2972
    %v3017 = vpack.c.b16 %v2977, %v2973
    %v3018 = vpack.c.b16 %v2978, %v2974
    %v3019 = vpack.c.b16 %v2979, %v2975
    %v3020 = vpack.c.b16 %v2984, %v2980
    %v3021 = vpack.c.b16 %v2985, %v2981
    %v3022 = vpack.c.b16 %v2986, %v2982
    %v3023 = vpack.c.b16 %v2987, %v2983
    %v3024 = vpack.c.b16 %v2992, %v2988
    %v3025 = vpack.c.b16 %v2993, %v2989
    %v3026 = vpack.c.b16 %v2994, %v2990
    %v3027 = vpack.c.b16 %v2995, %v2991
    %v3028 = vpack.c.b16 %v3000, %v2996
    %v3029 = vpack.c.b16 %v3001, %v2997
    %v3030 = vpack.c.b16 %v3002, %v2998
    %v3031 = vpack.c.b16 %v3003, %v2999
    %3060 = vmatprep.subr.bf16.mxu0 0
    %3061 = vmatpush1.bf16.msra.mxu0 %v422
    %3062 = vmatprep.subr.bf16.mxu0 0
    %3063 = vmatpush1.bf16.msra.mxu0 %v421
    %3064 = vmatprep.subr.bf16.mxu0 0
    %3065 = vmatpush1.bf16.msra.mxu0 %v420
    %3066 = vmatprep.subr.bf16.mxu0 0
    %3067 = vmatpush1.bf16.msra.mxu0 %v419
    %3068 = vmatprep.subr.bf16.mxu0 0
    %3069 = vmatpush1.bf16.msra.mxu0 %v418
    %3070 = vmatprep.subr.bf16.mxu0 0
    %3071 = vmatpush1.bf16.msra.mxu0 %v417
    %3072 = vmatprep.subr.bf16.mxu0 0
    %3073 = vmatpush1.bf16.msra.mxu0 %v416
    %3074 = vmatprep.subr.bf16.mxu0 0
    %3075 = vmatpush1.bf16.msra.mxu0 %v415
    %3076 = vmatprep.subr.bf16.mxu0 0
    %3077 = vmatpush2.bf16.msra.mxu0 %v430
    %3078 = vmatprep.subr.bf16.mxu0 0
    %3079 = vmatpush2.bf16.msra.mxu0 %v429
    %3080 = vmatprep.subr.bf16.mxu0 0
    %3081 = vmatpush2.bf16.msra.mxu0 %v428
    %3082 = vmatprep.subr.bf16.mxu0 0
    %3083 = vmatpush2.bf16.msra.mxu0 %v427
    %3084 = vmatprep.subr.bf16.mxu0 0
    %3085 = vmatpush2.bf16.msra.mxu0 %v426
    %3086 = vmatprep.subr.bf16.mxu0 0
    %3087 = vmatpush2.bf16.msra.mxu0 %v425
    %3088 = vmatprep.subr.bf16.mxu0 0
    %3089 = vmatpush2.bf16.msra.mxu0 %v424
    %3090 = vmatprep.subr.bf16.mxu0 0
    %3091 = vmatpush2.bf16.msra.mxu0 %v423
    %3092 = vmatprep.mubr.bf16.mxu0 %v3005
    %3093 = vmatmul.mubr.bf16.gmra.mxu0 %v3004
    %v3094 = vpop.f32.mrf.mxu0
    %v3095 = vadd.f32 0.0, %v3094
    %v3096 = vpop.f32.mrf.mxu0
    %v3097 = vpop.f32.mrf.mxu0
    %v3098 = vadd.f32 0.0, %v3097
    %v3099 = vpop.f32.mrf.mxu0
    %3100 = vmatprep.mubr.bf16.mxu0 %v3009
    %3101 = vmatmul.mubr.bf16.gmra.mxu0 %v3008
    %v3102 = vpop.f32.mrf.mxu0
    %v3103 = vadd.f32 0.0, %v3102
    %v3104 = vpop.f32.mrf.mxu0
    %v3105 = vpop.f32.mrf.mxu0
    %v3106 = vadd.f32 0.0, %v3105
    %v3107 = vpop.f32.mrf.mxu0
    %3108 = vmatprep.mubr.bf16.mxu0 %v3013
    %3109 = vmatmul.mubr.bf16.gmra.mxu0 %v3012
    %v3110 = vpop.f32.mrf.mxu0
    %v3111 = vadd.f32 0.0, %v3110
    %v3112 = vpop.f32.mrf.mxu0
    %v3113 = vpop.f32.mrf.mxu0
    %v3114 = vadd.f32 0.0, %v3113
    %v3115 = vpop.f32.mrf.mxu0
    %3116 = vmatprep.mubr.bf16.mxu0 %v3017
    %3117 = vmatmul.mubr.bf16.gmra.mxu0 %v3016
    %v3118 = vpop.f32.mrf.mxu0
    %v3119 = vadd.f32 0.0, %v3118
    %v3120 = vpop.f32.mrf.mxu0
    %v3121 = vpop.f32.mrf.mxu0
    %v3122 = vadd.f32 0.0, %v3121
    %v3123 = vpop.f32.mrf.mxu0
    %3124 = vmatprep.mubr.bf16.mxu0 %v3021
    %3125 = vmatmul.mubr.bf16.gmra.mxu0 %v3020
    %v3126 = vpop.f32.mrf.mxu0
    %v3127 = vadd.f32 0.0, %v3126
    %v3128 = vpop.f32.mrf.mxu0
    %v3129 = vpop.f32.mrf.mxu0
    %v3130 = vadd.f32 0.0, %v3129
    %v3131 = vpop.f32.mrf.mxu0
    %3132 = vmatprep.mubr.bf16.mxu0 %v3025
    %3133 = vmatmul.mubr.bf16.gmra.mxu0 %v3024
    %v3134 = vpop.f32.mrf.mxu0
    %v3135 = vadd.f32 0.0, %v3134
    %v3136 = vpop.f32.mrf.mxu0
    %v3137 = vpop.f32.mrf.mxu0
    %v3138 = vadd.f32 0.0, %v3137
    %v3139 = vpop.f32.mrf.mxu0
    %3140 = vmatprep.mubr.bf16.mxu0 %v3029
    %3141 = vmatmul.mubr.bf16.gmra.mxu0 %v3028
    %v3142 = vpop.f32.mrf.mxu0
    %v3143 = vadd.f32 0.0, %v3142
    %v3144 = vpop.f32.mrf.mxu0
    %v3145 = vpop.f32.mrf.mxu0
    %v3146 = vadd.f32 0.0, %v3145
    %v3147 = vpop.f32.mrf.mxu0
    %3148 = vdwg.mxu0
    %3149 = vmatprep.subr.bf16.mxu0 0
    %3150 = vmatpush1.bf16.msra.mxu0 %v438
    %3151 = vmatprep.subr.bf16.mxu0 0
    %3152 = vmatpush1.bf16.msra.mxu0 %v437
    %3153 = vmatprep.subr.bf16.mxu0 0
    %3154 = vmatpush1.bf16.msra.mxu0 %v436
    %3155 = vmatprep.subr.bf16.mxu0 0
    %3156 = vmatpush1.bf16.msra.mxu0 %v435
    %3157 = vmatprep.subr.bf16.mxu0 0
    %3158 = vmatpush1.bf16.msra.mxu0 %v434
    %3159 = vmatprep.subr.bf16.mxu0 0
    %3160 = vmatpush1.bf16.msra.mxu0 %v433
    %3161 = vmatprep.subr.bf16.mxu0 0
    %3162 = vmatpush1.bf16.msra.mxu0 %v432
    %3163 = vmatprep.subr.bf16.mxu0 0
    %3164 = vmatpush1.bf16.msra.mxu0 %v431
    %3165 = vmatprep.subr.bf16.mxu0 0
    %3166 = vmatpush2.bf16.msra.mxu0 %v446
    %3167 = vmatprep.subr.bf16.mxu0 0
    %3168 = vmatpush2.bf16.msra.mxu0 %v445
    %3169 = vmatprep.subr.bf16.mxu0 0
    %3170 = vmatpush2.bf16.msra.mxu0 %v444
    %3171 = vmatprep.subr.bf16.mxu0 0
    %3172 = vmatpush2.bf16.msra.mxu0 %v443
    %3173 = vmatprep.subr.bf16.mxu0 0
    %3174 = vmatpush2.bf16.msra.mxu0 %v442
    %3175 = vmatprep.subr.bf16.mxu0 0
    %3176 = vmatpush2.bf16.msra.mxu0 %v441
    %3177 = vmatprep.subr.bf16.mxu0 0
    %3178 = vmatpush2.bf16.msra.mxu0 %v440
    %3179 = vmatprep.subr.bf16.mxu0 0
    %3180 = vmatpush2.bf16.msra.mxu0 %v439
    %3181 = vmatprep.mubr.bf16.mxu0 %v3007
    %3182 = vmatmul.mubr.bf16.gmra.mxu0 %v3006
    %v3183 = vpop.f32.mrf.mxu0
    %v3184 = vadd.f32 %v3095, %v3183
    %v3185 = vpop.f32.mrf.mxu0
    %v3186 = vpop.f32.mrf.mxu0
    %v3187 = vadd.f32 %v3098, %v3186
    %v3188 = vpop.f32.mrf.mxu0
    %3189 = vmatprep.mubr.bf16.mxu0 %v3011
    %3190 = vmatmul.mubr.bf16.gmra.mxu0 %v3010
    %v3191 = vpop.f32.mrf.mxu0
    %v3192 = vadd.f32 %v3103, %v3191
    %v3193 = vpop.f32.mrf.mxu0
    %v3194 = vpop.f32.mrf.mxu0
    %v3195 = vadd.f32 %v3106, %v3194
    %v3196 = vpop.f32.mrf.mxu0
    %3197 = vmatprep.mubr.bf16.mxu0 %v3015
    %3198 = vmatmul.mubr.bf16.gmra.mxu0 %v3014
    %v3199 = vpop.f32.mrf.mxu0
    %v3200 = vadd.f32 %v3111, %v3199
    %v3201 = vpop.f32.mrf.mxu0
    %v3202 = vpop.f32.mrf.mxu0
    %v3203 = vadd.f32 %v3114, %v3202
    %v3204 = vpop.f32.mrf.mxu0
    %3205 = vmatprep.mubr.bf16.mxu0 %v3019
    %3206 = vmatmul.mubr.bf16.gmra.mxu0 %v3018
    %v3207 = vpop.f32.mrf.mxu0
    %v3208 = vadd.f32 %v3119, %v3207
    %v3209 = vpop.f32.mrf.mxu0
    %v3210 = vpop.f32.mrf.mxu0
    %v3211 = vadd.f32 %v3122, %v3210
    %v3212 = vpop.f32.mrf.mxu0
    %3213 = vmatprep.mubr.bf16.mxu0 %v3023
    %3214 = vmatmul.mubr.bf16.gmra.mxu0 %v3022
    %v3215 = vpop.f32.mrf.mxu0
    %v3216 = vadd.f32 %v3127, %v3215
    %v3217 = vpop.f32.mrf.mxu0
    %v3218 = vpop.f32.mrf.mxu0
    %v3219 = vadd.f32 %v3130, %v3218
    %v3220 = vpop.f32.mrf.mxu0
    %3221 = vmatprep.mubr.bf16.mxu0 %v3027
    %3222 = vmatmul.mubr.bf16.gmra.mxu0 %v3026
    %v3223 = vpop.f32.mrf.mxu0
    %v3224 = vadd.f32 %v3135, %v3223
    %v3225 = vpop.f32.mrf.mxu0
    %v3226 = vpop.f32.mrf.mxu0
    %v3227 = vadd.f32 %v3138, %v3226
    %v3228 = vpop.f32.mrf.mxu0
    %3229 = vmatprep.mubr.bf16.mxu0 %v3031
    %3230 = vmatmul.mubr.bf16.gmra.mxu0 %v3030
    %v3231 = vpop.f32.mrf.mxu0
    %v3232 = vadd.f32 %v3143, %v3231
    %v3233 = vpop.f32.mrf.mxu0
    %v3234 = vpop.f32.mrf.mxu0
    %v3235 = vadd.f32 %v3146, %v3234
    %v3236 = vpop.f32.mrf.mxu0
    %3237 = vdwg.mxu0
    %v3238 = vpack.c.bf16 %v3187, %v3184
    %v3239 = vpack.c.bf16 %v3195, %v3192
    %v3240 = vpack.c.bf16 %v3203, %v3200
    %v3241 = vpack.c.bf16 %v3211, %v3208
    %v3242 = vpack.c.bf16 %v3219, %v3216
    %v3243 = vpack.c.bf16 %v3227, %v3224
    %v3244 = vpack.c.bf16 %v3235, %v3232
    %s3245 = scalar_lea.vmem %s2, 320
    %v3246 = vld [vmem:[%s3245] sm:$0xf]
    %v3247 = vld [vmem:[%s3245 + $0x4] sm:$0xf]
    %v3248 = vld [vmem:[%s3245 + $0x8] sm:$0xf]
    %v3249 = vld [vmem:[%s3245 + $0xc] sm:$0xf]
    %v3250 = vld [vmem:[%s3245 + $0x10] sm:$0xf]
    %v3251 = vld [vmem:[%s3245 + $0x14] sm:$0xf]
    %v3252 = vld [vmem:[%s3245 + $0x18] sm:$0xf]
    %v3253 = vld [vmem:[%s3245 + $0x1c] sm:$0xf]
    %v3254 = vld [vmem:[%s3245 + $0x20] sm:$0xf]
    %v3255 = vld [vmem:[%s3245 + $0x24] sm:$0xf]
    %v3256 = vld [vmem:[%s3245 + $0x28] sm:$0xf]
    %v3257 = vld [vmem:[%s3245 + $0x2c] sm:$0xf]
    %v3258 = vld [vmem:[%s3245 + $0x30] sm:$0xf]
    %v3259 = vld [vmem:[%s3245 + $0x34] sm:$0xf]
    %v3260 = vld [vmem:[%s3245 + $0x38] sm:$0xf]
    %v3261 = vld [vmem:[%s3245 + $0x3c] sm:$0xf]
    %v3278 = vunpack.c.l.b16 %v3246
    %v3279 = vunpack.c.l.b16 %v3247
    %v3280 = vunpack.c.l.b16 %v3248
    %v3281 = vunpack.c.l.b16 %v3249
    %v3282 = vunpack.c.l.b16 %v3250
    %v3283 = vunpack.c.l.b16 %v3251
    %v3284 = vunpack.c.l.b16 %v3252
    %v3285 = vunpack.c.l.b16 %v3253
    %v3286 = vunpack.c.l.b16 %v3254
    %v3287 = vunpack.c.l.b16 %v3255
    %v3288 = vunpack.c.l.b16 %v3256
    %v3289 = vunpack.c.l.b16 %v3257
    %v3290 = vunpack.c.l.b16 %v3258
    %v3291 = vunpack.c.l.b16 %v3259
    %v3292 = vunpack.c.l.b16 %v3260
    %v3293 = vunpack.c.l.b16 %v3261
    %v3294 = vpack.c.b16 %v3279, %v3278
    %v3295 = vpack.c.b16 %v3281, %v3280
    %v3296 = vpack.c.b16 %v3283, %v3282
    %v3297 = vpack.c.b16 %v3285, %v3284
    %v3298 = vpack.c.b16 %v3287, %v3286
    %v3299 = vpack.c.b16 %v3289, %v3288
    %v3300 = vpack.c.b16 %v3291, %v3290
    %v3301 = vpack.c.b16 %v3293, %v3292
    %3310 = vmatprep.subr.bf16.mxu0 0
    %3311 = vmatpush1.bf16.msra.mxu0 %v3301
    %3312 = vmatprep.subr.bf16.mxu0 0
    %3313 = vmatpush1.bf16.msra.mxu0 %v3300
    %3314 = vmatprep.subr.bf16.mxu0 0
    %3315 = vmatpush1.bf16.msra.mxu0 %v3299
    %3316 = vmatprep.subr.bf16.mxu0 0
    %3317 = vmatpush1.bf16.msra.mxu0 %v3298
    %3318 = vmatprep.subr.bf16.mxu0 0
    %3319 = vmatpush1.bf16.msra.mxu0 %v3297
    %3320 = vmatprep.subr.bf16.mxu0 0
    %3321 = vmatpush1.bf16.msra.mxu0 %v3296
    %3322 = vmatprep.subr.bf16.mxu0 0
    %3323 = vmatpush1.bf16.msra.mxu0 %v3295
    %3324 = vmatprep.subr.bf16.mxu0 0
    %3325 = vmatpush1.bf16.msra.mxu0 %v3294
    %3326 = vmatprep.subr.bf16.mxu0 0
    %3327 = vmatpush2.bf16.msra.mxu0 0
    %3328 = vmatprep.subr.bf16.mxu0 0
    %3329 = vmatpush2.bf16.msra.mxu0 0
    %3330 = vmatprep.subr.bf16.mxu0 0
    %3331 = vmatpush2.bf16.msra.mxu0 0
    %3332 = vmatprep.subr.bf16.mxu0 0
    %3333 = vmatpush2.bf16.msra.mxu0 0
    %3334 = vmatprep.subr.bf16.mxu0 0
    %3335 = vmatpush2.bf16.msra.mxu0 0
    %3336 = vmatprep.subr.bf16.mxu0 0
    %3337 = vmatpush2.bf16.msra.mxu0 0
    %3338 = vmatprep.subr.bf16.mxu0 0
    %3339 = vmatpush2.bf16.msra.mxu0 0
    %3340 = vmatprep.subr.bf16.mxu0 0
    %3341 = vmatpush2.bf16.msra.mxu0 0
    %3342 = vmatprep.mubr.bf16.mxu0 0
    %3343 = vmatmul.mubr.bf16.gmra.mxu0 %v3238
    %v3344 = vpop.f32.mrf.mxu0
    %v3345 = vadd.f32 0.0, %v3344
    %v3346 = vpop.f32.mrf.mxu0
    %v3347 = vpop.f32.mrf.mxu0
    %v3348 = vadd.f32 0.0, %v3347
    %v3349 = vpop.f32.mrf.mxu0
    %3350 = vmatprep.mubr.bf16.mxu0 0
    %3351 = vmatmul.mubr.bf16.gmra.mxu0 %v3239
    %v3352 = vpop.f32.mrf.mxu0
    %v3353 = vadd.f32 0.0, %v3352
    %v3354 = vpop.f32.mrf.mxu0
    %v3355 = vpop.f32.mrf.mxu0
    %v3356 = vadd.f32 0.0, %v3355
    %v3357 = vpop.f32.mrf.mxu0
    %3358 = vmatprep.mubr.bf16.mxu0 0
    %3359 = vmatmul.mubr.bf16.gmra.mxu0 %v3240
    %v3360 = vpop.f32.mrf.mxu0
    %v3361 = vadd.f32 0.0, %v3360
    %v3362 = vpop.f32.mrf.mxu0
    %v3363 = vpop.f32.mrf.mxu0
    %v3364 = vadd.f32 0.0, %v3363
    %v3365 = vpop.f32.mrf.mxu0
    %3366 = vmatprep.mubr.bf16.mxu0 0
    %3367 = vmatmul.mubr.bf16.gmra.mxu0 %v3241
    %v3368 = vpop.f32.mrf.mxu0
    %v3369 = vadd.f32 0.0, %v3368
    %v3370 = vpop.f32.mrf.mxu0
    %v3371 = vpop.f32.mrf.mxu0
    %v3372 = vadd.f32 0.0, %v3371
    %v3373 = vpop.f32.mrf.mxu0
    %3374 = vmatprep.mubr.bf16.mxu0 0
    %3375 = vmatmul.mubr.bf16.gmra.mxu0 %v3242
    %v3376 = vpop.f32.mrf.mxu0
    %v3377 = vadd.f32 0.0, %v3376
    %v3378 = vpop.f32.mrf.mxu0
    %v3379 = vpop.f32.mrf.mxu0
    %v3380 = vadd.f32 0.0, %v3379
    %v3381 = vpop.f32.mrf.mxu0
    %3382 = vmatprep.mubr.bf16.mxu0 0
    %3383 = vmatmul.mubr.bf16.gmra.mxu0 %v3243
    %v3384 = vpop.f32.mrf.mxu0
    %v3385 = vadd.f32 0.0, %v3384
    %v3386 = vpop.f32.mrf.mxu0
    %v3387 = vpop.f32.mrf.mxu0
    %v3388 = vadd.f32 0.0, %v3387
    %v3389 = vpop.f32.mrf.mxu0
    %3390 = vmatprep.mubr.bf16.mxu0 0
    %3391 = vmatmul.mubr.bf16.gmra.mxu0 %v3244
    %v3392 = vpop.f32.mrf.mxu0
    %v3393 = vadd.f32 0.0, %v3392
    %v3394 = vpop.f32.mrf.mxu0
    %v3395 = vpop.f32.mrf.mxu0
    %v3396 = vadd.f32 0.0, %v3395
    %v3397 = vpop.f32.mrf.mxu0
    %3398 = vdwg.mxu0
    %v3399 = vadd.f32 %v2877, %v3345
    %v3400 = vadd.f32 %v2878, %v3348
    %v3401 = vadd.f32 %v2879, %v3353
    %v3402 = vadd.f32 %v2880, %v3356
    %v3403 = vadd.f32 %v2881, %v3361
    %v3404 = vadd.f32 %v2882, %v3364
    %v3405 = vadd.f32 %v2883, %v3369
    %v3406 = vadd.f32 %v2884, %v3372
    %v3407 = vadd.f32 %v2885, %v3377
    %v3408 = vadd.f32 %v2886, %v3380
    %v3409 = vadd.f32 %v2887, %v3385
    %v3410 = vadd.f32 %v2888, %v3388
    %v3411 = vadd.f32 %v2889, %v3393
    %v3412 = vadd.f32 %v2890, %v3396
    %s3413 = scalar_lea.vmem %s1, 1344
    %v3414 = vld [vmem:[%s3413] sm:$0xff]
    %v3415 = vld [vmem:[%s3413 + $0x8] sm:$0xff]
    %v3416 = vld [vmem:[%s3413 + $0x10] sm:$0xff]
    %v3417 = vld [vmem:[%s3413 + $0x18] sm:$0xff]
    %v3418 = vld [vmem:[%s3413 + $0x20] sm:$0xff]
    %v3419 = vld [vmem:[%s3413 + $0x28] sm:$0xff]
    %v3420 = vld [vmem:[%s3413 + $0x30] sm:$0xff]
    %v3421 = vld [vmem:[%s3413 + $0x38] sm:$0xff]
    %v3422 = vld [vmem:[%s3413 + $0x40] sm:$0xff]
    %v3423 = vld [vmem:[%s3413 + $0x48] sm:$0xff]
    %v3424 = vld [vmem:[%s3413 + $0x50] sm:$0xff]
    %v3425 = vld [vmem:[%s3413 + $0x58] sm:$0xff]
    %v3426 = vld [vmem:[%s3413 + $0x60] sm:$0xff]
    %v3427 = vld [vmem:[%s3413 + $0x68] sm:$0xff]
    %v3428 = vld [vmem:[%s3413 + $0x70] sm:$0xff]
    %v3429 = vld [vmem:[%s3413 + $0x78] sm:$0xff]
    %v3430 = vld [vmem:[%s3413 + $0x80] sm:$0xff]
    %v3431 = vld [vmem:[%s3413 + $0x88] sm:$0xff]
    %v3432 = vld [vmem:[%s3413 + $0x90] sm:$0xff]
    %v3433 = vld [vmem:[%s3413 + $0x98] sm:$0xff]
    %v3434 = vld [vmem:[%s3413 + $0xa0] sm:$0xff]
    %v3435 = vld [vmem:[%s3413 + $0xa8] sm:$0xff]
    %v3436 = vld [vmem:[%s3413 + $0xb0] sm:$0xff]
    %v3437 = vld [vmem:[%s3413 + $0xb8] sm:$0xff]
    %v3438 = vld [vmem:[%s3413 + $0xc0] sm:$0xff]
    %v3439 = vld [vmem:[%s3413 + $0xc8] sm:$0xff]
    %v3440 = vld [vmem:[%s3413 + $0xd0] sm:$0xff]
    %v3441 = vld [vmem:[%s3413 + $0xd8] sm:$0xff]
    %v3470 = vunpack.c.l.b16 %v3414
    %v3471 = vunpack.c.h.b16 %v3414
    %v3472 = vunpack.c.l.b16 %v3415
    %v3473 = vunpack.c.h.b16 %v3415
    %v3474 = vunpack.c.l.b16 %v3416
    %v3475 = vunpack.c.h.b16 %v3416
    %v3476 = vunpack.c.l.b16 %v3417
    %v3477 = vunpack.c.h.b16 %v3417
    %v3478 = vunpack.c.l.b16 %v3418
    %v3479 = vunpack.c.h.b16 %v3418
    %v3480 = vunpack.c.l.b16 %v3419
    %v3481 = vunpack.c.h.b16 %v3419
    %v3482 = vunpack.c.l.b16 %v3420
    %v3483 = vunpack.c.h.b16 %v3420
    %v3484 = vunpack.c.l.b16 %v3421
    %v3485 = vunpack.c.h.b16 %v3421
    %v3486 = vunpack.c.l.b16 %v3422
    %v3487 = vunpack.c.h.b16 %v3422
    %v3488 = vunpack.c.l.b16 %v3423
    %v3489 = vunpack.c.h.b16 %v3423
    %v3490 = vunpack.c.l.b16 %v3424
    %v3491 = vunpack.c.h.b16 %v3424
    %v3492 = vunpack.c.l.b16 %v3425
    %v3493 = vunpack.c.h.b16 %v3425
    %v3494 = vunpack.c.l.b16 %v3426
    %v3495 = vunpack.c.h.b16 %v3426
    %v3496 = vunpack.c.l.b16 %v3427
    %v3497 = vunpack.c.h.b16 %v3427
    %v3498 = vunpack.c.l.b16 %v3428
    %v3499 = vunpack.c.h.b16 %v3428
    %v3500 = vunpack.c.l.b16 %v3429
    %v3501 = vunpack.c.h.b16 %v3429
    %v3502 = vunpack.c.l.b16 %v3430
    %v3503 = vunpack.c.h.b16 %v3430
    %v3504 = vunpack.c.l.b16 %v3431
    %v3505 = vunpack.c.h.b16 %v3431
    %v3506 = vunpack.c.l.b16 %v3432
    %v3507 = vunpack.c.h.b16 %v3432
    %v3508 = vunpack.c.l.b16 %v3433
    %v3509 = vunpack.c.h.b16 %v3433
    %v3510 = vunpack.c.l.b16 %v3434
    %v3511 = vunpack.c.h.b16 %v3434
    %v3512 = vunpack.c.l.b16 %v3435
    %v3513 = vunpack.c.h.b16 %v3435
    %v3514 = vunpack.c.l.b16 %v3436
    %v3515 = vunpack.c.h.b16 %v3436
    %v3516 = vunpack.c.l.b16 %v3437
    %v3517 = vunpack.c.h.b16 %v3437
    %v3518 = vunpack.c.l.b16 %v3438
    %v3519 = vunpack.c.h.b16 %v3438
    %v3520 = vunpack.c.l.b16 %v3439
    %v3521 = vunpack.c.h.b16 %v3439
    %v3522 = vunpack.c.l.b16 %v3440
    %v3523 = vunpack.c.h.b16 %v3440
    %v3524 = vunpack.c.l.b16 %v3441
    %v3525 = vunpack.c.h.b16 %v3441
    %v3526 = vpack.c.b16 %v3474, %v3470
    %v3527 = vpack.c.b16 %v3475, %v3471
    %v3528 = vpack.c.b16 %v3476, %v3472
    %v3529 = vpack.c.b16 %v3477, %v3473
    %v3530 = vpack.c.b16 %v3482, %v3478
    %v3531 = vpack.c.b16 %v3483, %v3479
    %v3532 = vpack.c.b16 %v3484, %v3480
    %v3533 = vpack.c.b16 %v3485, %v3481
    %v3534 = vpack.c.b16 %v3490, %v3486
    %v3535 = vpack.c.b16 %v3491, %v3487
    %v3536 = vpack.c.b16 %v3492, %v3488
    %v3537 = vpack.c.b16 %v3493, %v3489
    %v3538 = vpack.c.b16 %v3498, %v3494
    %v3539 = vpack.c.b16 %v3499, %v3495
    %v3540 = vpack.c.b16 %v3500, %v3496
    %v3541 = vpack.c.b16 %v3501, %v3497
    %v3542 = vpack.c.b16 %v3506, %v3502
    %v3543 = vpack.c.b16 %v3507, %v3503
    %v3544 = vpack.c.b16 %v3508, %v3504
    %v3545 = vpack.c.b16 %v3509, %v3505
    %v3546 = vpack.c.b16 %v3514, %v3510
    %v3547 = vpack.c.b16 %v3515, %v3511
    %v3548 = vpack.c.b16 %v3516, %v3512
    %v3549 = vpack.c.b16 %v3517, %v3513
    %v3550 = vpack.c.b16 %v3522, %v3518
    %v3551 = vpack.c.b16 %v3523, %v3519
    %v3552 = vpack.c.b16 %v3524, %v3520
    %v3553 = vpack.c.b16 %v3525, %v3521
    %3582 = vmatprep.subr.bf16.mxu0 0
    %3583 = vmatpush1.bf16.msra.mxu0 %v422
    %3584 = vmatprep.subr.bf16.mxu0 0
    %3585 = vmatpush1.bf16.msra.mxu0 %v421
    %3586 = vmatprep.subr.bf16.mxu0 0
    %3587 = vmatpush1.bf16.msra.mxu0 %v420
    %3588 = vmatprep.subr.bf16.mxu0 0
    %3589 = vmatpush1.bf16.msra.mxu0 %v419
    %3590 = vmatprep.subr.bf16.mxu0 0
    %3591 = vmatpush1.bf16.msra.mxu0 %v418
    %3592 = vmatprep.subr.bf16.mxu0 0
    %3593 = vmatpush1.bf16.msra.mxu0 %v417
    %3594 = vmatprep.subr.bf16.mxu0 0
    %3595 = vmatpush1.bf16.msra.mxu0 %v416
    %3596 = vmatprep.subr.bf16.mxu0 0
    %3597 = vmatpush1.bf16.msra.mxu0 %v415
    %3598 = vmatprep.subr.bf16.mxu0 0
    %3599 = vmatpush2.bf16.msra.mxu0 %v430
    %3600 = vmatprep.subr.bf16.mxu0 0
    %3601 = vmatpush2.bf16.msra.mxu0 %v429
    %3602 = vmatprep.subr.bf16.mxu0 0
    %3603 = vmatpush2.bf16.msra.mxu0 %v428
    %3604 = vmatprep.subr.bf16.mxu0 0
    %3605 = vmatpush2.bf16.msra.mxu0 %v427
    %3606 = vmatprep.subr.bf16.mxu0 0
    %3607 = vmatpush2.bf16.msra.mxu0 %v426
    %3608 = vmatprep.subr.bf16.mxu0 0
    %3609 = vmatpush2.bf16.msra.mxu0 %v425
    %3610 = vmatprep.subr.bf16.mxu0 0
    %3611 = vmatpush2.bf16.msra.mxu0 %v424
    %3612 = vmatprep.subr.bf16.mxu0 0
    %3613 = vmatpush2.bf16.msra.mxu0 %v423
    %3614 = vmatprep.mubr.bf16.mxu0 %v3527
    %3615 = vmatmul.mubr.bf16.gmra.mxu0 %v3526
    %v3616 = vpop.f32.mrf.mxu0
    %v3617 = vadd.f32 0.0, %v3616
    %v3618 = vpop.f32.mrf.mxu0
    %v3619 = vpop.f32.mrf.mxu0
    %v3620 = vadd.f32 0.0, %v3619
    %v3621 = vpop.f32.mrf.mxu0
    %3622 = vmatprep.mubr.bf16.mxu0 %v3531
    %3623 = vmatmul.mubr.bf16.gmra.mxu0 %v3530
    %v3624 = vpop.f32.mrf.mxu0
    %v3625 = vadd.f32 0.0, %v3624
    %v3626 = vpop.f32.mrf.mxu0
    %v3627 = vpop.f32.mrf.mxu0
    %v3628 = vadd.f32 0.0, %v3627
    %v3629 = vpop.f32.mrf.mxu0
    %3630 = vmatprep.mubr.bf16.mxu0 %v3535
    %3631 = vmatmul.mubr.bf16.gmra.mxu0 %v3534
    %v3632 = vpop.f32.mrf.mxu0
    %v3633 = vadd.f32 0.0, %v3632
    %v3634 = vpop.f32.mrf.mxu0
    %v3635 = vpop.f32.mrf.mxu0
    %v3636 = vadd.f32 0.0, %v3635
    %v3637 = vpop.f32.mrf.mxu0
    %3638 = vmatprep.mubr.bf16.mxu0 %v3539
    %3639 = vmatmul.mubr.bf16.gmra.mxu0 %v3538
    %v3640 = vpop.f32.mrf.mxu0
    %v3641 = vadd.f32 0.0, %v3640
    %v3642 = vpop.f32.mrf.mxu0
    %v3643 = vpop.f32.mrf.mxu0
    %v3644 = vadd.f32 0.0, %v3643
    %v3645 = vpop.f32.mrf.mxu0
    %3646 = vmatprep.mubr.bf16.mxu0 %v3543
    %3647 = vmatmul.mubr.bf16.gmra.mxu0 %v3542
    %v3648 = vpop.f32.mrf.mxu0
    %v3649 = vadd.f32 0.0, %v3648
    %v3650 = vpop.f32.mrf.mxu0
    %v3651 = vpop.f32.mrf.mxu0
    %v3652 = vadd.f32 0.0, %v3651
    %v3653 = vpop.f32.mrf.mxu0
    %3654 = vmatprep.mubr.bf16.mxu0 %v3547
    %3655 = vmatmul.mubr.bf16.gmra.mxu0 %v3546
    %v3656 = vpop.f32.mrf.mxu0
    %v3657 = vadd.f32 0.0, %v3656
    %v3658 = vpop.f32.mrf.mxu0
    %v3659 = vpop.f32.mrf.mxu0
    %v3660 = vadd.f32 0.0, %v3659
    %v3661 = vpop.f32.mrf.mxu0
    %3662 = vmatprep.mubr.bf16.mxu0 %v3551
    %3663 = vmatmul.mubr.bf16.gmra.mxu0 %v3550
    %v3664 = vpop.f32.mrf.mxu0
    %v3665 = vadd.f32 0.0, %v3664
    %v3666 = vpop.f32.mrf.mxu0
    %v3667 = vpop.f32.mrf.mxu0
    %v3668 = vadd.f32 0.0, %v3667
    %v3669 = vpop.f32.mrf.mxu0
    %3670 = vdwg.mxu0
    %3671 = vmatprep.subr.bf16.mxu0 0
    %3672 = vmatpush1.bf16.msra.mxu0 %v438
    %3673 = vmatprep.subr.bf16.mxu0 0
    %3674 = vmatpush1.bf16.msra.mxu0 %v437
    %3675 = vmatprep.subr.bf16.mxu0 0
    %3676 = vmatpush1.bf16.msra.mxu0 %v436
    %3677 = vmatprep.subr.bf16.mxu0 0
    %3678 = vmatpush1.bf16.msra.mxu0 %v435
    %3679 = vmatprep.subr.bf16.mxu0 0
    %3680 = vmatpush1.bf16.msra.mxu0 %v434
    %3681 = vmatprep.subr.bf16.mxu0 0
    %3682 = vmatpush1.bf16.msra.mxu0 %v433
    %3683 = vmatprep.subr.bf16.mxu0 0
    %3684 = vmatpush1.bf16.msra.mxu0 %v432
    %3685 = vmatprep.subr.bf16.mxu0 0
    %3686 = vmatpush1.bf16.msra.mxu0 %v431
    %3687 = vmatprep.subr.bf16.mxu0 0
    %3688 = vmatpush2.bf16.msra.mxu0 %v446
    %3689 = vmatprep.subr.bf16.mxu0 0
    %3690 = vmatpush2.bf16.msra.mxu0 %v445
    %3691 = vmatprep.subr.bf16.mxu0 0
    %3692 = vmatpush2.bf16.msra.mxu0 %v444
    %3693 = vmatprep.subr.bf16.mxu0 0
    %3694 = vmatpush2.bf16.msra.mxu0 %v443
    %3695 = vmatprep.subr.bf16.mxu0 0
    %3696 = vmatpush2.bf16.msra.mxu0 %v442
    %3697 = vmatprep.subr.bf16.mxu0 0
    %3698 = vmatpush2.bf16.msra.mxu0 %v441
    %3699 = vmatprep.subr.bf16.mxu0 0
    %3700 = vmatpush2.bf16.msra.mxu0 %v440
    %3701 = vmatprep.subr.bf16.mxu0 0
    %3702 = vmatpush2.bf16.msra.mxu0 %v439
    %3703 = vmatprep.mubr.bf16.mxu0 %v3529
    %3704 = vmatmul.mubr.bf16.gmra.mxu0 %v3528
    %v3705 = vpop.f32.mrf.mxu0
    %v3706 = vadd.f32 %v3617, %v3705
    %v3707 = vpop.f32.mrf.mxu0
    %v3708 = vpop.f32.mrf.mxu0
    %v3709 = vadd.f32 %v3620, %v3708
    %v3710 = vpop.f32.mrf.mxu0
    %3711 = vmatprep.mubr.bf16.mxu0 %v3533
    %3712 = vmatmul.mubr.bf16.gmra.mxu0 %v3532
    %v3713 = vpop.f32.mrf.mxu0
    %v3714 = vadd.f32 %v3625, %v3713
    %v3715 = vpop.f32.mrf.mxu0
    %v3716 = vpop.f32.mrf.mxu0
    %v3717 = vadd.f32 %v3628, %v3716
    %v3718 = vpop.f32.mrf.mxu0
    %3719 = vmatprep.mubr.bf16.mxu0 %v3537
    %3720 = vmatmul.mubr.bf16.gmra.mxu0 %v3536
    %v3721 = vpop.f32.mrf.mxu0
    %v3722 = vadd.f32 %v3633, %v3721
    %v3723 = vpop.f32.mrf.mxu0
    %v3724 = vpop.f32.mrf.mxu0
    %v3725 = vadd.f32 %v3636, %v3724
    %v3726 = vpop.f32.mrf.mxu0
    %3727 = vmatprep.mubr.bf16.mxu0 %v3541
    %3728 = vmatmul.mubr.bf16.gmra.mxu0 %v3540
    %v3729 = vpop.f32.mrf.mxu0
    %v3730 = vadd.f32 %v3641, %v3729
    %v3731 = vpop.f32.mrf.mxu0
    %v3732 = vpop.f32.mrf.mxu0
    %v3733 = vadd.f32 %v3644, %v3732
    %v3734 = vpop.f32.mrf.mxu0
    %3735 = vmatprep.mubr.bf16.mxu0 %v3545
    %3736 = vmatmul.mubr.bf16.gmra.mxu0 %v3544
    %v3737 = vpop.f32.mrf.mxu0
    %v3738 = vadd.f32 %v3649, %v3737
    %v3739 = vpop.f32.mrf.mxu0
    %v3740 = vpop.f32.mrf.mxu0
    %v3741 = vadd.f32 %v3652, %v3740
    %v3742 = vpop.f32.mrf.mxu0
    %3743 = vmatprep.mubr.bf16.mxu0 %v3549
    %3744 = vmatmul.mubr.bf16.gmra.mxu0 %v3548
    %v3745 = vpop.f32.mrf.mxu0
    %v3746 = vadd.f32 %v3657, %v3745
    %v3747 = vpop.f32.mrf.mxu0
    %v3748 = vpop.f32.mrf.mxu0
    %v3749 = vadd.f32 %v3660, %v3748
    %v3750 = vpop.f32.mrf.mxu0
    %3751 = vmatprep.mubr.bf16.mxu0 %v3553
    %3752 = vmatmul.mubr.bf16.gmra.mxu0 %v3552
    %v3753 = vpop.f32.mrf.mxu0
    %v3754 = vadd.f32 %v3665, %v3753
    %v3755 = vpop.f32.mrf.mxu0
    %v3756 = vpop.f32.mrf.mxu0
    %v3757 = vadd.f32 %v3668, %v3756
    %v3758 = vpop.f32.mrf.mxu0
    %3759 = vdwg.mxu0
    %v3760 = vpack.c.bf16 %v3709, %v3706
    %v3761 = vpack.c.bf16 %v3717, %v3714
    %v3762 = vpack.c.bf16 %v3725, %v3722
    %v3763 = vpack.c.bf16 %v3733, %v3730
    %v3764 = vpack.c.bf16 %v3741, %v3738
    %v3765 = vpack.c.bf16 %v3749, %v3746
    %v3766 = vpack.c.bf16 %v3757, %v3754
    %s3767 = scalar_lea.vmem %s2, 384
    %v3768 = vld [vmem:[%s3767] sm:$0xf]
    %v3769 = vld [vmem:[%s3767 + $0x4] sm:$0xf]
    %v3770 = vld [vmem:[%s3767 + $0x8] sm:$0xf]
    %v3771 = vld [vmem:[%s3767 + $0xc] sm:$0xf]
    %v3772 = vld [vmem:[%s3767 + $0x10] sm:$0xf]
    %v3773 = vld [vmem:[%s3767 + $0x14] sm:$0xf]
    %v3774 = vld [vmem:[%s3767 + $0x18] sm:$0xf]
    %v3775 = vld [vmem:[%s3767 + $0x1c] sm:$0xf]
    %v3776 = vld [vmem:[%s3767 + $0x20] sm:$0xf]
    %v3777 = vld [vmem:[%s3767 + $0x24] sm:$0xf]
    %v3778 = vld [vmem:[%s3767 + $0x28] sm:$0xf]
    %v3779 = vld [vmem:[%s3767 + $0x2c] sm:$0xf]
    %v3780 = vld [vmem:[%s3767 + $0x30] sm:$0xf]
    %v3781 = vld [vmem:[%s3767 + $0x34] sm:$0xf]
    %v3782 = vld [vmem:[%s3767 + $0x38] sm:$0xf]
    %v3783 = vld [vmem:[%s3767 + $0x3c] sm:$0xf]
    %v3800 = vunpack.c.l.b16 %v3768
    %v3801 = vunpack.c.l.b16 %v3769
    %v3802 = vunpack.c.l.b16 %v3770
    %v3803 = vunpack.c.l.b16 %v3771
    %v3804 = vunpack.c.l.b16 %v3772
    %v3805 = vunpack.c.l.b16 %v3773
    %v3806 = vunpack.c.l.b16 %v3774
    %v3807 = vunpack.c.l.b16 %v3775
    %v3808 = vunpack.c.l.b16 %v3776
    %v3809 = vunpack.c.l.b16 %v3777
    %v3810 = vunpack.c.l.b16 %v3778
    %v3811 = vunpack.c.l.b16 %v3779
    %v3812 = vunpack.c.l.b16 %v3780
    %v3813 = vunpack.c.l.b16 %v3781
    %v3814 = vunpack.c.l.b16 %v3782
    %v3815 = vunpack.c.l.b16 %v3783
    %v3816 = vpack.c.b16 %v3801, %v3800
    %v3817 = vpack.c.b16 %v3803, %v3802
    %v3818 = vpack.c.b16 %v3805, %v3804
    %v3819 = vpack.c.b16 %v3807, %v3806
    %v3820 = vpack.c.b16 %v3809, %v3808
    %v3821 = vpack.c.b16 %v3811, %v3810
    %v3822 = vpack.c.b16 %v3813, %v3812
    %v3823 = vpack.c.b16 %v3815, %v3814
    %3832 = vmatprep.subr.bf16.mxu0 0
    %3833 = vmatpush1.bf16.msra.mxu0 %v3823
    %3834 = vmatprep.subr.bf16.mxu0 0
    %3835 = vmatpush1.bf16.msra.mxu0 %v3822
    %3836 = vmatprep.subr.bf16.mxu0 0
    %3837 = vmatpush1.bf16.msra.mxu0 %v3821
    %3838 = vmatprep.subr.bf16.mxu0 0
    %3839 = vmatpush1.bf16.msra.mxu0 %v3820
    %3840 = vmatprep.subr.bf16.mxu0 0
    %3841 = vmatpush1.bf16.msra.mxu0 %v3819
    %3842 = vmatprep.subr.bf16.mxu0 0
    %3843 = vmatpush1.bf16.msra.mxu0 %v3818
    %3844 = vmatprep.subr.bf16.mxu0 0
    %3845 = vmatpush1.bf16.msra.mxu0 %v3817
    %3846 = vmatprep.subr.bf16.mxu0 0
    %3847 = vmatpush1.bf16.msra.mxu0 %v3816
    %3848 = vmatprep.subr.bf16.mxu0 0
    %3849 = vmatpush2.bf16.msra.mxu0 0
    %3850 = vmatprep.subr.bf16.mxu0 0
    %3851 = vmatpush2.bf16.msra.mxu0 0
    %3852 = vmatprep.subr.bf16.mxu0 0
    %3853 = vmatpush2.bf16.msra.mxu0 0
    %3854 = vmatprep.subr.bf16.mxu0 0
    %3855 = vmatpush2.bf16.msra.mxu0 0
    %3856 = vmatprep.subr.bf16.mxu0 0
    %3857 = vmatpush2.bf16.msra.mxu0 0
    %3858 = vmatprep.subr.bf16.mxu0 0
    %3859 = vmatpush2.bf16.msra.mxu0 0
    %3860 = vmatprep.subr.bf16.mxu0 0
    %3861 = vmatpush2.bf16.msra.mxu0 0
    %3862 = vmatprep.subr.bf16.mxu0 0
    %3863 = vmatpush2.bf16.msra.mxu0 0
    %3864 = vmatprep.mubr.bf16.mxu0 0
    %3865 = vmatmul.mubr.bf16.gmra.mxu0 %v3760
    %v3866 = vpop.f32.mrf.mxu0
    %v3867 = vadd.f32 0.0, %v3866
    %v3868 = vpop.f32.mrf.mxu0
    %v3869 = vpop.f32.mrf.mxu0
    %v3870 = vadd.f32 0.0, %v3869
    %v3871 = vpop.f32.mrf.mxu0
    %3872 = vmatprep.mubr.bf16.mxu0 0
    %3873 = vmatmul.mubr.bf16.gmra.mxu0 %v3761
    %v3874 = vpop.f32.mrf.mxu0
    %v3875 = vadd.f32 0.0, %v3874
    %v3876 = vpop.f32.mrf.mxu0
    %v3877 = vpop.f32.mrf.mxu0
    %v3878 = vadd.f32 0.0, %v3877
    %v3879 = vpop.f32.mrf.mxu0
    %3880 = vmatprep.mubr.bf16.mxu0 0
    %3881 = vmatmul.mubr.bf16.gmra.mxu0 %v3762
    %v3882 = vpop.f32.mrf.mxu0
    %v3883 = vadd.f32 0.0, %v3882
    %v3884 = vpop.f32.mrf.mxu0
    %v3885 = vpop.f32.mrf.mxu0
    %v3886 = vadd.f32 0.0, %v3885
    %v3887 = vpop.f32.mrf.mxu0
    %3888 = vmatprep.mubr.bf16.mxu0 0
    %3889 = vmatmul.mubr.bf16.gmra.mxu0 %v3763
    %v3890 = vpop.f32.mrf.mxu0
    %v3891 = vadd.f32 0.0, %v3890
    %v3892 = vpop.f32.mrf.mxu0
    %v3893 = vpop.f32.mrf.mxu0
    %v3894 = vadd.f32 0.0, %v3893
    %v3895 = vpop.f32.mrf.mxu0
    %3896 = vmatprep.mubr.bf16.mxu0 0
    %3897 = vmatmul.mubr.bf16.gmra.mxu0 %v3764
    %v3898 = vpop.f32.mrf.mxu0
    %v3899 = vadd.f32 0.0, %v3898
    %v3900 = vpop.f32.mrf.mxu0
    %v3901 = vpop.f32.mrf.mxu0
    %v3902 = vadd.f32 0.0, %v3901
    %v3903 = vpop.f32.mrf.mxu0
    %3904 = vmatprep.mubr.bf16.mxu0 0
    %3905 = vmatmul.mubr.bf16.gmra.mxu0 %v3765
    %v3906 = vpop.f32.mrf.mxu0
    %v3907 = vadd.f32 0.0, %v3906
    %v3908 = vpop.f32.mrf.mxu0
    %v3909 = vpop.f32.mrf.mxu0
    %v3910 = vadd.f32 0.0, %v3909
    %v3911 = vpop.f32.mrf.mxu0
    %3912 = vmatprep.mubr.bf16.mxu0 0
    %3913 = vmatmul.mubr.bf16.gmra.mxu0 %v3766
    %v3914 = vpop.f32.mrf.mxu0
    %v3915 = vadd.f32 0.0, %v3914
    %v3916 = vpop.f32.mrf.mxu0
    %v3917 = vpop.f32.mrf.mxu0
    %v3918 = vadd.f32 0.0, %v3917
    %v3919 = vpop.f32.mrf.mxu0
    %3920 = vdwg.mxu0
    %v3921 = vadd.f32 %v3399, %v3867
    %v3922 = vadd.f32 %v3400, %v3870
    %v3923 = vadd.f32 %v3401, %v3875
    %v3924 = vadd.f32 %v3402, %v3878
    %v3925 = vadd.f32 %v3403, %v3883
    %v3926 = vadd.f32 %v3404, %v3886
    %v3927 = vadd.f32 %v3405, %v3891
    %v3928 = vadd.f32 %v3406, %v3894
    %v3929 = vadd.f32 %v3407, %v3899
    %v3930 = vadd.f32 %v3408, %v3902
    %v3931 = vadd.f32 %v3409, %v3907
    %v3932 = vadd.f32 %v3410, %v3910
    %v3933 = vadd.f32 %v3411, %v3915
    %v3934 = vadd.f32 %v3412, %v3918
    %s3935 = scalar_lea.vmem %s1, 1568
    %v3936 = vld [vmem:[%s3935] sm:$0xff]
    %v3937 = vld [vmem:[%s3935 + $0x8] sm:$0xff]
    %v3938 = vld [vmem:[%s3935 + $0x10] sm:$0xff]
    %v3939 = vld [vmem:[%s3935 + $0x18] sm:$0xff]
    %v3940 = vld [vmem:[%s3935 + $0x20] sm:$0xff]
    %v3941 = vld [vmem:[%s3935 + $0x28] sm:$0xff]
    %v3942 = vld [vmem:[%s3935 + $0x30] sm:$0xff]
    %v3943 = vld [vmem:[%s3935 + $0x38] sm:$0xff]
    %v3944 = vld [vmem:[%s3935 + $0x40] sm:$0xff]
    %v3945 = vld [vmem:[%s3935 + $0x48] sm:$0xff]
    %v3946 = vld [vmem:[%s3935 + $0x50] sm:$0xff]
    %v3947 = vld [vmem:[%s3935 + $0x58] sm:$0xff]
    %v3948 = vld [vmem:[%s3935 + $0x60] sm:$0xff]
    %v3949 = vld [vmem:[%s3935 + $0x68] sm:$0xff]
    %v3950 = vld [vmem:[%s3935 + $0x70] sm:$0xff]
    %v3951 = vld [vmem:[%s3935 + $0x78] sm:$0xff]
    %v3952 = vld [vmem:[%s3935 + $0x80] sm:$0xff]
    %v3953 = vld [vmem:[%s3935 + $0x88] sm:$0xff]
    %v3954 = vld [vmem:[%s3935 + $0x90] sm:$0xff]
    %v3955 = vld [vmem:[%s3935 + $0x98] sm:$0xff]
    %v3956 = vld [vmem:[%s3935 + $0xa0] sm:$0xff]
    %v3957 = vld [vmem:[%s3935 + $0xa8] sm:$0xff]
    %v3958 = vld [vmem:[%s3935 + $0xb0] sm:$0xff]
    %v3959 = vld [vmem:[%s3935 + $0xb8] sm:$0xff]
    %v3960 = vld [vmem:[%s3935 + $0xc0] sm:$0xff]
    %v3961 = vld [vmem:[%s3935 + $0xc8] sm:$0xff]
    %v3962 = vld [vmem:[%s3935 + $0xd0] sm:$0xff]
    %v3963 = vld [vmem:[%s3935 + $0xd8] sm:$0xff]
    %v3992 = vunpack.c.l.b16 %v3936
    %v3993 = vunpack.c.h.b16 %v3936
    %v3994 = vunpack.c.l.b16 %v3937
    %v3995 = vunpack.c.h.b16 %v3937
    %v3996 = vunpack.c.l.b16 %v3938
    %v3997 = vunpack.c.h.b16 %v3938
    %v3998 = vunpack.c.l.b16 %v3939
    %v3999 = vunpack.c.h.b16 %v3939
    %v4000 = vunpack.c.l.b16 %v3940
    %v4001 = vunpack.c.h.b16 %v3940
    %v4002 = vunpack.c.l.b16 %v3941
    %v4003 = vunpack.c.h.b16 %v3941
    %v4004 = vunpack.c.l.b16 %v3942
    %v4005 = vunpack.c.h.b16 %v3942
    %v4006 = vunpack.c.l.b16 %v3943
    %v4007 = vunpack.c.h.b16 %v3943
    %v4008 = vunpack.c.l.b16 %v3944
    %v4009 = vunpack.c.h.b16 %v3944
    %v4010 = vunpack.c.l.b16 %v3945
    %v4011 = vunpack.c.h.b16 %v3945
    %v4012 = vunpack.c.l.b16 %v3946
    %v4013 = vunpack.c.h.b16 %v3946
    %v4014 = vunpack.c.l.b16 %v3947
    %v4015 = vunpack.c.h.b16 %v3947
    %v4016 = vunpack.c.l.b16 %v3948
    %v4017 = vunpack.c.h.b16 %v3948
    %v4018 = vunpack.c.l.b16 %v3949
    %v4019 = vunpack.c.h.b16 %v3949
    %v4020 = vunpack.c.l.b16 %v3950
    %v4021 = vunpack.c.h.b16 %v3950
    %v4022 = vunpack.c.l.b16 %v3951
    %v4023 = vunpack.c.h.b16 %v3951
    %v4024 = vunpack.c.l.b16 %v3952
    %v4025 = vunpack.c.h.b16 %v3952
    %v4026 = vunpack.c.l.b16 %v3953
    %v4027 = vunpack.c.h.b16 %v3953
    %v4028 = vunpack.c.l.b16 %v3954
    %v4029 = vunpack.c.h.b16 %v3954
    %v4030 = vunpack.c.l.b16 %v3955
    %v4031 = vunpack.c.h.b16 %v3955
    %v4032 = vunpack.c.l.b16 %v3956
    %v4033 = vunpack.c.h.b16 %v3956
    %v4034 = vunpack.c.l.b16 %v3957
    %v4035 = vunpack.c.h.b16 %v3957
    %v4036 = vunpack.c.l.b16 %v3958
    %v4037 = vunpack.c.h.b16 %v3958
    %v4038 = vunpack.c.l.b16 %v3959
    %v4039 = vunpack.c.h.b16 %v3959
    %v4040 = vunpack.c.l.b16 %v3960
    %v4041 = vunpack.c.h.b16 %v3960
    %v4042 = vunpack.c.l.b16 %v3961
    %v4043 = vunpack.c.h.b16 %v3961
    %v4044 = vunpack.c.l.b16 %v3962
    %v4045 = vunpack.c.h.b16 %v3962
    %v4046 = vunpack.c.l.b16 %v3963
    %v4047 = vunpack.c.h.b16 %v3963
    %v4048 = vpack.c.b16 %v3996, %v3992
    %v4049 = vpack.c.b16 %v3997, %v3993
    %v4050 = vpack.c.b16 %v3998, %v3994
    %v4051 = vpack.c.b16 %v3999, %v3995
    %v4052 = vpack.c.b16 %v4004, %v4000
    %v4053 = vpack.c.b16 %v4005, %v4001
    %v4054 = vpack.c.b16 %v4006, %v4002
    %v4055 = vpack.c.b16 %v4007, %v4003
    %v4056 = vpack.c.b16 %v4012, %v4008
    %v4057 = vpack.c.b16 %v4013, %v4009
    %v4058 = vpack.c.b16 %v4014, %v4010
    %v4059 = vpack.c.b16 %v4015, %v4011
    %v4060 = vpack.c.b16 %v4020, %v4016
    %v4061 = vpack.c.b16 %v4021, %v4017
    %v4062 = vpack.c.b16 %v4022, %v4018
    %v4063 = vpack.c.b16 %v4023, %v4019
    %v4064 = vpack.c.b16 %v4028, %v4024
    %v4065 = vpack.c.b16 %v4029, %v4025
    %v4066 = vpack.c.b16 %v4030, %v4026
    %v4067 = vpack.c.b16 %v4031, %v4027
    %v4068 = vpack.c.b16 %v4036, %v4032
    %v4069 = vpack.c.b16 %v4037, %v4033
    %v4070 = vpack.c.b16 %v4038, %v4034
    %v4071 = vpack.c.b16 %v4039, %v4035
    %v4072 = vpack.c.b16 %v4044, %v4040
    %v4073 = vpack.c.b16 %v4045, %v4041
    %v4074 = vpack.c.b16 %v4046, %v4042
    %v4075 = vpack.c.b16 %v4047, %v4043
    %4104 = vmatprep.subr.bf16.mxu0 0
    %4105 = vmatpush1.bf16.msra.mxu0 %v422
    %4106 = vmatprep.subr.bf16.mxu0 0
    %4107 = vmatpush1.bf16.msra.mxu0 %v421
    %4108 = vmatprep.subr.bf16.mxu0 0
    %4109 = vmatpush1.bf16.msra.mxu0 %v420
    %4110 = vmatprep.subr.bf16.mxu0 0
    %4111 = vmatpush1.bf16.msra.mxu0 %v419
    %4112 = vmatprep.subr.bf16.mxu0 0
    %4113 = vmatpush1.bf16.msra.mxu0 %v418
    %4114 = vmatprep.subr.bf16.mxu0 0
    %4115 = vmatpush1.bf16.msra.mxu0 %v417
    %4116 = vmatprep.subr.bf16.mxu0 0
    %4117 = vmatpush1.bf16.msra.mxu0 %v416
    %4118 = vmatprep.subr.bf16.mxu0 0
    %4119 = vmatpush1.bf16.msra.mxu0 %v415
    %4120 = vmatprep.subr.bf16.mxu0 0
    %4121 = vmatpush2.bf16.msra.mxu0 %v430
    %4122 = vmatprep.subr.bf16.mxu0 0
    %4123 = vmatpush2.bf16.msra.mxu0 %v429
    %4124 = vmatprep.subr.bf16.mxu0 0
    %4125 = vmatpush2.bf16.msra.mxu0 %v428
    %4126 = vmatprep.subr.bf16.mxu0 0
    %4127 = vmatpush2.bf16.msra.mxu0 %v427
    %4128 = vmatprep.subr.bf16.mxu0 0
    %4129 = vmatpush2.bf16.msra.mxu0 %v426
    %4130 = vmatprep.subr.bf16.mxu0 0
    %4131 = vmatpush2.bf16.msra.mxu0 %v425
    %4132 = vmatprep.subr.bf16.mxu0 0
    %4133 = vmatpush2.bf16.msra.mxu0 %v424
    %4134 = vmatprep.subr.bf16.mxu0 0
    %4135 = vmatpush2.bf16.msra.mxu0 %v423
    %4136 = vmatprep.mubr.bf16.mxu0 %v4049
    %4137 = vmatmul.mubr.bf16.gmra.mxu0 %v4048
    %v4138 = vpop.f32.mrf.mxu0
    %v4139 = vadd.f32 0.0, %v4138
    %v4140 = vpop.f32.mrf.mxu0
    %v4141 = vpop.f32.mrf.mxu0
    %v4142 = vadd.f32 0.0, %v4141
    %v4143 = vpop.f32.mrf.mxu0
    %4144 = vmatprep.mubr.bf16.mxu0 %v4053
    %4145 = vmatmul.mubr.bf16.gmra.mxu0 %v4052
    %v4146 = vpop.f32.mrf.mxu0
    %v4147 = vadd.f32 0.0, %v4146
    %v4148 = vpop.f32.mrf.mxu0
    %v4149 = vpop.f32.mrf.mxu0
    %v4150 = vadd.f32 0.0, %v4149
    %v4151 = vpop.f32.mrf.mxu0
    %4152 = vmatprep.mubr.bf16.mxu0 %v4057
    %4153 = vmatmul.mubr.bf16.gmra.mxu0 %v4056
    %v4154 = vpop.f32.mrf.mxu0
    %v4155 = vadd.f32 0.0, %v4154
    %v4156 = vpop.f32.mrf.mxu0
    %v4157 = vpop.f32.mrf.mxu0
    %v4158 = vadd.f32 0.0, %v4157
    %v4159 = vpop.f32.mrf.mxu0
    %4160 = vmatprep.mubr.bf16.mxu0 %v4061
    %4161 = vmatmul.mubr.bf16.gmra.mxu0 %v4060
    %v4162 = vpop.f32.mrf.mxu0
    %v4163 = vadd.f32 0.0, %v4162
    %v4164 = vpop.f32.mrf.mxu0
    %v4165 = vpop.f32.mrf.mxu0
    %v4166 = vadd.f32 0.0, %v4165
    %v4167 = vpop.f32.mrf.mxu0
    %4168 = vmatprep.mubr.bf16.mxu0 %v4065
    %4169 = vmatmul.mubr.bf16.gmra.mxu0 %v4064
    %v4170 = vpop.f32.mrf.mxu0
    %v4171 = vadd.f32 0.0, %v4170
    %v4172 = vpop.f32.mrf.mxu0
    %v4173 = vpop.f32.mrf.mxu0
    %v4174 = vadd.f32 0.0, %v4173
    %v4175 = vpop.f32.mrf.mxu0
    %4176 = vmatprep.mubr.bf16.mxu0 %v4069
    %4177 = vmatmul.mubr.bf16.gmra.mxu0 %v4068
    %v4178 = vpop.f32.mrf.mxu0
    %v4179 = vadd.f32 0.0, %v4178
    %v4180 = vpop.f32.mrf.mxu0
    %v4181 = vpop.f32.mrf.mxu0
    %v4182 = vadd.f32 0.0, %v4181
    %v4183 = vpop.f32.mrf.mxu0
    %4184 = vmatprep.mubr.bf16.mxu0 %v4073
    %4185 = vmatmul.mubr.bf16.gmra.mxu0 %v4072
    %v4186 = vpop.f32.mrf.mxu0
    %v4187 = vadd.f32 0.0, %v4186
    %v4188 = vpop.f32.mrf.mxu0
    %v4189 = vpop.f32.mrf.mxu0
    %v4190 = vadd.f32 0.0, %v4189
    %v4191 = vpop.f32.mrf.mxu0
    %4192 = vdwg.mxu0
    %4193 = vmatprep.subr.bf16.mxu0 0
    %4194 = vmatpush1.bf16.msra.mxu0 %v438
    %4195 = vmatprep.subr.bf16.mxu0 0
    %4196 = vmatpush1.bf16.msra.mxu0 %v437
    %4197 = vmatprep.subr.bf16.mxu0 0
    %4198 = vmatpush1.bf16.msra.mxu0 %v436
    %4199 = vmatprep.subr.bf16.mxu0 0
    %4200 = vmatpush1.bf16.msra.mxu0 %v435
    %4201 = vmatprep.subr.bf16.mxu0 0
    %4202 = vmatpush1.bf16.msra.mxu0 %v434
    %4203 = vmatprep.subr.bf16.mxu0 0
    %4204 = vmatpush1.bf16.msra.mxu0 %v433
    %4205 = vmatprep.subr.bf16.mxu0 0
    %4206 = vmatpush1.bf16.msra.mxu0 %v432
    %4207 = vmatprep.subr.bf16.mxu0 0
    %4208 = vmatpush1.bf16.msra.mxu0 %v431
    %4209 = vmatprep.subr.bf16.mxu0 0
    %4210 = vmatpush2.bf16.msra.mxu0 %v446
    %4211 = vmatprep.subr.bf16.mxu0 0
    %4212 = vmatpush2.bf16.msra.mxu0 %v445
    %4213 = vmatprep.subr.bf16.mxu0 0
    %4214 = vmatpush2.bf16.msra.mxu0 %v444
    %4215 = vmatprep.subr.bf16.mxu0 0
    %4216 = vmatpush2.bf16.msra.mxu0 %v443
    %4217 = vmatprep.subr.bf16.mxu0 0
    %4218 = vmatpush2.bf16.msra.mxu0 %v442
    %4219 = vmatprep.subr.bf16.mxu0 0
    %4220 = vmatpush2.bf16.msra.mxu0 %v441
    %4221 = vmatprep.subr.bf16.mxu0 0
    %4222 = vmatpush2.bf16.msra.mxu0 %v440
    %4223 = vmatprep.subr.bf16.mxu0 0
    %4224 = vmatpush2.bf16.msra.mxu0 %v439
    %4225 = vmatprep.mubr.bf16.mxu0 %v4051
    %4226 = vmatmul.mubr.bf16.gmra.mxu0 %v4050
    %v4227 = vpop.f32.mrf.mxu0
    %v4228 = vadd.f32 %v4139, %v4227
    %v4229 = vpop.f32.mrf.mxu0
    %v4230 = vpop.f32.mrf.mxu0
    %v4231 = vadd.f32 %v4142, %v4230
    %v4232 = vpop.f32.mrf.mxu0
    %4233 = vmatprep.mubr.bf16.mxu0 %v4055
    %4234 = vmatmul.mubr.bf16.gmra.mxu0 %v4054
    %v4235 = vpop.f32.mrf.mxu0
    %v4236 = vadd.f32 %v4147, %v4235
    %v4237 = vpop.f32.mrf.mxu0
    %v4238 = vpop.f32.mrf.mxu0
    %v4239 = vadd.f32 %v4150, %v4238
    %v4240 = vpop.f32.mrf.mxu0
    %4241 = vmatprep.mubr.bf16.mxu0 %v4059
    %4242 = vmatmul.mubr.bf16.gmra.mxu0 %v4058
    %v4243 = vpop.f32.mrf.mxu0
    %v4244 = vadd.f32 %v4155, %v4243
    %v4245 = vpop.f32.mrf.mxu0
    %v4246 = vpop.f32.mrf.mxu0
    %v4247 = vadd.f32 %v4158, %v4246
    %v4248 = vpop.f32.mrf.mxu0
    %4249 = vmatprep.mubr.bf16.mxu0 %v4063
    %4250 = vmatmul.mubr.bf16.gmra.mxu0 %v4062
    %v4251 = vpop.f32.mrf.mxu0
    %v4252 = vadd.f32 %v4163, %v4251
    %v4253 = vpop.f32.mrf.mxu0
    %v4254 = vpop.f32.mrf.mxu0
    %v4255 = vadd.f32 %v4166, %v4254
    %v4256 = vpop.f32.mrf.mxu0
    %4257 = vmatprep.mubr.bf16.mxu0 %v4067
    %4258 = vmatmul.mubr.bf16.gmra.mxu0 %v4066
    %v4259 = vpop.f32.mrf.mxu0
    %v4260 = vadd.f32 %v4171, %v4259
    %v4261 = vpop.f32.mrf.mxu0
    %v4262 = vpop.f32.mrf.mxu0
    %v4263 = vadd.f32 %v4174, %v4262
    %v4264 = vpop.f32.mrf.mxu0
    %4265 = vmatprep.mubr.bf16.mxu0 %v4071
    %4266 = vmatmul.mubr.bf16.gmra.mxu0 %v4070
    %v4267 = vpop.f32.mrf.mxu0
    %v4268 = vadd.f32 %v4179, %v4267
    %v4269 = vpop.f32.mrf.mxu0
    %v4270 = vpop.f32.mrf.mxu0
    %v4271 = vadd.f32 %v4182, %v4270
    %v4272 = vpop.f32.mrf.mxu0
    %4273 = vmatprep.mubr.bf16.mxu0 %v4075
    %4274 = vmatmul.mubr.bf16.gmra.mxu0 %v4074
    %v4275 = vpop.f32.mrf.mxu0
    %v4276 = vadd.f32 %v4187, %v4275
    %v4277 = vpop.f32.mrf.mxu0
    %v4278 = vpop.f32.mrf.mxu0
    %v4279 = vadd.f32 %v4190, %v4278
    %v4280 = vpop.f32.mrf.mxu0
    %4281 = vdwg.mxu0
    %v4282 = vpack.c.bf16 %v4231, %v4228
    %v4283 = vpack.c.bf16 %v4239, %v4236
    %v4284 = vpack.c.bf16 %v4247, %v4244
    %v4285 = vpack.c.bf16 %v4255, %v4252
    %v4286 = vpack.c.bf16 %v4263, %v4260
    %v4287 = vpack.c.bf16 %v4271, %v4268
    %v4288 = vpack.c.bf16 %v4279, %v4276
    %s4289 = scalar_lea.vmem %s2, 448
    %v4290 = vld [vmem:[%s4289] sm:$0xf]
    %v4291 = vld [vmem:[%s4289 + $0x4] sm:$0xf]
    %v4292 = vld [vmem:[%s4289 + $0x8] sm:$0xf]
    %v4293 = vld [vmem:[%s4289 + $0xc] sm:$0xf]
    %v4294 = vld [vmem:[%s4289 + $0x10] sm:$0xf]
    %v4295 = vld [vmem:[%s4289 + $0x14] sm:$0xf]
    %v4296 = vld [vmem:[%s4289 + $0x18] sm:$0xf]
    %v4297 = vld [vmem:[%s4289 + $0x1c] sm:$0xf]
    %v4298 = vld [vmem:[%s4289 + $0x20] sm:$0xf]
    %v4299 = vld [vmem:[%s4289 + $0x24] sm:$0xf]
    %v4300 = vld [vmem:[%s4289 + $0x28] sm:$0xf]
    %v4301 = vld [vmem:[%s4289 + $0x2c] sm:$0xf]
    %v4302 = vld [vmem:[%s4289 + $0x30] sm:$0xf]
    %v4303 = vld [vmem:[%s4289 + $0x34] sm:$0xf]
    %v4304 = vld [vmem:[%s4289 + $0x38] sm:$0xf]
    %v4305 = vld [vmem:[%s4289 + $0x3c] sm:$0xf]
    %v4322 = vunpack.c.l.b16 %v4290
    %v4323 = vunpack.c.l.b16 %v4291
    %v4324 = vunpack.c.l.b16 %v4292
    %v4325 = vunpack.c.l.b16 %v4293
    %v4326 = vunpack.c.l.b16 %v4294
    %v4327 = vunpack.c.l.b16 %v4295
    %v4328 = vunpack.c.l.b16 %v4296
    %v4329 = vunpack.c.l.b16 %v4297
    %v4330 = vunpack.c.l.b16 %v4298
    %v4331 = vunpack.c.l.b16 %v4299
    %v4332 = vunpack.c.l.b16 %v4300
    %v4333 = vunpack.c.l.b16 %v4301
    %v4334 = vunpack.c.l.b16 %v4302
    %v4335 = vunpack.c.l.b16 %v4303
    %v4336 = vunpack.c.l.b16 %v4304
    %v4337 = vunpack.c.l.b16 %v4305
    %v4338 = vpack.c.b16 %v4323, %v4322
    %v4339 = vpack.c.b16 %v4325, %v4324
    %v4340 = vpack.c.b16 %v4327, %v4326
    %v4341 = vpack.c.b16 %v4329, %v4328
    %v4342 = vpack.c.b16 %v4331, %v4330
    %v4343 = vpack.c.b16 %v4333, %v4332
    %v4344 = vpack.c.b16 %v4335, %v4334
    %v4345 = vpack.c.b16 %v4337, %v4336
    %4354 = vmatprep.subr.bf16.mxu0 0
    %4355 = vmatpush1.bf16.msra.mxu0 %v4345
    %4356 = vmatprep.subr.bf16.mxu0 0
    %4357 = vmatpush1.bf16.msra.mxu0 %v4344
    %4358 = vmatprep.subr.bf16.mxu0 0
    %4359 = vmatpush1.bf16.msra.mxu0 %v4343
    %4360 = vmatprep.subr.bf16.mxu0 0
    %4361 = vmatpush1.bf16.msra.mxu0 %v4342
    %4362 = vmatprep.subr.bf16.mxu0 0
    %4363 = vmatpush1.bf16.msra.mxu0 %v4341
    %4364 = vmatprep.subr.bf16.mxu0 0
    %4365 = vmatpush1.bf16.msra.mxu0 %v4340
    %4366 = vmatprep.subr.bf16.mxu0 0
    %4367 = vmatpush1.bf16.msra.mxu0 %v4339
    %4368 = vmatprep.subr.bf16.mxu0 0
    %4369 = vmatpush1.bf16.msra.mxu0 %v4338
    %4370 = vmatprep.subr.bf16.mxu0 0
    %4371 = vmatpush2.bf16.msra.mxu0 0
    %4372 = vmatprep.subr.bf16.mxu0 0
    %4373 = vmatpush2.bf16.msra.mxu0 0
    %4374 = vmatprep.subr.bf16.mxu0 0
    %4375 = vmatpush2.bf16.msra.mxu0 0
    %4376 = vmatprep.subr.bf16.mxu0 0
    %4377 = vmatpush2.bf16.msra.mxu0 0
    %4378 = vmatprep.subr.bf16.mxu0 0
    %4379 = vmatpush2.bf16.msra.mxu0 0
    %4380 = vmatprep.subr.bf16.mxu0 0
    %4381 = vmatpush2.bf16.msra.mxu0 0
    %4382 = vmatprep.subr.bf16.mxu0 0
    %4383 = vmatpush2.bf16.msra.mxu0 0
    %4384 = vmatprep.subr.bf16.mxu0 0
    %4385 = vmatpush2.bf16.msra.mxu0 0
    %4386 = vmatprep.mubr.bf16.mxu0 0
    %4387 = vmatmul.mubr.bf16.gmra.mxu0 %v4282
    %v4388 = vpop.f32.mrf.mxu0
    %v4389 = vadd.f32 0.0, %v4388
    %v4390 = vpop.f32.mrf.mxu0
    %v4391 = vpop.f32.mrf.mxu0
    %v4392 = vadd.f32 0.0, %v4391
    %v4393 = vpop.f32.mrf.mxu0
    %4394 = vmatprep.mubr.bf16.mxu0 0
    %4395 = vmatmul.mubr.bf16.gmra.mxu0 %v4283
    %v4396 = vpop.f32.mrf.mxu0
    %v4397 = vadd.f32 0.0, %v4396
    %v4398 = vpop.f32.mrf.mxu0
    %v4399 = vpop.f32.mrf.mxu0
    %v4400 = vadd.f32 0.0, %v4399
    %v4401 = vpop.f32.mrf.mxu0
    %4402 = vmatprep.mubr.bf16.mxu0 0
    %4403 = vmatmul.mubr.bf16.gmra.mxu0 %v4284
    %v4404 = vpop.f32.mrf.mxu0
    %v4405 = vadd.f32 0.0, %v4404
    %v4406 = vpop.f32.mrf.mxu0
    %v4407 = vpop.f32.mrf.mxu0
    %v4408 = vadd.f32 0.0, %v4407
    %v4409 = vpop.f32.mrf.mxu0
    %4410 = vmatprep.mubr.bf16.mxu0 0
    %4411 = vmatmul.mubr.bf16.gmra.mxu0 %v4285
    %v4412 = vpop.f32.mrf.mxu0
    %v4413 = vadd.f32 0.0, %v4412
    %v4414 = vpop.f32.mrf.mxu0
    %v4415 = vpop.f32.mrf.mxu0
    %v4416 = vadd.f32 0.0, %v4415
    %v4417 = vpop.f32.mrf.mxu0
    %4418 = vmatprep.mubr.bf16.mxu0 0
    %4419 = vmatmul.mubr.bf16.gmra.mxu0 %v4286
    %v4420 = vpop.f32.mrf.mxu0
    %v4421 = vadd.f32 0.0, %v4420
    %v4422 = vpop.f32.mrf.mxu0
    %v4423 = vpop.f32.mrf.mxu0
    %v4424 = vadd.f32 0.0, %v4423
    %v4425 = vpop.f32.mrf.mxu0
    %4426 = vmatprep.mubr.bf16.mxu0 0
    %4427 = vmatmul.mubr.bf16.gmra.mxu0 %v4287
    %v4428 = vpop.f32.mrf.mxu0
    %v4429 = vadd.f32 0.0, %v4428
    %v4430 = vpop.f32.mrf.mxu0
    %v4431 = vpop.f32.mrf.mxu0
    %v4432 = vadd.f32 0.0, %v4431
    %v4433 = vpop.f32.mrf.mxu0
    %4434 = vmatprep.mubr.bf16.mxu0 0
    %4435 = vmatmul.mubr.bf16.gmra.mxu0 %v4288
    %v4436 = vpop.f32.mrf.mxu0
    %v4437 = vadd.f32 0.0, %v4436
    %v4438 = vpop.f32.mrf.mxu0
    %v4439 = vpop.f32.mrf.mxu0
    %v4440 = vadd.f32 0.0, %v4439
    %v4441 = vpop.f32.mrf.mxu0
    %4442 = vdwg.mxu0
    %v4443 = vadd.f32 %v3921, %v4389
    %v4444 = vadd.f32 %v3922, %v4392
    %v4445 = vadd.f32 %v3923, %v4397
    %v4446 = vadd.f32 %v3924, %v4400
    %v4447 = vadd.f32 %v3925, %v4405
    %v4448 = vadd.f32 %v3926, %v4408
    %v4449 = vadd.f32 %v3927, %v4413
    %v4450 = vadd.f32 %v3928, %v4416
    %v4451 = vadd.f32 %v3929, %v4421
    %v4452 = vadd.f32 %v3930, %v4424
    %v4453 = vadd.f32 %v3931, %v4429
    %v4454 = vadd.f32 %v3932, %v4432
    %v4455 = vadd.f32 %v3933, %v4437
    %v4456 = vadd.f32 %v3934, %v4440
    %s4457 = scalar_lea.vmem %s1, 1792
    %v4458 = vld [vmem:[%s4457] sm:$0xff]
    %v4459 = vld [vmem:[%s4457 + $0x8] sm:$0xff]
    %v4460 = vld [vmem:[%s4457 + $0x10] sm:$0xff]
    %v4461 = vld [vmem:[%s4457 + $0x18] sm:$0xff]
    %v4462 = vld [vmem:[%s4457 + $0x20] sm:$0xff]
    %v4463 = vld [vmem:[%s4457 + $0x28] sm:$0xff]
    %v4464 = vld [vmem:[%s4457 + $0x30] sm:$0xff]
    %v4465 = vld [vmem:[%s4457 + $0x38] sm:$0xff]
    %v4466 = vld [vmem:[%s4457 + $0x40] sm:$0xff]
    %v4467 = vld [vmem:[%s4457 + $0x48] sm:$0xff]
    %v4468 = vld [vmem:[%s4457 + $0x50] sm:$0xff]
    %v4469 = vld [vmem:[%s4457 + $0x58] sm:$0xff]
    %v4470 = vld [vmem:[%s4457 + $0x60] sm:$0xff]
    %v4471 = vld [vmem:[%s4457 + $0x68] sm:$0xff]
    %v4472 = vld [vmem:[%s4457 + $0x70] sm:$0xff]
    %v4473 = vld [vmem:[%s4457 + $0x78] sm:$0xff]
    %v4474 = vld [vmem:[%s4457 + $0x80] sm:$0xff]
    %v4475 = vld [vmem:[%s4457 + $0x88] sm:$0xff]
    %v4476 = vld [vmem:[%s4457 + $0x90] sm:$0xff]
    %v4477 = vld [vmem:[%s4457 + $0x98] sm:$0xff]
    %v4478 = vld [vmem:[%s4457 + $0xa0] sm:$0xff]
    %v4479 = vld [vmem:[%s4457 + $0xa8] sm:$0xff]
    %v4480 = vld [vmem:[%s4457 + $0xb0] sm:$0xff]
    %v4481 = vld [vmem:[%s4457 + $0xb8] sm:$0xff]
    %v4482 = vld [vmem:[%s4457 + $0xc0] sm:$0xff]
    %v4483 = vld [vmem:[%s4457 + $0xc8] sm:$0xff]
    %v4484 = vld [vmem:[%s4457 + $0xd0] sm:$0xff]
    %v4485 = vld [vmem:[%s4457 + $0xd8] sm:$0xff]
    %v4514 = vunpack.c.l.b16 %v4458
    %v4515 = vunpack.c.h.b16 %v4458
    %v4516 = vunpack.c.l.b16 %v4459
    %v4517 = vunpack.c.h.b16 %v4459
    %v4518 = vunpack.c.l.b16 %v4460
    %v4519 = vunpack.c.h.b16 %v4460
    %v4520 = vunpack.c.l.b16 %v4461
    %v4521 = vunpack.c.h.b16 %v4461
    %v4522 = vunpack.c.l.b16 %v4462
    %v4523 = vunpack.c.h.b16 %v4462
    %v4524 = vunpack.c.l.b16 %v4463
    %v4525 = vunpack.c.h.b16 %v4463
    %v4526 = vunpack.c.l.b16 %v4464
    %v4527 = vunpack.c.h.b16 %v4464
    %v4528 = vunpack.c.l.b16 %v4465
    %v4529 = vunpack.c.h.b16 %v4465
    %v4530 = vunpack.c.l.b16 %v4466
    %v4531 = vunpack.c.h.b16 %v4466
    %v4532 = vunpack.c.l.b16 %v4467
    %v4533 = vunpack.c.h.b16 %v4467
    %v4534 = vunpack.c.l.b16 %v4468
    %v4535 = vunpack.c.h.b16 %v4468
    %v4536 = vunpack.c.l.b16 %v4469
    %v4537 = vunpack.c.h.b16 %v4469
    %v4538 = vunpack.c.l.b16 %v4470
    %v4539 = vunpack.c.h.b16 %v4470
    %v4540 = vunpack.c.l.b16 %v4471
    %v4541 = vunpack.c.h.b16 %v4471
    %v4542 = vunpack.c.l.b16 %v4472
    %v4543 = vunpack.c.h.b16 %v4472
    %v4544 = vunpack.c.l.b16 %v4473
    %v4545 = vunpack.c.h.b16 %v4473
    %v4546 = vunpack.c.l.b16 %v4474
    %v4547 = vunpack.c.h.b16 %v4474
    %v4548 = vunpack.c.l.b16 %v4475
    %v4549 = vunpack.c.h.b16 %v4475
    %v4550 = vunpack.c.l.b16 %v4476
    %v4551 = vunpack.c.h.b16 %v4476
    %v4552 = vunpack.c.l.b16 %v4477
    %v4553 = vunpack.c.h.b16 %v4477
    %v4554 = vunpack.c.l.b16 %v4478
    %v4555 = vunpack.c.h.b16 %v4478
    %v4556 = vunpack.c.l.b16 %v4479
    %v4557 = vunpack.c.h.b16 %v4479
    %v4558 = vunpack.c.l.b16 %v4480
    %v4559 = vunpack.c.h.b16 %v4480
    %v4560 = vunpack.c.l.b16 %v4481
    %v4561 = vunpack.c.h.b16 %v4481
    %v4562 = vunpack.c.l.b16 %v4482
    %v4563 = vunpack.c.h.b16 %v4482
    %v4564 = vunpack.c.l.b16 %v4483
    %v4565 = vunpack.c.h.b16 %v4483
    %v4566 = vunpack.c.l.b16 %v4484
    %v4567 = vunpack.c.h.b16 %v4484
    %v4568 = vunpack.c.l.b16 %v4485
    %v4569 = vunpack.c.h.b16 %v4485
    %v4570 = vpack.c.b16 %v4518, %v4514
    %v4571 = vpack.c.b16 %v4519, %v4515
    %v4572 = vpack.c.b16 %v4520, %v4516
    %v4573 = vpack.c.b16 %v4521, %v4517
    %v4574 = vpack.c.b16 %v4526, %v4522
    %v4575 = vpack.c.b16 %v4527, %v4523
    %v4576 = vpack.c.b16 %v4528, %v4524
    %v4577 = vpack.c.b16 %v4529, %v4525
    %v4578 = vpack.c.b16 %v4534, %v4530
    %v4579 = vpack.c.b16 %v4535, %v4531
    %v4580 = vpack.c.b16 %v4536, %v4532
    %v4581 = vpack.c.b16 %v4537, %v4533
    %v4582 = vpack.c.b16 %v4542, %v4538
    %v4583 = vpack.c.b16 %v4543, %v4539
    %v4584 = vpack.c.b16 %v4544, %v4540
    %v4585 = vpack.c.b16 %v4545, %v4541
    %v4586 = vpack.c.b16 %v4550, %v4546
    %v4587 = vpack.c.b16 %v4551, %v4547
    %v4588 = vpack.c.b16 %v4552, %v4548
    %v4589 = vpack.c.b16 %v4553, %v4549
    %v4590 = vpack.c.b16 %v4558, %v4554
    %v4591 = vpack.c.b16 %v4559, %v4555
    %v4592 = vpack.c.b16 %v4560, %v4556
    %v4593 = vpack.c.b16 %v4561, %v4557
    %v4594 = vpack.c.b16 %v4566, %v4562
    %v4595 = vpack.c.b16 %v4567, %v4563
    %v4596 = vpack.c.b16 %v4568, %v4564
    %v4597 = vpack.c.b16 %v4569, %v4565
    %4626 = vmatprep.subr.bf16.mxu0 0
    %4627 = vmatpush1.bf16.msra.mxu0 %v422
    %4628 = vmatprep.subr.bf16.mxu0 0
    %4629 = vmatpush1.bf16.msra.mxu0 %v421
    %4630 = vmatprep.subr.bf16.mxu0 0
    %4631 = vmatpush1.bf16.msra.mxu0 %v420
    %4632 = vmatprep.subr.bf16.mxu0 0
    %4633 = vmatpush1.bf16.msra.mxu0 %v419
    %4634 = vmatprep.subr.bf16.mxu0 0
    %4635 = vmatpush1.bf16.msra.mxu0 %v418
    %4636 = vmatprep.subr.bf16.mxu0 0
    %4637 = vmatpush1.bf16.msra.mxu0 %v417
    %4638 = vmatprep.subr.bf16.mxu0 0
    %4639 = vmatpush1.bf16.msra.mxu0 %v416
    %4640 = vmatprep.subr.bf16.mxu0 0
    %4641 = vmatpush1.bf16.msra.mxu0 %v415
    %4642 = vmatprep.subr.bf16.mxu0 0
    %4643 = vmatpush2.bf16.msra.mxu0 %v430
    %4644 = vmatprep.subr.bf16.mxu0 0
    %4645 = vmatpush2.bf16.msra.mxu0 %v429
    %4646 = vmatprep.subr.bf16.mxu0 0
    %4647 = vmatpush2.bf16.msra.mxu0 %v428
    %4648 = vmatprep.subr.bf16.mxu0 0
    %4649 = vmatpush2.bf16.msra.mxu0 %v427
    %4650 = vmatprep.subr.bf16.mxu0 0
    %4651 = vmatpush2.bf16.msra.mxu0 %v426
    %4652 = vmatprep.subr.bf16.mxu0 0
    %4653 = vmatpush2.bf16.msra.mxu0 %v425
    %4654 = vmatprep.subr.bf16.mxu0 0
    %4655 = vmatpush2.bf16.msra.mxu0 %v424
    %4656 = vmatprep.subr.bf16.mxu0 0
    %4657 = vmatpush2.bf16.msra.mxu0 %v423
    %4658 = vmatprep.mubr.bf16.mxu0 %v4571
    %4659 = vmatmul.mubr.bf16.gmra.mxu0 %v4570
    %v4660 = vpop.f32.mrf.mxu0
    %v4661 = vadd.f32 0.0, %v4660
    %v4662 = vpop.f32.mrf.mxu0
    %v4663 = vpop.f32.mrf.mxu0
    %v4664 = vadd.f32 0.0, %v4663
    %v4665 = vpop.f32.mrf.mxu0
    %4666 = vmatprep.mubr.bf16.mxu0 %v4575
    %4667 = vmatmul.mubr.bf16.gmra.mxu0 %v4574
    %v4668 = vpop.f32.mrf.mxu0
    %v4669 = vadd.f32 0.0, %v4668
    %v4670 = vpop.f32.mrf.mxu0
    %v4671 = vpop.f32.mrf.mxu0
    %v4672 = vadd.f32 0.0, %v4671
    %v4673 = vpop.f32.mrf.mxu0
    %4674 = vmatprep.mubr.bf16.mxu0 %v4579
    %4675 = vmatmul.mubr.bf16.gmra.mxu0 %v4578
    %v4676 = vpop.f32.mrf.mxu0
    %v4677 = vadd.f32 0.0, %v4676
    %v4678 = vpop.f32.mrf.mxu0
    %v4679 = vpop.f32.mrf.mxu0
    %v4680 = vadd.f32 0.0, %v4679
    %v4681 = vpop.f32.mrf.mxu0
    %4682 = vmatprep.mubr.bf16.mxu0 %v4583
    %4683 = vmatmul.mubr.bf16.gmra.mxu0 %v4582
    %v4684 = vpop.f32.mrf.mxu0
    %v4685 = vadd.f32 0.0, %v4684
    %v4686 = vpop.f32.mrf.mxu0
    %v4687 = vpop.f32.mrf.mxu0
    %v4688 = vadd.f32 0.0, %v4687
    %v4689 = vpop.f32.mrf.mxu0
    %4690 = vmatprep.mubr.bf16.mxu0 %v4587
    %4691 = vmatmul.mubr.bf16.gmra.mxu0 %v4586
    %v4692 = vpop.f32.mrf.mxu0
    %v4693 = vadd.f32 0.0, %v4692
    %v4694 = vpop.f32.mrf.mxu0
    %v4695 = vpop.f32.mrf.mxu0
    %v4696 = vadd.f32 0.0, %v4695
    %v4697 = vpop.f32.mrf.mxu0
    %4698 = vmatprep.mubr.bf16.mxu0 %v4591
    %4699 = vmatmul.mubr.bf16.gmra.mxu0 %v4590
    %v4700 = vpop.f32.mrf.mxu0
    %v4701 = vadd.f32 0.0, %v4700
    %v4702 = vpop.f32.mrf.mxu0
    %v4703 = vpop.f32.mrf.mxu0
    %v4704 = vadd.f32 0.0, %v4703
    %v4705 = vpop.f32.mrf.mxu0
    %4706 = vmatprep.mubr.bf16.mxu0 %v4595
    %4707 = vmatmul.mubr.bf16.gmra.mxu0 %v4594
    %v4708 = vpop.f32.mrf.mxu0
    %v4709 = vadd.f32 0.0, %v4708
    %v4710 = vpop.f32.mrf.mxu0
    %v4711 = vpop.f32.mrf.mxu0
    %v4712 = vadd.f32 0.0, %v4711
    %v4713 = vpop.f32.mrf.mxu0
    %4714 = vdwg.mxu0
    %4715 = vmatprep.subr.bf16.mxu0 0
    %4716 = vmatpush1.bf16.msra.mxu0 %v438
    %4717 = vmatprep.subr.bf16.mxu0 0
    %4718 = vmatpush1.bf16.msra.mxu0 %v437
    %4719 = vmatprep.subr.bf16.mxu0 0
    %4720 = vmatpush1.bf16.msra.mxu0 %v436
    %4721 = vmatprep.subr.bf16.mxu0 0
    %4722 = vmatpush1.bf16.msra.mxu0 %v435
    %4723 = vmatprep.subr.bf16.mxu0 0
    %4724 = vmatpush1.bf16.msra.mxu0 %v434
    %4725 = vmatprep.subr.bf16.mxu0 0
    %4726 = vmatpush1.bf16.msra.mxu0 %v433
    %4727 = vmatprep.subr.bf16.mxu0 0
    %4728 = vmatpush1.bf16.msra.mxu0 %v432
    %4729 = vmatprep.subr.bf16.mxu0 0
    %4730 = vmatpush1.bf16.msra.mxu0 %v431
    %4731 = vmatprep.subr.bf16.mxu0 0
    %4732 = vmatpush2.bf16.msra.mxu0 %v446
    %4733 = vmatprep.subr.bf16.mxu0 0
    %4734 = vmatpush2.bf16.msra.mxu0 %v445
    %4735 = vmatprep.subr.bf16.mxu0 0
    %4736 = vmatpush2.bf16.msra.mxu0 %v444
    %4737 = vmatprep.subr.bf16.mxu0 0
    %4738 = vmatpush2.bf16.msra.mxu0 %v443
    %4739 = vmatprep.subr.bf16.mxu0 0
    %4740 = vmatpush2.bf16.msra.mxu0 %v442
    %4741 = vmatprep.subr.bf16.mxu0 0
    %4742 = vmatpush2.bf16.msra.mxu0 %v441
    %4743 = vmatprep.subr.bf16.mxu0 0
    %4744 = vmatpush2.bf16.msra.mxu0 %v440
    %4745 = vmatprep.subr.bf16.mxu0 0
    %4746 = vmatpush2.bf16.msra.mxu0 %v439
    %4747 = vmatprep.mubr.bf16.mxu0 %v4573
    %4748 = vmatmul.mubr.bf16.gmra.mxu0 %v4572
    %v4749 = vpop.f32.mrf.mxu0
    %v4750 = vadd.f32 %v4661, %v4749
    %v4751 = vpop.f32.mrf.mxu0
    %v4752 = vpop.f32.mrf.mxu0
    %v4753 = vadd.f32 %v4664, %v4752
    %v4754 = vpop.f32.mrf.mxu0
    %4755 = vmatprep.mubr.bf16.mxu0 %v4577
    %4756 = vmatmul.mubr.bf16.gmra.mxu0 %v4576
    %v4757 = vpop.f32.mrf.mxu0
    %v4758 = vadd.f32 %v4669, %v4757
    %v4759 = vpop.f32.mrf.mxu0
    %v4760 = vpop.f32.mrf.mxu0
    %v4761 = vadd.f32 %v4672, %v4760
    %v4762 = vpop.f32.mrf.mxu0
    %4763 = vmatprep.mubr.bf16.mxu0 %v4581
    %4764 = vmatmul.mubr.bf16.gmra.mxu0 %v4580
    %v4765 = vpop.f32.mrf.mxu0
    %v4766 = vadd.f32 %v4677, %v4765
    %v4767 = vpop.f32.mrf.mxu0
    %v4768 = vpop.f32.mrf.mxu0
    %v4769 = vadd.f32 %v4680, %v4768
    %v4770 = vpop.f32.mrf.mxu0
    %4771 = vmatprep.mubr.bf16.mxu0 %v4585
    %4772 = vmatmul.mubr.bf16.gmra.mxu0 %v4584
    %v4773 = vpop.f32.mrf.mxu0
    %v4774 = vadd.f32 %v4685, %v4773
    %v4775 = vpop.f32.mrf.mxu0
    %v4776 = vpop.f32.mrf.mxu0
    %v4777 = vadd.f32 %v4688, %v4776
    %v4778 = vpop.f32.mrf.mxu0
    %4779 = vmatprep.mubr.bf16.mxu0 %v4589
    %4780 = vmatmul.mubr.bf16.gmra.mxu0 %v4588
    %v4781 = vpop.f32.mrf.mxu0
    %v4782 = vadd.f32 %v4693, %v4781
    %v4783 = vpop.f32.mrf.mxu0
    %v4784 = vpop.f32.mrf.mxu0
    %v4785 = vadd.f32 %v4696, %v4784
    %v4786 = vpop.f32.mrf.mxu0
    %4787 = vmatprep.mubr.bf16.mxu0 %v4593
    %4788 = vmatmul.mubr.bf16.gmra.mxu0 %v4592
    %v4789 = vpop.f32.mrf.mxu0
    %v4790 = vadd.f32 %v4701, %v4789
    %v4791 = vpop.f32.mrf.mxu0
    %v4792 = vpop.f32.mrf.mxu0
    %v4793 = vadd.f32 %v4704, %v4792
    %v4794 = vpop.f32.mrf.mxu0
    %4795 = vmatprep.mubr.bf16.mxu0 %v4597
    %4796 = vmatmul.mubr.bf16.gmra.mxu0 %v4596
    %v4797 = vpop.f32.mrf.mxu0
    %v4798 = vadd.f32 %v4709, %v4797
    %v4799 = vpop.f32.mrf.mxu0
    %v4800 = vpop.f32.mrf.mxu0
    %v4801 = vadd.f32 %v4712, %v4800
    %v4802 = vpop.f32.mrf.mxu0
    %4803 = vdwg.mxu0
    %v4804 = vpack.c.bf16 %v4753, %v4750
    %v4805 = vpack.c.bf16 %v4761, %v4758
    %v4806 = vpack.c.bf16 %v4769, %v4766
    %v4807 = vpack.c.bf16 %v4777, %v4774
    %v4808 = vpack.c.bf16 %v4785, %v4782
    %v4809 = vpack.c.bf16 %v4793, %v4790
    %v4810 = vpack.c.bf16 %v4801, %v4798
    %s4811 = scalar_lea.vmem %s2, 512
    %v4812 = vld [vmem:[%s4811] sm:$0xf]
    %v4813 = vld [vmem:[%s4811 + $0x4] sm:$0xf]
    %v4814 = vld [vmem:[%s4811 + $0x8] sm:$0xf]
    %v4815 = vld [vmem:[%s4811 + $0xc] sm:$0xf]
    %v4816 = vld [vmem:[%s4811 + $0x10] sm:$0xf]
    %v4817 = vld [vmem:[%s4811 + $0x14] sm:$0xf]
    %v4818 = vld [vmem:[%s4811 + $0x18] sm:$0xf]
    %v4819 = vld [vmem:[%s4811 + $0x1c] sm:$0xf]
    %v4820 = vld [vmem:[%s4811 + $0x20] sm:$0xf]
    %v4821 = vld [vmem:[%s4811 + $0x24] sm:$0xf]
    %v4822 = vld [vmem:[%s4811 + $0x28] sm:$0xf]
    %v4823 = vld [vmem:[%s4811 + $0x2c] sm:$0xf]
    %v4824 = vld [vmem:[%s4811 + $0x30] sm:$0xf]
    %v4825 = vld [vmem:[%s4811 + $0x34] sm:$0xf]
    %v4826 = vld [vmem:[%s4811 + $0x38] sm:$0xf]
    %v4827 = vld [vmem:[%s4811 + $0x3c] sm:$0xf]
    %v4844 = vunpack.c.l.b16 %v4812
    %v4845 = vunpack.c.l.b16 %v4813
    %v4846 = vunpack.c.l.b16 %v4814
    %v4847 = vunpack.c.l.b16 %v4815
    %v4848 = vunpack.c.l.b16 %v4816
    %v4849 = vunpack.c.l.b16 %v4817
    %v4850 = vunpack.c.l.b16 %v4818
    %v4851 = vunpack.c.l.b16 %v4819
    %v4852 = vunpack.c.l.b16 %v4820
    %v4853 = vunpack.c.l.b16 %v4821
    %v4854 = vunpack.c.l.b16 %v4822
    %v4855 = vunpack.c.l.b16 %v4823
    %v4856 = vunpack.c.l.b16 %v4824
    %v4857 = vunpack.c.l.b16 %v4825
    %v4858 = vunpack.c.l.b16 %v4826
    %v4859 = vunpack.c.l.b16 %v4827
    %v4860 = vpack.c.b16 %v4845, %v4844
    %v4861 = vpack.c.b16 %v4847, %v4846
    %v4862 = vpack.c.b16 %v4849, %v4848
    %v4863 = vpack.c.b16 %v4851, %v4850
    %v4864 = vpack.c.b16 %v4853, %v4852
    %v4865 = vpack.c.b16 %v4855, %v4854
    %v4866 = vpack.c.b16 %v4857, %v4856
    %v4867 = vpack.c.b16 %v4859, %v4858
    %4876 = vmatprep.subr.bf16.mxu0 0
    %4877 = vmatpush1.bf16.msra.mxu0 %v4867
    %4878 = vmatprep.subr.bf16.mxu0 0
    %4879 = vmatpush1.bf16.msra.mxu0 %v4866
    %4880 = vmatprep.subr.bf16.mxu0 0
    %4881 = vmatpush1.bf16.msra.mxu0 %v4865
    %4882 = vmatprep.subr.bf16.mxu0 0
    %4883 = vmatpush1.bf16.msra.mxu0 %v4864
    %4884 = vmatprep.subr.bf16.mxu0 0
    %4885 = vmatpush1.bf16.msra.mxu0 %v4863
    %4886 = vmatprep.subr.bf16.mxu0 0
    %4887 = vmatpush1.bf16.msra.mxu0 %v4862
    %4888 = vmatprep.subr.bf16.mxu0 0
    %4889 = vmatpush1.bf16.msra.mxu0 %v4861
    %4890 = vmatprep.subr.bf16.mxu0 0
    %4891 = vmatpush1.bf16.msra.mxu0 %v4860
    %4892 = vmatprep.subr.bf16.mxu0 0
    %4893 = vmatpush2.bf16.msra.mxu0 0
    %4894 = vmatprep.subr.bf16.mxu0 0
    %4895 = vmatpush2.bf16.msra.mxu0 0
    %4896 = vmatprep.subr.bf16.mxu0 0
    %4897 = vmatpush2.bf16.msra.mxu0 0
    %4898 = vmatprep.subr.bf16.mxu0 0
    %4899 = vmatpush2.bf16.msra.mxu0 0
    %4900 = vmatprep.subr.bf16.mxu0 0
    %4901 = vmatpush2.bf16.msra.mxu0 0
    %4902 = vmatprep.subr.bf16.mxu0 0
    %4903 = vmatpush2.bf16.msra.mxu0 0
    %4904 = vmatprep.subr.bf16.mxu0 0
    %4905 = vmatpush2.bf16.msra.mxu0 0
    %4906 = vmatprep.subr.bf16.mxu0 0
    %4907 = vmatpush2.bf16.msra.mxu0 0
    %4908 = vmatprep.mubr.bf16.mxu0 0
    %4909 = vmatmul.mubr.bf16.gmra.mxu0 %v4804
    %v4910 = vpop.f32.mrf.mxu0
    %v4911 = vadd.f32 0.0, %v4910
    %v4912 = vpop.f32.mrf.mxu0
    %v4913 = vpop.f32.mrf.mxu0
    %v4914 = vadd.f32 0.0, %v4913
    %v4915 = vpop.f32.mrf.mxu0
    %4916 = vmatprep.mubr.bf16.mxu0 0
    %4917 = vmatmul.mubr.bf16.gmra.mxu0 %v4805
    %v4918 = vpop.f32.mrf.mxu0
    %v4919 = vadd.f32 0.0, %v4918
    %v4920 = vpop.f32.mrf.mxu0
    %v4921 = vpop.f32.mrf.mxu0
    %v4922 = vadd.f32 0.0, %v4921
    %v4923 = vpop.f32.mrf.mxu0
    %4924 = vmatprep.mubr.bf16.mxu0 0
    %4925 = vmatmul.mubr.bf16.gmra.mxu0 %v4806
    %v4926 = vpop.f32.mrf.mxu0
    %v4927 = vadd.f32 0.0, %v4926
    %v4928 = vpop.f32.mrf.mxu0
    %v4929 = vpop.f32.mrf.mxu0
    %v4930 = vadd.f32 0.0, %v4929
    %v4931 = vpop.f32.mrf.mxu0
    %4932 = vmatprep.mubr.bf16.mxu0 0
    %4933 = vmatmul.mubr.bf16.gmra.mxu0 %v4807
    %v4934 = vpop.f32.mrf.mxu0
    %v4935 = vadd.f32 0.0, %v4934
    %v4936 = vpop.f32.mrf.mxu0
    %v4937 = vpop.f32.mrf.mxu0
    %v4938 = vadd.f32 0.0, %v4937
    %v4939 = vpop.f32.mrf.mxu0
    %4940 = vmatprep.mubr.bf16.mxu0 0
    %4941 = vmatmul.mubr.bf16.gmra.mxu0 %v4808
    %v4942 = vpop.f32.mrf.mxu0
    %v4943 = vadd.f32 0.0, %v4942
    %v4944 = vpop.f32.mrf.mxu0
    %v4945 = vpop.f32.mrf.mxu0
    %v4946 = vadd.f32 0.0, %v4945
    %v4947 = vpop.f32.mrf.mxu0
    %4948 = vmatprep.mubr.bf16.mxu0 0
    %4949 = vmatmul.mubr.bf16.gmra.mxu0 %v4809
    %v4950 = vpop.f32.mrf.mxu0
    %v4951 = vadd.f32 0.0, %v4950
    %v4952 = vpop.f32.mrf.mxu0
    %v4953 = vpop.f32.mrf.mxu0
    %v4954 = vadd.f32 0.0, %v4953
    %v4955 = vpop.f32.mrf.mxu0
    %4956 = vmatprep.mubr.bf16.mxu0 0
    %4957 = vmatmul.mubr.bf16.gmra.mxu0 %v4810
    %v4958 = vpop.f32.mrf.mxu0
    %v4959 = vadd.f32 0.0, %v4958
    %v4960 = vpop.f32.mrf.mxu0
    %v4961 = vpop.f32.mrf.mxu0
    %v4962 = vadd.f32 0.0, %v4961
    %v4963 = vpop.f32.mrf.mxu0
    %4964 = vdwg.mxu0
    %v4965 = vadd.f32 %v4443, %v4911
    %v4966 = vadd.f32 %v4444, %v4914
    %v4967 = vadd.f32 %v4445, %v4919
    %v4968 = vadd.f32 %v4446, %v4922
    %v4969 = vadd.f32 %v4447, %v4927
    %v4970 = vadd.f32 %v4448, %v4930
    %v4971 = vadd.f32 %v4449, %v4935
    %v4972 = vadd.f32 %v4450, %v4938
    %v4973 = vadd.f32 %v4451, %v4943
    %v4974 = vadd.f32 %v4452, %v4946
    %v4975 = vadd.f32 %v4453, %v4951
    %v4976 = vadd.f32 %v4454, %v4954
    %v4977 = vadd.f32 %v4455, %v4959
    %v4978 = vadd.f32 %v4456, %v4962
    %v4979 = vld [vmem:[%s3] sm:$0x1]
    %v4981 = vlaneseq
    %v4982 = vshrl.u32 %v4981, 7
    %v4983 = vsub.s32 0, %v4982
    %v4984 = vrot.slane %v4979, %v4983
    %v4986 = vadd.f32 %v4965, %v4984
    %v4987 = vadd.f32 %v4966, %v4984
    %v4988 = vadd.f32 %v4967, %v4984
    %v4989 = vadd.f32 %v4968, %v4984
    %v4990 = vadd.f32 %v4969, %v4984
    %v4991 = vadd.f32 %v4970, %v4984
    %v4992 = vadd.f32 %v4971, %v4984
    %v4993 = vadd.f32 %v4972, %v4984
    %v4994 = vadd.f32 %v4973, %v4984
    %v4995 = vadd.f32 %v4974, %v4984
    %v4996 = vadd.f32 %v4975, %v4984
    %v4997 = vadd.f32 %v4976, %v4984
    %v4998 = vadd.f32 %v4977, %v4984
    %v4999 = vadd.f32 %v4978, %v4984
    %v5000 = vmax.f32 %v4986, 0.0
    %v5001 = vmax.f32 %v4987, 0.0
    %v5002 = vmax.f32 %v4988, 0.0
    %v5003 = vmax.f32 %v4989, 0.0
    %v5004 = vmax.f32 %v4990, 0.0
    %v5005 = vmax.f32 %v4991, 0.0
    %v5006 = vmax.f32 %v4992, 0.0
    %v5007 = vmax.f32 %v4993, 0.0
    %v5008 = vmax.f32 %v4994, 0.0
    %v5009 = vmax.f32 %v4995, 0.0
    %v5010 = vmax.f32 %v4996, 0.0
    %v5011 = vmax.f32 %v4997, 0.0
    %v5012 = vmax.f32 %v4998, 0.0
    %v5013 = vmax.f32 %v4999, 0.0
    %v5014 = vpack.c.bf16 %v5001, %v5000
    %v5015 = vpack.c.bf16 %v5003, %v5002
    %v5016 = vpack.c.bf16 %v5005, %v5004
    %v5017 = vpack.c.bf16 %v5007, %v5006
    %v5018 = vpack.c.bf16 %v5009, %v5008
    %v5019 = vpack.c.bf16 %v5011, %v5010
    %v5020 = vpack.c.bf16 %v5013, %v5012
    %v5021 = vld [vmem:[%s4] sm:$0xf]
    %v5022 = vld [vmem:[%s4 + $0x4] sm:$0xf]
    %v5023 = vld [vmem:[%s4 + $0x8] sm:$0xf]
    %v5024 = vld [vmem:[%s4 + $0xc] sm:$0xf]
    %v5029 = vunpack.c.l.b16 %v5021
    %v5030 = vunpack.c.l.b16 %v5022
    %v5031 = vunpack.c.l.b16 %v5023
    %v5032 = vunpack.c.l.b16 %v5024
    %v5033 = vpack.c.b16 %v5030, %v5029
    %v5034 = vpack.c.b16 %v5032, %v5031
    %vm5035 = vcmask 916480
    %v5037 = vsel %vm5035, %v5033, 0
    %v5040 = vsel %vm5035, %v5034, 0
    %5042 = vmatprep.subr.bf16.mxu0 0
    %5043 = vmatpush1.bf16.msra.mxu0 0
    %5044 = vmatprep.subr.bf16.mxu0 0
    %5045 = vmatpush1.bf16.msra.mxu0 %v5020
    %5046 = vmatprep.subr.bf16.mxu0 0
    %5047 = vmatpush1.bf16.msra.mxu0 %v5019
    %5048 = vmatprep.subr.bf16.mxu0 0
    %5049 = vmatpush1.bf16.msra.mxu0 %v5018
    %5050 = vmatprep.subr.bf16.mxu0 0
    %5051 = vmatpush1.bf16.msra.mxu0 %v5017
    %5052 = vmatprep.subr.bf16.mxu0 0
    %5053 = vmatpush1.bf16.msra.mxu0 %v5016
    %5054 = vmatprep.subr.bf16.mxu0 0
    %5055 = vmatpush1.bf16.msra.mxu0 %v5015
    %5056 = vmatprep.subr.bf16.mxu0 0
    %5057 = vmatpush1.bf16.msra.mxu0 %v5014
    %5058 = vmatprep.subr.bf16.mxu0 0
    %5059 = vmatpush2.bf16.msra.mxu0 0
    %5060 = vmatprep.subr.bf16.mxu0 0
    %5061 = vmatpush2.bf16.msra.mxu0 0
    %5062 = vmatprep.subr.bf16.mxu0 0
    %5063 = vmatpush2.bf16.msra.mxu0 0
    %5064 = vmatprep.subr.bf16.mxu0 0
    %5065 = vmatpush2.bf16.msra.mxu0 0
    %5066 = vmatprep.subr.bf16.mxu0 0
    %5067 = vmatpush2.bf16.msra.mxu0 0
    %5068 = vmatprep.subr.bf16.mxu0 0
    %5069 = vmatpush2.bf16.msra.mxu0 0
    %5070 = vmatprep.subr.bf16.mxu0 0
    %5071 = vmatpush2.bf16.msra.mxu0 0
    %5072 = vmatprep.subr.bf16.mxu0 0
    %5073 = vmatpush2.bf16.msra.mxu0 0
    %5074 = vmatprep.mubr.bf16.mxu0 0
    %5075 = vmatmul.mubr.bf16.gmra.mxu0 %v5037
    %v5076 = vpop.f32.mrf.mxu0
    %v5077 = vadd.f32 0.0, %v5076
    %v5078 = vpop.f32.mrf.mxu0
    %v5079 = vpop.f32.mrf.mxu0
    %v5080 = vadd.f32 0.0, %v5079
    %v5081 = vpop.f32.mrf.mxu0
    %5082 = vmatprep.mubr.bf16.mxu0 0
    %5083 = vmatmul.mubr.bf16.gmra.mxu0 %v5040
    %v5084 = vpop.f32.mrf.mxu0
    %v5085 = vadd.f32 0.0, %v5084
    %v5086 = vpop.f32.mrf.mxu0
    %v5087 = vpop.f32.mrf.mxu0
    %v5088 = vadd.f32 0.0, %v5087
    %v5089 = vpop.f32.mrf.mxu0
    %5090 = vdwg.mxu0
    %v5091 = vpack.c.bf16 %v5080, %v5077
    %v5092 = vpack.c.bf16 %v5088, %v5085
    %v5093 = vld [vmem:[%s5] sm:$0xf]
    %v5094 = vld [vmem:[%s5 + $0x4] sm:$0xf]
    %v5095 = vld [vmem:[%s5 + $0x8] sm:$0xf]
    %v5096 = vld [vmem:[%s5 + $0xc] sm:$0xf]
    %v5097 = vld [vmem:[%s5 + $0x10] sm:$0xf]
    %v5098 = vld [vmem:[%s5 + $0x14] sm:$0xf]
    %v5099 = vld [vmem:[%s5 + $0x18] sm:$0xf]
    %v5100 = vld [vmem:[%s5 + $0x1c] sm:$0xf]
    %v5101 = vld [vmem:[%s5 + $0x20] sm:$0xf]
    %v5102 = vld [vmem:[%s5 + $0x24] sm:$0xf]
    %v5103 = vld [vmem:[%s5 + $0x28] sm:$0xf]
    %v5104 = vld [vmem:[%s5 + $0x2c] sm:$0xf]
    %v5105 = vld [vmem:[%s5 + $0x30] sm:$0xf]
    %v5106 = vld [vmem:[%s5 + $0x34] sm:$0xf]
    %v5107 = vld [vmem:[%s5 + $0x38] sm:$0xf]
    %v5108 = vld [vmem:[%s5 + $0x3c] sm:$0xf]
    %s5109 = scalar_lea.vmem %s4, 16
    %v5110 = vld [vmem:[%s5109] sm:$0xf]
    %v5111 = vld [vmem:[%s5109 + $0x4] sm:$0xf]
    %v5112 = vld [vmem:[%s5109 + $0x8] sm:$0xf]
    %v5113 = vld [vmem:[%s5109 + $0xc] sm:$0xf]
    %v5118 = vunpack.c.l.b16 %v5110
    %v5119 = vunpack.c.l.b16 %v5111
    %v5120 = vunpack.c.l.b16 %v5112
    %v5121 = vunpack.c.l.b16 %v5113
    %v5122 = vpack.c.b16 %v5119, %v5118
    %v5123 = vpack.c.b16 %v5121, %v5120
    %v5125 = vsel %vm5035, %v5122, 0
    %v5128 = vsel %vm5035, %v5123, 0
    %5130 = vmatprep.subr.bf16.mxu0 0
    %5131 = vmatpush1.bf16.msra.mxu0 0
    %5132 = vmatprep.subr.bf16.mxu0 0
    %5133 = vmatpush1.bf16.msra.mxu0 %v5020
    %5134 = vmatprep.subr.bf16.mxu0 0
    %5135 = vmatpush1.bf16.msra.mxu0 %v5019
    %5136 = vmatprep.subr.bf16.mxu0 0
    %5137 = vmatpush1.bf16.msra.mxu0 %v5018
    %5138 = vmatprep.subr.bf16.mxu0 0
    %5139 = vmatpush1.bf16.msra.mxu0 %v5017
    %5140 = vmatprep.subr.bf16.mxu0 0
    %5141 = vmatpush1.bf16.msra.mxu0 %v5016
    %5142 = vmatprep.subr.bf16.mxu0 0
    %5143 = vmatpush1.bf16.msra.mxu0 %v5015
    %5144 = vmatprep.subr.bf16.mxu0 0
    %5145 = vmatpush1.bf16.msra.mxu0 %v5014
    %5146 = vmatprep.subr.bf16.mxu0 0
    %5147 = vmatpush2.bf16.msra.mxu0 0
    %5148 = vmatprep.subr.bf16.mxu0 0
    %5149 = vmatpush2.bf16.msra.mxu0 0
    %5150 = vmatprep.subr.bf16.mxu0 0
    %5151 = vmatpush2.bf16.msra.mxu0 0
    %5152 = vmatprep.subr.bf16.mxu0 0
    %5153 = vmatpush2.bf16.msra.mxu0 0
    %5154 = vmatprep.subr.bf16.mxu0 0
    %5155 = vmatpush2.bf16.msra.mxu0 0
    %5156 = vmatprep.subr.bf16.mxu0 0
    %5157 = vmatpush2.bf16.msra.mxu0 0
    %5158 = vmatprep.subr.bf16.mxu0 0
    %5159 = vmatpush2.bf16.msra.mxu0 0
    %5160 = vmatprep.subr.bf16.mxu0 0
    %5161 = vmatpush2.bf16.msra.mxu0 0
    %5162 = vmatprep.mubr.bf16.mxu0 0
    %5163 = vmatmul.mubr.bf16.gmra.mxu0 %v5125
    %v5164 = vpop.f32.mrf.mxu0
    %v5165 = vadd.f32 0.0, %v5164
    %v5166 = vpop.f32.mrf.mxu0
    %v5167 = vpop.f32.mrf.mxu0
    %v5168 = vadd.f32 0.0, %v5167
    %v5169 = vpop.f32.mrf.mxu0
    %5170 = vmatprep.mubr.bf16.mxu0 0
    %5171 = vmatmul.mubr.bf16.gmra.mxu0 %v5128
    %v5172 = vpop.f32.mrf.mxu0
    %v5173 = vadd.f32 0.0, %v5172
    %v5174 = vpop.f32.mrf.mxu0
    %v5175 = vpop.f32.mrf.mxu0
    %v5176 = vadd.f32 0.0, %v5175
    %v5177 = vpop.f32.mrf.mxu0
    %5178 = vdwg.mxu0
    %v5179 = vpack.c.bf16 %v5168, %v5165
    %v5180 = vpack.c.bf16 %v5176, %v5173
    %s5181 = scalar_lea.vmem %s5, 64
    %v5182 = vld [vmem:[%s5181] sm:$0xf]
    %v5183 = vld [vmem:[%s5181 + $0x4] sm:$0xf]
    %v5184 = vld [vmem:[%s5181 + $0x8] sm:$0xf]
    %v5185 = vld [vmem:[%s5181 + $0xc] sm:$0xf]
    %v5186 = vld [vmem:[%s5181 + $0x10] sm:$0xf]
    %v5187 = vld [vmem:[%s5181 + $0x14] sm:$0xf]
    %v5188 = vld [vmem:[%s5181 + $0x18] sm:$0xf]
    %v5189 = vld [vmem:[%s5181 + $0x1c] sm:$0xf]
    %v5190 = vld [vmem:[%s5181 + $0x20] sm:$0xf]
    %v5191 = vld [vmem:[%s5181 + $0x24] sm:$0xf]
    %v5192 = vld [vmem:[%s5181 + $0x28] sm:$0xf]
    %v5193 = vld [vmem:[%s5181 + $0x2c] sm:$0xf]
    %v5194 = vld [vmem:[%s5181 + $0x30] sm:$0xf]
    %v5195 = vld [vmem:[%s5181 + $0x34] sm:$0xf]
    %v5196 = vld [vmem:[%s5181 + $0x38] sm:$0xf]
    %v5197 = vld [vmem:[%s5181 + $0x3c] sm:$0xf]
    %v5214 = vunpack.c.l.b16 %v5182
    %v5215 = vunpack.c.l.b16 %v5183
    %v5216 = vunpack.c.l.b16 %v5184
    %v5217 = vunpack.c.l.b16 %v5185
    %v5218 = vunpack.c.l.b16 %v5186
    %v5219 = vunpack.c.l.b16 %v5187
    %v5220 = vunpack.c.l.b16 %v5188
    %v5221 = vunpack.c.l.b16 %v5189
    %v5222 = vunpack.c.l.b16 %v5190
    %v5223 = vunpack.c.l.b16 %v5191
    %v5224 = vunpack.c.l.b16 %v5192
    %v5225 = vunpack.c.l.b16 %v5193
    %v5226 = vunpack.c.l.b16 %v5194
    %v5227 = vunpack.c.l.b16 %v5195
    %v5228 = vunpack.c.l.b16 %v5196
    %v5229 = vunpack.c.l.b16 %v5197
    %v5230 = vpack.c.b16 %v5215, %v5214
    %v5231 = vpack.c.b16 %v5217, %v5216
    %v5232 = vpack.c.b16 %v5219, %v5218
    %v5233 = vpack.c.b16 %v5221, %v5220
    %v5234 = vpack.c.b16 %v5223, %v5222
    %v5235 = vpack.c.b16 %v5225, %v5224
    %v5236 = vpack.c.b16 %v5227, %v5226
    %v5237 = vpack.c.b16 %v5229, %v5228
    %5246 = vmatprep.subr.bf16.mxu0 0
    %5247 = vmatpush1.bf16.msra.mxu0 %v5237
    %5248 = vmatprep.subr.bf16.mxu0 0
    %5249 = vmatpush1.bf16.msra.mxu0 %v5236
    %5250 = vmatprep.subr.bf16.mxu0 0
    %5251 = vmatpush1.bf16.msra.mxu0 %v5235
    %5252 = vmatprep.subr.bf16.mxu0 0
    %5253 = vmatpush1.bf16.msra.mxu0 %v5234
    %5254 = vmatprep.subr.bf16.mxu0 0
    %5255 = vmatpush1.bf16.msra.mxu0 %v5233
    %5256 = vmatprep.subr.bf16.mxu0 0
    %5257 = vmatpush1.bf16.msra.mxu0 %v5232
    %5258 = vmatprep.subr.bf16.mxu0 0
    %5259 = vmatpush1.bf16.msra.mxu0 %v5231
    %5260 = vmatprep.subr.bf16.mxu0 0
    %5261 = vmatpush1.bf16.msra.mxu0 %v5230
    %5262 = vmatprep.subr.bf16.mxu0 0
    %5263 = vmatpush2.bf16.msra.mxu0 0
    %5264 = vmatprep.subr.bf16.mxu0 0
    %5265 = vmatpush2.bf16.msra.mxu0 0
    %5266 = vmatprep.subr.bf16.mxu0 0
    %5267 = vmatpush2.bf16.msra.mxu0 0
    %5268 = vmatprep.subr.bf16.mxu0 0
    %5269 = vmatpush2.bf16.msra.mxu0 0
    %5270 = vmatprep.subr.bf16.mxu0 0
    %5271 = vmatpush2.bf16.msra.mxu0 0
    %5272 = vmatprep.subr.bf16.mxu0 0
    %5273 = vmatpush2.bf16.msra.mxu0 0
    %5274 = vmatprep.subr.bf16.mxu0 0
    %5275 = vmatpush2.bf16.msra.mxu0 0
    %5276 = vmatprep.subr.bf16.mxu0 0
    %5277 = vmatpush2.bf16.msra.mxu0 0
    %5278 = vmatprep.mubr.bf16.mxu0 0
    %5279 = vmatmul.mubr.bf16.gmra.mxu0 %v5179
    %v5280 = vpop.f32.mrf.mxu0
    %v5281 = vadd.f32 0.0, %v5280
    %v5282 = vpop.f32.mrf.mxu0
    %v5283 = vpop.f32.mrf.mxu0
    %v5284 = vadd.f32 0.0, %v5283
    %v5285 = vpop.f32.mrf.mxu0
    %5286 = vmatprep.mubr.bf16.mxu0 0
    %5287 = vmatmul.mubr.bf16.gmra.mxu0 %v5180
    %v5288 = vpop.f32.mrf.mxu0
    %v5289 = vadd.f32 0.0, %v5288
    %v5290 = vpop.f32.mrf.mxu0
    %v5291 = vpop.f32.mrf.mxu0
    %v5292 = vadd.f32 0.0, %v5291
    %v5293 = vpop.f32.mrf.mxu0
    %5294 = vdwg.mxu0
    %v5311 = vunpack.c.l.b16 %v5093
    %v5312 = vunpack.c.l.b16 %v5094
    %v5313 = vunpack.c.l.b16 %v5095
    %v5314 = vunpack.c.l.b16 %v5096
    %v5315 = vunpack.c.l.b16 %v5097
    %v5316 = vunpack.c.l.b16 %v5098
    %v5317 = vunpack.c.l.b16 %v5099
    %v5318 = vunpack.c.l.b16 %v5100
    %v5319 = vunpack.c.l.b16 %v5101
    %v5320 = vunpack.c.l.b16 %v5102
    %v5321 = vunpack.c.l.b16 %v5103
    %v5322 = vunpack.c.l.b16 %v5104
    %v5323 = vunpack.c.l.b16 %v5105
    %v5324 = vunpack.c.l.b16 %v5106
    %v5325 = vunpack.c.l.b16 %v5107
    %v5326 = vunpack.c.l.b16 %v5108
    %v5327 = vpack.c.b16 %v5312, %v5311
    %v5328 = vpack.c.b16 %v5314, %v5313
    %v5329 = vpack.c.b16 %v5316, %v5315
    %v5330 = vpack.c.b16 %v5318, %v5317
    %v5331 = vpack.c.b16 %v5320, %v5319
    %v5332 = vpack.c.b16 %v5322, %v5321
    %v5333 = vpack.c.b16 %v5324, %v5323
    %v5334 = vpack.c.b16 %v5326, %v5325
    %5343 = vmatprep.subr.bf16.mxu0 0
    %5344 = vmatpush1.bf16.msra.mxu0 %v5334
    %5345 = vmatprep.subr.bf16.mxu0 0
    %5346 = vmatpush1.bf16.msra.mxu0 %v5333
    %5347 = vmatprep.subr.bf16.mxu0 0
    %5348 = vmatpush1.bf16.msra.mxu0 %v5332
    %5349 = vmatprep.subr.bf16.mxu0 0
    %5350 = vmatpush1.bf16.msra.mxu0 %v5331
    %5351 = vmatprep.subr.bf16.mxu0 0
    %5352 = vmatpush1.bf16.msra.mxu0 %v5330
    %5353 = vmatprep.subr.bf16.mxu0 0
    %5354 = vmatpush1.bf16.msra.mxu0 %v5329
    %5355 = vmatprep.subr.bf16.mxu0 0
    %5356 = vmatpush1.bf16.msra.mxu0 %v5328
    %5357 = vmatprep.subr.bf16.mxu0 0
    %5358 = vmatpush1.bf16.msra.mxu0 %v5327
    %5359 = vmatprep.subr.bf16.mxu0 0
    %5360 = vmatpush2.bf16.msra.mxu0 0
    %5361 = vmatprep.subr.bf16.mxu0 0
    %5362 = vmatpush2.bf16.msra.mxu0 0
    %5363 = vmatprep.subr.bf16.mxu0 0
    %5364 = vmatpush2.bf16.msra.mxu0 0
    %5365 = vmatprep.subr.bf16.mxu0 0
    %5366 = vmatpush2.bf16.msra.mxu0 0
    %5367 = vmatprep.subr.bf16.mxu0 0
    %5368 = vmatpush2.bf16.msra.mxu0 0
    %5369 = vmatprep.subr.bf16.mxu0 0
    %5370 = vmatpush2.bf16.msra.mxu0 0
    %5371 = vmatprep.subr.bf16.mxu0 0
    %5372 = vmatpush2.bf16.msra.mxu0 0
    %5373 = vmatprep.subr.bf16.mxu0 0
    %5374 = vmatpush2.bf16.msra.mxu0 0
    %5375 = vmatprep.mubr.bf16.mxu0 0
    %5376 = vmatmul.mubr.bf16.gmra.mxu0 %v5091
    %v5377 = vpop.f32.mrf.mxu0
    %v5378 = vadd.f32 %v5281, %v5377
    %v5379 = vpop.f32.mrf.mxu0
    %v5380 = vpop.f32.mrf.mxu0
    %v5381 = vadd.f32 %v5284, %v5380
    %v5382 = vpop.f32.mrf.mxu0
    %5383 = vmatprep.mubr.bf16.mxu0 0
    %5384 = vmatmul.mubr.bf16.gmra.mxu0 %v5092
    %v5385 = vpop.f32.mrf.mxu0
    %v5386 = vadd.f32 %v5289, %v5385
    %v5387 = vpop.f32.mrf.mxu0
    %v5388 = vpop.f32.mrf.mxu0
    %v5389 = vadd.f32 %v5292, %v5388
    %v5390 = vpop.f32.mrf.mxu0
    %5391 = vdwg.mxu0
    %s5392 = scalar_lea.vmem %s4, 32
    %v5393 = vld [vmem:[%s5392] sm:$0xf]
    %v5394 = vld [vmem:[%s5392 + $0x4] sm:$0xf]
    %v5395 = vld [vmem:[%s5392 + $0x8] sm:$0xf]
    %v5396 = vld [vmem:[%s5392 + $0xc] sm:$0xf]
    %v5401 = vunpack.c.l.b16 %v5393
    %v5402 = vunpack.c.l.b16 %v5394
    %v5403 = vunpack.c.l.b16 %v5395
    %v5404 = vunpack.c.l.b16 %v5396
    %v5405 = vpack.c.b16 %v5402, %v5401
    %v5406 = vpack.c.b16 %v5404, %v5403
    %v5408 = vsel %vm5035, %v5405, 0
    %v5411 = vsel %vm5035, %v5406, 0
    %5413 = vmatprep.subr.bf16.mxu0 0
    %5414 = vmatpush1.bf16.msra.mxu0 0
    %5415 = vmatprep.subr.bf16.mxu0 0
    %5416 = vmatpush1.bf16.msra.mxu0 %v5020
    %5417 = vmatprep.subr.bf16.mxu0 0
    %5418 = vmatpush1.bf16.msra.mxu0 %v5019
    %5419 = vmatprep.subr.bf16.mxu0 0
    %5420 = vmatpush1.bf16.msra.mxu0 %v5018
    %5421 = vmatprep.subr.bf16.mxu0 0
    %5422 = vmatpush1.bf16.msra.mxu0 %v5017
    %5423 = vmatprep.subr.bf16.mxu0 0
    %5424 = vmatpush1.bf16.msra.mxu0 %v5016
    %5425 = vmatprep.subr.bf16.mxu0 0
    %5426 = vmatpush1.bf16.msra.mxu0 %v5015
    %5427 = vmatprep.subr.bf16.mxu0 0
    %5428 = vmatpush1.bf16.msra.mxu0 %v5014
    %5429 = vmatprep.subr.bf16.mxu0 0
    %5430 = vmatpush2.bf16.msra.mxu0 0
    %5431 = vmatprep.subr.bf16.mxu0 0
    %5432 = vmatpush2.bf16.msra.mxu0 0
    %5433 = vmatprep.subr.bf16.mxu0 0
    %5434 = vmatpush2.bf16.msra.mxu0 0
    %5435 = vmatprep.subr.bf16.mxu0 0
    %5436 = vmatpush2.bf16.msra.mxu0 0
    %5437 = vmatprep.subr.bf16.mxu0 0
    %5438 = vmatpush2.bf16.msra.mxu0 0
    %5439 = vmatprep.subr.bf16.mxu0 0
    %5440 = vmatpush2.bf16.msra.mxu0 0
    %5441 = vmatprep.subr.bf16.mxu0 0
    %5442 = vmatpush2.bf16.msra.mxu0 0
    %5443 = vmatprep.subr.bf16.mxu0 0
    %5444 = vmatpush2.bf16.msra.mxu0 0
    %5445 = vmatprep.mubr.bf16.mxu0 0
    %5446 = vmatmul.mubr.bf16.gmra.mxu0 %v5408
    %v5447 = vpop.f32.mrf.mxu0
    %v5448 = vadd.f32 0.0, %v5447
    %v5449 = vpop.f32.mrf.mxu0
    %v5450 = vpop.f32.mrf.mxu0
    %v5451 = vadd.f32 0.0, %v5450
    %v5452 = vpop.f32.mrf.mxu0
    %5453 = vmatprep.mubr.bf16.mxu0 0
    %5454 = vmatmul.mubr.bf16.gmra.mxu0 %v5411
    %v5455 = vpop.f32.mrf.mxu0
    %v5456 = vadd.f32 0.0, %v5455
    %v5457 = vpop.f32.mrf.mxu0
    %v5458 = vpop.f32.mrf.mxu0
    %v5459 = vadd.f32 0.0, %v5458
    %v5460 = vpop.f32.mrf.mxu0
    %5461 = vdwg.mxu0
    %v5462 = vpack.c.bf16 %v5451, %v5448
    %v5463 = vpack.c.bf16 %v5459, %v5456
    %s5464 = scalar_lea.vmem %s5, 128
    %v5465 = vld [vmem:[%s5464] sm:$0xf]
    %v5466 = vld [vmem:[%s5464 + $0x4] sm:$0xf]
    %v5467 = vld [vmem:[%s5464 + $0x8] sm:$0xf]
    %v5468 = vld [vmem:[%s5464 + $0xc] sm:$0xf]
    %v5469 = vld [vmem:[%s5464 + $0x10] sm:$0xf]
    %v5470 = vld [vmem:[%s5464 + $0x14] sm:$0xf]
    %v5471 = vld [vmem:[%s5464 + $0x18] sm:$0xf]
    %v5472 = vld [vmem:[%s5464 + $0x1c] sm:$0xf]
    %v5473 = vld [vmem:[%s5464 + $0x20] sm:$0xf]
    %v5474 = vld [vmem:[%s5464 + $0x24] sm:$0xf]
    %v5475 = vld [vmem:[%s5464 + $0x28] sm:$0xf]
    %v5476 = vld [vmem:[%s5464 + $0x2c] sm:$0xf]
    %v5477 = vld [vmem:[%s5464 + $0x30] sm:$0xf]
    %v5478 = vld [vmem:[%s5464 + $0x34] sm:$0xf]
    %v5479 = vld [vmem:[%s5464 + $0x38] sm:$0xf]
    %v5480 = vld [vmem:[%s5464 + $0x3c] sm:$0xf]
    %v5497 = vunpack.c.l.b16 %v5465
    %v5498 = vunpack.c.l.b16 %v5466
    %v5499 = vunpack.c.l.b16 %v5467
    %v5500 = vunpack.c.l.b16 %v5468
    %v5501 = vunpack.c.l.b16 %v5469
    %v5502 = vunpack.c.l.b16 %v5470
    %v5503 = vunpack.c.l.b16 %v5471
    %v5504 = vunpack.c.l.b16 %v5472
    %v5505 = vunpack.c.l.b16 %v5473
    %v5506 = vunpack.c.l.b16 %v5474
    %v5507 = vunpack.c.l.b16 %v5475
    %v5508 = vunpack.c.l.b16 %v5476
    %v5509 = vunpack.c.l.b16 %v5477
    %v5510 = vunpack.c.l.b16 %v5478
    %v5511 = vunpack.c.l.b16 %v5479
    %v5512 = vunpack.c.l.b16 %v5480
    %v5513 = vpack.c.b16 %v5498, %v5497
    %v5514 = vpack.c.b16 %v5500, %v5499
    %v5515 = vpack.c.b16 %v5502, %v5501
    %v5516 = vpack.c.b16 %v5504, %v5503
    %v5517 = vpack.c.b16 %v5506, %v5505
    %v5518 = vpack.c.b16 %v5508, %v5507
    %v5519 = vpack.c.b16 %v5510, %v5509
    %v5520 = vpack.c.b16 %v5512, %v5511
    %5529 = vmatprep.subr.bf16.mxu0 0
    %5530 = vmatpush1.bf16.msra.mxu0 %v5520
    %5531 = vmatprep.subr.bf16.mxu0 0
    %5532 = vmatpush1.bf16.msra.mxu0 %v5519
    %5533 = vmatprep.subr.bf16.mxu0 0
    %5534 = vmatpush1.bf16.msra.mxu0 %v5518
    %5535 = vmatprep.subr.bf16.mxu0 0
    %5536 = vmatpush1.bf16.msra.mxu0 %v5517
    %5537 = vmatprep.subr.bf16.mxu0 0
    %5538 = vmatpush1.bf16.msra.mxu0 %v5516
    %5539 = vmatprep.subr.bf16.mxu0 0
    %5540 = vmatpush1.bf16.msra.mxu0 %v5515
    %5541 = vmatprep.subr.bf16.mxu0 0
    %5542 = vmatpush1.bf16.msra.mxu0 %v5514
    %5543 = vmatprep.subr.bf16.mxu0 0
    %5544 = vmatpush1.bf16.msra.mxu0 %v5513
    %5545 = vmatprep.subr.bf16.mxu0 0
    %5546 = vmatpush2.bf16.msra.mxu0 0
    %5547 = vmatprep.subr.bf16.mxu0 0
    %5548 = vmatpush2.bf16.msra.mxu0 0
    %5549 = vmatprep.subr.bf16.mxu0 0
    %5550 = vmatpush2.bf16.msra.mxu0 0
    %5551 = vmatprep.subr.bf16.mxu0 0
    %5552 = vmatpush2.bf16.msra.mxu0 0
    %5553 = vmatprep.subr.bf16.mxu0 0
    %5554 = vmatpush2.bf16.msra.mxu0 0
    %5555 = vmatprep.subr.bf16.mxu0 0
    %5556 = vmatpush2.bf16.msra.mxu0 0
    %5557 = vmatprep.subr.bf16.mxu0 0
    %5558 = vmatpush2.bf16.msra.mxu0 0
    %5559 = vmatprep.subr.bf16.mxu0 0
    %5560 = vmatpush2.bf16.msra.mxu0 0
    %5561 = vmatprep.mubr.bf16.mxu0 0
    %5562 = vmatmul.mubr.bf16.gmra.mxu0 %v5462
    %v5563 = vpop.f32.mrf.mxu0
    %v5564 = vadd.f32 0.0, %v5563
    %v5565 = vpop.f32.mrf.mxu0
    %v5566 = vpop.f32.mrf.mxu0
    %v5567 = vadd.f32 0.0, %v5566
    %v5568 = vpop.f32.mrf.mxu0
    %5569 = vmatprep.mubr.bf16.mxu0 0
    %5570 = vmatmul.mubr.bf16.gmra.mxu0 %v5463
    %v5571 = vpop.f32.mrf.mxu0
    %v5572 = vadd.f32 0.0, %v5571
    %v5573 = vpop.f32.mrf.mxu0
    %v5574 = vpop.f32.mrf.mxu0
    %v5575 = vadd.f32 0.0, %v5574
    %v5576 = vpop.f32.mrf.mxu0
    %5577 = vdwg.mxu0
    %v5578 = vadd.f32 %v5378, %v5564
    %v5579 = vadd.f32 %v5381, %v5567
    %v5580 = vadd.f32 %v5386, %v5572
    %v5581 = vadd.f32 %v5389, %v5575
    %s5582 = scalar_lea.vmem %s4, 48
    %v5583 = vld [vmem:[%s5582] sm:$0xf]
    %v5584 = vld [vmem:[%s5582 + $0x4] sm:$0xf]
    %v5585 = vld [vmem:[%s5582 + $0x8] sm:$0xf]
    %v5586 = vld [vmem:[%s5582 + $0xc] sm:$0xf]
    %v5591 = vunpack.c.l.b16 %v5583
    %v5592 = vunpack.c.l.b16 %v5584
    %v5593 = vunpack.c.l.b16 %v5585
    %v5594 = vunpack.c.l.b16 %v5586
    %v5595 = vpack.c.b16 %v5592, %v5591
    %v5596 = vpack.c.b16 %v5594, %v5593
    %v5598 = vsel %vm5035, %v5595, 0
    %v5601 = vsel %vm5035, %v5596, 0
    %5603 = vmatprep.subr.bf16.mxu0 0
    %5604 = vmatpush1.bf16.msra.mxu0 0
    %5605 = vmatprep.subr.bf16.mxu0 0
    %5606 = vmatpush1.bf16.msra.mxu0 %v5020
    %5607 = vmatprep.subr.bf16.mxu0 0
    %5608 = vmatpush1.bf16.msra.mxu0 %v5019
    %5609 = vmatprep.subr.bf16.mxu0 0
    %5610 = vmatpush1.bf16.msra.mxu0 %v5018
    %5611 = vmatprep.subr.bf16.mxu0 0
    %5612 = vmatpush1.bf16.msra.mxu0 %v5017
    %5613 = vmatprep.subr.bf16.mxu0 0
    %5614 = vmatpush1.bf16.msra.mxu0 %v5016
    %5615 = vmatprep.subr.bf16.mxu0 0
    %5616 = vmatpush1.bf16.msra.mxu0 %v5015
    %5617 = vmatprep.subr.bf16.mxu0 0
    %5618 = vmatpush1.bf16.msra.mxu0 %v5014
    %5619 = vmatprep.subr.bf16.mxu0 0
    %5620 = vmatpush2.bf16.msra.mxu0 0
    %5621 = vmatprep.subr.bf16.mxu0 0
    %5622 = vmatpush2.bf16.msra.mxu0 0
    %5623 = vmatprep.subr.bf16.mxu0 0
    %5624 = vmatpush2.bf16.msra.mxu0 0
    %5625 = vmatprep.subr.bf16.mxu0 0
    %5626 = vmatpush2.bf16.msra.mxu0 0
    %5627 = vmatprep.subr.bf16.mxu0 0
    %5628 = vmatpush2.bf16.msra.mxu0 0
    %5629 = vmatprep.subr.bf16.mxu0 0
    %5630 = vmatpush2.bf16.msra.mxu0 0
    %5631 = vmatprep.subr.bf16.mxu0 0
    %5632 = vmatpush2.bf16.msra.mxu0 0
    %5633 = vmatprep.subr.bf16.mxu0 0
    %5634 = vmatpush2.bf16.msra.mxu0 0
    %5635 = vmatprep.mubr.bf16.mxu0 0
    %5636 = vmatmul.mubr.bf16.gmra.mxu0 %v5598
    %v5637 = vpop.f32.mrf.mxu0
    %v5638 = vadd.f32 0.0, %v5637
    %v5639 = vpop.f32.mrf.mxu0
    %v5640 = vpop.f32.mrf.mxu0
    %v5641 = vadd.f32 0.0, %v5640
    %v5642 = vpop.f32.mrf.mxu0
    %5643 = vmatprep.mubr.bf16.mxu0 0
    %5644 = vmatmul.mubr.bf16.gmra.mxu0 %v5601
    %v5645 = vpop.f32.mrf.mxu0
    %v5646 = vadd.f32 0.0, %v5645
    %v5647 = vpop.f32.mrf.mxu0
    %v5648 = vpop.f32.mrf.mxu0
    %v5649 = vadd.f32 0.0, %v5648
    %v5650 = vpop.f32.mrf.mxu0
    %5651 = vdwg.mxu0
    %v5652 = vpack.c.bf16 %v5641, %v5638
    %v5653 = vpack.c.bf16 %v5649, %v5646
    %s5654 = scalar_lea.vmem %s5, 192
    %v5655 = vld [vmem:[%s5654] sm:$0xf]
    %v5656 = vld [vmem:[%s5654 + $0x4] sm:$0xf]
    %v5657 = vld [vmem:[%s5654 + $0x8] sm:$0xf]
    %v5658 = vld [vmem:[%s5654 + $0xc] sm:$0xf]
    %v5659 = vld [vmem:[%s5654 + $0x10] sm:$0xf]
    %v5660 = vld [vmem:[%s5654 + $0x14] sm:$0xf]
    %v5661 = vld [vmem:[%s5654 + $0x18] sm:$0xf]
    %v5662 = vld [vmem:[%s5654 + $0x1c] sm:$0xf]
    %v5663 = vld [vmem:[%s5654 + $0x20] sm:$0xf]
    %v5664 = vld [vmem:[%s5654 + $0x24] sm:$0xf]
    %v5665 = vld [vmem:[%s5654 + $0x28] sm:$0xf]
    %v5666 = vld [vmem:[%s5654 + $0x2c] sm:$0xf]
    %v5667 = vld [vmem:[%s5654 + $0x30] sm:$0xf]
    %v5668 = vld [vmem:[%s5654 + $0x34] sm:$0xf]
    %v5669 = vld [vmem:[%s5654 + $0x38] sm:$0xf]
    %v5670 = vld [vmem:[%s5654 + $0x3c] sm:$0xf]
    %v5687 = vunpack.c.l.b16 %v5655
    %v5688 = vunpack.c.l.b16 %v5656
    %v5689 = vunpack.c.l.b16 %v5657
    %v5690 = vunpack.c.l.b16 %v5658
    %v5691 = vunpack.c.l.b16 %v5659
    %v5692 = vunpack.c.l.b16 %v5660
    %v5693 = vunpack.c.l.b16 %v5661
    %v5694 = vunpack.c.l.b16 %v5662
    %v5695 = vunpack.c.l.b16 %v5663
    %v5696 = vunpack.c.l.b16 %v5664
    %v5697 = vunpack.c.l.b16 %v5665
    %v5698 = vunpack.c.l.b16 %v5666
    %v5699 = vunpack.c.l.b16 %v5667
    %v5700 = vunpack.c.l.b16 %v5668
    %v5701 = vunpack.c.l.b16 %v5669
    %v5702 = vunpack.c.l.b16 %v5670
    %v5703 = vpack.c.b16 %v5688, %v5687
    %v5704 = vpack.c.b16 %v5690, %v5689
    %v5705 = vpack.c.b16 %v5692, %v5691
    %v5706 = vpack.c.b16 %v5694, %v5693
    %v5707 = vpack.c.b16 %v5696, %v5695
    %v5708 = vpack.c.b16 %v5698, %v5697
    %v5709 = vpack.c.b16 %v5700, %v5699
    %v5710 = vpack.c.b16 %v5702, %v5701
    %5719 = vmatprep.subr.bf16.mxu0 0
    %5720 = vmatpush1.bf16.msra.mxu0 %v5710
    %5721 = vmatprep.subr.bf16.mxu0 0
    %5722 = vmatpush1.bf16.msra.mxu0 %v5709
    %5723 = vmatprep.subr.bf16.mxu0 0
    %5724 = vmatpush1.bf16.msra.mxu0 %v5708
    %5725 = vmatprep.subr.bf16.mxu0 0
    %5726 = vmatpush1.bf16.msra.mxu0 %v5707
    %5727 = vmatprep.subr.bf16.mxu0 0
    %5728 = vmatpush1.bf16.msra.mxu0 %v5706
    %5729 = vmatprep.subr.bf16.mxu0 0
    %5730 = vmatpush1.bf16.msra.mxu0 %v5705
    %5731 = vmatprep.subr.bf16.mxu0 0
    %5732 = vmatpush1.bf16.msra.mxu0 %v5704
    %5733 = vmatprep.subr.bf16.mxu0 0
    %5734 = vmatpush1.bf16.msra.mxu0 %v5703
    %5735 = vmatprep.subr.bf16.mxu0 0
    %5736 = vmatpush2.bf16.msra.mxu0 0
    %5737 = vmatprep.subr.bf16.mxu0 0
    %5738 = vmatpush2.bf16.msra.mxu0 0
    %5739 = vmatprep.subr.bf16.mxu0 0
    %5740 = vmatpush2.bf16.msra.mxu0 0
    %5741 = vmatprep.subr.bf16.mxu0 0
    %5742 = vmatpush2.bf16.msra.mxu0 0
    %5743 = vmatprep.subr.bf16.mxu0 0
    %5744 = vmatpush2.bf16.msra.mxu0 0
    %5745 = vmatprep.subr.bf16.mxu0 0
    %5746 = vmatpush2.bf16.msra.mxu0 0
    %5747 = vmatprep.subr.bf16.mxu0 0
    %5748 = vmatpush2.bf16.msra.mxu0 0
    %5749 = vmatprep.subr.bf16.mxu0 0
    %5750 = vmatpush2.bf16.msra.mxu0 0
    %5751 = vmatprep.mubr.bf16.mxu0 0
    %5752 = vmatmul.mubr.bf16.gmra.mxu0 %v5652
    %v5753 = vpop.f32.mrf.mxu0
    %v5754 = vadd.f32 0.0, %v5753
    %v5755 = vpop.f32.mrf.mxu0
    %v5756 = vpop.f32.mrf.mxu0
    %v5757 = vadd.f32 0.0, %v5756
    %v5758 = vpop.f32.mrf.mxu0
    %5759 = vmatprep.mubr.bf16.mxu0 0
    %5760 = vmatmul.mubr.bf16.gmra.mxu0 %v5653
    %v5761 = vpop.f32.mrf.mxu0
    %v5762 = vadd.f32 0.0, %v5761
    %v5763 = vpop.f32.mrf.mxu0
    %v5764 = vpop.f32.mrf.mxu0
    %v5765 = vadd.f32 0.0, %v5764
    %v5766 = vpop.f32.mrf.mxu0
    %5767 = vdwg.mxu0
    %v5768 = vadd.f32 %v5578, %v5754
    %v5769 = vadd.f32 %v5579, %v5757
    %v5770 = vadd.f32 %v5580, %v5762
    %v5771 = vadd.f32 %v5581, %v5765
    %s5772 = scalar_lea.vmem %s4, 64
    %v5773 = vld [vmem:[%s5772] sm:$0xf]
    %v5774 = vld [vmem:[%s5772 + $0x4] sm:$0xf]
    %v5775 = vld [vmem:[%s5772 + $0x8] sm:$0xf]
    %v5776 = vld [vmem:[%s5772 + $0xc] sm:$0xf]
    %v5781 = vunpack.c.l.b16 %v5773
    %v5782 = vunpack.c.l.b16 %v5774
    %v5783 = vunpack.c.l.b16 %v5775
    %v5784 = vunpack.c.l.b16 %v5776
    %v5785 = vpack.c.b16 %v5782, %v5781
    %v5786 = vpack.c.b16 %v5784, %v5783
    %v5788 = vsel %vm5035, %v5785, 0
    %v5791 = vsel %vm5035, %v5786, 0
    %5793 = vmatprep.subr.bf16.mxu0 0
    %5794 = vmatpush1.bf16.msra.mxu0 0
    %5795 = vmatprep.subr.bf16.mxu0 0
    %5796 = vmatpush1.bf16.msra.mxu0 %v5020
    %5797 = vmatprep.subr.bf16.mxu0 0
    %5798 = vmatpush1.bf16.msra.mxu0 %v5019
    %5799 = vmatprep.subr.bf16.mxu0 0
    %5800 = vmatpush1.bf16.msra.mxu0 %v5018
    %5801 = vmatprep.subr.bf16.mxu0 0
    %5802 = vmatpush1.bf16.msra.mxu0 %v5017
    %5803 = vmatprep.subr.bf16.mxu0 0
    %5804 = vmatpush1.bf16.msra.mxu0 %v5016
    %5805 = vmatprep.subr.bf16.mxu0 0
    %5806 = vmatpush1.bf16.msra.mxu0 %v5015
    %5807 = vmatprep.subr.bf16.mxu0 0
    %5808 = vmatpush1.bf16.msra.mxu0 %v5014
    %5809 = vmatprep.subr.bf16.mxu0 0
    %5810 = vmatpush2.bf16.msra.mxu0 0
    %5811 = vmatprep.subr.bf16.mxu0 0
    %5812 = vmatpush2.bf16.msra.mxu0 0
    %5813 = vmatprep.subr.bf16.mxu0 0
    %5814 = vmatpush2.bf16.msra.mxu0 0
    %5815 = vmatprep.subr.bf16.mxu0 0
    %5816 = vmatpush2.bf16.msra.mxu0 0
    %5817 = vmatprep.subr.bf16.mxu0 0
    %5818 = vmatpush2.bf16.msra.mxu0 0
    %5819 = vmatprep.subr.bf16.mxu0 0
    %5820 = vmatpush2.bf16.msra.mxu0 0
    %5821 = vmatprep.subr.bf16.mxu0 0
    %5822 = vmatpush2.bf16.msra.mxu0 0
    %5823 = vmatprep.subr.bf16.mxu0 0
    %5824 = vmatpush2.bf16.msra.mxu0 0
    %5825 = vmatprep.mubr.bf16.mxu0 0
    %5826 = vmatmul.mubr.bf16.gmra.mxu0 %v5788
    %v5827 = vpop.f32.mrf.mxu0
    %v5828 = vadd.f32 0.0, %v5827
    %v5829 = vpop.f32.mrf.mxu0
    %v5830 = vpop.f32.mrf.mxu0
    %v5831 = vadd.f32 0.0, %v5830
    %v5832 = vpop.f32.mrf.mxu0
    %5833 = vmatprep.mubr.bf16.mxu0 0
    %5834 = vmatmul.mubr.bf16.gmra.mxu0 %v5791
    %v5835 = vpop.f32.mrf.mxu0
    %v5836 = vadd.f32 0.0, %v5835
    %v5837 = vpop.f32.mrf.mxu0
    %v5838 = vpop.f32.mrf.mxu0
    %v5839 = vadd.f32 0.0, %v5838
    %v5840 = vpop.f32.mrf.mxu0
    %5841 = vdwg.mxu0
    %v5842 = vpack.c.bf16 %v5831, %v5828
    %v5843 = vpack.c.bf16 %v5839, %v5836
    %s5844 = scalar_lea.vmem %s5, 256
    %v5845 = vld [vmem:[%s5844] sm:$0xf]
    %v5846 = vld [vmem:[%s5844 + $0x4] sm:$0xf]
    %v5847 = vld [vmem:[%s5844 + $0x8] sm:$0xf]
    %v5848 = vld [vmem:[%s5844 + $0xc] sm:$0xf]
    %v5849 = vld [vmem:[%s5844 + $0x10] sm:$0xf]
    %v5850 = vld [vmem:[%s5844 + $0x14] sm:$0xf]
    %v5851 = vld [vmem:[%s5844 + $0x18] sm:$0xf]
    %v5852 = vld [vmem:[%s5844 + $0x1c] sm:$0xf]
    %v5853 = vld [vmem:[%s5844 + $0x20] sm:$0xf]
    %v5854 = vld [vmem:[%s5844 + $0x24] sm:$0xf]
    %v5855 = vld [vmem:[%s5844 + $0x28] sm:$0xf]
    %v5856 = vld [vmem:[%s5844 + $0x2c] sm:$0xf]
    %v5857 = vld [vmem:[%s5844 + $0x30] sm:$0xf]
    %v5858 = vld [vmem:[%s5844 + $0x34] sm:$0xf]
    %v5859 = vld [vmem:[%s5844 + $0x38] sm:$0xf]
    %v5860 = vld [vmem:[%s5844 + $0x3c] sm:$0xf]
    %v5877 = vunpack.c.l.b16 %v5845
    %v5878 = vunpack.c.l.b16 %v5846
    %v5879 = vunpack.c.l.b16 %v5847
    %v5880 = vunpack.c.l.b16 %v5848
    %v5881 = vunpack.c.l.b16 %v5849
    %v5882 = vunpack.c.l.b16 %v5850
    %v5883 = vunpack.c.l.b16 %v5851
    %v5884 = vunpack.c.l.b16 %v5852
    %v5885 = vunpack.c.l.b16 %v5853
    %v5886 = vunpack.c.l.b16 %v5854
    %v5887 = vunpack.c.l.b16 %v5855
    %v5888 = vunpack.c.l.b16 %v5856
    %v5889 = vunpack.c.l.b16 %v5857
    %v5890 = vunpack.c.l.b16 %v5858
    %v5891 = vunpack.c.l.b16 %v5859
    %v5892 = vunpack.c.l.b16 %v5860
    %v5893 = vpack.c.b16 %v5878, %v5877
    %v5894 = vpack.c.b16 %v5880, %v5879
    %v5895 = vpack.c.b16 %v5882, %v5881
    %v5896 = vpack.c.b16 %v5884, %v5883
    %v5897 = vpack.c.b16 %v5886, %v5885
    %v5898 = vpack.c.b16 %v5888, %v5887
    %v5899 = vpack.c.b16 %v5890, %v5889
    %v5900 = vpack.c.b16 %v5892, %v5891
    %5909 = vmatprep.subr.bf16.mxu0 0
    %5910 = vmatpush1.bf16.msra.mxu0 %v5900
    %5911 = vmatprep.subr.bf16.mxu0 0
    %5912 = vmatpush1.bf16.msra.mxu0 %v5899
    %5913 = vmatprep.subr.bf16.mxu0 0
    %5914 = vmatpush1.bf16.msra.mxu0 %v5898
    %5915 = vmatprep.subr.bf16.mxu0 0
    %5916 = vmatpush1.bf16.msra.mxu0 %v5897
    %5917 = vmatprep.subr.bf16.mxu0 0
    %5918 = vmatpush1.bf16.msra.mxu0 %v5896
    %5919 = vmatprep.subr.bf16.mxu0 0
    %5920 = vmatpush1.bf16.msra.mxu0 %v5895
    %5921 = vmatprep.subr.bf16.mxu0 0
    %5922 = vmatpush1.bf16.msra.mxu0 %v5894
    %5923 = vmatprep.subr.bf16.mxu0 0
    %5924 = vmatpush1.bf16.msra.mxu0 %v5893
    %5925 = vmatprep.subr.bf16.mxu0 0
    %5926 = vmatpush2.bf16.msra.mxu0 0
    %5927 = vmatprep.subr.bf16.mxu0 0
    %5928 = vmatpush2.bf16.msra.mxu0 0
    %5929 = vmatprep.subr.bf16.mxu0 0
    %5930 = vmatpush2.bf16.msra.mxu0 0
    %5931 = vmatprep.subr.bf16.mxu0 0
    %5932 = vmatpush2.bf16.msra.mxu0 0
    %5933 = vmatprep.subr.bf16.mxu0 0
    %5934 = vmatpush2.bf16.msra.mxu0 0
    %5935 = vmatprep.subr.bf16.mxu0 0
    %5936 = vmatpush2.bf16.msra.mxu0 0
    %5937 = vmatprep.subr.bf16.mxu0 0
    %5938 = vmatpush2.bf16.msra.mxu0 0
    %5939 = vmatprep.subr.bf16.mxu0 0
    %5940 = vmatpush2.bf16.msra.mxu0 0
    %5941 = vmatprep.mubr.bf16.mxu0 0
    %5942 = vmatmul.mubr.bf16.gmra.mxu0 %v5842
    %v5943 = vpop.f32.mrf.mxu0
    %v5944 = vadd.f32 0.0, %v5943
    %v5945 = vpop.f32.mrf.mxu0
    %v5946 = vpop.f32.mrf.mxu0
    %v5947 = vadd.f32 0.0, %v5946
    %v5948 = vpop.f32.mrf.mxu0
    %5949 = vmatprep.mubr.bf16.mxu0 0
    %5950 = vmatmul.mubr.bf16.gmra.mxu0 %v5843
    %v5951 = vpop.f32.mrf.mxu0
    %v5952 = vadd.f32 0.0, %v5951
    %v5953 = vpop.f32.mrf.mxu0
    %v5954 = vpop.f32.mrf.mxu0
    %v5955 = vadd.f32 0.0, %v5954
    %v5956 = vpop.f32.mrf.mxu0
    %5957 = vdwg.mxu0
    %v5958 = vadd.f32 %v5768, %v5944
    %v5959 = vadd.f32 %v5769, %v5947
    %v5960 = vadd.f32 %v5770, %v5952
    %v5961 = vadd.f32 %v5771, %v5955
    %s5962 = scalar_lea.vmem %s4, 80
    %v5963 = vld [vmem:[%s5962] sm:$0xf]
    %v5964 = vld [vmem:[%s5962 + $0x4] sm:$0xf]
    %v5965 = vld [vmem:[%s5962 + $0x8] sm:$0xf]
    %v5966 = vld [vmem:[%s5962 + $0xc] sm:$0xf]
    %v5971 = vunpack.c.l.b16 %v5963
    %v5972 = vunpack.c.l.b16 %v5964
    %v5973 = vunpack.c.l.b16 %v5965
    %v5974 = vunpack.c.l.b16 %v5966
    %v5975 = vpack.c.b16 %v5972, %v5971
    %v5976 = vpack.c.b16 %v5974, %v5973
    %v5978 = vsel %vm5035, %v5975, 0
    %v5981 = vsel %vm5035, %v5976, 0
    %5983 = vmatprep.subr.bf16.mxu0 0
    %5984 = vmatpush1.bf16.msra.mxu0 0
    %5985 = vmatprep.subr.bf16.mxu0 0
    %5986 = vmatpush1.bf16.msra.mxu0 %v5020
    %5987 = vmatprep.subr.bf16.mxu0 0
    %5988 = vmatpush1.bf16.msra.mxu0 %v5019
    %5989 = vmatprep.subr.bf16.mxu0 0
    %5990 = vmatpush1.bf16.msra.mxu0 %v5018
    %5991 = vmatprep.subr.bf16.mxu0 0
    %5992 = vmatpush1.bf16.msra.mxu0 %v5017
    %5993 = vmatprep.subr.bf16.mxu0 0
    %5994 = vmatpush1.bf16.msra.mxu0 %v5016
    %5995 = vmatprep.subr.bf16.mxu0 0
    %5996 = vmatpush1.bf16.msra.mxu0 %v5015
    %5997 = vmatprep.subr.bf16.mxu0 0
    %5998 = vmatpush1.bf16.msra.mxu0 %v5014
    %5999 = vmatprep.subr.bf16.mxu0 0
    %6000 = vmatpush2.bf16.msra.mxu0 0
    %6001 = vmatprep.subr.bf16.mxu0 0
    %6002 = vmatpush2.bf16.msra.mxu0 0
    %6003 = vmatprep.subr.bf16.mxu0 0
    %6004 = vmatpush2.bf16.msra.mxu0 0
    %6005 = vmatprep.subr.bf16.mxu0 0
    %6006 = vmatpush2.bf16.msra.mxu0 0
    %6007 = vmatprep.subr.bf16.mxu0 0
    %6008 = vmatpush2.bf16.msra.mxu0 0
    %6009 = vmatprep.subr.bf16.mxu0 0
    %6010 = vmatpush2.bf16.msra.mxu0 0
    %6011 = vmatprep.subr.bf16.mxu0 0
    %6012 = vmatpush2.bf16.msra.mxu0 0
    %6013 = vmatprep.subr.bf16.mxu0 0
    %6014 = vmatpush2.bf16.msra.mxu0 0
    %6015 = vmatprep.mubr.bf16.mxu0 0
    %6016 = vmatmul.mubr.bf16.gmra.mxu0 %v5978
    %v6017 = vpop.f32.mrf.mxu0
    %v6018 = vadd.f32 0.0, %v6017
    %v6019 = vpop.f32.mrf.mxu0
    %v6020 = vpop.f32.mrf.mxu0
    %v6021 = vadd.f32 0.0, %v6020
    %v6022 = vpop.f32.mrf.mxu0
    %6023 = vmatprep.mubr.bf16.mxu0 0
    %6024 = vmatmul.mubr.bf16.gmra.mxu0 %v5981
    %v6025 = vpop.f32.mrf.mxu0
    %v6026 = vadd.f32 0.0, %v6025
    %v6027 = vpop.f32.mrf.mxu0
    %v6028 = vpop.f32.mrf.mxu0
    %v6029 = vadd.f32 0.0, %v6028
    %v6030 = vpop.f32.mrf.mxu0
    %6031 = vdwg.mxu0
    %v6032 = vpack.c.bf16 %v6021, %v6018
    %v6033 = vpack.c.bf16 %v6029, %v6026
    %s6034 = scalar_lea.vmem %s5, 320
    %v6035 = vld [vmem:[%s6034] sm:$0xf]
    %v6036 = vld [vmem:[%s6034 + $0x4] sm:$0xf]
    %v6037 = vld [vmem:[%s6034 + $0x8] sm:$0xf]
    %v6038 = vld [vmem:[%s6034 + $0xc] sm:$0xf]
    %v6039 = vld [vmem:[%s6034 + $0x10] sm:$0xf]
    %v6040 = vld [vmem:[%s6034 + $0x14] sm:$0xf]
    %v6041 = vld [vmem:[%s6034 + $0x18] sm:$0xf]
    %v6042 = vld [vmem:[%s6034 + $0x1c] sm:$0xf]
    %v6043 = vld [vmem:[%s6034 + $0x20] sm:$0xf]
    %v6044 = vld [vmem:[%s6034 + $0x24] sm:$0xf]
    %v6045 = vld [vmem:[%s6034 + $0x28] sm:$0xf]
    %v6046 = vld [vmem:[%s6034 + $0x2c] sm:$0xf]
    %v6047 = vld [vmem:[%s6034 + $0x30] sm:$0xf]
    %v6048 = vld [vmem:[%s6034 + $0x34] sm:$0xf]
    %v6049 = vld [vmem:[%s6034 + $0x38] sm:$0xf]
    %v6050 = vld [vmem:[%s6034 + $0x3c] sm:$0xf]
    %v6067 = vunpack.c.l.b16 %v6035
    %v6068 = vunpack.c.l.b16 %v6036
    %v6069 = vunpack.c.l.b16 %v6037
    %v6070 = vunpack.c.l.b16 %v6038
    %v6071 = vunpack.c.l.b16 %v6039
    %v6072 = vunpack.c.l.b16 %v6040
    %v6073 = vunpack.c.l.b16 %v6041
    %v6074 = vunpack.c.l.b16 %v6042
    %v6075 = vunpack.c.l.b16 %v6043
    %v6076 = vunpack.c.l.b16 %v6044
    %v6077 = vunpack.c.l.b16 %v6045
    %v6078 = vunpack.c.l.b16 %v6046
    %v6079 = vunpack.c.l.b16 %v6047
    %v6080 = vunpack.c.l.b16 %v6048
    %v6081 = vunpack.c.l.b16 %v6049
    %v6082 = vunpack.c.l.b16 %v6050
    %v6083 = vpack.c.b16 %v6068, %v6067
    %v6084 = vpack.c.b16 %v6070, %v6069
    %v6085 = vpack.c.b16 %v6072, %v6071
    %v6086 = vpack.c.b16 %v6074, %v6073
    %v6087 = vpack.c.b16 %v6076, %v6075
    %v6088 = vpack.c.b16 %v6078, %v6077
    %v6089 = vpack.c.b16 %v6080, %v6079
    %v6090 = vpack.c.b16 %v6082, %v6081
    %6099 = vmatprep.subr.bf16.mxu0 0
    %6100 = vmatpush1.bf16.msra.mxu0 %v6090
    %6101 = vmatprep.subr.bf16.mxu0 0
    %6102 = vmatpush1.bf16.msra.mxu0 %v6089
    %6103 = vmatprep.subr.bf16.mxu0 0
    %6104 = vmatpush1.bf16.msra.mxu0 %v6088
    %6105 = vmatprep.subr.bf16.mxu0 0
    %6106 = vmatpush1.bf16.msra.mxu0 %v6087
    %6107 = vmatprep.subr.bf16.mxu0 0
    %6108 = vmatpush1.bf16.msra.mxu0 %v6086
    %6109 = vmatprep.subr.bf16.mxu0 0
    %6110 = vmatpush1.bf16.msra.mxu0 %v6085
    %6111 = vmatprep.subr.bf16.mxu0 0
    %6112 = vmatpush1.bf16.msra.mxu0 %v6084
    %6113 = vmatprep.subr.bf16.mxu0 0
    %6114 = vmatpush1.bf16.msra.mxu0 %v6083
    %6115 = vmatprep.subr.bf16.mxu0 0
    %6116 = vmatpush2.bf16.msra.mxu0 0
    %6117 = vmatprep.subr.bf16.mxu0 0
    %6118 = vmatpush2.bf16.msra.mxu0 0
    %6119 = vmatprep.subr.bf16.mxu0 0
    %6120 = vmatpush2.bf16.msra.mxu0 0
    %6121 = vmatprep.subr.bf16.mxu0 0
    %6122 = vmatpush2.bf16.msra.mxu0 0
    %6123 = vmatprep.subr.bf16.mxu0 0
    %6124 = vmatpush2.bf16.msra.mxu0 0
    %6125 = vmatprep.subr.bf16.mxu0 0
    %6126 = vmatpush2.bf16.msra.mxu0 0
    %6127 = vmatprep.subr.bf16.mxu0 0
    %6128 = vmatpush2.bf16.msra.mxu0 0
    %6129 = vmatprep.subr.bf16.mxu0 0
    %6130 = vmatpush2.bf16.msra.mxu0 0
    %6131 = vmatprep.mubr.bf16.mxu0 0
    %6132 = vmatmul.mubr.bf16.gmra.mxu0 %v6032
    %v6133 = vpop.f32.mrf.mxu0
    %v6134 = vadd.f32 0.0, %v6133
    %v6135 = vpop.f32.mrf.mxu0
    %v6136 = vpop.f32.mrf.mxu0
    %v6137 = vadd.f32 0.0, %v6136
    %v6138 = vpop.f32.mrf.mxu0
    %6139 = vmatprep.mubr.bf16.mxu0 0
    %6140 = vmatmul.mubr.bf16.gmra.mxu0 %v6033
    %v6141 = vpop.f32.mrf.mxu0
    %v6142 = vadd.f32 0.0, %v6141
    %v6143 = vpop.f32.mrf.mxu0
    %v6144 = vpop.f32.mrf.mxu0
    %v6145 = vadd.f32 0.0, %v6144
    %v6146 = vpop.f32.mrf.mxu0
    %6147 = vdwg.mxu0
    %v6148 = vadd.f32 %v5958, %v6134
    %v6149 = vadd.f32 %v5959, %v6137
    %v6150 = vadd.f32 %v5960, %v6142
    %v6151 = vadd.f32 %v5961, %v6145
    %s6152 = scalar_lea.vmem %s4, 96
    %v6153 = vld [vmem:[%s6152] sm:$0xf]
    %v6154 = vld [vmem:[%s6152 + $0x4] sm:$0xf]
    %v6155 = vld [vmem:[%s6152 + $0x8] sm:$0xf]
    %v6156 = vld [vmem:[%s6152 + $0xc] sm:$0xf]
    %v6161 = vunpack.c.l.b16 %v6153
    %v6162 = vunpack.c.l.b16 %v6154
    %v6163 = vunpack.c.l.b16 %v6155
    %v6164 = vunpack.c.l.b16 %v6156
    %v6165 = vpack.c.b16 %v6162, %v6161
    %v6166 = vpack.c.b16 %v6164, %v6163
    %v6168 = vsel %vm5035, %v6165, 0
    %v6171 = vsel %vm5035, %v6166, 0
    %6173 = vmatprep.subr.bf16.mxu0 0
    %6174 = vmatpush1.bf16.msra.mxu0 0
    %6175 = vmatprep.subr.bf16.mxu0 0
    %6176 = vmatpush1.bf16.msra.mxu0 %v5020
    %6177 = vmatprep.subr.bf16.mxu0 0
    %6178 = vmatpush1.bf16.msra.mxu0 %v5019
    %6179 = vmatprep.subr.bf16.mxu0 0
    %6180 = vmatpush1.bf16.msra.mxu0 %v5018
    %6181 = vmatprep.subr.bf16.mxu0 0
    %6182 = vmatpush1.bf16.msra.mxu0 %v5017
    %6183 = vmatprep.subr.bf16.mxu0 0
    %6184 = vmatpush1.bf16.msra.mxu0 %v5016
    %6185 = vmatprep.subr.bf16.mxu0 0
    %6186 = vmatpush1.bf16.msra.mxu0 %v5015
    %6187 = vmatprep.subr.bf16.mxu0 0
    %6188 = vmatpush1.bf16.msra.mxu0 %v5014
    %6189 = vmatprep.subr.bf16.mxu0 0
    %6190 = vmatpush2.bf16.msra.mxu0 0
    %6191 = vmatprep.subr.bf16.mxu0 0
    %6192 = vmatpush2.bf16.msra.mxu0 0
    %6193 = vmatprep.subr.bf16.mxu0 0
    %6194 = vmatpush2.bf16.msra.mxu0 0
    %6195 = vmatprep.subr.bf16.mxu0 0
    %6196 = vmatpush2.bf16.msra.mxu0 0
    %6197 = vmatprep.subr.bf16.mxu0 0
    %6198 = vmatpush2.bf16.msra.mxu0 0
    %6199 = vmatprep.subr.bf16.mxu0 0
    %6200 = vmatpush2.bf16.msra.mxu0 0
    %6201 = vmatprep.subr.bf16.mxu0 0
    %6202 = vmatpush2.bf16.msra.mxu0 0
    %6203 = vmatprep.subr.bf16.mxu0 0
    %6204 = vmatpush2.bf16.msra.mxu0 0
    %6205 = vmatprep.mubr.bf16.mxu0 0
    %6206 = vmatmul.mubr.bf16.gmra.mxu0 %v6168
    %v6207 = vpop.f32.mrf.mxu0
    %v6208 = vadd.f32 0.0, %v6207
    %v6209 = vpop.f32.mrf.mxu0
    %v6210 = vpop.f32.mrf.mxu0
    %v6211 = vadd.f32 0.0, %v6210
    %v6212 = vpop.f32.mrf.mxu0
    %6213 = vmatprep.mubr.bf16.mxu0 0
    %6214 = vmatmul.mubr.bf16.gmra.mxu0 %v6171
    %v6215 = vpop.f32.mrf.mxu0
    %v6216 = vadd.f32 0.0, %v6215
    %v6217 = vpop.f32.mrf.mxu0
    %v6218 = vpop.f32.mrf.mxu0
    %v6219 = vadd.f32 0.0, %v6218
    %v6220 = vpop.f32.mrf.mxu0
    %6221 = vdwg.mxu0
    %v6222 = vpack.c.bf16 %v6211, %v6208
    %v6223 = vpack.c.bf16 %v6219, %v6216
    %s6224 = scalar_lea.vmem %s5, 384
    %v6225 = vld [vmem:[%s6224] sm:$0xf]
    %v6226 = vld [vmem:[%s6224 + $0x4] sm:$0xf]
    %v6227 = vld [vmem:[%s6224 + $0x8] sm:$0xf]
    %v6228 = vld [vmem:[%s6224 + $0xc] sm:$0xf]
    %v6229 = vld [vmem:[%s6224 + $0x10] sm:$0xf]
    %v6230 = vld [vmem:[%s6224 + $0x14] sm:$0xf]
    %v6231 = vld [vmem:[%s6224 + $0x18] sm:$0xf]
    %v6232 = vld [vmem:[%s6224 + $0x1c] sm:$0xf]
    %v6233 = vld [vmem:[%s6224 + $0x20] sm:$0xf]
    %v6234 = vld [vmem:[%s6224 + $0x24] sm:$0xf]
    %v6235 = vld [vmem:[%s6224 + $0x28] sm:$0xf]
    %v6236 = vld [vmem:[%s6224 + $0x2c] sm:$0xf]
    %v6237 = vld [vmem:[%s6224 + $0x30] sm:$0xf]
    %v6238 = vld [vmem:[%s6224 + $0x34] sm:$0xf]
    %v6239 = vld [vmem:[%s6224 + $0x38] sm:$0xf]
    %v6240 = vld [vmem:[%s6224 + $0x3c] sm:$0xf]
    %v6257 = vunpack.c.l.b16 %v6225
    %v6258 = vunpack.c.l.b16 %v6226
    %v6259 = vunpack.c.l.b16 %v6227
    %v6260 = vunpack.c.l.b16 %v6228
    %v6261 = vunpack.c.l.b16 %v6229
    %v6262 = vunpack.c.l.b16 %v6230
    %v6263 = vunpack.c.l.b16 %v6231
    %v6264 = vunpack.c.l.b16 %v6232
    %v6265 = vunpack.c.l.b16 %v6233
    %v6266 = vunpack.c.l.b16 %v6234
    %v6267 = vunpack.c.l.b16 %v6235
    %v6268 = vunpack.c.l.b16 %v6236
    %v6269 = vunpack.c.l.b16 %v6237
    %v6270 = vunpack.c.l.b16 %v6238
    %v6271 = vunpack.c.l.b16 %v6239
    %v6272 = vunpack.c.l.b16 %v6240
    %v6273 = vpack.c.b16 %v6258, %v6257
    %v6274 = vpack.c.b16 %v6260, %v6259
    %v6275 = vpack.c.b16 %v6262, %v6261
    %v6276 = vpack.c.b16 %v6264, %v6263
    %v6277 = vpack.c.b16 %v6266, %v6265
    %v6278 = vpack.c.b16 %v6268, %v6267
    %v6279 = vpack.c.b16 %v6270, %v6269
    %v6280 = vpack.c.b16 %v6272, %v6271
    %6289 = vmatprep.subr.bf16.mxu0 0
    %6290 = vmatpush1.bf16.msra.mxu0 %v6280
    %6291 = vmatprep.subr.bf16.mxu0 0
    %6292 = vmatpush1.bf16.msra.mxu0 %v6279
    %6293 = vmatprep.subr.bf16.mxu0 0
    %6294 = vmatpush1.bf16.msra.mxu0 %v6278
    %6295 = vmatprep.subr.bf16.mxu0 0
    %6296 = vmatpush1.bf16.msra.mxu0 %v6277
    %6297 = vmatprep.subr.bf16.mxu0 0
    %6298 = vmatpush1.bf16.msra.mxu0 %v6276
    %6299 = vmatprep.subr.bf16.mxu0 0
    %6300 = vmatpush1.bf16.msra.mxu0 %v6275
    %6301 = vmatprep.subr.bf16.mxu0 0
    %6302 = vmatpush1.bf16.msra.mxu0 %v6274
    %6303 = vmatprep.subr.bf16.mxu0 0
    %6304 = vmatpush1.bf16.msra.mxu0 %v6273
    %6305 = vmatprep.subr.bf16.mxu0 0
    %6306 = vmatpush2.bf16.msra.mxu0 0
    %6307 = vmatprep.subr.bf16.mxu0 0
    %6308 = vmatpush2.bf16.msra.mxu0 0
    %6309 = vmatprep.subr.bf16.mxu0 0
    %6310 = vmatpush2.bf16.msra.mxu0 0
    %6311 = vmatprep.subr.bf16.mxu0 0
    %6312 = vmatpush2.bf16.msra.mxu0 0
    %6313 = vmatprep.subr.bf16.mxu0 0
    %6314 = vmatpush2.bf16.msra.mxu0 0
    %6315 = vmatprep.subr.bf16.mxu0 0
    %6316 = vmatpush2.bf16.msra.mxu0 0
    %6317 = vmatprep.subr.bf16.mxu0 0
    %6318 = vmatpush2.bf16.msra.mxu0 0
    %6319 = vmatprep.subr.bf16.mxu0 0
    %6320 = vmatpush2.bf16.msra.mxu0 0
    %6321 = vmatprep.mubr.bf16.mxu0 0
    %6322 = vmatmul.mubr.bf16.gmra.mxu0 %v6222
    %v6323 = vpop.f32.mrf.mxu0
    %v6324 = vadd.f32 0.0, %v6323
    %v6325 = vpop.f32.mrf.mxu0
    %v6326 = vpop.f32.mrf.mxu0
    %v6327 = vadd.f32 0.0, %v6326
    %v6328 = vpop.f32.mrf.mxu0
    %6329 = vmatprep.mubr.bf16.mxu0 0
    %6330 = vmatmul.mubr.bf16.gmra.mxu0 %v6223
    %v6331 = vpop.f32.mrf.mxu0
    %v6332 = vadd.f32 0.0, %v6331
    %v6333 = vpop.f32.mrf.mxu0
    %v6334 = vpop.f32.mrf.mxu0
    %v6335 = vadd.f32 0.0, %v6334
    %v6336 = vpop.f32.mrf.mxu0
    %6337 = vdwg.mxu0
    %v6338 = vadd.f32 %v6148, %v6324
    %v6339 = vadd.f32 %v6149, %v6327
    %v6340 = vadd.f32 %v6150, %v6332
    %v6341 = vadd.f32 %v6151, %v6335
    %s6342 = scalar_lea.vmem %s4, 112
    %v6343 = vld [vmem:[%s6342] sm:$0xf]
    %v6344 = vld [vmem:[%s6342 + $0x4] sm:$0xf]
    %v6345 = vld [vmem:[%s6342 + $0x8] sm:$0xf]
    %v6346 = vld [vmem:[%s6342 + $0xc] sm:$0xf]
    %v6351 = vunpack.c.l.b16 %v6343
    %v6352 = vunpack.c.l.b16 %v6344
    %v6353 = vunpack.c.l.b16 %v6345
    %v6354 = vunpack.c.l.b16 %v6346
    %v6355 = vpack.c.b16 %v6352, %v6351
    %v6356 = vpack.c.b16 %v6354, %v6353
    %v6358 = vsel %vm5035, %v6355, 0
    %v6361 = vsel %vm5035, %v6356, 0
    %6363 = vmatprep.subr.bf16.mxu0 0
    %6364 = vmatpush1.bf16.msra.mxu0 0
    %6365 = vmatprep.subr.bf16.mxu0 0
    %6366 = vmatpush1.bf16.msra.mxu0 %v5020
    %6367 = vmatprep.subr.bf16.mxu0 0
    %6368 = vmatpush1.bf16.msra.mxu0 %v5019
    %6369 = vmatprep.subr.bf16.mxu0 0
    %6370 = vmatpush1.bf16.msra.mxu0 %v5018
    %6371 = vmatprep.subr.bf16.mxu0 0
    %6372 = vmatpush1.bf16.msra.mxu0 %v5017
    %6373 = vmatprep.subr.bf16.mxu0 0
    %6374 = vmatpush1.bf16.msra.mxu0 %v5016
    %6375 = vmatprep.subr.bf16.mxu0 0
    %6376 = vmatpush1.bf16.msra.mxu0 %v5015
    %6377 = vmatprep.subr.bf16.mxu0 0
    %6378 = vmatpush1.bf16.msra.mxu0 %v5014
    %6379 = vmatprep.subr.bf16.mxu0 0
    %6380 = vmatpush2.bf16.msra.mxu0 0
    %6381 = vmatprep.subr.bf16.mxu0 0
    %6382 = vmatpush2.bf16.msra.mxu0 0
    %6383 = vmatprep.subr.bf16.mxu0 0
    %6384 = vmatpush2.bf16.msra.mxu0 0
    %6385 = vmatprep.subr.bf16.mxu0 0
    %6386 = vmatpush2.bf16.msra.mxu0 0
    %6387 = vmatprep.subr.bf16.mxu0 0
    %6388 = vmatpush2.bf16.msra.mxu0 0
    %6389 = vmatprep.subr.bf16.mxu0 0
    %6390 = vmatpush2.bf16.msra.mxu0 0
    %6391 = vmatprep.subr.bf16.mxu0 0
    %6392 = vmatpush2.bf16.msra.mxu0 0
    %6393 = vmatprep.subr.bf16.mxu0 0
    %6394 = vmatpush2.bf16.msra.mxu0 0
    %6395 = vmatprep.mubr.bf16.mxu0 0
    %6396 = vmatmul.mubr.bf16.gmra.mxu0 %v6358
    %v6397 = vpop.f32.mrf.mxu0
    %v6398 = vadd.f32 0.0, %v6397
    %v6399 = vpop.f32.mrf.mxu0
    %v6400 = vpop.f32.mrf.mxu0
    %v6401 = vadd.f32 0.0, %v6400
    %v6402 = vpop.f32.mrf.mxu0
    %6403 = vmatprep.mubr.bf16.mxu0 0
    %6404 = vmatmul.mubr.bf16.gmra.mxu0 %v6361
    %v6405 = vpop.f32.mrf.mxu0
    %v6406 = vadd.f32 0.0, %v6405
    %v6407 = vpop.f32.mrf.mxu0
    %v6408 = vpop.f32.mrf.mxu0
    %v6409 = vadd.f32 0.0, %v6408
    %v6410 = vpop.f32.mrf.mxu0
    %6411 = vdwg.mxu0
    %v6412 = vpack.c.bf16 %v6401, %v6398
    %v6413 = vpack.c.bf16 %v6409, %v6406
    %s6414 = scalar_lea.vmem %s5, 448
    %v6415 = vld [vmem:[%s6414] sm:$0xf]
    %v6416 = vld [vmem:[%s6414 + $0x4] sm:$0xf]
    %v6417 = vld [vmem:[%s6414 + $0x8] sm:$0xf]
    %v6418 = vld [vmem:[%s6414 + $0xc] sm:$0xf]
    %v6419 = vld [vmem:[%s6414 + $0x10] sm:$0xf]
    %v6420 = vld [vmem:[%s6414 + $0x14] sm:$0xf]
    %v6421 = vld [vmem:[%s6414 + $0x18] sm:$0xf]
    %v6422 = vld [vmem:[%s6414 + $0x1c] sm:$0xf]
    %v6423 = vld [vmem:[%s6414 + $0x20] sm:$0xf]
    %v6424 = vld [vmem:[%s6414 + $0x24] sm:$0xf]
    %v6425 = vld [vmem:[%s6414 + $0x28] sm:$0xf]
    %v6426 = vld [vmem:[%s6414 + $0x2c] sm:$0xf]
    %v6427 = vld [vmem:[%s6414 + $0x30] sm:$0xf]
    %v6428 = vld [vmem:[%s6414 + $0x34] sm:$0xf]
    %v6429 = vld [vmem:[%s6414 + $0x38] sm:$0xf]
    %v6430 = vld [vmem:[%s6414 + $0x3c] sm:$0xf]
    %v6447 = vunpack.c.l.b16 %v6415
    %v6448 = vunpack.c.l.b16 %v6416
    %v6449 = vunpack.c.l.b16 %v6417
    %v6450 = vunpack.c.l.b16 %v6418
    %v6451 = vunpack.c.l.b16 %v6419
    %v6452 = vunpack.c.l.b16 %v6420
    %v6453 = vunpack.c.l.b16 %v6421
    %v6454 = vunpack.c.l.b16 %v6422
    %v6455 = vunpack.c.l.b16 %v6423
    %v6456 = vunpack.c.l.b16 %v6424
    %v6457 = vunpack.c.l.b16 %v6425
    %v6458 = vunpack.c.l.b16 %v6426
    %v6459 = vunpack.c.l.b16 %v6427
    %v6460 = vunpack.c.l.b16 %v6428
    %v6461 = vunpack.c.l.b16 %v6429
    %v6462 = vunpack.c.l.b16 %v6430
    %v6463 = vpack.c.b16 %v6448, %v6447
    %v6464 = vpack.c.b16 %v6450, %v6449
    %v6465 = vpack.c.b16 %v6452, %v6451
    %v6466 = vpack.c.b16 %v6454, %v6453
    %v6467 = vpack.c.b16 %v6456, %v6455
    %v6468 = vpack.c.b16 %v6458, %v6457
    %v6469 = vpack.c.b16 %v6460, %v6459
    %v6470 = vpack.c.b16 %v6462, %v6461
    %6479 = vmatprep.subr.bf16.mxu0 0
    %6480 = vmatpush1.bf16.msra.mxu0 %v6470
    %6481 = vmatprep.subr.bf16.mxu0 0
    %6482 = vmatpush1.bf16.msra.mxu0 %v6469
    %6483 = vmatprep.subr.bf16.mxu0 0
    %6484 = vmatpush1.bf16.msra.mxu0 %v6468
    %6485 = vmatprep.subr.bf16.mxu0 0
    %6486 = vmatpush1.bf16.msra.mxu0 %v6467
    %6487 = vmatprep.subr.bf16.mxu0 0
    %6488 = vmatpush1.bf16.msra.mxu0 %v6466
    %6489 = vmatprep.subr.bf16.mxu0 0
    %6490 = vmatpush1.bf16.msra.mxu0 %v6465
    %6491 = vmatprep.subr.bf16.mxu0 0
    %6492 = vmatpush1.bf16.msra.mxu0 %v6464
    %6493 = vmatprep.subr.bf16.mxu0 0
    %6494 = vmatpush1.bf16.msra.mxu0 %v6463
    %6495 = vmatprep.subr.bf16.mxu0 0
    %6496 = vmatpush2.bf16.msra.mxu0 0
    %6497 = vmatprep.subr.bf16.mxu0 0
    %6498 = vmatpush2.bf16.msra.mxu0 0
    %6499 = vmatprep.subr.bf16.mxu0 0
    %6500 = vmatpush2.bf16.msra.mxu0 0
    %6501 = vmatprep.subr.bf16.mxu0 0
    %6502 = vmatpush2.bf16.msra.mxu0 0
    %6503 = vmatprep.subr.bf16.mxu0 0
    %6504 = vmatpush2.bf16.msra.mxu0 0
    %6505 = vmatprep.subr.bf16.mxu0 0
    %6506 = vmatpush2.bf16.msra.mxu0 0
    %6507 = vmatprep.subr.bf16.mxu0 0
    %6508 = vmatpush2.bf16.msra.mxu0 0
    %6509 = vmatprep.subr.bf16.mxu0 0
    %6510 = vmatpush2.bf16.msra.mxu0 0
    %6511 = vmatprep.mubr.bf16.mxu0 0
    %6512 = vmatmul.mubr.bf16.gmra.mxu0 %v6412
    %v6513 = vpop.f32.mrf.mxu0
    %v6514 = vadd.f32 0.0, %v6513
    %v6515 = vpop.f32.mrf.mxu0
    %v6516 = vpop.f32.mrf.mxu0
    %v6517 = vadd.f32 0.0, %v6516
    %v6518 = vpop.f32.mrf.mxu0
    %6519 = vmatprep.mubr.bf16.mxu0 0
    %6520 = vmatmul.mubr.bf16.gmra.mxu0 %v6413
    %v6521 = vpop.f32.mrf.mxu0
    %v6522 = vadd.f32 0.0, %v6521
    %v6523 = vpop.f32.mrf.mxu0
    %v6524 = vpop.f32.mrf.mxu0
    %v6525 = vadd.f32 0.0, %v6524
    %v6526 = vpop.f32.mrf.mxu0
    %6527 = vdwg.mxu0
    %v6528 = vadd.f32 %v6338, %v6514
    %v6529 = vadd.f32 %v6339, %v6517
    %v6530 = vadd.f32 %v6340, %v6522
    %v6531 = vadd.f32 %v6341, %v6525
    %s6532 = scalar_lea.vmem %s4, 128
    %v6533 = vld [vmem:[%s6532] sm:$0xf]
    %v6534 = vld [vmem:[%s6532 + $0x4] sm:$0xf]
    %v6535 = vld [vmem:[%s6532 + $0x8] sm:$0xf]
    %v6536 = vld [vmem:[%s6532 + $0xc] sm:$0xf]
    %v6541 = vunpack.c.l.b16 %v6533
    %v6542 = vunpack.c.l.b16 %v6534
    %v6543 = vunpack.c.l.b16 %v6535
    %v6544 = vunpack.c.l.b16 %v6536
    %v6545 = vpack.c.b16 %v6542, %v6541
    %v6546 = vpack.c.b16 %v6544, %v6543
    %v6548 = vsel %vm5035, %v6545, 0
    %v6551 = vsel %vm5035, %v6546, 0
    %6553 = vmatprep.subr.bf16.mxu0 0
    %6554 = vmatpush1.bf16.msra.mxu0 0
    %6555 = vmatprep.subr.bf16.mxu0 0
    %6556 = vmatpush1.bf16.msra.mxu0 %v5020
    %6557 = vmatprep.subr.bf16.mxu0 0
    %6558 = vmatpush1.bf16.msra.mxu0 %v5019
    %6559 = vmatprep.subr.bf16.mxu0 0
    %6560 = vmatpush1.bf16.msra.mxu0 %v5018
    %6561 = vmatprep.subr.bf16.mxu0 0
    %6562 = vmatpush1.bf16.msra.mxu0 %v5017
    %6563 = vmatprep.subr.bf16.mxu0 0
    %6564 = vmatpush1.bf16.msra.mxu0 %v5016
    %6565 = vmatprep.subr.bf16.mxu0 0
    %6566 = vmatpush1.bf16.msra.mxu0 %v5015
    %6567 = vmatprep.subr.bf16.mxu0 0
    %6568 = vmatpush1.bf16.msra.mxu0 %v5014
    %6569 = vmatprep.subr.bf16.mxu0 0
    %6570 = vmatpush2.bf16.msra.mxu0 0
    %6571 = vmatprep.subr.bf16.mxu0 0
    %6572 = vmatpush2.bf16.msra.mxu0 0
    %6573 = vmatprep.subr.bf16.mxu0 0
    %6574 = vmatpush2.bf16.msra.mxu0 0
    %6575 = vmatprep.subr.bf16.mxu0 0
    %6576 = vmatpush2.bf16.msra.mxu0 0
    %6577 = vmatprep.subr.bf16.mxu0 0
    %6578 = vmatpush2.bf16.msra.mxu0 0
    %6579 = vmatprep.subr.bf16.mxu0 0
    %6580 = vmatpush2.bf16.msra.mxu0 0
    %6581 = vmatprep.subr.bf16.mxu0 0
    %6582 = vmatpush2.bf16.msra.mxu0 0
    %6583 = vmatprep.subr.bf16.mxu0 0
    %6584 = vmatpush2.bf16.msra.mxu0 0
    %6585 = vmatprep.mubr.bf16.mxu0 0
    %6586 = vmatmul.mubr.bf16.gmra.mxu0 %v6548
    %v6587 = vpop.f32.mrf.mxu0
    %v6588 = vadd.f32 0.0, %v6587
    %v6589 = vpop.f32.mrf.mxu0
    %v6590 = vpop.f32.mrf.mxu0
    %v6591 = vadd.f32 0.0, %v6590
    %v6592 = vpop.f32.mrf.mxu0
    %6593 = vmatprep.mubr.bf16.mxu0 0
    %6594 = vmatmul.mubr.bf16.gmra.mxu0 %v6551
    %v6595 = vpop.f32.mrf.mxu0
    %v6596 = vadd.f32 0.0, %v6595
    %v6597 = vpop.f32.mrf.mxu0
    %v6598 = vpop.f32.mrf.mxu0
    %v6599 = vadd.f32 0.0, %v6598
    %v6600 = vpop.f32.mrf.mxu0
    %6601 = vdwg.mxu0
    %v6602 = vpack.c.bf16 %v6591, %v6588
    %v6603 = vpack.c.bf16 %v6599, %v6596
    %s6604 = scalar_lea.vmem %s5, 512
    %v6605 = vld [vmem:[%s6604] sm:$0xf]
    %v6606 = vld [vmem:[%s6604 + $0x4] sm:$0xf]
    %v6607 = vld [vmem:[%s6604 + $0x8] sm:$0xf]
    %v6608 = vld [vmem:[%s6604 + $0xc] sm:$0xf]
    %v6609 = vld [vmem:[%s6604 + $0x10] sm:$0xf]
    %v6610 = vld [vmem:[%s6604 + $0x14] sm:$0xf]
    %v6611 = vld [vmem:[%s6604 + $0x18] sm:$0xf]
    %v6612 = vld [vmem:[%s6604 + $0x1c] sm:$0xf]
    %v6613 = vld [vmem:[%s6604 + $0x20] sm:$0xf]
    %v6614 = vld [vmem:[%s6604 + $0x24] sm:$0xf]
    %v6615 = vld [vmem:[%s6604 + $0x28] sm:$0xf]
    %v6616 = vld [vmem:[%s6604 + $0x2c] sm:$0xf]
    %v6617 = vld [vmem:[%s6604 + $0x30] sm:$0xf]
    %v6618 = vld [vmem:[%s6604 + $0x34] sm:$0xf]
    %v6619 = vld [vmem:[%s6604 + $0x38] sm:$0xf]
    %v6620 = vld [vmem:[%s6604 + $0x3c] sm:$0xf]
    %v6637 = vunpack.c.l.b16 %v6605
    %v6638 = vunpack.c.l.b16 %v6606
    %v6639 = vunpack.c.l.b16 %v6607
    %v6640 = vunpack.c.l.b16 %v6608
    %v6641 = vunpack.c.l.b16 %v6609
    %v6642 = vunpack.c.l.b16 %v6610
    %v6643 = vunpack.c.l.b16 %v6611
    %v6644 = vunpack.c.l.b16 %v6612
    %v6645 = vunpack.c.l.b16 %v6613
    %v6646 = vunpack.c.l.b16 %v6614
    %v6647 = vunpack.c.l.b16 %v6615
    %v6648 = vunpack.c.l.b16 %v6616
    %v6649 = vunpack.c.l.b16 %v6617
    %v6650 = vunpack.c.l.b16 %v6618
    %v6651 = vunpack.c.l.b16 %v6619
    %v6652 = vunpack.c.l.b16 %v6620
    %v6653 = vpack.c.b16 %v6638, %v6637
    %v6654 = vpack.c.b16 %v6640, %v6639
    %v6655 = vpack.c.b16 %v6642, %v6641
    %v6656 = vpack.c.b16 %v6644, %v6643
    %v6657 = vpack.c.b16 %v6646, %v6645
    %v6658 = vpack.c.b16 %v6648, %v6647
    %v6659 = vpack.c.b16 %v6650, %v6649
    %v6660 = vpack.c.b16 %v6652, %v6651
    %6669 = vmatprep.subr.bf16.mxu0 0
    %6670 = vmatpush1.bf16.msra.mxu0 %v6660
    %6671 = vmatprep.subr.bf16.mxu0 0
    %6672 = vmatpush1.bf16.msra.mxu0 %v6659
    %6673 = vmatprep.subr.bf16.mxu0 0
    %6674 = vmatpush1.bf16.msra.mxu0 %v6658
    %6675 = vmatprep.subr.bf16.mxu0 0
    %6676 = vmatpush1.bf16.msra.mxu0 %v6657
    %6677 = vmatprep.subr.bf16.mxu0 0
    %6678 = vmatpush1.bf16.msra.mxu0 %v6656
    %6679 = vmatprep.subr.bf16.mxu0 0
    %6680 = vmatpush1.bf16.msra.mxu0 %v6655
    %6681 = vmatprep.subr.bf16.mxu0 0
    %6682 = vmatpush1.bf16.msra.mxu0 %v6654
    %6683 = vmatprep.subr.bf16.mxu0 0
    %6684 = vmatpush1.bf16.msra.mxu0 %v6653
    %6685 = vmatprep.subr.bf16.mxu0 0
    %6686 = vmatpush2.bf16.msra.mxu0 0
    %6687 = vmatprep.subr.bf16.mxu0 0
    %6688 = vmatpush2.bf16.msra.mxu0 0
    %6689 = vmatprep.subr.bf16.mxu0 0
    %6690 = vmatpush2.bf16.msra.mxu0 0
    %6691 = vmatprep.subr.bf16.mxu0 0
    %6692 = vmatpush2.bf16.msra.mxu0 0
    %6693 = vmatprep.subr.bf16.mxu0 0
    %6694 = vmatpush2.bf16.msra.mxu0 0
    %6695 = vmatprep.subr.bf16.mxu0 0
    %6696 = vmatpush2.bf16.msra.mxu0 0
    %6697 = vmatprep.subr.bf16.mxu0 0
    %6698 = vmatpush2.bf16.msra.mxu0 0
    %6699 = vmatprep.subr.bf16.mxu0 0
    %6700 = vmatpush2.bf16.msra.mxu0 0
    %6701 = vmatprep.mubr.bf16.mxu0 0
    %6702 = vmatmul.mubr.bf16.gmra.mxu0 %v6602
    %v6703 = vpop.f32.mrf.mxu0
    %v6704 = vadd.f32 0.0, %v6703
    %v6705 = vpop.f32.mrf.mxu0
    %v6706 = vpop.f32.mrf.mxu0
    %v6707 = vadd.f32 0.0, %v6706
    %v6708 = vpop.f32.mrf.mxu0
    %6709 = vmatprep.mubr.bf16.mxu0 0
    %6710 = vmatmul.mubr.bf16.gmra.mxu0 %v6603
    %v6711 = vpop.f32.mrf.mxu0
    %v6712 = vadd.f32 0.0, %v6711
    %v6713 = vpop.f32.mrf.mxu0
    %v6714 = vpop.f32.mrf.mxu0
    %v6715 = vadd.f32 0.0, %v6714
    %v6716 = vpop.f32.mrf.mxu0
    %6717 = vdwg.mxu0
    %v6718 = vadd.f32 %v6528, %v6704
    %v6719 = vadd.f32 %v6529, %v6707
    %v6720 = vadd.f32 %v6530, %v6712
    %v6721 = vadd.f32 %v6531, %v6715
    %v6722 = vld [vmem:[%s6] sm:$0x1]
    %v6724 = vlaneseq
    %v6725 = vshrl.u32 %v6724, 7
    %v6726 = vsub.s32 0, %v6725
    %v6727 = vrot.slane %v6722, %v6726
    %v6729 = vadd.f32 %v6718, %v6727
    %v6730 = vadd.f32 %v6719, %v6727
    %v6731 = vadd.f32 %v6720, %v6727
    %v6732 = vadd.f32 %v6721, %v6727
    %v6733 = vmax.f32 %v6729, 0.0
    %v6734 = vmax.f32 %v6730, 0.0
    %v6735 = vmax.f32 %v6731, 0.0
    %v6736 = vmax.f32 %v6732, 0.0
    %v6737 = vpack.c.bf16 %v6734, %v6733
    %v6738 = vpack.c.bf16 %v6736, %v6735
    %v6739 = vld [vmem:[%s7] sm:$0xf]
    %v6740 = vld [vmem:[%s7 + $0x4] sm:$0xf]
    %v6743 = vunpack.c.l.b16 %v6739
    %v6744 = vunpack.c.l.b16 %v6740
    %v6745 = vpack.c.b16 %v6744, %v6743
    %vm6746 = vcmask 261120
    %v6748 = vsel %vm6746, %v6745, 0
    %6750 = vmatprep.subr.bf16.mxu0 0
    %6751 = vmatpush1.bf16.msra.mxu0 0
    %6752 = vmatprep.subr.bf16.mxu0 0
    %6753 = vmatpush1.bf16.msra.mxu0 0
    %6754 = vmatprep.subr.bf16.mxu0 0
    %6755 = vmatpush1.bf16.msra.mxu0 0
    %6756 = vmatprep.subr.bf16.mxu0 0
    %6757 = vmatpush1.bf16.msra.mxu0 0
    %6758 = vmatprep.subr.bf16.mxu0 0
    %6759 = vmatpush1.bf16.msra.mxu0 0
    %6760 = vmatprep.subr.bf16.mxu0 0
    %6761 = vmatpush1.bf16.msra.mxu0 0
    %6762 = vmatprep.subr.bf16.mxu0 0
    %6763 = vmatpush1.bf16.msra.mxu0 %v6738
    %6764 = vmatprep.subr.bf16.mxu0 0
    %6765 = vmatpush1.bf16.msra.mxu0 %v6737
    %6766 = vmatprep.subr.bf16.mxu0 0
    %6767 = vmatpush2.bf16.msra.mxu0 0
    %6768 = vmatprep.subr.bf16.mxu0 0
    %6769 = vmatpush2.bf16.msra.mxu0 0
    %6770 = vmatprep.subr.bf16.mxu0 0
    %6771 = vmatpush2.bf16.msra.mxu0 0
    %6772 = vmatprep.subr.bf16.mxu0 0
    %6773 = vmatpush2.bf16.msra.mxu0 0
    %6774 = vmatprep.subr.bf16.mxu0 0
    %6775 = vmatpush2.bf16.msra.mxu0 0
    %6776 = vmatprep.subr.bf16.mxu0 0
    %6777 = vmatpush2.bf16.msra.mxu0 0
    %6778 = vmatprep.subr.bf16.mxu0 0
    %6779 = vmatpush2.bf16.msra.mxu0 0
    %6780 = vmatprep.subr.bf16.mxu0 0
    %6781 = vmatpush2.bf16.msra.mxu0 0
    %6782 = vmatprep.mubr.bf16.mxu0 0
    %6783 = vmatmul.mubr.bf16.gmra.mxu0 %v6748
    %v6784 = vpop.f32.mrf.mxu0
    %v6785 = vadd.f32 0.0, %v6784
    %v6786 = vpop.f32.mrf.mxu0
    %v6787 = vpop.f32.mrf.mxu0
    %v6788 = vadd.f32 0.0, %v6787
    %v6789 = vpop.f32.mrf.mxu0
    %6790 = vdwg.mxu0
    %v6791 = vpack.c.bf16 %v6788, %v6785
    %v6792 = vld [vmem:[%s8] sm:$0xf]
    %v6793 = vld [vmem:[%s8 + $0x4] sm:$0xf]
    %v6794 = vld [vmem:[%s8 + $0x8] sm:$0xf]
    %v6795 = vld [vmem:[%s8 + $0xc] sm:$0xf]
    %v6796 = vld [vmem:[%s8 + $0x10] sm:$0xf]
    %v6797 = vld [vmem:[%s8 + $0x14] sm:$0xf]
    %v6798 = vld [vmem:[%s8 + $0x18] sm:$0xf]
    %v6799 = vld [vmem:[%s8 + $0x1c] sm:$0xf]
    %v6800 = vld [vmem:[%s8 + $0x20] sm:$0xf]
    %v6801 = vld [vmem:[%s8 + $0x24] sm:$0xf]
    %v6802 = vld [vmem:[%s8 + $0x28] sm:$0xf]
    %v6803 = vld [vmem:[%s8 + $0x2c] sm:$0xf]
    %v6804 = vld [vmem:[%s8 + $0x30] sm:$0xf]
    %v6805 = vld [vmem:[%s8 + $0x34] sm:$0xf]
    %v6806 = vld [vmem:[%s8 + $0x38] sm:$0xf]
    %v6807 = vld [vmem:[%s8 + $0x3c] sm:$0xf]
    %s6808 = scalar_lea.vmem %s7, 8
    %v6809 = vld [vmem:[%s6808] sm:$0xf]
    %v6810 = vld [vmem:[%s6808 + $0x4] sm:$0xf]
    %v6813 = vunpack.c.l.b16 %v6809
    %v6814 = vunpack.c.l.b16 %v6810
    %v6815 = vpack.c.b16 %v6814, %v6813
    %v6817 = vsel %vm6746, %v6815, 0
    %6819 = vmatprep.subr.bf16.mxu0 0
    %6820 = vmatpush1.bf16.msra.mxu0 0
    %6821 = vmatprep.subr.bf16.mxu0 0
    %6822 = vmatpush1.bf16.msra.mxu0 0
    %6823 = vmatprep.subr.bf16.mxu0 0
    %6824 = vmatpush1.bf16.msra.mxu0 0
    %6825 = vmatprep.subr.bf16.mxu0 0
    %6826 = vmatpush1.bf16.msra.mxu0 0
    %6827 = vmatprep.subr.bf16.mxu0 0
    %6828 = vmatpush1.bf16.msra.mxu0 0
    %6829 = vmatprep.subr.bf16.mxu0 0
    %6830 = vmatpush1.bf16.msra.mxu0 0
    %6831 = vmatprep.subr.bf16.mxu0 0
    %6832 = vmatpush1.bf16.msra.mxu0 %v6738
    %6833 = vmatprep.subr.bf16.mxu0 0
    %6834 = vmatpush1.bf16.msra.mxu0 %v6737
    %6835 = vmatprep.subr.bf16.mxu0 0
    %6836 = vmatpush2.bf16.msra.mxu0 0
    %6837 = vmatprep.subr.bf16.mxu0 0
    %6838 = vmatpush2.bf16.msra.mxu0 0
    %6839 = vmatprep.subr.bf16.mxu0 0
    %6840 = vmatpush2.bf16.msra.mxu0 0
    %6841 = vmatprep.subr.bf16.mxu0 0
    %6842 = vmatpush2.bf16.msra.mxu0 0
    %6843 = vmatprep.subr.bf16.mxu0 0
    %6844 = vmatpush2.bf16.msra.mxu0 0
    %6845 = vmatprep.subr.bf16.mxu0 0
    %6846 = vmatpush2.bf16.msra.mxu0 0
    %6847 = vmatprep.subr.bf16.mxu0 0
    %6848 = vmatpush2.bf16.msra.mxu0 0
    %6849 = vmatprep.subr.bf16.mxu0 0
    %6850 = vmatpush2.bf16.msra.mxu0 0
    %6851 = vmatprep.mubr.bf16.mxu0 0
    %6852 = vmatmul.mubr.bf16.gmra.mxu0 %v6817
    %v6853 = vpop.f32.mrf.mxu0
    %v6854 = vadd.f32 0.0, %v6853
    %v6855 = vpop.f32.mrf.mxu0
    %v6856 = vpop.f32.mrf.mxu0
    %v6857 = vadd.f32 0.0, %v6856
    %v6858 = vpop.f32.mrf.mxu0
    %6859 = vdwg.mxu0
    %v6860 = vpack.c.bf16 %v6857, %v6854
    %s6861 = scalar_lea.vmem %s8, 64
    %v6862 = vld [vmem:[%s6861] sm:$0xf]
    %v6863 = vld [vmem:[%s6861 + $0x4] sm:$0xf]
    %v6864 = vld [vmem:[%s6861 + $0x8] sm:$0xf]
    %v6865 = vld [vmem:[%s6861 + $0xc] sm:$0xf]
    %v6866 = vld [vmem:[%s6861 + $0x10] sm:$0xf]
    %v6867 = vld [vmem:[%s6861 + $0x14] sm:$0xf]
    %v6868 = vld [vmem:[%s6861 + $0x18] sm:$0xf]
    %v6869 = vld [vmem:[%s6861 + $0x1c] sm:$0xf]
    %v6870 = vld [vmem:[%s6861 + $0x20] sm:$0xf]
    %v6871 = vld [vmem:[%s6861 + $0x24] sm:$0xf]
    %v6872 = vld [vmem:[%s6861 + $0x28] sm:$0xf]
    %v6873 = vld [vmem:[%s6861 + $0x2c] sm:$0xf]
    %v6874 = vld [vmem:[%s6861 + $0x30] sm:$0xf]
    %v6875 = vld [vmem:[%s6861 + $0x34] sm:$0xf]
    %v6876 = vld [vmem:[%s6861 + $0x38] sm:$0xf]
    %v6877 = vld [vmem:[%s6861 + $0x3c] sm:$0xf]
    %v6894 = vunpack.c.l.b16 %v6862
    %v6895 = vunpack.c.l.b16 %v6863
    %v6896 = vunpack.c.l.b16 %v6864
    %v6897 = vunpack.c.l.b16 %v6865
    %v6898 = vunpack.c.l.b16 %v6866
    %v6899 = vunpack.c.l.b16 %v6867
    %v6900 = vunpack.c.l.b16 %v6868
    %v6901 = vunpack.c.l.b16 %v6869
    %v6902 = vunpack.c.l.b16 %v6870
    %v6903 = vunpack.c.l.b16 %v6871
    %v6904 = vunpack.c.l.b16 %v6872
    %v6905 = vunpack.c.l.b16 %v6873
    %v6906 = vunpack.c.l.b16 %v6874
    %v6907 = vunpack.c.l.b16 %v6875
    %v6908 = vunpack.c.l.b16 %v6876
    %v6909 = vunpack.c.l.b16 %v6877
    %v6910 = vpack.c.b16 %v6895, %v6894
    %v6911 = vpack.c.b16 %v6897, %v6896
    %v6912 = vpack.c.b16 %v6899, %v6898
    %v6913 = vpack.c.b16 %v6901, %v6900
    %v6914 = vpack.c.b16 %v6903, %v6902
    %v6915 = vpack.c.b16 %v6905, %v6904
    %v6916 = vpack.c.b16 %v6907, %v6906
    %v6917 = vpack.c.b16 %v6909, %v6908
    %6926 = vmatprep.subr.bf16.mxu0 0
    %6927 = vmatpush1.bf16.msra.mxu0 %v6917
    %6928 = vmatprep.subr.bf16.mxu0 0
    %6929 = vmatpush1.bf16.msra.mxu0 %v6916
    %6930 = vmatprep.subr.bf16.mxu0 0
    %6931 = vmatpush1.bf16.msra.mxu0 %v6915
    %6932 = vmatprep.subr.bf16.mxu0 0
    %6933 = vmatpush1.bf16.msra.mxu0 %v6914
    %6934 = vmatprep.subr.bf16.mxu0 0
    %6935 = vmatpush1.bf16.msra.mxu0 %v6913
    %6936 = vmatprep.subr.bf16.mxu0 0
    %6937 = vmatpush1.bf16.msra.mxu0 %v6912
    %6938 = vmatprep.subr.bf16.mxu0 0
    %6939 = vmatpush1.bf16.msra.mxu0 %v6911
    %6940 = vmatprep.subr.bf16.mxu0 0
    %6941 = vmatpush1.bf16.msra.mxu0 %v6910
    %6942 = vmatprep.subr.bf16.mxu0 0
    %6943 = vmatpush2.bf16.msra.mxu0 0
    %6944 = vmatprep.subr.bf16.mxu0 0
    %6945 = vmatpush2.bf16.msra.mxu0 0
    %6946 = vmatprep.subr.bf16.mxu0 0
    %6947 = vmatpush2.bf16.msra.mxu0 0
    %6948 = vmatprep.subr.bf16.mxu0 0
    %6949 = vmatpush2.bf16.msra.mxu0 0
    %6950 = vmatprep.subr.bf16.mxu0 0
    %6951 = vmatpush2.bf16.msra.mxu0 0
    %6952 = vmatprep.subr.bf16.mxu0 0
    %6953 = vmatpush2.bf16.msra.mxu0 0
    %6954 = vmatprep.subr.bf16.mxu0 0
    %6955 = vmatpush2.bf16.msra.mxu0 0
    %6956 = vmatprep.subr.bf16.mxu0 0
    %6957 = vmatpush2.bf16.msra.mxu0 0
    %6958 = vmatprep.mubr.bf16.mxu0 0
    %6959 = vmatmul.mubr.bf16.gmra.mxu0 %v6860
    %v6960 = vpop.f32.mrf.mxu0
    %v6961 = vadd.f32 0.0, %v6960
    %v6962 = vpop.f32.mrf.mxu0
    %v6963 = vpop.f32.mrf.mxu0
    %v6964 = vadd.f32 0.0, %v6963
    %v6965 = vpop.f32.mrf.mxu0
    %6966 = vdwg.mxu0
    %v6983 = vunpack.c.l.b16 %v6792
    %v6984 = vunpack.c.l.b16 %v6793
    %v6985 = vunpack.c.l.b16 %v6794
    %v6986 = vunpack.c.l.b16 %v6795
    %v6987 = vunpack.c.l.b16 %v6796
    %v6988 = vunpack.c.l.b16 %v6797
    %v6989 = vunpack.c.l.b16 %v6798
    %v6990 = vunpack.c.l.b16 %v6799
    %v6991 = vunpack.c.l.b16 %v6800
    %v6992 = vunpack.c.l.b16 %v6801
    %v6993 = vunpack.c.l.b16 %v6802
    %v6994 = vunpack.c.l.b16 %v6803
    %v6995 = vunpack.c.l.b16 %v6804
    %v6996 = vunpack.c.l.b16 %v6805
    %v6997 = vunpack.c.l.b16 %v6806
    %v6998 = vunpack.c.l.b16 %v6807
    %v6999 = vpack.c.b16 %v6984, %v6983
    %v7000 = vpack.c.b16 %v6986, %v6985
    %v7001 = vpack.c.b16 %v6988, %v6987
    %v7002 = vpack.c.b16 %v6990, %v6989
    %v7003 = vpack.c.b16 %v6992, %v6991
    %v7004 = vpack.c.b16 %v6994, %v6993
    %v7005 = vpack.c.b16 %v6996, %v6995
    %v7006 = vpack.c.b16 %v6998, %v6997
    %7015 = vmatprep.subr.bf16.mxu0 0
    %7016 = vmatpush1.bf16.msra.mxu0 %v7006
    %7017 = vmatprep.subr.bf16.mxu0 0
    %7018 = vmatpush1.bf16.msra.mxu0 %v7005
    %7019 = vmatprep.subr.bf16.mxu0 0
    %7020 = vmatpush1.bf16.msra.mxu0 %v7004
    %7021 = vmatprep.subr.bf16.mxu0 0
    %7022 = vmatpush1.bf16.msra.mxu0 %v7003
    %7023 = vmatprep.subr.bf16.mxu0 0
    %7024 = vmatpush1.bf16.msra.mxu0 %v7002
    %7025 = vmatprep.subr.bf16.mxu0 0
    %7026 = vmatpush1.bf16.msra.mxu0 %v7001
    %7027 = vmatprep.subr.bf16.mxu0 0
    %7028 = vmatpush1.bf16.msra.mxu0 %v7000
    %7029 = vmatprep.subr.bf16.mxu0 0
    %7030 = vmatpush1.bf16.msra.mxu0 %v6999
    %7031 = vmatprep.subr.bf16.mxu0 0
    %7032 = vmatpush2.bf16.msra.mxu0 0
    %7033 = vmatprep.subr.bf16.mxu0 0
    %7034 = vmatpush2.bf16.msra.mxu0 0
    %7035 = vmatprep.subr.bf16.mxu0 0
    %7036 = vmatpush2.bf16.msra.mxu0 0
    %7037 = vmatprep.subr.bf16.mxu0 0
    %7038 = vmatpush2.bf16.msra.mxu0 0
    %7039 = vmatprep.subr.bf16.mxu0 0
    %7040 = vmatpush2.bf16.msra.mxu0 0
    %7041 = vmatprep.subr.bf16.mxu0 0
    %7042 = vmatpush2.bf16.msra.mxu0 0
    %7043 = vmatprep.subr.bf16.mxu0 0
    %7044 = vmatpush2.bf16.msra.mxu0 0
    %7045 = vmatprep.subr.bf16.mxu0 0
    %7046 = vmatpush2.bf16.msra.mxu0 0
    %7047 = vmatprep.mubr.bf16.mxu0 0
    %7048 = vmatmul.mubr.bf16.gmra.mxu0 %v6791
    %v7049 = vpop.f32.mrf.mxu0
    %v7050 = vadd.f32 %v6961, %v7049
    %v7051 = vpop.f32.mrf.mxu0
    %v7052 = vpop.f32.mrf.mxu0
    %v7053 = vadd.f32 %v6964, %v7052
    %v7054 = vpop.f32.mrf.mxu0
    %7055 = vdwg.mxu0
    %s7056 = scalar_lea.vmem %s7, 16
    %v7057 = vld [vmem:[%s7056] sm:$0xf]
    %v7058 = vld [vmem:[%s7056 + $0x4] sm:$0xf]
    %v7061 = vunpack.c.l.b16 %v7057
    %v7062 = vunpack.c.l.b16 %v7058
    %v7063 = vpack.c.b16 %v7062, %v7061
    %v7065 = vsel %vm6746, %v7063, 0
    %7067 = vmatprep.subr.bf16.mxu0 0
    %7068 = vmatpush1.bf16.msra.mxu0 0
    %7069 = vmatprep.subr.bf16.mxu0 0
    %7070 = vmatpush1.bf16.msra.mxu0 0
    %7071 = vmatprep.subr.bf16.mxu0 0
    %7072 = vmatpush1.bf16.msra.mxu0 0
    %7073 = vmatprep.subr.bf16.mxu0 0
    %7074 = vmatpush1.bf16.msra.mxu0 0
    %7075 = vmatprep.subr.bf16.mxu0 0
    %7076 = vmatpush1.bf16.msra.mxu0 0
    %7077 = vmatprep.subr.bf16.mxu0 0
    %7078 = vmatpush1.bf16.msra.mxu0 0
    %7079 = vmatprep.subr.bf16.mxu0 0
    %7080 = vmatpush1.bf16.msra.mxu0 %v6738
    %7081 = vmatprep.subr.bf16.mxu0 0
    %7082 = vmatpush1.bf16.msra.mxu0 %v6737
    %7083 = vmatprep.subr.bf16.mxu0 0
    %7084 = vmatpush2.bf16.msra.mxu0 0
    %7085 = vmatprep.subr.bf16.mxu0 0
    %7086 = vmatpush2.bf16.msra.mxu0 0
    %7087 = vmatprep.subr.bf16.mxu0 0
    %7088 = vmatpush2.bf16.msra.mxu0 0
    %7089 = vmatprep.subr.bf16.mxu0 0
    %7090 = vmatpush2.bf16.msra.mxu0 0
    %7091 = vmatprep.subr.bf16.mxu0 0
    %7092 = vmatpush2.bf16.msra.mxu0 0
    %7093 = vmatprep.subr.bf16.mxu0 0
    %7094 = vmatpush2.bf16.msra.mxu0 0
    %7095 = vmatprep.subr.bf16.mxu0 0
    %7096 = vmatpush2.bf16.msra.mxu0 0
    %7097 = vmatprep.subr.bf16.mxu0 0
    %7098 = vmatpush2.bf16.msra.mxu0 0
    %7099 = vmatprep.mubr.bf16.mxu0 0
    %7100 = vmatmul.mubr.bf16.gmra.mxu0 %v7065
    %v7101 = vpop.f32.mrf.mxu0
    %v7102 = vadd.f32 0.0, %v7101
    %v7103 = vpop.f32.mrf.mxu0
    %v7104 = vpop.f32.mrf.mxu0
    %v7105 = vadd.f32 0.0, %v7104
    %v7106 = vpop.f32.mrf.mxu0
    %7107 = vdwg.mxu0
    %v7108 = vpack.c.bf16 %v7105, %v7102
    %s7109 = scalar_lea.vmem %s8, 128
    %v7110 = vld [vmem:[%s7109] sm:$0xf]
    %v7111 = vld [vmem:[%s7109 + $0x4] sm:$0xf]
    %v7112 = vld [vmem:[%s7109 + $0x8] sm:$0xf]
    %v7113 = vld [vmem:[%s7109 + $0xc] sm:$0xf]
    %v7114 = vld [vmem:[%s7109 + $0x10] sm:$0xf]
    %v7115 = vld [vmem:[%s7109 + $0x14] sm:$0xf]
    %v7116 = vld [vmem:[%s7109 + $0x18] sm:$0xf]
    %v7117 = vld [vmem:[%s7109 + $0x1c] sm:$0xf]
    %v7118 = vld [vmem:[%s7109 + $0x20] sm:$0xf]
    %v7119 = vld [vmem:[%s7109 + $0x24] sm:$0xf]
    %v7120 = vld [vmem:[%s7109 + $0x28] sm:$0xf]
    %v7121 = vld [vmem:[%s7109 + $0x2c] sm:$0xf]
    %v7122 = vld [vmem:[%s7109 + $0x30] sm:$0xf]
    %v7123 = vld [vmem:[%s7109 + $0x34] sm:$0xf]
    %v7124 = vld [vmem:[%s7109 + $0x38] sm:$0xf]
    %v7125 = vld [vmem:[%s7109 + $0x3c] sm:$0xf]
    %v7142 = vunpack.c.l.b16 %v7110
    %v7143 = vunpack.c.l.b16 %v7111
    %v7144 = vunpack.c.l.b16 %v7112
    %v7145 = vunpack.c.l.b16 %v7113
    %v7146 = vunpack.c.l.b16 %v7114
    %v7147 = vunpack.c.l.b16 %v7115
    %v7148 = vunpack.c.l.b16 %v7116
    %v7149 = vunpack.c.l.b16 %v7117
    %v7150 = vunpack.c.l.b16 %v7118
    %v7151 = vunpack.c.l.b16 %v7119
    %v7152 = vunpack.c.l.b16 %v7120
    %v7153 = vunpack.c.l.b16 %v7121
    %v7154 = vunpack.c.l.b16 %v7122
    %v7155 = vunpack.c.l.b16 %v7123
    %v7156 = vunpack.c.l.b16 %v7124
    %v7157 = vunpack.c.l.b16 %v7125
    %v7158 = vpack.c.b16 %v7143, %v7142
    %v7159 = vpack.c.b16 %v7145, %v7144
    %v7160 = vpack.c.b16 %v7147, %v7146
    %v7161 = vpack.c.b16 %v7149, %v7148
    %v7162 = vpack.c.b16 %v7151, %v7150
    %v7163 = vpack.c.b16 %v7153, %v7152
    %v7164 = vpack.c.b16 %v7155, %v7154
    %v7165 = vpack.c.b16 %v7157, %v7156
    %7174 = vmatprep.subr.bf16.mxu0 0
    %7175 = vmatpush1.bf16.msra.mxu0 %v7165
    %7176 = vmatprep.subr.bf16.mxu0 0
    %7177 = vmatpush1.bf16.msra.mxu0 %v7164
    %7178 = vmatprep.subr.bf16.mxu0 0
    %7179 = vmatpush1.bf16.msra.mxu0 %v7163
    %7180 = vmatprep.subr.bf16.mxu0 0
    %7181 = vmatpush1.bf16.msra.mxu0 %v7162
    %7182 = vmatprep.subr.bf16.mxu0 0
    %7183 = vmatpush1.bf16.msra.mxu0 %v7161
    %7184 = vmatprep.subr.bf16.mxu0 0
    %7185 = vmatpush1.bf16.msra.mxu0 %v7160
    %7186 = vmatprep.subr.bf16.mxu0 0
    %7187 = vmatpush1.bf16.msra.mxu0 %v7159
    %7188 = vmatprep.subr.bf16.mxu0 0
    %7189 = vmatpush1.bf16.msra.mxu0 %v7158
    %7190 = vmatprep.subr.bf16.mxu0 0
    %7191 = vmatpush2.bf16.msra.mxu0 0
    %7192 = vmatprep.subr.bf16.mxu0 0
    %7193 = vmatpush2.bf16.msra.mxu0 0
    %7194 = vmatprep.subr.bf16.mxu0 0
    %7195 = vmatpush2.bf16.msra.mxu0 0
    %7196 = vmatprep.subr.bf16.mxu0 0
    %7197 = vmatpush2.bf16.msra.mxu0 0
    %7198 = vmatprep.subr.bf16.mxu0 0
    %7199 = vmatpush2.bf16.msra.mxu0 0
    %7200 = vmatprep.subr.bf16.mxu0 0
    %7201 = vmatpush2.bf16.msra.mxu0 0
    %7202 = vmatprep.subr.bf16.mxu0 0
    %7203 = vmatpush2.bf16.msra.mxu0 0
    %7204 = vmatprep.subr.bf16.mxu0 0
    %7205 = vmatpush2.bf16.msra.mxu0 0
    %7206 = vmatprep.mubr.bf16.mxu0 0
    %7207 = vmatmul.mubr.bf16.gmra.mxu0 %v7108
    %v7208 = vpop.f32.mrf.mxu0
    %v7209 = vadd.f32 0.0, %v7208
    %v7210 = vpop.f32.mrf.mxu0
    %v7211 = vpop.f32.mrf.mxu0
    %v7212 = vadd.f32 0.0, %v7211
    %v7213 = vpop.f32.mrf.mxu0
    %7214 = vdwg.mxu0
    %v7215 = vadd.f32 %v7050, %v7209
    %v7216 = vadd.f32 %v7053, %v7212
    %s7217 = scalar_lea.vmem %s7, 24
    %v7218 = vld [vmem:[%s7217] sm:$0xf]
    %v7219 = vld [vmem:[%s7217 + $0x4] sm:$0xf]
    %v7222 = vunpack.c.l.b16 %v7218
    %v7223 = vunpack.c.l.b16 %v7219
    %v7224 = vpack.c.b16 %v7223, %v7222
    %v7226 = vsel %vm6746, %v7224, 0
    %7228 = vmatprep.subr.bf16.mxu0 0
    %7229 = vmatpush1.bf16.msra.mxu0 0
    %7230 = vmatprep.subr.bf16.mxu0 0
    %7231 = vmatpush1.bf16.msra.mxu0 0
    %7232 = vmatprep.subr.bf16.mxu0 0
    %7233 = vmatpush1.bf16.msra.mxu0 0
    %7234 = vmatprep.subr.bf16.mxu0 0
    %7235 = vmatpush1.bf16.msra.mxu0 0
    %7236 = vmatprep.subr.bf16.mxu0 0
    %7237 = vmatpush1.bf16.msra.mxu0 0
    %7238 = vmatprep.subr.bf16.mxu0 0
    %7239 = vmatpush1.bf16.msra.mxu0 0
    %7240 = vmatprep.subr.bf16.mxu0 0
    %7241 = vmatpush1.bf16.msra.mxu0 %v6738
    %7242 = vmatprep.subr.bf16.mxu0 0
    %7243 = vmatpush1.bf16.msra.mxu0 %v6737
    %7244 = vmatprep.subr.bf16.mxu0 0
    %7245 = vmatpush2.bf16.msra.mxu0 0
    %7246 = vmatprep.subr.bf16.mxu0 0
    %7247 = vmatpush2.bf16.msra.mxu0 0
    %7248 = vmatprep.subr.bf16.mxu0 0
    %7249 = vmatpush2.bf16.msra.mxu0 0
    %7250 = vmatprep.subr.bf16.mxu0 0
    %7251 = vmatpush2.bf16.msra.mxu0 0
    %7252 = vmatprep.subr.bf16.mxu0 0
    %7253 = vmatpush2.bf16.msra.mxu0 0
    %7254 = vmatprep.subr.bf16.mxu0 0
    %7255 = vmatpush2.bf16.msra.mxu0 0
    %7256 = vmatprep.subr.bf16.mxu0 0
    %7257 = vmatpush2.bf16.msra.mxu0 0
    %7258 = vmatprep.subr.bf16.mxu0 0
    %7259 = vmatpush2.bf16.msra.mxu0 0
    %7260 = vmatprep.mubr.bf16.mxu0 0
    %7261 = vmatmul.mubr.bf16.gmra.mxu0 %v7226
    %v7262 = vpop.f32.mrf.mxu0
    %v7263 = vadd.f32 0.0, %v7262
    %v7264 = vpop.f32.mrf.mxu0
    %v7265 = vpop.f32.mrf.mxu0
    %v7266 = vadd.f32 0.0, %v7265
    %v7267 = vpop.f32.mrf.mxu0
    %7268 = vdwg.mxu0
    %v7269 = vpack.c.bf16 %v7266, %v7263
    %s7270 = scalar_lea.vmem %s8, 192
    %v7271 = vld [vmem:[%s7270] sm:$0xf]
    %v7272 = vld [vmem:[%s7270 + $0x4] sm:$0xf]
    %v7273 = vld [vmem:[%s7270 + $0x8] sm:$0xf]
    %v7274 = vld [vmem:[%s7270 + $0xc] sm:$0xf]
    %v7275 = vld [vmem:[%s7270 + $0x10] sm:$0xf]
    %v7276 = vld [vmem:[%s7270 + $0x14] sm:$0xf]
    %v7277 = vld [vmem:[%s7270 + $0x18] sm:$0xf]
    %v7278 = vld [vmem:[%s7270 + $0x1c] sm:$0xf]
    %v7279 = vld [vmem:[%s7270 + $0x20] sm:$0xf]
    %v7280 = vld [vmem:[%s7270 + $0x24] sm:$0xf]
    %v7281 = vld [vmem:[%s7270 + $0x28] sm:$0xf]
    %v7282 = vld [vmem:[%s7270 + $0x2c] sm:$0xf]
    %v7283 = vld [vmem:[%s7270 + $0x30] sm:$0xf]
    %v7284 = vld [vmem:[%s7270 + $0x34] sm:$0xf]
    %v7285 = vld [vmem:[%s7270 + $0x38] sm:$0xf]
    %v7286 = vld [vmem:[%s7270 + $0x3c] sm:$0xf]
    %v7303 = vunpack.c.l.b16 %v7271
    %v7304 = vunpack.c.l.b16 %v7272
    %v7305 = vunpack.c.l.b16 %v7273
    %v7306 = vunpack.c.l.b16 %v7274
    %v7307 = vunpack.c.l.b16 %v7275
    %v7308 = vunpack.c.l.b16 %v7276
    %v7309 = vunpack.c.l.b16 %v7277
    %v7310 = vunpack.c.l.b16 %v7278
    %v7311 = vunpack.c.l.b16 %v7279
    %v7312 = vunpack.c.l.b16 %v7280
    %v7313 = vunpack.c.l.b16 %v7281
    %v7314 = vunpack.c.l.b16 %v7282
    %v7315 = vunpack.c.l.b16 %v7283
    %v7316 = vunpack.c.l.b16 %v7284
    %v7317 = vunpack.c.l.b16 %v7285
    %v7318 = vunpack.c.l.b16 %v7286
    %v7319 = vpack.c.b16 %v7304, %v7303
    %v7320 = vpack.c.b16 %v7306, %v7305
    %v7321 = vpack.c.b16 %v7308, %v7307
    %v7322 = vpack.c.b16 %v7310, %v7309
    %v7323 = vpack.c.b16 %v7312, %v7311
    %v7324 = vpack.c.b16 %v7314, %v7313
    %v7325 = vpack.c.b16 %v7316, %v7315
    %v7326 = vpack.c.b16 %v7318, %v7317
    %7335 = vmatprep.subr.bf16.mxu0 0
    %7336 = vmatpush1.bf16.msra.mxu0 %v7326
    %7337 = vmatprep.subr.bf16.mxu0 0
    %7338 = vmatpush1.bf16.msra.mxu0 %v7325
    %7339 = vmatprep.subr.bf16.mxu0 0
    %7340 = vmatpush1.bf16.msra.mxu0 %v7324
    %7341 = vmatprep.subr.bf16.mxu0 0
    %7342 = vmatpush1.bf16.msra.mxu0 %v7323
    %7343 = vmatprep.subr.bf16.mxu0 0
    %7344 = vmatpush1.bf16.msra.mxu0 %v7322
    %7345 = vmatprep.subr.bf16.mxu0 0
    %7346 = vmatpush1.bf16.msra.mxu0 %v7321
    %7347 = vmatprep.subr.bf16.mxu0 0
    %7348 = vmatpush1.bf16.msra.mxu0 %v7320
    %7349 = vmatprep.subr.bf16.mxu0 0
    %7350 = vmatpush1.bf16.msra.mxu0 %v7319
    %7351 = vmatprep.subr.bf16.mxu0 0
    %7352 = vmatpush2.bf16.msra.mxu0 0
    %7353 = vmatprep.subr.bf16.mxu0 0
    %7354 = vmatpush2.bf16.msra.mxu0 0
    %7355 = vmatprep.subr.bf16.mxu0 0
    %7356 = vmatpush2.bf16.msra.mxu0 0
    %7357 = vmatprep.subr.bf16.mxu0 0
    %7358 = vmatpush2.bf16.msra.mxu0 0
    %7359 = vmatprep.subr.bf16.mxu0 0
    %7360 = vmatpush2.bf16.msra.mxu0 0
    %7361 = vmatprep.subr.bf16.mxu0 0
    %7362 = vmatpush2.bf16.msra.mxu0 0
    %7363 = vmatprep.subr.bf16.mxu0 0
    %7364 = vmatpush2.bf16.msra.mxu0 0
    %7365 = vmatprep.subr.bf16.mxu0 0
    %7366 = vmatpush2.bf16.msra.mxu0 0
    %7367 = vmatprep.mubr.bf16.mxu0 0
    %7368 = vmatmul.mubr.bf16.gmra.mxu0 %v7269
    %v7369 = vpop.f32.mrf.mxu0
    %v7370 = vadd.f32 0.0, %v7369
    %v7371 = vpop.f32.mrf.mxu0
    %v7372 = vpop.f32.mrf.mxu0
    %v7373 = vadd.f32 0.0, %v7372
    %v7374 = vpop.f32.mrf.mxu0
    %7375 = vdwg.mxu0
    %v7376 = vadd.f32 %v7215, %v7370
    %v7377 = vadd.f32 %v7216, %v7373
    %s7378 = scalar_lea.vmem %s7, 32
    %v7379 = vld [vmem:[%s7378] sm:$0xf]
    %v7380 = vld [vmem:[%s7378 + $0x4] sm:$0xf]
    %v7383 = vunpack.c.l.b16 %v7379
    %v7384 = vunpack.c.l.b16 %v7380
    %v7385 = vpack.c.b16 %v7384, %v7383
    %v7387 = vsel %vm6746, %v7385, 0
    %7389 = vmatprep.subr.bf16.mxu0 0
    %7390 = vmatpush1.bf16.msra.mxu0 0
    %7391 = vmatprep.subr.bf16.mxu0 0
    %7392 = vmatpush1.bf16.msra.mxu0 0
    %7393 = vmatprep.subr.bf16.mxu0 0
    %7394 = vmatpush1.bf16.msra.mxu0 0
    %7395 = vmatprep.subr.bf16.mxu0 0
    %7396 = vmatpush1.bf16.msra.mxu0 0
    %7397 = vmatprep.subr.bf16.mxu0 0
    %7398 = vmatpush1.bf16.msra.mxu0 0
    %7399 = vmatprep.subr.bf16.mxu0 0
    %7400 = vmatpush1.bf16.msra.mxu0 0
    %7401 = vmatprep.subr.bf16.mxu0 0
    %7402 = vmatpush1.bf16.msra.mxu0 %v6738
    %7403 = vmatprep.subr.bf16.mxu0 0
    %7404 = vmatpush1.bf16.msra.mxu0 %v6737
    %7405 = vmatprep.subr.bf16.mxu0 0
    %7406 = vmatpush2.bf16.msra.mxu0 0
    %7407 = vmatprep.subr.bf16.mxu0 0
    %7408 = vmatpush2.bf16.msra.mxu0 0
    %7409 = vmatprep.subr.bf16.mxu0 0
    %7410 = vmatpush2.bf16.msra.mxu0 0
    %7411 = vmatprep.subr.bf16.mxu0 0
    %7412 = vmatpush2.bf16.msra.mxu0 0
    %7413 = vmatprep.subr.bf16.mxu0 0
    %7414 = vmatpush2.bf16.msra.mxu0 0
    %7415 = vmatprep.subr.bf16.mxu0 0
    %7416 = vmatpush2.bf16.msra.mxu0 0
    %7417 = vmatprep.subr.bf16.mxu0 0
    %7418 = vmatpush2.bf16.msra.mxu0 0
    %7419 = vmatprep.subr.bf16.mxu0 0
    %7420 = vmatpush2.bf16.msra.mxu0 0
    %7421 = vmatprep.mubr.bf16.mxu0 0
    %7422 = vmatmul.mubr.bf16.gmra.mxu0 %v7387
    %v7423 = vpop.f32.mrf.mxu0
    %v7424 = vadd.f32 0.0, %v7423
    %v7425 = vpop.f32.mrf.mxu0
    %v7426 = vpop.f32.mrf.mxu0
    %v7427 = vadd.f32 0.0, %v7426
    %v7428 = vpop.f32.mrf.mxu0
    %7429 = vdwg.mxu0
    %v7430 = vpack.c.bf16 %v7427, %v7424
    %s7431 = scalar_lea.vmem %s8, 256
    %v7432 = vld [vmem:[%s7431] sm:$0xf]
    %v7433 = vld [vmem:[%s7431 + $0x4] sm:$0xf]
    %v7434 = vld [vmem:[%s7431 + $0x8] sm:$0xf]
    %v7435 = vld [vmem:[%s7431 + $0xc] sm:$0xf]
    %v7436 = vld [vmem:[%s7431 + $0x10] sm:$0xf]
    %v7437 = vld [vmem:[%s7431 + $0x14] sm:$0xf]
    %v7438 = vld [vmem:[%s7431 + $0x18] sm:$0xf]
    %v7439 = vld [vmem:[%s7431 + $0x1c] sm:$0xf]
    %v7440 = vld [vmem:[%s7431 + $0x20] sm:$0xf]
    %v7441 = vld [vmem:[%s7431 + $0x24] sm:$0xf]
    %v7442 = vld [vmem:[%s7431 + $0x28] sm:$0xf]
    %v7443 = vld [vmem:[%s7431 + $0x2c] sm:$0xf]
    %v7444 = vld [vmem:[%s7431 + $0x30] sm:$0xf]
    %v7445 = vld [vmem:[%s7431 + $0x34] sm:$0xf]
    %v7446 = vld [vmem:[%s7431 + $0x38] sm:$0xf]
    %v7447 = vld [vmem:[%s7431 + $0x3c] sm:$0xf]
    %v7464 = vunpack.c.l.b16 %v7432
    %v7465 = vunpack.c.l.b16 %v7433
    %v7466 = vunpack.c.l.b16 %v7434
    %v7467 = vunpack.c.l.b16 %v7435
    %v7468 = vunpack.c.l.b16 %v7436
    %v7469 = vunpack.c.l.b16 %v7437
    %v7470 = vunpack.c.l.b16 %v7438
    %v7471 = vunpack.c.l.b16 %v7439
    %v7472 = vunpack.c.l.b16 %v7440
    %v7473 = vunpack.c.l.b16 %v7441
    %v7474 = vunpack.c.l.b16 %v7442
    %v7475 = vunpack.c.l.b16 %v7443
    %v7476 = vunpack.c.l.b16 %v7444
    %v7477 = vunpack.c.l.b16 %v7445
    %v7478 = vunpack.c.l.b16 %v7446
    %v7479 = vunpack.c.l.b16 %v7447
    %v7480 = vpack.c.b16 %v7465, %v7464
    %v7481 = vpack.c.b16 %v7467, %v7466
    %v7482 = vpack.c.b16 %v7469, %v7468
    %v7483 = vpack.c.b16 %v7471, %v7470
    %v7484 = vpack.c.b16 %v7473, %v7472
    %v7485 = vpack.c.b16 %v7475, %v7474
    %v7486 = vpack.c.b16 %v7477, %v7476
    %v7487 = vpack.c.b16 %v7479, %v7478
    %7496 = vmatprep.subr.bf16.mxu0 0
    %7497 = vmatpush1.bf16.msra.mxu0 %v7487
    %7498 = vmatprep.subr.bf16.mxu0 0
    %7499 = vmatpush1.bf16.msra.mxu0 %v7486
    %7500 = vmatprep.subr.bf16.mxu0 0
    %7501 = vmatpush1.bf16.msra.mxu0 %v7485
    %7502 = vmatprep.subr.bf16.mxu0 0
    %7503 = vmatpush1.bf16.msra.mxu0 %v7484
    %7504 = vmatprep.subr.bf16.mxu0 0
    %7505 = vmatpush1.bf16.msra.mxu0 %v7483
    %7506 = vmatprep.subr.bf16.mxu0 0
    %7507 = vmatpush1.bf16.msra.mxu0 %v7482
    %7508 = vmatprep.subr.bf16.mxu0 0
    %7509 = vmatpush1.bf16.msra.mxu0 %v7481
    %7510 = vmatprep.subr.bf16.mxu0 0
    %7511 = vmatpush1.bf16.msra.mxu0 %v7480
    %7512 = vmatprep.subr.bf16.mxu0 0
    %7513 = vmatpush2.bf16.msra.mxu0 0
    %7514 = vmatprep.subr.bf16.mxu0 0
    %7515 = vmatpush2.bf16.msra.mxu0 0
    %7516 = vmatprep.subr.bf16.mxu0 0
    %7517 = vmatpush2.bf16.msra.mxu0 0
    %7518 = vmatprep.subr.bf16.mxu0 0
    %7519 = vmatpush2.bf16.msra.mxu0 0
    %7520 = vmatprep.subr.bf16.mxu0 0
    %7521 = vmatpush2.bf16.msra.mxu0 0
    %7522 = vmatprep.subr.bf16.mxu0 0
    %7523 = vmatpush2.bf16.msra.mxu0 0
    %7524 = vmatprep.subr.bf16.mxu0 0
    %7525 = vmatpush2.bf16.msra.mxu0 0
    %7526 = vmatprep.subr.bf16.mxu0 0
    %7527 = vmatpush2.bf16.msra.mxu0 0
    %7528 = vmatprep.mubr.bf16.mxu0 0
    %7529 = vmatmul.mubr.bf16.gmra.mxu0 %v7430
    %v7530 = vpop.f32.mrf.mxu0
    %v7531 = vadd.f32 0.0, %v7530
    %v7532 = vpop.f32.mrf.mxu0
    %v7533 = vpop.f32.mrf.mxu0
    %v7534 = vadd.f32 0.0, %v7533
    %v7535 = vpop.f32.mrf.mxu0
    %7536 = vdwg.mxu0
    %v7537 = vadd.f32 %v7376, %v7531
    %v7538 = vadd.f32 %v7377, %v7534
    %s7539 = scalar_lea.vmem %s7, 40
    %v7540 = vld [vmem:[%s7539] sm:$0xf]
    %v7541 = vld [vmem:[%s7539 + $0x4] sm:$0xf]
    %v7544 = vunpack.c.l.b16 %v7540
    %v7545 = vunpack.c.l.b16 %v7541
    %v7546 = vpack.c.b16 %v7545, %v7544
    %v7548 = vsel %vm6746, %v7546, 0
    %7550 = vmatprep.subr.bf16.mxu0 0
    %7551 = vmatpush1.bf16.msra.mxu0 0
    %7552 = vmatprep.subr.bf16.mxu0 0
    %7553 = vmatpush1.bf16.msra.mxu0 0
    %7554 = vmatprep.subr.bf16.mxu0 0
    %7555 = vmatpush1.bf16.msra.mxu0 0
    %7556 = vmatprep.subr.bf16.mxu0 0
    %7557 = vmatpush1.bf16.msra.mxu0 0
    %7558 = vmatprep.subr.bf16.mxu0 0
    %7559 = vmatpush1.bf16.msra.mxu0 0
    %7560 = vmatprep.subr.bf16.mxu0 0
    %7561 = vmatpush1.bf16.msra.mxu0 0
    %7562 = vmatprep.subr.bf16.mxu0 0
    %7563 = vmatpush1.bf16.msra.mxu0 %v6738
    %7564 = vmatprep.subr.bf16.mxu0 0
    %7565 = vmatpush1.bf16.msra.mxu0 %v6737
    %7566 = vmatprep.subr.bf16.mxu0 0
    %7567 = vmatpush2.bf16.msra.mxu0 0
    %7568 = vmatprep.subr.bf16.mxu0 0
    %7569 = vmatpush2.bf16.msra.mxu0 0
    %7570 = vmatprep.subr.bf16.mxu0 0
    %7571 = vmatpush2.bf16.msra.mxu0 0
    %7572 = vmatprep.subr.bf16.mxu0 0
    %7573 = vmatpush2.bf16.msra.mxu0 0
    %7574 = vmatprep.subr.bf16.mxu0 0
    %7575 = vmatpush2.bf16.msra.mxu0 0
    %7576 = vmatprep.subr.bf16.mxu0 0
    %7577 = vmatpush2.bf16.msra.mxu0 0
    %7578 = vmatprep.subr.bf16.mxu0 0
    %7579 = vmatpush2.bf16.msra.mxu0 0
    %7580 = vmatprep.subr.bf16.mxu0 0
    %7581 = vmatpush2.bf16.msra.mxu0 0
    %7582 = vmatprep.mubr.bf16.mxu0 0
    %7583 = vmatmul.mubr.bf16.gmra.mxu0 %v7548
    %v7584 = vpop.f32.mrf.mxu0
    %v7585 = vadd.f32 0.0, %v7584
    %v7586 = vpop.f32.mrf.mxu0
    %v7587 = vpop.f32.mrf.mxu0
    %v7588 = vadd.f32 0.0, %v7587
    %v7589 = vpop.f32.mrf.mxu0
    %7590 = vdwg.mxu0
    %v7591 = vpack.c.bf16 %v7588, %v7585
    %s7592 = scalar_lea.vmem %s8, 320
    %v7593 = vld [vmem:[%s7592] sm:$0xf]
    %v7594 = vld [vmem:[%s7592 + $0x4] sm:$0xf]
    %v7595 = vld [vmem:[%s7592 + $0x8] sm:$0xf]
    %v7596 = vld [vmem:[%s7592 + $0xc] sm:$0xf]
    %v7597 = vld [vmem:[%s7592 + $0x10] sm:$0xf]
    %v7598 = vld [vmem:[%s7592 + $0x14] sm:$0xf]
    %v7599 = vld [vmem:[%s7592 + $0x18] sm:$0xf]
    %v7600 = vld [vmem:[%s7592 + $0x1c] sm:$0xf]
    %v7601 = vld [vmem:[%s7592 + $0x20] sm:$0xf]
    %v7602 = vld [vmem:[%s7592 + $0x24] sm:$0xf]
    %v7603 = vld [vmem:[%s7592 + $0x28] sm:$0xf]
    %v7604 = vld [vmem:[%s7592 + $0x2c] sm:$0xf]
    %v7605 = vld [vmem:[%s7592 + $0x30] sm:$0xf]
    %v7606 = vld [vmem:[%s7592 + $0x34] sm:$0xf]
    %v7607 = vld [vmem:[%s7592 + $0x38] sm:$0xf]
    %v7608 = vld [vmem:[%s7592 + $0x3c] sm:$0xf]
    %v7625 = vunpack.c.l.b16 %v7593
    %v7626 = vunpack.c.l.b16 %v7594
    %v7627 = vunpack.c.l.b16 %v7595
    %v7628 = vunpack.c.l.b16 %v7596
    %v7629 = vunpack.c.l.b16 %v7597
    %v7630 = vunpack.c.l.b16 %v7598
    %v7631 = vunpack.c.l.b16 %v7599
    %v7632 = vunpack.c.l.b16 %v7600
    %v7633 = vunpack.c.l.b16 %v7601
    %v7634 = vunpack.c.l.b16 %v7602
    %v7635 = vunpack.c.l.b16 %v7603
    %v7636 = vunpack.c.l.b16 %v7604
    %v7637 = vunpack.c.l.b16 %v7605
    %v7638 = vunpack.c.l.b16 %v7606
    %v7639 = vunpack.c.l.b16 %v7607
    %v7640 = vunpack.c.l.b16 %v7608
    %v7641 = vpack.c.b16 %v7626, %v7625
    %v7642 = vpack.c.b16 %v7628, %v7627
    %v7643 = vpack.c.b16 %v7630, %v7629
    %v7644 = vpack.c.b16 %v7632, %v7631
    %v7645 = vpack.c.b16 %v7634, %v7633
    %v7646 = vpack.c.b16 %v7636, %v7635
    %v7647 = vpack.c.b16 %v7638, %v7637
    %v7648 = vpack.c.b16 %v7640, %v7639
    %7657 = vmatprep.subr.bf16.mxu0 0
    %7658 = vmatpush1.bf16.msra.mxu0 %v7648
    %7659 = vmatprep.subr.bf16.mxu0 0
    %7660 = vmatpush1.bf16.msra.mxu0 %v7647
    %7661 = vmatprep.subr.bf16.mxu0 0
    %7662 = vmatpush1.bf16.msra.mxu0 %v7646
    %7663 = vmatprep.subr.bf16.mxu0 0
    %7664 = vmatpush1.bf16.msra.mxu0 %v7645
    %7665 = vmatprep.subr.bf16.mxu0 0
    %7666 = vmatpush1.bf16.msra.mxu0 %v7644
    %7667 = vmatprep.subr.bf16.mxu0 0
    %7668 = vmatpush1.bf16.msra.mxu0 %v7643
    %7669 = vmatprep.subr.bf16.mxu0 0
    %7670 = vmatpush1.bf16.msra.mxu0 %v7642
    %7671 = vmatprep.subr.bf16.mxu0 0
    %7672 = vmatpush1.bf16.msra.mxu0 %v7641
    %7673 = vmatprep.subr.bf16.mxu0 0
    %7674 = vmatpush2.bf16.msra.mxu0 0
    %7675 = vmatprep.subr.bf16.mxu0 0
    %7676 = vmatpush2.bf16.msra.mxu0 0
    %7677 = vmatprep.subr.bf16.mxu0 0
    %7678 = vmatpush2.bf16.msra.mxu0 0
    %7679 = vmatprep.subr.bf16.mxu0 0
    %7680 = vmatpush2.bf16.msra.mxu0 0
    %7681 = vmatprep.subr.bf16.mxu0 0
    %7682 = vmatpush2.bf16.msra.mxu0 0
    %7683 = vmatprep.subr.bf16.mxu0 0
    %7684 = vmatpush2.bf16.msra.mxu0 0
    %7685 = vmatprep.subr.bf16.mxu0 0
    %7686 = vmatpush2.bf16.msra.mxu0 0
    %7687 = vmatprep.subr.bf16.mxu0 0
    %7688 = vmatpush2.bf16.msra.mxu0 0
    %7689 = vmatprep.mubr.bf16.mxu0 0
    %7690 = vmatmul.mubr.bf16.gmra.mxu0 %v7591
    %v7691 = vpop.f32.mrf.mxu0
    %v7692 = vadd.f32 0.0, %v7691
    %v7693 = vpop.f32.mrf.mxu0
    %v7694 = vpop.f32.mrf.mxu0
    %v7695 = vadd.f32 0.0, %v7694
    %v7696 = vpop.f32.mrf.mxu0
    %7697 = vdwg.mxu0
    %v7698 = vadd.f32 %v7537, %v7692
    %v7699 = vadd.f32 %v7538, %v7695
    %s7700 = scalar_lea.vmem %s7, 48
    %v7701 = vld [vmem:[%s7700] sm:$0xf]
    %v7702 = vld [vmem:[%s7700 + $0x4] sm:$0xf]
    %v7705 = vunpack.c.l.b16 %v7701
    %v7706 = vunpack.c.l.b16 %v7702
    %v7707 = vpack.c.b16 %v7706, %v7705
    %v7709 = vsel %vm6746, %v7707, 0
    %7711 = vmatprep.subr.bf16.mxu0 0
    %7712 = vmatpush1.bf16.msra.mxu0 0
    %7713 = vmatprep.subr.bf16.mxu0 0
    %7714 = vmatpush1.bf16.msra.mxu0 0
    %7715 = vmatprep.subr.bf16.mxu0 0
    %7716 = vmatpush1.bf16.msra.mxu0 0
    %7717 = vmatprep.subr.bf16.mxu0 0
    %7718 = vmatpush1.bf16.msra.mxu0 0
    %7719 = vmatprep.subr.bf16.mxu0 0
    %7720 = vmatpush1.bf16.msra.mxu0 0
    %7721 = vmatprep.subr.bf16.mxu0 0
    %7722 = vmatpush1.bf16.msra.mxu0 0
    %7723 = vmatprep.subr.bf16.mxu0 0
    %7724 = vmatpush1.bf16.msra.mxu0 %v6738
    %7725 = vmatprep.subr.bf16.mxu0 0
    %7726 = vmatpush1.bf16.msra.mxu0 %v6737
    %7727 = vmatprep.subr.bf16.mxu0 0
    %7728 = vmatpush2.bf16.msra.mxu0 0
    %7729 = vmatprep.subr.bf16.mxu0 0
    %7730 = vmatpush2.bf16.msra.mxu0 0
    %7731 = vmatprep.subr.bf16.mxu0 0
    %7732 = vmatpush2.bf16.msra.mxu0 0
    %7733 = vmatprep.subr.bf16.mxu0 0
    %7734 = vmatpush2.bf16.msra.mxu0 0
    %7735 = vmatprep.subr.bf16.mxu0 0
    %7736 = vmatpush2.bf16.msra.mxu0 0
    %7737 = vmatprep.subr.bf16.mxu0 0
    %7738 = vmatpush2.bf16.msra.mxu0 0
    %7739 = vmatprep.subr.bf16.mxu0 0
    %7740 = vmatpush2.bf16.msra.mxu0 0
    %7741 = vmatprep.subr.bf16.mxu0 0
    %7742 = vmatpush2.bf16.msra.mxu0 0
    %7743 = vmatprep.mubr.bf16.mxu0 0
    %7744 = vmatmul.mubr.bf16.gmra.mxu0 %v7709
    %v7745 = vpop.f32.mrf.mxu0
    %v7746 = vadd.f32 0.0, %v7745
    %v7747 = vpop.f32.mrf.mxu0
    %v7748 = vpop.f32.mrf.mxu0
    %v7749 = vadd.f32 0.0, %v7748
    %v7750 = vpop.f32.mrf.mxu0
    %7751 = vdwg.mxu0
    %v7752 = vpack.c.bf16 %v7749, %v7746
    %s7753 = scalar_lea.vmem %s8, 384
    %v7754 = vld [vmem:[%s7753] sm:$0xf]
    %v7755 = vld [vmem:[%s7753 + $0x4] sm:$0xf]
    %v7756 = vld [vmem:[%s7753 + $0x8] sm:$0xf]
    %v7757 = vld [vmem:[%s7753 + $0xc] sm:$0xf]
    %v7758 = vld [vmem:[%s7753 + $0x10] sm:$0xf]
    %v7759 = vld [vmem:[%s7753 + $0x14] sm:$0xf]
    %v7760 = vld [vmem:[%s7753 + $0x18] sm:$0xf]
    %v7761 = vld [vmem:[%s7753 + $0x1c] sm:$0xf]
    %v7762 = vld [vmem:[%s7753 + $0x20] sm:$0xf]
    %v7763 = vld [vmem:[%s7753 + $0x24] sm:$0xf]
    %v7764 = vld [vmem:[%s7753 + $0x28] sm:$0xf]
    %v7765 = vld [vmem:[%s7753 + $0x2c] sm:$0xf]
    %v7766 = vld [vmem:[%s7753 + $0x30] sm:$0xf]
    %v7767 = vld [vmem:[%s7753 + $0x34] sm:$0xf]
    %v7768 = vld [vmem:[%s7753 + $0x38] sm:$0xf]
    %v7769 = vld [vmem:[%s7753 + $0x3c] sm:$0xf]
    %v7786 = vunpack.c.l.b16 %v7754
    %v7787 = vunpack.c.l.b16 %v7755
    %v7788 = vunpack.c.l.b16 %v7756
    %v7789 = vunpack.c.l.b16 %v7757
    %v7790 = vunpack.c.l.b16 %v7758
    %v7791 = vunpack.c.l.b16 %v7759
    %v7792 = vunpack.c.l.b16 %v7760
    %v7793 = vunpack.c.l.b16 %v7761
    %v7794 = vunpack.c.l.b16 %v7762
    %v7795 = vunpack.c.l.b16 %v7763
    %v7796 = vunpack.c.l.b16 %v7764
    %v7797 = vunpack.c.l.b16 %v7765
    %v7798 = vunpack.c.l.b16 %v7766
    %v7799 = vunpack.c.l.b16 %v7767
    %v7800 = vunpack.c.l.b16 %v7768
    %v7801 = vunpack.c.l.b16 %v7769
    %v7802 = vpack.c.b16 %v7787, %v7786
    %v7803 = vpack.c.b16 %v7789, %v7788
    %v7804 = vpack.c.b16 %v7791, %v7790
    %v7805 = vpack.c.b16 %v7793, %v7792
    %v7806 = vpack.c.b16 %v7795, %v7794
    %v7807 = vpack.c.b16 %v7797, %v7796
    %v7808 = vpack.c.b16 %v7799, %v7798
    %v7809 = vpack.c.b16 %v7801, %v7800
    %7818 = vmatprep.subr.bf16.mxu0 0
    %7819 = vmatpush1.bf16.msra.mxu0 %v7809
    %7820 = vmatprep.subr.bf16.mxu0 0
    %7821 = vmatpush1.bf16.msra.mxu0 %v7808
    %7822 = vmatprep.subr.bf16.mxu0 0
    %7823 = vmatpush1.bf16.msra.mxu0 %v7807
    %7824 = vmatprep.subr.bf16.mxu0 0
    %7825 = vmatpush1.bf16.msra.mxu0 %v7806
    %7826 = vmatprep.subr.bf16.mxu0 0
    %7827 = vmatpush1.bf16.msra.mxu0 %v7805
    %7828 = vmatprep.subr.bf16.mxu0 0
    %7829 = vmatpush1.bf16.msra.mxu0 %v7804
    %7830 = vmatprep.subr.bf16.mxu0 0
    %7831 = vmatpush1.bf16.msra.mxu0 %v7803
    %7832 = vmatprep.subr.bf16.mxu0 0
    %7833 = vmatpush1.bf16.msra.mxu0 %v7802
    %7834 = vmatprep.subr.bf16.mxu0 0
    %7835 = vmatpush2.bf16.msra.mxu0 0
    %7836 = vmatprep.subr.bf16.mxu0 0
    %7837 = vmatpush2.bf16.msra.mxu0 0
    %7838 = vmatprep.subr.bf16.mxu0 0
    %7839 = vmatpush2.bf16.msra.mxu0 0
    %7840 = vmatprep.subr.bf16.mxu0 0
    %7841 = vmatpush2.bf16.msra.mxu0 0
    %7842 = vmatprep.subr.bf16.mxu0 0
    %7843 = vmatpush2.bf16.msra.mxu0 0
    %7844 = vmatprep.subr.bf16.mxu0 0
    %7845 = vmatpush2.bf16.msra.mxu0 0
    %7846 = vmatprep.subr.bf16.mxu0 0
    %7847 = vmatpush2.bf16.msra.mxu0 0
    %7848 = vmatprep.subr.bf16.mxu0 0
    %7849 = vmatpush2.bf16.msra.mxu0 0
    %7850 = vmatprep.mubr.bf16.mxu0 0
    %7851 = vmatmul.mubr.bf16.gmra.mxu0 %v7752
    %v7852 = vpop.f32.mrf.mxu0
    %v7853 = vadd.f32 0.0, %v7852
    %v7854 = vpop.f32.mrf.mxu0
    %v7855 = vpop.f32.mrf.mxu0
    %v7856 = vadd.f32 0.0, %v7855
    %v7857 = vpop.f32.mrf.mxu0
    %7858 = vdwg.mxu0
    %v7859 = vadd.f32 %v7698, %v7853
    %v7860 = vadd.f32 %v7699, %v7856
    %s7861 = scalar_lea.vmem %s7, 56
    %v7862 = vld [vmem:[%s7861] sm:$0xf]
    %v7863 = vld [vmem:[%s7861 + $0x4] sm:$0xf]
    %v7866 = vunpack.c.l.b16 %v7862
    %v7867 = vunpack.c.l.b16 %v7863
    %v7868 = vpack.c.b16 %v7867, %v7866
    %v7870 = vsel %vm6746, %v7868, 0
    %7872 = vmatprep.subr.bf16.mxu0 0
    %7873 = vmatpush1.bf16.msra.mxu0 0
    %7874 = vmatprep.subr.bf16.mxu0 0
    %7875 = vmatpush1.bf16.msra.mxu0 0
    %7876 = vmatprep.subr.bf16.mxu0 0
    %7877 = vmatpush1.bf16.msra.mxu0 0
    %7878 = vmatprep.subr.bf16.mxu0 0
    %7879 = vmatpush1.bf16.msra.mxu0 0
    %7880 = vmatprep.subr.bf16.mxu0 0
    %7881 = vmatpush1.bf16.msra.mxu0 0
    %7882 = vmatprep.subr.bf16.mxu0 0
    %7883 = vmatpush1.bf16.msra.mxu0 0
    %7884 = vmatprep.subr.bf16.mxu0 0
    %7885 = vmatpush1.bf16.msra.mxu0 %v6738
    %7886 = vmatprep.subr.bf16.mxu0 0
    %7887 = vmatpush1.bf16.msra.mxu0 %v6737
    %7888 = vmatprep.subr.bf16.mxu0 0
    %7889 = vmatpush2.bf16.msra.mxu0 0
    %7890 = vmatprep.subr.bf16.mxu0 0
    %7891 = vmatpush2.bf16.msra.mxu0 0
    %7892 = vmatprep.subr.bf16.mxu0 0
    %7893 = vmatpush2.bf16.msra.mxu0 0
    %7894 = vmatprep.subr.bf16.mxu0 0
    %7895 = vmatpush2.bf16.msra.mxu0 0
    %7896 = vmatprep.subr.bf16.mxu0 0
    %7897 = vmatpush2.bf16.msra.mxu0 0
    %7898 = vmatprep.subr.bf16.mxu0 0
    %7899 = vmatpush2.bf16.msra.mxu0 0
    %7900 = vmatprep.subr.bf16.mxu0 0
    %7901 = vmatpush2.bf16.msra.mxu0 0
    %7902 = vmatprep.subr.bf16.mxu0 0
    %7903 = vmatpush2.bf16.msra.mxu0 0
    %7904 = vmatprep.mubr.bf16.mxu0 0
    %7905 = vmatmul.mubr.bf16.gmra.mxu0 %v7870
    %v7906 = vpop.f32.mrf.mxu0
    %v7907 = vadd.f32 0.0, %v7906
    %v7908 = vpop.f32.mrf.mxu0
    %v7909 = vpop.f32.mrf.mxu0
    %v7910 = vadd.f32 0.0, %v7909
    %v7911 = vpop.f32.mrf.mxu0
    %7912 = vdwg.mxu0
    %v7913 = vpack.c.bf16 %v7910, %v7907
    %s7914 = scalar_lea.vmem %s8, 448
    %v7915 = vld [vmem:[%s7914] sm:$0xf]
    %v7916 = vld [vmem:[%s7914 + $0x4] sm:$0xf]
    %v7917 = vld [vmem:[%s7914 + $0x8] sm:$0xf]
    %v7918 = vld [vmem:[%s7914 + $0xc] sm:$0xf]
    %v7919 = vld [vmem:[%s7914 + $0x10] sm:$0xf]
    %v7920 = vld [vmem:[%s7914 + $0x14] sm:$0xf]
    %v7921 = vld [vmem:[%s7914 + $0x18] sm:$0xf]
    %v7922 = vld [vmem:[%s7914 + $0x1c] sm:$0xf]
    %v7923 = vld [vmem:[%s7914 + $0x20] sm:$0xf]
    %v7924 = vld [vmem:[%s7914 + $0x24] sm:$0xf]
    %v7925 = vld [vmem:[%s7914 + $0x28] sm:$0xf]
    %v7926 = vld [vmem:[%s7914 + $0x2c] sm:$0xf]
    %v7927 = vld [vmem:[%s7914 + $0x30] sm:$0xf]
    %v7928 = vld [vmem:[%s7914 + $0x34] sm:$0xf]
    %v7929 = vld [vmem:[%s7914 + $0x38] sm:$0xf]
    %v7930 = vld [vmem:[%s7914 + $0x3c] sm:$0xf]
    %v7947 = vunpack.c.l.b16 %v7915
    %v7948 = vunpack.c.l.b16 %v7916
    %v7949 = vunpack.c.l.b16 %v7917
    %v7950 = vunpack.c.l.b16 %v7918
    %v7951 = vunpack.c.l.b16 %v7919
    %v7952 = vunpack.c.l.b16 %v7920
    %v7953 = vunpack.c.l.b16 %v7921
    %v7954 = vunpack.c.l.b16 %v7922
    %v7955 = vunpack.c.l.b16 %v7923
    %v7956 = vunpack.c.l.b16 %v7924
    %v7957 = vunpack.c.l.b16 %v7925
    %v7958 = vunpack.c.l.b16 %v7926
    %v7959 = vunpack.c.l.b16 %v7927
    %v7960 = vunpack.c.l.b16 %v7928
    %v7961 = vunpack.c.l.b16 %v7929
    %v7962 = vunpack.c.l.b16 %v7930
    %v7963 = vpack.c.b16 %v7948, %v7947
    %v7964 = vpack.c.b16 %v7950, %v7949
    %v7965 = vpack.c.b16 %v7952, %v7951
    %v7966 = vpack.c.b16 %v7954, %v7953
    %v7967 = vpack.c.b16 %v7956, %v7955
    %v7968 = vpack.c.b16 %v7958, %v7957
    %v7969 = vpack.c.b16 %v7960, %v7959
    %v7970 = vpack.c.b16 %v7962, %v7961
    %7979 = vmatprep.subr.bf16.mxu0 0
    %7980 = vmatpush1.bf16.msra.mxu0 %v7970
    %7981 = vmatprep.subr.bf16.mxu0 0
    %7982 = vmatpush1.bf16.msra.mxu0 %v7969
    %7983 = vmatprep.subr.bf16.mxu0 0
    %7984 = vmatpush1.bf16.msra.mxu0 %v7968
    %7985 = vmatprep.subr.bf16.mxu0 0
    %7986 = vmatpush1.bf16.msra.mxu0 %v7967
    %7987 = vmatprep.subr.bf16.mxu0 0
    %7988 = vmatpush1.bf16.msra.mxu0 %v7966
    %7989 = vmatprep.subr.bf16.mxu0 0
    %7990 = vmatpush1.bf16.msra.mxu0 %v7965
    %7991 = vmatprep.subr.bf16.mxu0 0
    %7992 = vmatpush1.bf16.msra.mxu0 %v7964
    %7993 = vmatprep.subr.bf16.mxu0 0
    %7994 = vmatpush1.bf16.msra.mxu0 %v7963
    %7995 = vmatprep.subr.bf16.mxu0 0
    %7996 = vmatpush2.bf16.msra.mxu0 0
    %7997 = vmatprep.subr.bf16.mxu0 0
    %7998 = vmatpush2.bf16.msra.mxu0 0
    %7999 = vmatprep.subr.bf16.mxu0 0
    %8000 = vmatpush2.bf16.msra.mxu0 0
    %8001 = vmatprep.subr.bf16.mxu0 0
    %8002 = vmatpush2.bf16.msra.mxu0 0
    %8003 = vmatprep.subr.bf16.mxu0 0
    %8004 = vmatpush2.bf16.msra.mxu0 0
    %8005 = vmatprep.subr.bf16.mxu0 0
    %8006 = vmatpush2.bf16.msra.mxu0 0
    %8007 = vmatprep.subr.bf16.mxu0 0
    %8008 = vmatpush2.bf16.msra.mxu0 0
    %8009 = vmatprep.subr.bf16.mxu0 0
    %8010 = vmatpush2.bf16.msra.mxu0 0
    %8011 = vmatprep.mubr.bf16.mxu0 0
    %8012 = vmatmul.mubr.bf16.gmra.mxu0 %v7913
    %v8013 = vpop.f32.mrf.mxu0
    %v8014 = vadd.f32 0.0, %v8013
    %v8015 = vpop.f32.mrf.mxu0
    %v8016 = vpop.f32.mrf.mxu0
    %v8017 = vadd.f32 0.0, %v8016
    %v8018 = vpop.f32.mrf.mxu0
    %8019 = vdwg.mxu0
    %v8020 = vadd.f32 %v7859, %v8014
    %v8021 = vadd.f32 %v7860, %v8017
    %s8022 = scalar_lea.vmem %s7, 64
    %v8023 = vld [vmem:[%s8022] sm:$0xf]
    %v8024 = vld [vmem:[%s8022 + $0x4] sm:$0xf]
    %v8027 = vunpack.c.l.b16 %v8023
    %v8028 = vunpack.c.l.b16 %v8024
    %v8029 = vpack.c.b16 %v8028, %v8027
    %v8031 = vsel %vm6746, %v8029, 0
    %8033 = vmatprep.subr.bf16.mxu0 0
    %8034 = vmatpush1.bf16.msra.mxu0 0
    %8035 = vmatprep.subr.bf16.mxu0 0
    %8036 = vmatpush1.bf16.msra.mxu0 0
    %8037 = vmatprep.subr.bf16.mxu0 0
    %8038 = vmatpush1.bf16.msra.mxu0 0
    %8039 = vmatprep.subr.bf16.mxu0 0
    %8040 = vmatpush1.bf16.msra.mxu0 0
    %8041 = vmatprep.subr.bf16.mxu0 0
    %8042 = vmatpush1.bf16.msra.mxu0 0
    %8043 = vmatprep.subr.bf16.mxu0 0
    %8044 = vmatpush1.bf16.msra.mxu0 0
    %8045 = vmatprep.subr.bf16.mxu0 0
    %8046 = vmatpush1.bf16.msra.mxu0 %v6738
    %8047 = vmatprep.subr.bf16.mxu0 0
    %8048 = vmatpush1.bf16.msra.mxu0 %v6737
    %8049 = vmatprep.subr.bf16.mxu0 0
    %8050 = vmatpush2.bf16.msra.mxu0 0
    %8051 = vmatprep.subr.bf16.mxu0 0
    %8052 = vmatpush2.bf16.msra.mxu0 0
    %8053 = vmatprep.subr.bf16.mxu0 0
    %8054 = vmatpush2.bf16.msra.mxu0 0
    %8055 = vmatprep.subr.bf16.mxu0 0
    %8056 = vmatpush2.bf16.msra.mxu0 0
    %8057 = vmatprep.subr.bf16.mxu0 0
    %8058 = vmatpush2.bf16.msra.mxu0 0
    %8059 = vmatprep.subr.bf16.mxu0 0
    %8060 = vmatpush2.bf16.msra.mxu0 0
    %8061 = vmatprep.subr.bf16.mxu0 0
    %8062 = vmatpush2.bf16.msra.mxu0 0
    %8063 = vmatprep.subr.bf16.mxu0 0
    %8064 = vmatpush2.bf16.msra.mxu0 0
    %8065 = vmatprep.mubr.bf16.mxu0 0
    %8066 = vmatmul.mubr.bf16.gmra.mxu0 %v8031
    %v8067 = vpop.f32.mrf.mxu0
    %v8068 = vadd.f32 0.0, %v8067
    %v8069 = vpop.f32.mrf.mxu0
    %v8070 = vpop.f32.mrf.mxu0
    %v8071 = vadd.f32 0.0, %v8070
    %v8072 = vpop.f32.mrf.mxu0
    %8073 = vdwg.mxu0
    %v8074 = vpack.c.bf16 %v8071, %v8068
    %s8075 = scalar_lea.vmem %s8, 512
    %v8076 = vld [vmem:[%s8075] sm:$0xf]
    %v8077 = vld [vmem:[%s8075 + $0x4] sm:$0xf]
    %v8078 = vld [vmem:[%s8075 + $0x8] sm:$0xf]
    %v8079 = vld [vmem:[%s8075 + $0xc] sm:$0xf]
    %v8080 = vld [vmem:[%s8075 + $0x10] sm:$0xf]
    %v8081 = vld [vmem:[%s8075 + $0x14] sm:$0xf]
    %v8082 = vld [vmem:[%s8075 + $0x18] sm:$0xf]
    %v8083 = vld [vmem:[%s8075 + $0x1c] sm:$0xf]
    %v8084 = vld [vmem:[%s8075 + $0x20] sm:$0xf]
    %v8085 = vld [vmem:[%s8075 + $0x24] sm:$0xf]
    %v8086 = vld [vmem:[%s8075 + $0x28] sm:$0xf]
    %v8087 = vld [vmem:[%s8075 + $0x2c] sm:$0xf]
    %v8088 = vld [vmem:[%s8075 + $0x30] sm:$0xf]
    %v8089 = vld [vmem:[%s8075 + $0x34] sm:$0xf]
    %v8090 = vld [vmem:[%s8075 + $0x38] sm:$0xf]
    %v8091 = vld [vmem:[%s8075 + $0x3c] sm:$0xf]
    %v8108 = vunpack.c.l.b16 %v8076
    %v8109 = vunpack.c.l.b16 %v8077
    %v8110 = vunpack.c.l.b16 %v8078
    %v8111 = vunpack.c.l.b16 %v8079
    %v8112 = vunpack.c.l.b16 %v8080
    %v8113 = vunpack.c.l.b16 %v8081
    %v8114 = vunpack.c.l.b16 %v8082
    %v8115 = vunpack.c.l.b16 %v8083
    %v8116 = vunpack.c.l.b16 %v8084
    %v8117 = vunpack.c.l.b16 %v8085
    %v8118 = vunpack.c.l.b16 %v8086
    %v8119 = vunpack.c.l.b16 %v8087
    %v8120 = vunpack.c.l.b16 %v8088
    %v8121 = vunpack.c.l.b16 %v8089
    %v8122 = vunpack.c.l.b16 %v8090
    %v8123 = vunpack.c.l.b16 %v8091
    %v8124 = vpack.c.b16 %v8109, %v8108
    %v8125 = vpack.c.b16 %v8111, %v8110
    %v8126 = vpack.c.b16 %v8113, %v8112
    %v8127 = vpack.c.b16 %v8115, %v8114
    %v8128 = vpack.c.b16 %v8117, %v8116
    %v8129 = vpack.c.b16 %v8119, %v8118
    %v8130 = vpack.c.b16 %v8121, %v8120
    %v8131 = vpack.c.b16 %v8123, %v8122
    %8140 = vmatprep.subr.bf16.mxu0 0
    %8141 = vmatpush1.bf16.msra.mxu0 %v8131
    %8142 = vmatprep.subr.bf16.mxu0 0
    %8143 = vmatpush1.bf16.msra.mxu0 %v8130
    %8144 = vmatprep.subr.bf16.mxu0 0
    %8145 = vmatpush1.bf16.msra.mxu0 %v8129
    %8146 = vmatprep.subr.bf16.mxu0 0
    %8147 = vmatpush1.bf16.msra.mxu0 %v8128
    %8148 = vmatprep.subr.bf16.mxu0 0
    %8149 = vmatpush1.bf16.msra.mxu0 %v8127
    %8150 = vmatprep.subr.bf16.mxu0 0
    %8151 = vmatpush1.bf16.msra.mxu0 %v8126
    %8152 = vmatprep.subr.bf16.mxu0 0
    %8153 = vmatpush1.bf16.msra.mxu0 %v8125
    %8154 = vmatprep.subr.bf16.mxu0 0
    %8155 = vmatpush1.bf16.msra.mxu0 %v8124
    %8156 = vmatprep.subr.bf16.mxu0 0
    %8157 = vmatpush2.bf16.msra.mxu0 0
    %8158 = vmatprep.subr.bf16.mxu0 0
    %8159 = vmatpush2.bf16.msra.mxu0 0
    %8160 = vmatprep.subr.bf16.mxu0 0
    %8161 = vmatpush2.bf16.msra.mxu0 0
    %8162 = vmatprep.subr.bf16.mxu0 0
    %8163 = vmatpush2.bf16.msra.mxu0 0
    %8164 = vmatprep.subr.bf16.mxu0 0
    %8165 = vmatpush2.bf16.msra.mxu0 0
    %8166 = vmatprep.subr.bf16.mxu0 0
    %8167 = vmatpush2.bf16.msra.mxu0 0
    %8168 = vmatprep.subr.bf16.mxu0 0
    %8169 = vmatpush2.bf16.msra.mxu0 0
    %8170 = vmatprep.subr.bf16.mxu0 0
    %8171 = vmatpush2.bf16.msra.mxu0 0
    %8172 = vmatprep.mubr.bf16.mxu0 0
    %8173 = vmatmul.mubr.bf16.gmra.mxu0 %v8074
    %v8174 = vpop.f32.mrf.mxu0
    %v8175 = vadd.f32 0.0, %v8174
    %v8176 = vpop.f32.mrf.mxu0
    %v8177 = vpop.f32.mrf.mxu0
    %v8178 = vadd.f32 0.0, %v8177
    %v8179 = vpop.f32.mrf.mxu0
    %8180 = vdwg.mxu0
    %v8181 = vadd.f32 %v8020, %v8175
    %v8182 = vadd.f32 %v8021, %v8178
    %v8183 = vld [vmem:[%s9] sm:$0x1]
    %v8185 = vlaneseq
    %v8186 = vshrl.u32 %v8185, 7
    %v8187 = vsub.s32 0, %v8186
    %v8188 = vrot.slane %v8183, %v8187
    %v8190 = vadd.f32 %v8181, %v8188
    %v8191 = vadd.f32 %v8182, %v8188
    %v8192 = vmax.f32 %v8190, 0.0
    %v8193 = vmax.f32 %v8191, 0.0
    %v8194 = vpack.c.bf16 %v8193, %v8192
    %v8195 = vld [vmem:[%s10] sm:$0xff]
    %v8196 = vld [vmem:[%s10 + $0x8] sm:$0xff]
    %v8197 = vld [vmem:[%s10 + $0x10] sm:$0xff]
    %v8198 = vld [vmem:[%s10 + $0x18] sm:$0xff]
    %v8199 = vld [vmem:[%s10 + $0x20] sm:$0xff]
    %v8200 = vld [vmem:[%s10 + $0x28] sm:$0xff]
    %v8201 = vld [vmem:[%s10 + $0x30] sm:$0xff]
    %v8202 = vld [vmem:[%s10 + $0x38] sm:$0xff]
    %v8203 = vld [vmem:[%s10 + $0x40] sm:$0xff]
    %v8204 = vld [vmem:[%s10 + $0x48] sm:$0xff]
    %v8205 = vld [vmem:[%s10 + $0x50] sm:$0xff]
    %v8206 = vld [vmem:[%s10 + $0x58] sm:$0xff]
    %v8207 = vld [vmem:[%s10 + $0x60] sm:$0xff]
    %v8208 = vld [vmem:[%s10 + $0x68] sm:$0xff]
    %v8209 = vld [vmem:[%s10 + $0x70] sm:$0xff]
    %v8210 = vld [vmem:[%s10 + $0x78] sm:$0xff]
    %v8211 = vld [vmem:[%s10 + $0x80] sm:$0xff]
    %v8212 = vld [vmem:[%s10 + $0x88] sm:$0xff]
    %v8213 = vld [vmem:[%s10 + $0x90] sm:$0xff]
    %v8214 = vld [vmem:[%s10 + $0x98] sm:$0xff]
    %v8215 = vld [vmem:[%s10 + $0xa0] sm:$0xff]
    %v8216 = vld [vmem:[%s10 + $0xa8] sm:$0xff]
    %v8217 = vld [vmem:[%s10 + $0xb0] sm:$0xff]
    %v8218 = vld [vmem:[%s10 + $0xb8] sm:$0xff]
    %v8219 = vld [vmem:[%s10 + $0xc0] sm:$0xff]
    %v8220 = vld [vmem:[%s10 + $0xc8] sm:$0xff]
    %v8221 = vld [vmem:[%s10 + $0xd0] sm:$0xff]
    %v8222 = vld [vmem:[%s10 + $0xd8] sm:$0xff]
    %v8223 = vld [vmem:[%s10 + $0xe0] sm:$0xff]
    %v8224 = vld [vmem:[%s10 + $0xe8] sm:$0xff]
    %v8225 = vld [vmem:[%s10 + $0xf0] sm:$0xff]
    %v8226 = vld [vmem:[%s10 + $0xf8] sm:$0xff]
    %v8227 = vld [vmem:[%s11] sm:$0xf]
    %v8229 = vlaneseq
    %v8230 = vshrl.u32 %v8229, 7
    %v8231 = vsub.s32 0, %v8230
    %v8232 = vrot.slane %v8227, %v8231
    %v8233 = vlaneseq
    %v8234 = vshrl.u32 %v8233, 7
    %v8235 = vsub.s32 1, %v8234
    %v8236 = vrot.slane %v8227, %v8235
    %v8237 = vlaneseq
    %v8238 = vshrl.u32 %v8237, 7
    %v8239 = vsub.s32 2, %v8238
    %v8240 = vrot.slane %v8227, %v8239
    %v8241 = vlaneseq
    %v8242 = vshrl.u32 %v8241, 7
    %v8243 = vsub.s32 3, %v8242
    %v8244 = vrot.slane %v8227, %v8243
    %v8281 = vunpack.c.l.b16 %v8195
    %v8282 = vunpack.c.h.b16 %v8195
    %v8283 = vunpack.c.l.b16 %v8196
    %v8284 = vunpack.c.h.b16 %v8196
    %v8285 = vunpack.c.l.b16 %v8197
    %v8286 = vunpack.c.h.b16 %v8197
    %v8287 = vunpack.c.l.b16 %v8198
    %v8288 = vunpack.c.h.b16 %v8198
    %v8289 = vunpack.c.l.b16 %v8199
    %v8290 = vunpack.c.h.b16 %v8199
    %v8291 = vunpack.c.l.b16 %v8200
    %v8292 = vunpack.c.h.b16 %v8200
    %v8293 = vunpack.c.l.b16 %v8201
    %v8294 = vunpack.c.h.b16 %v8201
    %v8295 = vunpack.c.l.b16 %v8202
    %v8296 = vunpack.c.h.b16 %v8202
    %v8297 = vunpack.c.l.b16 %v8203
    %v8298 = vunpack.c.h.b16 %v8203
    %v8299 = vunpack.c.l.b16 %v8204
    %v8300 = vunpack.c.h.b16 %v8204
    %v8301 = vunpack.c.l.b16 %v8205
    %v8302 = vunpack.c.h.b16 %v8205
    %v8303 = vunpack.c.l.b16 %v8206
    %v8304 = vunpack.c.h.b16 %v8206
    %v8305 = vunpack.c.l.b16 %v8207
    %v8306 = vunpack.c.h.b16 %v8207
    %v8307 = vunpack.c.l.b16 %v8208
    %v8308 = vunpack.c.h.b16 %v8208
    %v8309 = vunpack.c.l.b16 %v8209
    %v8310 = vunpack.c.h.b16 %v8209
    %v8311 = vunpack.c.l.b16 %v8210
    %v8312 = vunpack.c.h.b16 %v8210
    %v8313 = vunpack.c.l.b16 %v8211
    %v8314 = vunpack.c.h.b16 %v8211
    %v8315 = vunpack.c.l.b16 %v8212
    %v8316 = vunpack.c.h.b16 %v8212
    %v8317 = vunpack.c.l.b16 %v8213
    %v8318 = vunpack.c.h.b16 %v8213
    %v8319 = vunpack.c.l.b16 %v8214
    %v8320 = vunpack.c.h.b16 %v8214
    %v8321 = vunpack.c.l.b16 %v8215
    %v8322 = vunpack.c.h.b16 %v8215
    %v8323 = vunpack.c.l.b16 %v8216
    %v8324 = vunpack.c.h.b16 %v8216
    %v8325 = vunpack.c.l.b16 %v8217
    %v8326 = vunpack.c.h.b16 %v8217
    %v8327 = vunpack.c.l.b16 %v8218
    %v8328 = vunpack.c.h.b16 %v8218
    %v8329 = vunpack.c.l.b16 %v8219
    %v8330 = vunpack.c.h.b16 %v8219
    %v8331 = vunpack.c.l.b16 %v8220
    %v8332 = vunpack.c.h.b16 %v8220
    %v8333 = vunpack.c.l.b16 %v8221
    %v8334 = vunpack.c.h.b16 %v8221
    %v8335 = vunpack.c.l.b16 %v8222
    %v8336 = vunpack.c.h.b16 %v8222
    %v8337 = vunpack.c.l.b16 %v8223
    %v8338 = vunpack.c.h.b16 %v8223
    %v8339 = vunpack.c.l.b16 %v8224
    %v8340 = vunpack.c.h.b16 %v8224
    %v8341 = vunpack.c.l.b16 %v8225
    %v8342 = vunpack.c.h.b16 %v8225
    %v8343 = vunpack.c.l.b16 %v8226
    %v8344 = vunpack.c.h.b16 %v8226
    %v8345 = vpack.c.b16 %v8285, %v8281
    %v8346 = vpack.c.b16 %v8286, %v8282
    %v8347 = vpack.c.b16 %v8287, %v8283
    %v8348 = vpack.c.b16 %v8288, %v8284
    %v8349 = vpack.c.b16 %v8293, %v8289
    %v8350 = vpack.c.b16 %v8294, %v8290
    %v8351 = vpack.c.b16 %v8295, %v8291
    %v8352 = vpack.c.b16 %v8296, %v8292
    %v8353 = vpack.c.b16 %v8301, %v8297
    %v8354 = vpack.c.b16 %v8302, %v8298
    %v8355 = vpack.c.b16 %v8303, %v8299
    %v8356 = vpack.c.b16 %v8304, %v8300
    %v8357 = vpack.c.b16 %v8309, %v8305
    %v8358 = vpack.c.b16 %v8310, %v8306
    %v8359 = vpack.c.b16 %v8311, %v8307
    %v8360 = vpack.c.b16 %v8312, %v8308
    %v8361 = vpack.c.b16 %v8317, %v8313
    %v8362 = vpack.c.b16 %v8318, %v8314
    %v8363 = vpack.c.b16 %v8319, %v8315
    %v8364 = vpack.c.b16 %v8320, %v8316
    %v8365 = vpack.c.b16 %v8325, %v8321
    %v8366 = vpack.c.b16 %v8326, %v8322
    %v8367 = vpack.c.b16 %v8327, %v8323
    %v8368 = vpack.c.b16 %v8328, %v8324
    %v8369 = vpack.c.b16 %v8333, %v8329
    %v8370 = vpack.c.b16 %v8334, %v8330
    %v8371 = vpack.c.b16 %v8335, %v8331
    %v8372 = vpack.c.b16 %v8336, %v8332
    %v8373 = vpack.c.b16 %v8341, %v8337
    %v8374 = vpack.c.b16 %v8342, %v8338
    %v8375 = vpack.c.b16 %v8343, %v8339
    %v8376 = vpack.c.b16 %v8344, %v8340
    %8409 = vmatprep.subr.bf16.mxu0 %v8374
    %8410 = vmatpush1.bf16.msra.mxu0 %v8373
    %8411 = vmatprep.subr.bf16.mxu0 %v8370
    %8412 = vmatpush1.bf16.msra.mxu0 %v8369
    %8413 = vmatprep.subr.bf16.mxu0 %v8366
    %8414 = vmatpush1.bf16.msra.mxu0 %v8365
    %8415 = vmatprep.subr.bf16.mxu0 %v8362
    %8416 = vmatpush1.bf16.msra.mxu0 %v8361
    %8417 = vmatprep.subr.bf16.mxu0 %v8358
    %8418 = vmatpush1.bf16.msra.mxu0 %v8357
    %8419 = vmatprep.subr.bf16.mxu0 %v8354
    %8420 = vmatpush1.bf16.msra.mxu0 %v8353
    %8421 = vmatprep.subr.bf16.mxu0 %v8350
    %8422 = vmatpush1.bf16.msra.mxu0 %v8349
    %8423 = vmatprep.subr.bf16.mxu0 %v8346
    %8424 = vmatpush1.bf16.msra.mxu0 %v8345
    %8425 = vmatprep.subr.bf16.mxu0 0
    %8426 = vmatpush2.bf16.msra.mxu0 0
    %8427 = vmatprep.subr.bf16.mxu0 0
    %8428 = vmatpush2.bf16.msra.mxu0 0
    %8429 = vmatprep.subr.bf16.mxu0 0
    %8430 = vmatpush2.bf16.msra.mxu0 0
    %8431 = vmatprep.subr.bf16.mxu0 0
    %8432 = vmatpush2.bf16.msra.mxu0 0
    %8433 = vmatprep.subr.bf16.mxu0 0
    %8434 = vmatpush2.bf16.msra.mxu0 0
    %8435 = vmatprep.subr.bf16.mxu0 0
    %8436 = vmatpush2.bf16.msra.mxu0 0
    %8437 = vmatprep.subr.bf16.mxu0 0
    %8438 = vmatpush2.bf16.msra.mxu0 0
    %8439 = vmatprep.subr.bf16.mxu0 0
    %8440 = vmatpush2.bf16.msra.mxu0 0
    %8441 = vmatprep.mubr.bf16.mxu0 0
    %8442 = vmatmul.mubr.bf16.gmra.mxu0 %v8194
    %v8443 = vpop.f32.mrf.mxu0
    %v8444 = vadd.f32 %v8232, %v8443
    %v8445 = vpop.f32.mrf.mxu0
    %v8446 = vadd.f32 %v8236, %v8445
    %v8447 = vpop.f32.mrf.mxu0
    %v8448 = vpop.f32.mrf.mxu0
    %8449 = vdwg.mxu0
    %8450 = vmatprep.subr.bf16.mxu0 %v8376
    %8451 = vmatpush1.bf16.msra.mxu0 %v8375
    %8452 = vmatprep.subr.bf16.mxu0 %v8372
    %8453 = vmatpush1.bf16.msra.mxu0 %v8371
    %8454 = vmatprep.subr.bf16.mxu0 %v8368
    %8455 = vmatpush1.bf16.msra.mxu0 %v8367
    %8456 = vmatprep.subr.bf16.mxu0 %v8364
    %8457 = vmatpush1.bf16.msra.mxu0 %v8363
    %8458 = vmatprep.subr.bf16.mxu0 %v8360
    %8459 = vmatpush1.bf16.msra.mxu0 %v8359
    %8460 = vmatprep.subr.bf16.mxu0 %v8356
    %8461 = vmatpush1.bf16.msra.mxu0 %v8355
    %8462 = vmatprep.subr.bf16.mxu0 %v8352
    %8463 = vmatpush1.bf16.msra.mxu0 %v8351
    %8464 = vmatprep.subr.bf16.mxu0 %v8348
    %8465 = vmatpush1.bf16.msra.mxu0 %v8347
    %8466 = vmatprep.subr.bf16.mxu0 0
    %8467 = vmatpush2.bf16.msra.mxu0 0
    %8468 = vmatprep.subr.bf16.mxu0 0
    %8469 = vmatpush2.bf16.msra.mxu0 0
    %8470 = vmatprep.subr.bf16.mxu0 0
    %8471 = vmatpush2.bf16.msra.mxu0 0
    %8472 = vmatprep.subr.bf16.mxu0 0
    %8473 = vmatpush2.bf16.msra.mxu0 0
    %8474 = vmatprep.subr.bf16.mxu0 0
    %8475 = vmatpush2.bf16.msra.mxu0 0
    %8476 = vmatprep.subr.bf16.mxu0 0
    %8477 = vmatpush2.bf16.msra.mxu0 0
    %8478 = vmatprep.subr.bf16.mxu0 0
    %8479 = vmatpush2.bf16.msra.mxu0 0
    %8480 = vmatprep.subr.bf16.mxu0 0
    %8481 = vmatpush2.bf16.msra.mxu0 0
    %8482 = vmatprep.mubr.bf16.mxu0 0
    %8483 = vmatmul.mubr.bf16.gmra.mxu0 %v8194
    %v8484 = vpop.f32.mrf.mxu0
    %v8485 = vadd.f32 %v8240, %v8484
    %v8486 = vpop.f32.mrf.mxu0
    %v8487 = vadd.f32 %v8244, %v8486
    %v8488 = vpop.f32.mrf.mxu0
    %v8489 = vpop.f32.mrf.mxu0
    %8490 = vdwg.mxu0
    %v8491 = vmax.f32 %v8444, 0.0
    %v8492 = vmax.f32 %v8446, 0.0
    %v8493 = vmax.f32 %v8485, 0.0
    %v8494 = vmax.f32 %v8487, 0.0
    %v8495 = vpack.c.bf16 %v8491, %v8491
    %v8496 = vpack.c.bf16 %v8492, %v8492
    %v8497 = vpack.c.bf16 %v8493, %v8493
    %v8498 = vpack.c.bf16 %v8494, %v8494
    %v8499 = vld [vmem:[%s12] sm:$0xf]
    %v8500 = vld [vmem:[%s12 + $0x4] sm:$0xf]
    %v8501 = vld [vmem:[%s12 + $0x8] sm:$0xf]
    %v8502 = vld [vmem:[%s12 + $0xc] sm:$0xf]
    %v8503 = vld [vmem:[%s12 + $0x10] sm:$0xf]
    %v8504 = vld [vmem:[%s12 + $0x14] sm:$0xf]
    %v8505 = vld [vmem:[%s12 + $0x18] sm:$0xf]
    %v8506 = vld [vmem:[%s12 + $0x1c] sm:$0xf]
    %v8507 = vld [vmem:[%s12 + $0x20] sm:$0xf]
    %v8508 = vld [vmem:[%s12 + $0x24] sm:$0xf]
    %v8509 = vld [vmem:[%s12 + $0x28] sm:$0xf]
    %v8510 = vld [vmem:[%s12 + $0x2c] sm:$0xf]
    %v8511 = vld [vmem:[%s12 + $0x30] sm:$0xf]
    %v8512 = vld [vmem:[%s12 + $0x34] sm:$0xf]
    %v8513 = vld [vmem:[%s12 + $0x38] sm:$0xf]
    %v8514 = vld [vmem:[%s12 + $0x3c] sm:$0xf]
    %v8515 = vld [vmem:[%s12 + $0x40] sm:$0xf]
    %v8516 = vld [vmem:[%s12 + $0x44] sm:$0xf]
    %v8517 = vld [vmem:[%s12 + $0x48] sm:$0xf]
    %v8518 = vld [vmem:[%s12 + $0x4c] sm:$0xf]
    %v8519 = vld [vmem:[%s12 + $0x50] sm:$0xf]
    %v8520 = vld [vmem:[%s12 + $0x54] sm:$0xf]
    %v8521 = vld [vmem:[%s12 + $0x58] sm:$0xf]
    %v8522 = vld [vmem:[%s12 + $0x5c] sm:$0xf]
    %v8523 = vld [vmem:[%s12 + $0x60] sm:$0xf]
    %v8524 = vld [vmem:[%s12 + $0x64] sm:$0xf]
    %v8525 = vld [vmem:[%s12 + $0x68] sm:$0xf]
    %v8526 = vld [vmem:[%s12 + $0x6c] sm:$0xf]
    %v8527 = vld [vmem:[%s12 + $0x70] sm:$0xf]
    %v8528 = vld [vmem:[%s12 + $0x74] sm:$0xf]
    %v8529 = vld [vmem:[%s12 + $0x78] sm:$0xf]
    %v8530 = vld [vmem:[%s12 + $0x7c] sm:$0xf]
    %v8531 = vld [vmem:[%s12 + $0x80] sm:$0xf]
    %v8532 = vld [vmem:[%s12 + $0x84] sm:$0xf]
    %v8533 = vld [vmem:[%s12 + $0x88] sm:$0xf]
    %v8534 = vld [vmem:[%s12 + $0x8c] sm:$0xf]
    %v8535 = vld [vmem:[%s12 + $0x90] sm:$0xf]
    %v8536 = vld [vmem:[%s12 + $0x94] sm:$0xf]
    %v8537 = vld [vmem:[%s12 + $0x98] sm:$0xf]
    %v8538 = vld [vmem:[%s12 + $0x9c] sm:$0xf]
    %v8539 = vld [vmem:[%s12 + $0xa0] sm:$0xf]
    %v8540 = vld [vmem:[%s12 + $0xa4] sm:$0xf]
    %v8541 = vld [vmem:[%s12 + $0xa8] sm:$0xf]
    %v8542 = vld [vmem:[%s12 + $0xac] sm:$0xf]
    %v8543 = vld [vmem:[%s12 + $0xb0] sm:$0xf]
    %v8544 = vld [vmem:[%s12 + $0xb4] sm:$0xf]
    %v8545 = vld [vmem:[%s12 + $0xb8] sm:$0xf]
    %v8546 = vld [vmem:[%s12 + $0xbc] sm:$0xf]
    %v8547 = vld [vmem:[%s12 + $0xc0] sm:$0xf]
    %v8548 = vld [vmem:[%s12 + $0xc4] sm:$0xf]
    %v8549 = vld [vmem:[%s12 + $0xc8] sm:$0xf]
    %v8550 = vld [vmem:[%s12 + $0xcc] sm:$0xf]
    %v8551 = vld [vmem:[%s12 + $0xd0] sm:$0xf]
    %v8552 = vld [vmem:[%s12 + $0xd4] sm:$0xf]
    %v8553 = vld [vmem:[%s12 + $0xd8] sm:$0xf]
    %v8554 = vld [vmem:[%s12 + $0xdc] sm:$0xf]
    %v8555 = vld [vmem:[%s12 + $0xe0] sm:$0xf]
    %v8556 = vld [vmem:[%s12 + $0xe4] sm:$0xf]
    %v8557 = vld [vmem:[%s12 + $0xe8] sm:$0xf]
    %v8558 = vld [vmem:[%s12 + $0xec] sm:$0xf]
    %v8559 = vld [vmem:[%s12 + $0xf0] sm:$0xf]
    %v8560 = vld [vmem:[%s12 + $0xf4] sm:$0xf]
    %v8561 = vld [vmem:[%s12 + $0xf8] sm:$0xf]
    %v8562 = vld [vmem:[%s12 + $0xfc] sm:$0xf]
    %v8563 = vld [vmem:[%s13] sm:$0x1]
    %v8565 = vlaneseq
    %v8566 = vshrl.u32 %v8565, 7
    %v8567 = vsub.s32 0, %v8566
    %v8568 = vrot.slane %v8563, %v8567
    %v8634 = vunpack.c.l.b16 %v8499
    %v8635 = vunpack.c.l.b16 %v8500
    %v8636 = vunpack.c.l.b16 %v8501
    %v8637 = vunpack.c.l.b16 %v8502
    %v8638 = vunpack.c.l.b16 %v8503
    %v8639 = vunpack.c.l.b16 %v8504
    %v8640 = vunpack.c.l.b16 %v8505
    %v8641 = vunpack.c.l.b16 %v8506
    %v8642 = vunpack.c.l.b16 %v8507
    %v8643 = vunpack.c.l.b16 %v8508
    %v8644 = vunpack.c.l.b16 %v8509
    %v8645 = vunpack.c.l.b16 %v8510
    %v8646 = vunpack.c.l.b16 %v8511
    %v8647 = vunpack.c.l.b16 %v8512
    %v8648 = vunpack.c.l.b16 %v8513
    %v8649 = vunpack.c.l.b16 %v8514
    %v8650 = vunpack.c.l.b16 %v8515
    %v8651 = vunpack.c.l.b16 %v8516
    %v8652 = vunpack.c.l.b16 %v8517
    %v8653 = vunpack.c.l.b16 %v8518
    %v8654 = vunpack.c.l.b16 %v8519
    %v8655 = vunpack.c.l.b16 %v8520
    %v8656 = vunpack.c.l.b16 %v8521
    %v8657 = vunpack.c.l.b16 %v8522
    %v8658 = vunpack.c.l.b16 %v8523
    %v8659 = vunpack.c.l.b16 %v8524
    %v8660 = vunpack.c.l.b16 %v8525
    %v8661 = vunpack.c.l.b16 %v8526
    %v8662 = vunpack.c.l.b16 %v8527
    %v8663 = vunpack.c.l.b16 %v8528
    %v8664 = vunpack.c.l.b16 %v8529
    %v8665 = vunpack.c.l.b16 %v8530
    %v8666 = vunpack.c.l.b16 %v8531
    %v8667 = vunpack.c.l.b16 %v8532
    %v8668 = vunpack.c.l.b16 %v8533
    %v8669 = vunpack.c.l.b16 %v8534
    %v8670 = vunpack.c.l.b16 %v8535
    %v8671 = vunpack.c.l.b16 %v8536
    %v8672 = vunpack.c.l.b16 %v8537
    %v8673 = vunpack.c.l.b16 %v8538
    %v8674 = vunpack.c.l.b16 %v8539
    %v8675 = vunpack.c.l.b16 %v8540
    %v8676 = vunpack.c.l.b16 %v8541
    %v8677 = vunpack.c.l.b16 %v8542
    %v8678 = vunpack.c.l.b16 %v8543
    %v8679 = vunpack.c.l.b16 %v8544
    %v8680 = vunpack.c.l.b16 %v8545
    %v8681 = vunpack.c.l.b16 %v8546
    %v8682 = vunpack.c.l.b16 %v8547
    %v8683 = vunpack.c.l.b16 %v8548
    %v8684 = vunpack.c.l.b16 %v8549
    %v8685 = vunpack.c.l.b16 %v8550
    %v8686 = vunpack.c.l.b16 %v8551
    %v8687 = vunpack.c.l.b16 %v8552
    %v8688 = vunpack.c.l.b16 %v8553
    %v8689 = vunpack.c.l.b16 %v8554
    %v8690 = vunpack.c.l.b16 %v8555
    %v8691 = vunpack.c.l.b16 %v8556
    %v8692 = vunpack.c.l.b16 %v8557
    %v8693 = vunpack.c.l.b16 %v8558
    %v8694 = vunpack.c.l.b16 %v8559
    %v8695 = vunpack.c.l.b16 %v8560
    %v8696 = vunpack.c.l.b16 %v8561
    %v8697 = vunpack.c.l.b16 %v8562
    %v8698 = vpack.c.b16 %v8635, %v8634
    %v8699 = vpack.c.b16 %v8637, %v8636
    %v8700 = vpack.c.b16 %v8639, %v8638
    %v8701 = vpack.c.b16 %v8641, %v8640
    %v8702 = vpack.c.b16 %v8643, %v8642
    %v8703 = vpack.c.b16 %v8645, %v8644
    %v8704 = vpack.c.b16 %v8647, %v8646
    %v8705 = vpack.c.b16 %v8649, %v8648
    %v8706 = vpack.c.b16 %v8651, %v8650
    %v8707 = vpack.c.b16 %v8653, %v8652
    %v8708 = vpack.c.b16 %v8655, %v8654
    %v8709 = vpack.c.b16 %v8657, %v8656
    %v8710 = vpack.c.b16 %v8659, %v8658
    %v8711 = vpack.c.b16 %v8661, %v8660
    %v8712 = vpack.c.b16 %v8663, %v8662
    %v8713 = vpack.c.b16 %v8665, %v8664
    %v8714 = vpack.c.b16 %v8667, %v8666
    %v8715 = vpack.c.b16 %v8669, %v8668
    %v8716 = vpack.c.b16 %v8671, %v8670
    %v8717 = vpack.c.b16 %v8673, %v8672
    %v8718 = vpack.c.b16 %v8675, %v8674
    %v8719 = vpack.c.b16 %v8677, %v8676
    %v8720 = vpack.c.b16 %v8679, %v8678
    %v8721 = vpack.c.b16 %v8681, %v8680
    %v8722 = vpack.c.b16 %v8683, %v8682
    %v8723 = vpack.c.b16 %v8685, %v8684
    %v8724 = vpack.c.b16 %v8687, %v8686
    %v8725 = vpack.c.b16 %v8689, %v8688
    %v8726 = vpack.c.b16 %v8691, %v8690
    %v8727 = vpack.c.b16 %v8693, %v8692
    %v8728 = vpack.c.b16 %v8695, %v8694
    %v8729 = vpack.c.b16 %v8697, %v8696
    %8762 = vmatprep.subr.bf16.mxu0 0
    %8763 = vmatpush1.bf16.msra.mxu0 %v8705
    %8764 = vmatprep.subr.bf16.mxu0 0
    %8765 = vmatpush1.bf16.msra.mxu0 %v8704
    %8766 = vmatprep.subr.bf16.mxu0 0
    %8767 = vmatpush1.bf16.msra.mxu0 %v8703
    %8768 = vmatprep.subr.bf16.mxu0 0
    %8769 = vmatpush1.bf16.msra.mxu0 %v8702
    %8770 = vmatprep.subr.bf16.mxu0 0
    %8771 = vmatpush1.bf16.msra.mxu0 %v8701
    %8772 = vmatprep.subr.bf16.mxu0 0
    %8773 = vmatpush1.bf16.msra.mxu0 %v8700
    %8774 = vmatprep.subr.bf16.mxu0 0
    %8775 = vmatpush1.bf16.msra.mxu0 %v8699
    %8776 = vmatprep.subr.bf16.mxu0 0
    %8777 = vmatpush1.bf16.msra.mxu0 %v8698
    %8778 = vmatprep.subr.bf16.mxu0 0
    %8779 = vmatpush2.bf16.msra.mxu0 %v8713
    %8780 = vmatprep.subr.bf16.mxu0 0
    %8781 = vmatpush2.bf16.msra.mxu0 %v8712
    %8782 = vmatprep.subr.bf16.mxu0 0
    %8783 = vmatpush2.bf16.msra.mxu0 %v8711
    %8784 = vmatprep.subr.bf16.mxu0 0
    %8785 = vmatpush2.bf16.msra.mxu0 %v8710
    %8786 = vmatprep.subr.bf16.mxu0 0
    %8787 = vmatpush2.bf16.msra.mxu0 %v8709
    %8788 = vmatprep.subr.bf16.mxu0 0
    %8789 = vmatpush2.bf16.msra.mxu0 %v8708
    %8790 = vmatprep.subr.bf16.mxu0 0
    %8791 = vmatpush2.bf16.msra.mxu0 %v8707
    %8792 = vmatprep.subr.bf16.mxu0 0
    %8793 = vmatpush2.bf16.msra.mxu0 %v8706
    %8794 = vmatprep.mubr.bf16.mxu0 %v8496
    %8795 = vmatmul.mubr.bf16.gmra.mxu0 %v8495
    %v8796 = vpop.f32.mrf.mxu0
    %v8797 = vadd.f32 %v8568, %v8796
    %v8798 = vpop.f32.mrf.mxu0
    %v8799 = vpop.f32.mrf.mxu0
    %v8800 = vpop.f32.mrf.mxu0
    %8801 = vdwg.mxu0
    %8802 = vmatprep.subr.bf16.mxu0 0
    %8803 = vmatpush1.bf16.msra.mxu0 %v8721
    %8804 = vmatprep.subr.bf16.mxu0 0
    %8805 = vmatpush1.bf16.msra.mxu0 %v8720
    %8806 = vmatprep.subr.bf16.mxu0 0
    %8807 = vmatpush1.bf16.msra.mxu0 %v8719
    %8808 = vmatprep.subr.bf16.mxu0 0
    %8809 = vmatpush1.bf16.msra.mxu0 %v8718
    %8810 = vmatprep.subr.bf16.mxu0 0
    %8811 = vmatpush1.bf16.msra.mxu0 %v8717
    %8812 = vmatprep.subr.bf16.mxu0 0
    %8813 = vmatpush1.bf16.msra.mxu0 %v8716
    %8814 = vmatprep.subr.bf16.mxu0 0
    %8815 = vmatpush1.bf16.msra.mxu0 %v8715
    %8816 = vmatprep.subr.bf16.mxu0 0
    %8817 = vmatpush1.bf16.msra.mxu0 %v8714
    %8818 = vmatprep.subr.bf16.mxu0 0
    %8819 = vmatpush2.bf16.msra.mxu0 %v8729
    %8820 = vmatprep.subr.bf16.mxu0 0
    %8821 = vmatpush2.bf16.msra.mxu0 %v8728
    %8822 = vmatprep.subr.bf16.mxu0 0
    %8823 = vmatpush2.bf16.msra.mxu0 %v8727
    %8824 = vmatprep.subr.bf16.mxu0 0
    %8825 = vmatpush2.bf16.msra.mxu0 %v8726
    %8826 = vmatprep.subr.bf16.mxu0 0
    %8827 = vmatpush2.bf16.msra.mxu0 %v8725
    %8828 = vmatprep.subr.bf16.mxu0 0
    %8829 = vmatpush2.bf16.msra.mxu0 %v8724
    %8830 = vmatprep.subr.bf16.mxu0 0
    %8831 = vmatpush2.bf16.msra.mxu0 %v8723
    %8832 = vmatprep.subr.bf16.mxu0 0
    %8833 = vmatpush2.bf16.msra.mxu0 %v8722
    %8834 = vmatprep.mubr.bf16.mxu0 %v8498
    %8835 = vmatmul.mubr.bf16.gmra.mxu0 %v8497
    %v8836 = vpop.f32.mrf.mxu0
    %v8837 = vadd.f32 %v8797, %v8836
    %v8838 = vpop.f32.mrf.mxu0
    %v8839 = vpop.f32.mrf.mxu0
    %v8840 = vpop.f32.mrf.mxu0
    %8841 = vdwg.mxu0
    %v8842 = vmax.f32 %v8837, 0.0
    %v8843 = vpack.c.bf16 %v8842, %v8842
    %v8844 = vld [vmem:[%s14] sm:$0xf]
    %v8845 = vld [vmem:[%s14 + $0x4] sm:$0xf]
    %v8846 = vld [vmem:[%s14 + $0x8] sm:$0xf]
    %v8847 = vld [vmem:[%s14 + $0xc] sm:$0xf]
    %v8848 = vld [vmem:[%s14 + $0x10] sm:$0xf]
    %v8849 = vld [vmem:[%s14 + $0x14] sm:$0xf]
    %v8850 = vld [vmem:[%s14 + $0x18] sm:$0xf]
    %v8851 = vld [vmem:[%s14 + $0x1c] sm:$0xf]
    %v8852 = vld [vmem:[%s14 + $0x20] sm:$0xf]
    %v8853 = vld [vmem:[%s14 + $0x24] sm:$0xf]
    %v8854 = vld [vmem:[%s14 + $0x28] sm:$0xf]
    %v8855 = vld [vmem:[%s14 + $0x2c] sm:$0xf]
    %v8856 = vld [vmem:[%s14 + $0x30] sm:$0xf]
    %v8857 = vld [vmem:[%s14 + $0x34] sm:$0xf]
    %v8858 = vld [vmem:[%s14 + $0x38] sm:$0xf]
    %v8859 = vld [vmem:[%s14 + $0x3c] sm:$0xf]
    %v8860 = vld [vmem:[%s15] sm:$0x1]
    %v8862 = vlaneseq
    %v8863 = vshrl.u32 %v8862, 7
    %v8864 = vsub.s32 0, %v8863
    %v8865 = vrot.slane %v8860, %v8864
    %v8883 = vunpack.c.l.b16 %v8844
    %v8884 = vunpack.c.l.b16 %v8845
    %v8885 = vunpack.c.l.b16 %v8846
    %v8886 = vunpack.c.l.b16 %v8847
    %v8887 = vunpack.c.l.b16 %v8848
    %v8888 = vunpack.c.l.b16 %v8849
    %v8889 = vunpack.c.l.b16 %v8850
    %v8890 = vunpack.c.l.b16 %v8851
    %v8891 = vunpack.c.l.b16 %v8852
    %v8892 = vunpack.c.l.b16 %v8853
    %v8893 = vunpack.c.l.b16 %v8854
    %v8894 = vunpack.c.l.b16 %v8855
    %v8895 = vunpack.c.l.b16 %v8856
    %v8896 = vunpack.c.l.b16 %v8857
    %v8897 = vunpack.c.l.b16 %v8858
    %v8898 = vunpack.c.l.b16 %v8859
    %v8899 = vpack.c.b16 %v8884, %v8883
    %v8900 = vpack.c.b16 %v8886, %v8885
    %v8901 = vpack.c.b16 %v8888, %v8887
    %v8902 = vpack.c.b16 %v8890, %v8889
    %v8903 = vpack.c.b16 %v8892, %v8891
    %v8904 = vpack.c.b16 %v8894, %v8893
    %v8905 = vpack.c.b16 %v8896, %v8895
    %v8906 = vpack.c.b16 %v8898, %v8897
    %8915 = vmatprep.subr.bf16.mxu0 0
    %8916 = vmatpush1.bf16.msra.mxu0 %v8906
    %8917 = vmatprep.subr.bf16.mxu0 0
    %8918 = vmatpush1.bf16.msra.mxu0 %v8905
    %8919 = vmatprep.subr.bf16.mxu0 0
    %8920 = vmatpush1.bf16.msra.mxu0 %v8904
    %8921 = vmatprep.subr.bf16.mxu0 0
    %8922 = vmatpush1.bf16.msra.mxu0 %v8903
    %8923 = vmatprep.subr.bf16.mxu0 0
    %8924 = vmatpush1.bf16.msra.mxu0 %v8902
    %8925 = vmatprep.subr.bf16.mxu0 0
    %8926 = vmatpush1.bf16.msra.mxu0 %v8901
    %8927 = vmatprep.subr.bf16.mxu0 0
    %8928 = vmatpush1.bf16.msra.mxu0 %v8900
    %8929 = vmatprep.subr.bf16.mxu0 0
    %8930 = vmatpush1.bf16.msra.mxu0 %v8899
    %8931 = vmatprep.subr.bf16.mxu0 0
    %8932 = vmatpush2.bf16.msra.mxu0 0
    %8933 = vmatprep.subr.bf16.mxu0 0
    %8934 = vmatpush2.bf16.msra.mxu0 0
    %8935 = vmatprep.subr.bf16.mxu0 0
    %8936 = vmatpush2.bf16.msra.mxu0 0
    %8937 = vmatprep.subr.bf16.mxu0 0
    %8938 = vmatpush2.bf16.msra.mxu0 0
    %8939 = vmatprep.subr.bf16.mxu0 0
    %8940 = vmatpush2.bf16.msra.mxu0 0
    %8941 = vmatprep.subr.bf16.mxu0 0
    %8942 = vmatpush2.bf16.msra.mxu0 0
    %8943 = vmatprep.subr.bf16.mxu0 0
    %8944 = vmatpush2.bf16.msra.mxu0 0
    %8945 = vmatprep.subr.bf16.mxu0 0
    %8946 = vmatpush2.bf16.msra.mxu0 0
    %8947 = vmatprep.mubr.bf16.mxu0 0
    %8948 = vmatmul.mubr.bf16.gmra.mxu0 %v8843
    %v8949 = vpop.f32.mrf.mxu0
    %v8950 = vadd.f32 %v8865, %v8949
    %v8951 = vpop.f32.mrf.mxu0
    %v8952 = vpop.f32.mrf.mxu0
    %v8953 = vpop.f32.mrf.mxu0
    %8954 = vdwg.mxu0
    %v8955 = vxor.u32 %v8950, 2147483648
    %v8956 = vmul.f32 %v8955, 1.442695
    %v8957 = vpow.pop %v8956
    %v8958 = vadd.f32 %v8957, 1.0
    %v8959 = vrcp.pop %v8958
    %v8960 = vmul.f32 1.0, %v8959
    %8961 = vst [vmem:[#allocation2] sm:$0x3] %v8960
    // Predicated region
    $region66: #{cnn4_fc3_forward.3} parent=1 // pred_check
      _
    $region67: #{cnn4_fc3_forward.3} parent=1 // pred_check_branch
      %8963 = sbr.rel (0) target = $region69
    $region68: #{cnn4_fc3_forward.3} parent=1 // pred_region
      %s8965 = ssub.s32 32, 32
      %8966 = vsyncadd [#allocation3], %s8965
      %s8968 = sshll.u32 [#allocation2], 4
      %s8969 = int_to_ptr.vmem [resolvable:$true] %s8968
      %8971 = dma.vmem_to_hbm [thread:$0]  %s8969, 32, %s16, [#allocation3]
    $region69: #{cnn4_fc3_forward.3} parent=1 // pred_fallthru
      _
    // Predicated region
    $region70: #{cnn4_fc3_forward.3} parent=1 // pred_check
      _
    $region71: #{cnn4_fc3_forward.3} parent=1 // pred_check_branch
      %8973 = sbr.rel (0) target = $region73
    $region72: #{cnn4_fc3_forward.3} parent=1 // pred_region
      %8974 = dma.done [#allocation3], 32
    $region73: #{cnn4_fc3_forward.3} parent=1 // pred_fallthru
      _
    %8975 = vsyncpa [#allocation3], 1

</llo_original>
